<compile_context>
chip_gen: v7x
topology: tpu7x:2x2x1
jax: 0.10.0
libtpu: 0.0.40
codegen_flags: <defaults>
</compile_context>

<pallas_src>
import functools

import jax
import jax.numpy as jnp
import numpy as np
from jax.experimental import pallas as pl
from jax.experimental.pallas import tpu as pltpu

LN_EPS = 1e-5
LANE = 128


def _round_up(v, m):
    return ((v + m - 1) // m) * m


# --------------------------------------------------------------------------
# Pallas kernel: one full DilatedBlock (conv1+LN+FiLM+ReLU -> conv2+LN+FiLM+
# ReLU -> + identity), one grid step per batch sample.
# --------------------------------------------------------------------------
def make_block_kernel(*, H, W, Wp, d, hidden, upsample):
    HWp = H * Wp                                  # flattened output rows
    inv_n = 1.0 / float(H * W * hidden)           # true LN element count
    tap_offsets = [kh * d * Wp + kw * d for kh in range(3) for kw in range(3)]
    center_off = d * Wp + d

    def kernel(*refs):
        if upsample:
            (xp_ref, mask_ref, w1_ref, b1_ref, w2_ref, b2_ref,
             s_ref, bb_ref, wup_ref, bup_ref, out_ref, h1f_ref) = refs
        else:
            (xp_ref, mask_ref, w1_ref, b1_ref, w2_ref, b2_ref,
             s_ref, bb_ref, out_ref, h1f_ref) = refs

        mask = mask_ref[...]                      # (HWp, 1) f32 in {0, 1}
        s = s_ref[0]                              # (1, CP)  FiLM scale
        bb = bb_ref[0]                            # (1, CP)  FiLM bias

        def gather_taps_in(ref):                  # ref block (1, Nrows, C)
            taps = [ref[0, pl.ds(off, HWp), :].astype(jnp.bfloat16)
                    for off in tap_offsets]
            return jnp.concatenate(taps, axis=-1)         # (HWp, 9*C) bf16

        def gather_taps_scratch(ref):             # ref (Nrows, C)
            taps = [ref[pl.ds(off, HWp), :].astype(jnp.bfloat16)
                    for off in tap_offsets]
            return jnp.concatenate(taps, axis=-1)

        def ln_film_relu(acc):
            # one-pass stats over the true (masked) elements only
            acc_m = acc * mask
            mu = jnp.sum(acc_m) * inv_n
            var = jnp.sum(acc_m * acc_m) * inv_n - mu * mu
            y = (acc - mu) * jax.lax.rsqrt(var + LN_EPS)
            return jnp.maximum(y * s + bb, 0.0)

        # ---- stage 1: dilated 3x3 conv as a single folded MXU matmul -------
        cols1 = gather_taps_in(xp_ref)                               # bf16
        acc1 = jnp.dot(cols1, w1_ref[...],
                       preferred_element_type=jnp.float32) + b1_ref[...]
        y1 = ln_film_relu(acc1)

        # ---- identity path (center tap slice == the original, unpadded x) --
        center = xp_ref[0, pl.ds(center_off, HWp), :]                # f32
        if upsample:
            ident = jnp.dot(center.astype(jnp.bfloat16), wup_ref[...],
                            preferred_element_type=jnp.float32) + bup_ref[...]
        else:
            ident = center

        # ---- stage-1 result into zero-padded VMEM scratch (no HBM trip) ----
        h1f_ref[...] = jnp.zeros_like(h1f_ref)
        h1f_ref[pl.ds(center_off, HWp), :] = y1 * mask

        # ---- stage 2: conv2 from VMEM scratch, + residual -------------------
        cols2 = gather_taps_scratch(h1f_ref)
        acc2 = jnp.dot(cols2, w2_ref[...],
                       preferred_element_type=jnp.float32) + b2_ref[...]
        y2 = ln_film_relu(acc2)
        out_ref[0] = (y2 + ident).astype(out_ref.dtype)

    return kernel


def dilated_block_call(x, s, bb, w1p, b1p, w2p, b2p, wupp, bupp, d, hidden):
    """x: (B, H, W, Cin_p) channel-padded f32.  Returns (B, H, W, CP) f32."""
    B, H, W, cin_p = x.shape
    cp = w1p.shape[-1]
    Wp = W + 2 * d
    HWp = H * Wp
    # one extra zero row at the bottom keeps every tap slice in bounds
    n_rows = (H + 2 * d + 1) * Wp
    xp = jnp.pad(x, ((0, 0), (d, d + 1), (d, d), (0, 0)))
    xp = xp.reshape(B, n_rows, cin_p)
    # rows whose width coordinate >= W are junk (width padding) -> masked
    mask = jnp.asarray((np.arange(HWp) % Wp) < W, jnp.float32).reshape(HWp, 1)
    upsample = wupp is not None

    kernel = make_block_kernel(H=H, W=W, Wp=Wp, d=d, hidden=hidden,
                               upsample=upsample)

    in_specs = [
        pl.BlockSpec((1, n_rows, cin_p), lambda b: (b, 0, 0)),
        pl.BlockSpec((HWp, 1), lambda b: (0, 0)),
        pl.BlockSpec((9 * cin_p, cp), lambda b: (0, 0)),
        pl.BlockSpec((1, cp), lambda b: (0, 0)),
        pl.BlockSpec((9 * cp, cp), lambda b: (0, 0)),
        pl.BlockSpec((1, cp), lambda b: (0, 0)),
        pl.BlockSpec((1, 1, cp), lambda b: (b, 0, 0)),
        pl.BlockSpec((1, 1, cp), lambda b: (b, 0, 0)),
    ]
    args = [xp, mask, w1p, b1p, w2p, b2p, s, bb]
    if upsample:
        in_specs += [pl.BlockSpec((cin_p, cp), lambda b: (0, 0)),
                     pl.BlockSpec((1, cp), lambda b: (0, 0))]
        args += [wupp, bupp]

    out_flat = pl.pallas_call(
        kernel,
        out_shape=jax.ShapeDtypeStruct((B, HWp, cp), jnp.float32),
        grid=(B,),
        in_specs=in_specs,
        out_specs=pl.BlockSpec((1, HWp, cp), lambda b: (b, 0, 0)),
        scratch_shapes=[pltpu.VMEM((n_rows, cp), jnp.float32)],
        compiler_params=pltpu.CompilerParams(
            dimension_semantics=("parallel",),
            vmem_limit_bytes=32 * 1024 * 1024),   # block footprint is ~4 MiB
    )(*args)

    # strip the width-padding (junk) columns
    return out_flat.reshape(B, H, Wp, cp)[:, :, :W, :]


# --------------------------------------------------------------------------
# JAX glue: parameter packing (padding + bf16 cast) and block chaining
# --------------------------------------------------------------------------
def prep_conv_w(w, cin_pad, cout_pad):
    """(Cout, Cin, 3, 3) -> (9*cin_pad, cout_pad) bf16, tap-major rows."""
    cout, cin, kh, kw = w.shape
    wt = jnp.transpose(w, (2, 3, 1, 0))                         # (3,3,Cin,Cout)
    wt = jnp.pad(wt, ((0, 0), (0, 0), (0, cin_pad - cin), (0, cout_pad - cout)))
    return wt.reshape(kh * kw * cin_pad, cout_pad).astype(jnp.bfloat16)


def prep_1x1_w(w, cin_pad, cout_pad):
    cout, cin = w.shape[:2]
    wt = jnp.transpose(w[:, :, 0, 0], (1, 0))                   # (Cin, Cout)
    wt = jnp.pad(wt, ((0, cin_pad - cin), (0, cout_pad - cout)))
    return wt.astype(jnp.bfloat16)


def prep_bias(b, cout_pad):
    return jnp.pad(b, (0, cout_pad - b.shape[0])).reshape(1, cout_pad)


def dilated_net_forward(x_nchw, scale_bias, params, dilations, hidden):
    B, cin, H, W = x_nchw.shape
    cp = _round_up(hidden, LANE)
    x = jnp.transpose(x_nchw, (0, 2, 3, 1))                     # NCHW -> NHWC
    x = jnp.pad(x, ((0, 0), (0, 0), (0, 0), (0, _round_up(cin, LANE) - cin)))
    for i, d in enumerate(dilations):
        p = params[i]
        cin_pad = x.shape[-1]

        # scale_bias_cn: two bias-free Linears (tiny -> left to XLA), then pad
        sb = scale_bias @ p["sb_w1"].T @ p["sb_w2"].T            # (B, 2*hidden)
        s = jnp.pad(sb[:, :hidden], ((0, 0), (0, cp - hidden))).reshape(B, 1, cp)
        bb = jnp.pad(sb[:, hidden:], ((0, 0), (0, cp - hidden))).reshape(B, 1, cp)

        w1p = prep_conv_w(p["w1"], cin_pad, cp)
        b1p = prep_bias(p["b1"], cp)
        w2p = prep_conv_w(p["w2"], cp, cp)
        b2p = prep_bias(p["b2"], cp)
        wupp = prep_1x1_w(p["wup"], cin_pad, cp) if i == 0 else None
        bupp = prep_bias(p["bup"], cp) if i == 0 else None

        x = dilated_block_call(x, s, bb, w1p, b1p, w2p, b2p, wupp, bupp,
                               d, hidden)
    return jnp.transpose(x[..., :hidden], (0, 3, 1, 2))          # NHWC -> NCHW


# --------------------------------------------------------------------------
# Deterministic parameter init (shapes follow the PyTorch module __init__)
# --------------------------------------------------------------------------
def init_params(key, in_channels, hidden, n_blocks, lt):
    params = []
    for i in range(n_blocks):
        cin = in_channels if i == 0 else hidden
        key, *ks = jax.random.split(key, 9)
        p = {
            "w1": jax.random.normal(ks[0], (hidden, cin, 3, 3), jnp.float32) * 0.1,
            "b1": jax.random.normal(ks[1], (hidden,), jnp.float32) * 0.1,
            "w2": jax.random.normal(ks[2], (hidden, hidden, 3, 3), jnp.float32) * 0.05,
            "b2": jax.random.normal(ks[3], (hidden,), jnp.float32) * 0.1,
            "sb_w1": jax.random.normal(ks[4], (lt, lt), jnp.float32) * 0.3,
            "sb_w2": jax.random.normal(ks[5], (2 * hidden, lt), jnp.float32) * 0.3,
        }
        if i == 0:
            p["wup"] = jax.random.normal(ks[6], (hidden, cin, 1, 1), jnp.float32) * 0.1
            p["bup"] = jax.random.normal(ks[7], (hidden,), jnp.float32) * 0.1
        params.append(p)
    return params


# --------------------------------------------------------------------------
# Pure-JAX reference (mirrors PyTorch DilatedBlock semantics) for verification
# --------------------------------------------------------------------------
def _conv_ref(x, w, b, d):
    out = jax.lax.conv_general_dilated(
        x, w, window_strides=(1, 1), padding=((d, d), (d, d)),
        rhs_dilation=(d, d), dimension_numbers=("NCHW", "OIHW", "NCHW"))
    return out + b[None, :, None, None]


def _ln_ref(x):
    mu = x.mean(axis=(1, 2, 3), keepdims=True)
    var = ((x - mu) ** 2).mean(axis=(1, 2, 3), keepdims=True)
    return (x - mu) / jnp.sqrt(var + LN_EPS)


def dilated_net_ref(x, scale_bias, params, dilations, hidden):
    for i, d in enumerate(dilations):
        p = params[i]
        sb = scale_bias @ p["sb_w1"].T @ p["sb_w2"].T
        s = sb[:, :hidden][:, :, None, None]
        bb = sb[:, hidden:][:, :, None, None]
        identity = x
        y = _conv_ref(x, p["w1"], p["b1"], d)
        y = jnp.maximum(_ln_ref(y) * s + bb, 0.0)
        y = _conv_ref(y, p["w2"], p["b2"], d)
        y = jnp.maximum(_ln_ref(y) * s + bb, 0.0)
        if i == 0:
            identity = jax.lax.conv_general_dilated(
                x, p["wup"], (1, 1), ((0, 0), (0, 0)),
                dimension_numbers=("NCHW", "OIHW", "NCHW")
            ) + p["bup"][None, :, None, None]
        x = y + identity
    return x


# --------------------------------------------------------------------------
if __name__ == "__main__":
    B, Cin, H, W = 2, 4, 16, 16
    hidden = 32
    lt_features = 8
    dilations = [1, 2]        # block 0: scale_bias_index=0 (upsample), block 1: no upsample

    key = jax.random.PRNGKey(0)
    kx, ksb, kp = jax.random.split(key, 3)
    x = jax.random.normal(kx, (B, Cin, H, W), jnp.float32)
    scale_bias = jax.random.normal(ksb, (B, lt_features), jnp.float32)
    params = init_params(kp, Cin, hidden, len(dilations), lt_features)

    fwd = jax.jit(functools.partial(
        dilated_net_forward, params=params, dilations=dilations, hidden=hidden))
    out = fwd(x, scale_bias)
    out = jax.block_until_ready(out)

    assert out.shape == (B, hidden, H, W)

    ref = dilated_net_ref(x, scale_bias, params, dilations, hidden)
    np.testing.assert_allclose(np.asarray(out), np.asarray(ref),
                               rtol=2e-2, atol=2e-2)
    print("KERNEL_OK")
</pallas_src>

<mosaic_0001>
module attributes {stable_mosaic.version = 11 : i64} {
  func.func @kernel(%arg0: i32, %arg1: memref<1x342x128xf32, #tpu.memory_space<vmem>>, %arg2: memref<288x1xf32, #tpu.memory_space<vmem>>, %arg3: memref<1152x128xbf16, #tpu.memory_space<vmem>>, %arg4: memref<1x128xf32, #tpu.memory_space<vmem>>, %arg5: memref<1152x128xbf16, #tpu.memory_space<vmem>>, %arg6: memref<1x128xf32, #tpu.memory_space<vmem>>, %arg7: memref<1x1x128xf32, #tpu.memory_space<vmem>>, %arg8: memref<1x1x128xf32, #tpu.memory_space<vmem>>, %arg9: memref<128x128xbf16, #tpu.memory_space<vmem>>, %arg10: memref<1x128xf32, #tpu.memory_space<vmem>>, %arg11: memref<1x288x128xf32, #tpu.memory_space<vmem>>, %arg12: memref<342x128xf32, #tpu.memory_space<vmem>>) attributes {dimension_semantics = [#tpu.dimension_semantics<parallel>], iteration_bounds = array<i64: 2>, scalar_prefetch = 0 : i64, scratch_operands = 1 : i64, tpu.core_type = #tpu.core_type<tc>, window_params = [{transform_indices = @transform_0, window_bounds = array<i64: 1, 342, 128>}, {pipeline_mode = #tpu.pipeline_mode<synchronous>, transform_indices = @transform_1, window_bounds = array<i64: 288, 1>}, {pipeline_mode = #tpu.pipeline_mode<synchronous>, transform_indices = @transform_2, window_bounds = array<i64: 1152, 128>}, {pipeline_mode = #tpu.pipeline_mode<synchronous>, transform_indices = @transform_3, window_bounds = array<i64: 1, 128>}, {pipeline_mode = #tpu.pipeline_mode<synchronous>, transform_indices = @transform_4, window_bounds = array<i64: 1152, 128>}, {pipeline_mode = #tpu.pipeline_mode<synchronous>, transform_indices = @transform_5, window_bounds = array<i64: 1, 128>}, {transform_indices = @transform_6, window_bounds = array<i64: 1, 1, 128>}, {transform_indices = @transform_7, window_bounds = array<i64: 1, 1, 128>}, {pipeline_mode = #tpu.pipeline_mode<synchronous>, transform_indices = @transform_8, window_bounds = array<i64: 128, 128>}, {pipeline_mode = #tpu.pipeline_mode<synchronous>, transform_indices = @transform_9, window_bounds = array<i64: 1, 128>}, {transform_indices = @transform_10, window_bounds = array<i64: 1, 288, 128>}]} {
    %c0 = arith.constant 0 : index
    %c0_0 = arith.constant 0 : index
    %0 = vector.load %arg2[%c0, %c0_0] : memref<288x1xf32, #tpu.memory_space<vmem>>, vector<288x1xf32>
    %c0_1 = arith.constant 0 : index
    %c0_2 = arith.constant 0 : index
    %c0_3 = arith.constant 0 : index
    %1 = vector.load %arg7[%c0_1, %c0_2, %c0_3] : memref<1x1x128xf32, #tpu.memory_space<vmem>>, vector<1x1x128xf32>
    %2 = vector.shape_cast %1 : vector<1x1x128xf32> to vector<1x128xf32>
    %c0_4 = arith.constant 0 : index
    %c0_5 = arith.constant 0 : index
    %c0_6 = arith.constant 0 : index
    %3 = vector.load %arg8[%c0_4, %c0_5, %c0_6] : memref<1x1x128xf32, #tpu.memory_space<vmem>>, vector<1x1x128xf32>
    %4 = vector.shape_cast %3 : vector<1x1x128xf32> to vector<1x128xf32>
    %c0_7 = arith.constant 0 : index
    %c0_8 = arith.constant 0 : index
    %c0_9 = arith.constant 0 : index
    %5 = vector.load %arg1[%c0_7, %c0_8, %c0_9] : memref<1x342x128xf32, #tpu.memory_space<vmem>>, vector<1x288x128xf32>
    %6 = vector.shape_cast %5 : vector<1x288x128xf32> to vector<288x128xf32>
    %7 = arith.truncf %6 : vector<288x128xf32> to vector<288x128xbf16>
    %c0_10 = arith.constant 0 : index
    %c1 = arith.constant 1 : index
    %c0_11 = arith.constant 0 : index
    %8 = vector.load %arg1[%c0_10, %c1, %c0_11] : memref<1x342x128xf32, #tpu.memory_space<vmem>>, vector<1x288x128xf32>
    %9 = vector.shape_cast %8 : vector<1x288x128xf32> to vector<288x128xf32>
    %10 = arith.truncf %9 : vector<288x128xf32> to vector<288x128xbf16>
    %c0_12 = arith.constant 0 : index
    %c2 = arith.constant 2 : index
    %c0_13 = arith.constant 0 : index
    %11 = vector.load %arg1[%c0_12, %c2, %c0_13] : memref<1x342x128xf32, #tpu.memory_space<vmem>>, vector<1x288x128xf32>
    %12 = vector.shape_cast %11 : vector<1x288x128xf32> to vector<288x128xf32>
    %13 = arith.truncf %12 : vector<288x128xf32> to vector<288x128xbf16>
    %c0_14 = arith.constant 0 : index
    %c18 = arith.constant 18 : index
    %c0_15 = arith.constant 0 : index
    %14 = vector.load %arg1[%c0_14, %c18, %c0_15] : memref<1x342x128xf32, #tpu.memory_space<vmem>>, vector<1x288x128xf32>
    %15 = vector.shape_cast %14 : vector<1x288x128xf32> to vector<288x128xf32>
    %16 = arith.truncf %15 : vector<288x128xf32> to vector<288x128xbf16>
    %c0_16 = arith.constant 0 : index
    %c19 = arith.constant 19 : index
    %c0_17 = arith.constant 0 : index
    %17 = vector.load %arg1[%c0_16, %c19, %c0_17] : memref<1x342x128xf32, #tpu.memory_space<vmem>>, vector<1x288x128xf32>
    %18 = vector.shape_cast %17 : vector<1x288x128xf32> to vector<288x128xf32>
    %19 = arith.truncf %18 : vector<288x128xf32> to vector<288x128xbf16>
    %c0_18 = arith.constant 0 : index
    %c20 = arith.constant 20 : index
    %c0_19 = arith.constant 0 : index
    %20 = vector.load %arg1[%c0_18, %c20, %c0_19] : memref<1x342x128xf32, #tpu.memory_space<vmem>>, vector<1x288x128xf32>
    %21 = vector.shape_cast %20 : vector<1x288x128xf32> to vector<288x128xf32>
    %22 = arith.truncf %21 : vector<288x128xf32> to vector<288x128xbf16>
    %c0_20 = arith.constant 0 : index
    %c36 = arith.constant 36 : index
    %c0_21 = arith.constant 0 : index
    %23 = vector.load %arg1[%c0_20, %c36, %c0_21] : memref<1x342x128xf32, #tpu.memory_space<vmem>>, vector<1x288x128xf32>
    %24 = vector.shape_cast %23 : vector<1x288x128xf32> to vector<288x128xf32>
    %25 = arith.truncf %24 : vector<288x128xf32> to vector<288x128xbf16>
    %c0_22 = arith.constant 0 : index
    %c37 = arith.constant 37 : index
    %c0_23 = arith.constant 0 : index
    %26 = vector.load %arg1[%c0_22, %c37, %c0_23] : memref<1x342x128xf32, #tpu.memory_space<vmem>>, vector<1x288x128xf32>
    %27 = vector.shape_cast %26 : vector<1x288x128xf32> to vector<288x128xf32>
    %28 = arith.truncf %27 : vector<288x128xf32> to vector<288x128xbf16>
    %c0_24 = arith.constant 0 : index
    %c38 = arith.constant 38 : index
    %c0_25 = arith.constant 0 : index
    %29 = vector.load %arg1[%c0_24, %c38, %c0_25] : memref<1x342x128xf32, #tpu.memory_space<vmem>>, vector<1x288x128xf32>
    %30 = vector.shape_cast %29 : vector<1x288x128xf32> to vector<288x128xf32>
    %31 = arith.truncf %30 : vector<288x128xf32> to vector<288x128xbf16>
    %32 = tpu.concatenate %7, %10, %13, %16, %19, %22, %25, %28, %31 in 1 : vector<288x128xbf16>, vector<288x128xbf16>, vector<288x128xbf16>, vector<288x128xbf16>, vector<288x128xbf16>, vector<288x128xbf16>, vector<288x128xbf16>, vector<288x128xbf16>, vector<288x128xbf16> -> vector<288x1152xbf16>
    %c0_26 = arith.constant 0 : index
    %c0_27 = arith.constant 0 : index
    %33 = vector.load %arg3[%c0_26, %c0_27] : memref<1152x128xbf16, #tpu.memory_space<vmem>>, vector<1152x128xbf16>
    %cst = arith.constant dense<0.000000e+00> : vector<288x128xf32>
    %34 = tpu.matmul %32, %33, %cst {dimension_numbers = #tpu.dot_dimension_numbers<[1], [0], [0], [1], [0, 0, 1, 1], [], []>} : vector<288x1152xbf16>, vector<1152x128xbf16>, vector<288x128xf32> -> vector<288x128xf32>
    %c0_28 = arith.constant 0 : index
    %c0_29 = arith.constant 0 : index
    %35 = vector.load %arg4[%c0_28, %c0_29] : memref<1x128xf32, #tpu.memory_space<vmem>>, vector<1x128xf32>
    %36 = vector.broadcast %35 : vector<1x128xf32> to vector<288x128xf32>
    %37 = arith.addf %34, %36 : vector<288x128xf32>
    %38 = vector.broadcast %0 : vector<288x1xf32> to vector<288x128xf32>
    %39 = arith.mulf %37, %38 : vector<288x128xf32>
    %40 = vector.shape_cast %39 : vector<288x128xf32> to vector<1x288x128xf32>
    %cst_30 = arith.constant dense<0.000000e+00> : vector<1xf32>
    %41 = vector.multi_reduction <add>, %40, %cst_30 [1, 2] : vector<1x288x128xf32> to vector<1xf32>
    %42 = vector.shape_cast %41 : vector<1xf32> to vector<1x1x1xf32>
    %43 = vector.extract %42[0, 0, 0] : f32 from vector<1x1x1xf32>
    %cst_31 = arith.constant 1.22070313E-4 : f32
    %44 = arith.mulf %43, %cst_31 : f32
    %45 = arith.mulf %39, %39 : vector<288x128xf32>
    %46 = vector.shape_cast %45 : vector<288x128xf32> to vector<1x288x128xf32>
    %cst_32 = arith.constant dense<0.000000e+00> : vector<1xf32>
    %47 = vector.multi_reduction <add>, %46, %cst_32 [1, 2] : vector<1x288x128xf32> to vector<1xf32>
    %48 = vector.shape_cast %47 : vector<1xf32> to vector<1x1x1xf32>
    %49 = vector.extract %48[0, 0, 0] : f32 from vector<1x1x1xf32>
    %cst_33 = arith.constant 1.22070313E-4 : f32
    %50 = arith.mulf %49, %cst_33 : f32
    %51 = arith.mulf %44, %44 : f32
    %52 = arith.subf %50, %51 : f32
    %53 = vector.broadcast %44 : f32 to vector<288x128xf32>
    %54 = arith.subf %37, %53 : vector<288x128xf32>
    %cst_34 = arith.constant 9.99999974E-6 : f32
    %55 = arith.addf %52, %cst_34 : f32
    %56 = math.rsqrt %55 : f32
    %57 = vector.broadcast %56 : f32 to vector<288x128xf32>
    %58 = arith.mulf %54, %57 : vector<288x128xf32>
    %59 = vector.broadcast %2 : vector<1x128xf32> to vector<288x128xf32>
    %60 = arith.mulf %58, %59 : vector<288x128xf32>
    %61 = vector.broadcast %4 : vector<1x128xf32> to vector<288x128xf32>
    %62 = arith.addf %60, %61 : vector<288x128xf32>
    %cst_35 = arith.constant 0.000000e+00 : f32
    %63 = vector.broadcast %cst_35 : f32 to vector<288x128xf32>
    %64 = arith.maximumf %62, %63 : vector<288x128xf32>
    %c0_36 = arith.constant 0 : index
    %c19_37 = arith.constant 19 : index
    %c0_38 = arith.constant 0 : index
    %65 = vector.load %arg1[%c0_36, %c19_37, %c0_38] : memref<1x342x128xf32, #tpu.memory_space<vmem>>, vector<1x288x128xf32>
    %66 = vector.shape_cast %65 : vector<1x288x128xf32> to vector<288x128xf32>
    %67 = arith.truncf %66 : vector<288x128xf32> to vector<288x128xbf16>
    %c0_39 = arith.constant 0 : index
    %c0_40 = arith.constant 0 : index
    %68 = vector.load %arg9[%c0_39, %c0_40] : memref<128x128xbf16, #tpu.memory_space<vmem>>, vector<128x128xbf16>
    %cst_41 = arith.constant dense<0.000000e+00> : vector<288x128xf32>
    %69 = tpu.matmul %67, %68, %cst_41 {dimension_numbers = #tpu.dot_dimension_numbers<[1], [0], [0], [1], [0, 0, 1, 1], [], []>} : vector<288x128xbf16>, vector<128x128xbf16>, vector<288x128xf32> -> vector<288x128xf32>
    %c0_42 = arith.constant 0 : index
    %c0_43 = arith.constant 0 : index
    %70 = vector.load %arg10[%c0_42, %c0_43] : memref<1x128xf32, #tpu.memory_space<vmem>>, vector<1x128xf32>
    %71 = vector.broadcast %70 : vector<1x128xf32> to vector<288x128xf32>
    %72 = arith.addf %69, %71 : vector<288x128xf32>
    %cst_44 = arith.constant 0.000000e+00 : f32
    %73 = vector.broadcast %cst_44 : f32 to vector<342x128xf32>
    %c0_45 = arith.constant 0 : index
    %c0_46 = arith.constant 0 : index
    %74 = vector.load %arg12[%c0_45, %c0_46] : memref<342x128xf32, #tpu.memory_space<vmem>>, vector<342x128xf32>
    tpu.vector_store %arg12[%c0_45, %c0_46], %73 {strides = array<i32>} : memref<342x128xf32, #tpu.memory_space<vmem>>, vector<342x128xf32>,
    %75 = vector.broadcast %0 : vector<288x1xf32> to vector<288x128xf32>
    %76 = arith.mulf %64, %75 : vector<288x128xf32>
    %c19_47 = arith.constant 19 : index
    %c0_48 = arith.constant 0 : index
    %77 = vector.load %arg12[%c19_47, %c0_48] : memref<342x128xf32, #tpu.memory_space<vmem>>, vector<288x128xf32>
    tpu.vector_store %arg12[%c19_47, %c0_48], %76 {strides = array<i32>} : memref<342x128xf32, #tpu.memory_space<vmem>>, vector<288x128xf32>,
    %c0_49 = arith.constant 0 : index
    %c0_50 = arith.constant 0 : index
    %78 = vector.load %arg12[%c0_49, %c0_50] : memref<342x128xf32, #tpu.memory_space<vmem>>, vector<288x128xf32>
    %79 = arith.truncf %78 : vector<288x128xf32> to vector<288x128xbf16>
    %c1_51 = arith.constant 1 : index
    %c0_52 = arith.constant 0 : index
    %80 = vector.load %arg12[%c1_51, %c0_52] : memref<342x128xf32, #tpu.memory_space<vmem>>, vector<288x128xf32>
    %81 = arith.truncf %80 : vector<288x128xf32> to vector<288x128xbf16>
    %c2_53 = arith.constant 2 : index
    %c0_54 = arith.constant 0 : index
    %82 = vector.load %arg12[%c2_53, %c0_54] : memref<342x128xf32, #tpu.memory_space<vmem>>, vector<288x128xf32>
    %83 = arith.truncf %82 : vector<288x128xf32> to vector<288x128xbf16>
    %c18_55 = arith.constant 18 : index
    %c0_56 = arith.constant 0 : index
    %84 = vector.load %arg12[%c18_55, %c0_56] : memref<342x128xf32, #tpu.memory_space<vmem>>, vector<288x128xf32>
    %85 = arith.truncf %84 : vector<288x128xf32> to vector<288x128xbf16>
    %c19_57 = arith.constant 19 : index
    %c0_58 = arith.constant 0 : index
    %86 = vector.load %arg12[%c19_57, %c0_58] : memref<342x128xf32, #tpu.memory_space<vmem>>, vector<288x128xf32>
    %87 = arith.truncf %86 : vector<288x128xf32> to vector<288x128xbf16>
    %c20_59 = arith.constant 20 : index
    %c0_60 = arith.constant 0 : index
    %88 = vector.load %arg12[%c20_59, %c0_60] : memref<342x128xf32, #tpu.memory_space<vmem>>, vector<288x128xf32>
    %89 = arith.truncf %88 : vector<288x128xf32> to vector<288x128xbf16>
    %c36_61 = arith.constant 36 : index
    %c0_62 = arith.constant 0 : index
    %90 = vector.load %arg12[%c36_61, %c0_62] : memref<342x128xf32, #tpu.memory_space<vmem>>, vector<288x128xf32>
    %91 = arith.truncf %90 : vector<288x128xf32> to vector<288x128xbf16>
    %c37_63 = arith.constant 37 : index
    %c0_64 = arith.constant 0 : index
    %92 = vector.load %arg12[%c37_63, %c0_64] : memref<342x128xf32, #tpu.memory_space<vmem>>, vector<288x128xf32>
    %93 = arith.truncf %92 : vector<288x128xf32> to vector<288x128xbf16>
    %c38_65 = arith.constant 38 : index
    %c0_66 = arith.constant 0 : index
    %94 = vector.load %arg12[%c38_65, %c0_66] : memref<342x128xf32, #tpu.memory_space<vmem>>, vector<288x128xf32>
    %95 = arith.truncf %94 : vector<288x128xf32> to vector<288x128xbf16>
    %96 = tpu.concatenate %79, %81, %83, %85, %87, %89, %91, %93, %95 in 1 : vector<288x128xbf16>, vector<288x128xbf16>, vector<288x128xbf16>, vector<288x128xbf16>, vector<288x128xbf16>, vector<288x128xbf16>, vector<288x128xbf16>, vector<288x128xbf16>, vector<288x128xbf16> -> vector<288x1152xbf16>
    %c0_67 = arith.constant 0 : index
    %c0_68 = arith.constant 0 : index
    %97 = vector.load %arg5[%c0_67, %c0_68] : memref<1152x128xbf16, #tpu.memory_space<vmem>>, vector<1152x128xbf16>
    %cst_69 = arith.constant dense<0.000000e+00> : vector<288x128xf32>
    %98 = tpu.matmul %96, %97, %cst_69 {dimension_numbers = #tpu.dot_dimension_numbers<[1], [0], [0], [1], [0, 0, 1, 1], [], []>} : vector<288x1152xbf16>, vector<1152x128xbf16>, vector<288x128xf32> -> vector<288x128xf32>
    %c0_70 = arith.constant 0 : index
    %c0_71 = arith.constant 0 : index
    %99 = vector.load %arg6[%c0_70, %c0_71] : memref<1x128xf32, #tpu.memory_space<vmem>>, vector<1x128xf32>
    %100 = vector.broadcast %99 : vector<1x128xf32> to vector<288x128xf32>
    %101 = arith.addf %98, %100 : vector<288x128xf32>
    %102 = vector.broadcast %0 : vector<288x1xf32> to vector<288x128xf32>
    %103 = arith.mulf %101, %102 : vector<288x128xf32>
    %104 = vector.shape_cast %103 : vector<288x128xf32> to vector<1x288x128xf32>
    %cst_72 = arith.constant dense<0.000000e+00> : vector<1xf32>
    %105 = vector.multi_reduction <add>, %104, %cst_72 [1, 2] : vector<1x288x128xf32> to vector<1xf32>
    %106 = vector.shape_cast %105 : vector<1xf32> to vector<1x1x1xf32>
    %107 = vector.extract %106[0, 0, 0] : f32 from vector<1x1x1xf32>
    %cst_73 = arith.constant 1.22070313E-4 : f32
    %108 = arith.mulf %107, %cst_73 : f32
    %109 = arith.mulf %103, %103 : vector<288x128xf32>
    %110 = vector.shape_cast %109 : vector<288x128xf32> to vector<1x288x128xf32>
    %cst_74 = arith.constant dense<0.000000e+00> : vector<1xf32>
    %111 = vector.multi_reduction <add>, %110, %cst_74 [1, 2] : vector<1x288x128xf32> to vector<1xf32>
    %112 = vector.shape_cast %111 : vector<1xf32> to vector<1x1x1xf32>
    %113 = vector.extract %112[0, 0, 0] : f32 from vector<1x1x1xf32>
    %cst_75 = arith.constant 1.22070313E-4 : f32
    %114 = arith.mulf %113, %cst_75 : f32
    %115 = arith.mulf %108, %108 : f32
    %116 = arith.subf %114, %115 : f32
    %117 = vector.broadcast %108 : f32 to vector<288x128xf32>
    %118 = arith.subf %101, %117 : vector<288x128xf32>
    %cst_76 = arith.constant 9.99999974E-6 : f32
    %119 = arith.addf %116, %cst_76 : f32
    %120 = math.rsqrt %119 : f32
    %121 = vector.broadcast %120 : f32 to vector<288x128xf32>
    %122 = arith.mulf %118, %121 : vector<288x128xf32>
    %123 = vector.broadcast %2 : vector<1x128xf32> to vector<288x128xf32>
    %124 = arith.mulf %122, %123 : vector<288x128xf32>
    %125 = vector.broadcast %4 : vector<1x128xf32> to vector<288x128xf32>
    %126 = arith.addf %124, %125 : vector<288x128xf32>
    %cst_77 = arith.constant 0.000000e+00 : f32
    %127 = vector.broadcast %cst_77 : f32 to vector<288x128xf32>
    %128 = arith.maximumf %126, %127 : vector<288x128xf32>
    %129 = arith.addf %128, %72 : vector<288x128xf32>
    %c0_78 = arith.constant 0 : index
    %c0_79 = arith.constant 0 : index
    %c0_80 = arith.constant 0 : index
    %130 = vector.load %arg11[%c0_78, %c0_79, %c0_80] : memref<1x288x128xf32, #tpu.memory_space<vmem>>, vector<1x288x128xf32>
    %131 = vector.shape_cast %130 : vector<1x288x128xf32> to vector<288x128xf32>
    %132 = vector.shape_cast %129 : vector<288x128xf32> to vector<1x288x128xf32>
    tpu.vector_store %arg11[%c0_78, %c0_79, %c0_80], %132 {strides = array<i32>} : memref<1x288x128xf32, #tpu.memory_space<vmem>>, vector<1x288x128xf32>,
    return
  }
  func.func @transform_0(%arg0: i32) -> (i32, i32, i32) {
    %c0_i32 = arith.constant 0 : i32
    %c0_i32_0 = arith.constant 0 : i32
    %c0_i32_1 = arith.constant 0 : i32
    return %arg0, %c0_i32, %c0_i32_0 : i32, i32, i32
  }
  func.func @transform_1(%arg0: i32) -> (i32, i32) {
    %c0_i32 = arith.constant 0 : i32
    %c0_i32_0 = arith.constant 0 : i32
    %c0_i32_1 = arith.constant 0 : i32
    return %c0_i32, %c0_i32_0 : i32, i32
  }
  func.func @transform_2(%arg0: i32) -> (i32, i32) {
    %c0_i32 = arith.constant 0 : i32
    %c0_i32_0 = arith.constant 0 : i32
    %c0_i32_1 = arith.constant 0 : i32
    return %c0_i32, %c0_i32_0 : i32, i32
  }
  func.func @transform_3(%arg0: i32) -> (i32, i32) {
    %c0_i32 = arith.constant 0 : i32
    %c0_i32_0 = arith.constant 0 : i32
    %c0_i32_1 = arith.constant 0 : i32
    return %c0_i32, %c0_i32_0 : i32, i32
  }
  func.func @transform_4(%arg0: i32) -> (i32, i32) {
    %c0_i32 = arith.constant 0 : i32
    %c0_i32_0 = arith.constant 0 : i32
    %c0_i32_1 = arith.constant 0 : i32
    return %c0_i32, %c0_i32_0 : i32, i32
  }
  func.func @transform_5(%arg0: i32) -> (i32, i32) {
    %c0_i32 = arith.constant 0 : i32
    %c0_i32_0 = arith.constant 0 : i32
    %c0_i32_1 = arith.constant 0 : i32
    return %c0_i32, %c0_i32_0 : i32, i32
  }
  func.func @transform_6(%arg0: i32) -> (i32, i32, i32) {
    %c0_i32 = arith.constant 0 : i32
    %c0_i32_0 = arith.constant 0 : i32
    %c0_i32_1 = arith.constant 0 : i32
    return %arg0, %c0_i32, %c0_i32_0 : i32, i32, i32
  }
  func.func @transform_7(%arg0: i32) -> (i32, i32, i32) {
    %c0_i32 = arith.constant 0 : i32
    %c0_i32_0 = arith.constant 0 : i32
    %c0_i32_1 = arith.constant 0 : i32
    return %arg0, %c0_i32, %c0_i32_0 : i32, i32, i32
  }
  func.func @transform_8(%arg0: i32) -> (i32, i32) {
    %c0_i32 = arith.constant 0 : i32
    %c0_i32_0 = arith.constant 0 : i32
    %c0_i32_1 = arith.constant 0 : i32
    return %c0_i32, %c0_i32_0 : i32, i32
  }
  func.func @transform_9(%arg0: i32) -> (i32, i32) {
    %c0_i32 = arith.constant 0 : i32
    %c0_i32_0 = arith.constant 0 : i32
    %c0_i32_1 = arith.constant 0 : i32
    return %c0_i32, %c0_i32_0 : i32, i32
  }
  func.func @transform_10(%arg0: i32) -> (i32, i32, i32) {
    %c0_i32 = arith.constant 0 : i32
    %c0_i32_0 = arith.constant 0 : i32
    %c0_i32_1 = arith.constant 0 : i32
    return %arg0, %c0_i32, %c0_i32_0 : i32, i32, i32
  }
}

module attributes {stable_mosaic.version = 11 : i64} {
  func.func @kernel(%arg0: i32, %arg1: memref<1x420x128xf32, #tpu.memory_space<vmem>>, %arg2: memref<320x1xf32, #tpu.memory_space<vmem>>, %arg3: memref<1152x128xbf16, #tpu.memory_space<vmem>>, %arg4: memref<1x128xf32, #tpu.memory_space<vmem>>, %arg5: memref<1152x128xbf16, #tpu.memory_space<vmem>>, %arg6: memref<1x128xf32, #tpu.memory_space<vmem>>, %arg7: memref<1x1x128xf32, #tpu.memory_space<vmem>>, %arg8: memref<1x1x128xf32, #tpu.memory_space<vmem>>, %arg9: memref<1x320x128xf32, #tpu.memory_space<vmem>>, %arg10: memref<420x128xf32, #tpu.memory_space<vmem>>) attributes {dimension_semantics = [#tpu.dimension_semantics<parallel>], iteration_bounds = array<i64: 2>, scalar_prefetch = 0 : i64, scratch_operands = 1 : i64, tpu.core_type = #tpu.core_type<tc>, window_params = [{transform_indices = @transform_0, window_bounds = array<i64: 1, 420, 128>}, {pipeline_mode = #tpu.pipeline_mode<synchronous>, transform_indices = @transform_1, window_bounds = array<i64: 320, 1>}, {pipeline_mode = #tpu.pipeline_mode<synchronous>, transform_indices = @transform_2, window_bounds = array<i64: 1152, 128>}, {pipeline_mode = #tpu.pipeline_mode<synchronous>, transform_indices = @transform_3, window_bounds = array<i64: 1, 128>}, {pipeline_mode = #tpu.pipeline_mode<synchronous>, transform_indices = @transform_4, window_bounds = array<i64: 1152, 128>}, {pipeline_mode = #tpu.pipeline_mode<synchronous>, transform_indices = @transform_5, window_bounds = array<i64: 1, 128>}, {transform_indices = @transform_6, window_bounds = array<i64: 1, 1, 128>}, {transform_indices = @transform_7, window_bounds = array<i64: 1, 1, 128>}, {transform_indices = @transform_8, window_bounds = array<i64: 1, 320, 128>}]} {
    %c0 = arith.constant 0 : index
    %c0_0 = arith.constant 0 : index
    %0 = vector.load %arg2[%c0, %c0_0] : memref<320x1xf32, #tpu.memory_space<vmem>>, vector<320x1xf32>
    %c0_1 = arith.constant 0 : index
    %c0_2 = arith.constant 0 : index
    %c0_3 = arith.constant 0 : index
    %1 = vector.load %arg7[%c0_1, %c0_2, %c0_3] : memref<1x1x128xf32, #tpu.memory_space<vmem>>, vector<1x1x128xf32>
    %2 = vector.shape_cast %1 : vector<1x1x128xf32> to vector<1x128xf32>
    %c0_4 = arith.constant 0 : index
    %c0_5 = arith.constant 0 : index
    %c0_6 = arith.constant 0 : index
    %3 = vector.load %arg8[%c0_4, %c0_5, %c0_6] : memref<1x1x128xf32, #tpu.memory_space<vmem>>, vector<1x1x128xf32>
    %4 = vector.shape_cast %3 : vector<1x1x128xf32> to vector<1x128xf32>
    %c0_7 = arith.constant 0 : index
    %c0_8 = arith.constant 0 : index
    %c0_9 = arith.constant 0 : index
    %5 = vector.load %arg1[%c0_7, %c0_8, %c0_9] : memref<1x420x128xf32, #tpu.memory_space<vmem>>, vector<1x320x128xf32>
    %6 = vector.shape_cast %5 : vector<1x320x128xf32> to vector<320x128xf32>
    %7 = arith.truncf %6 : vector<320x128xf32> to vector<320x128xbf16>
    %c0_10 = arith.constant 0 : index
    %c2 = arith.constant 2 : index
    %c0_11 = arith.constant 0 : index
    %8 = vector.load %arg1[%c0_10, %c2, %c0_11] : memref<1x420x128xf32, #tpu.memory_space<vmem>>, vector<1x320x128xf32>
    %9 = vector.shape_cast %8 : vector<1x320x128xf32> to vector<320x128xf32>
    %10 = arith.truncf %9 : vector<320x128xf32> to vector<320x128xbf16>
    %c0_12 = arith.constant 0 : index
    %c4 = arith.constant 4 : index
    %c0_13 = arith.constant 0 : index
    %11 = vector.load %arg1[%c0_12, %c4, %c0_13] : memref<1x420x128xf32, #tpu.memory_space<vmem>>, vector<1x320x128xf32>
    %12 = vector.shape_cast %11 : vector<1x320x128xf32> to vector<320x128xf32>
    %13 = arith.truncf %12 : vector<320x128xf32> to vector<320x128xbf16>
    %c0_14 = arith.constant 0 : index
    %c40 = arith.constant 40 : index
    %c0_15 = arith.constant 0 : index
    %14 = vector.load %arg1[%c0_14, %c40, %c0_15] : memref<1x420x128xf32, #tpu.memory_space<vmem>>, vector<1x320x128xf32>
    %15 = vector.shape_cast %14 : vector<1x320x128xf32> to vector<320x128xf32>
    %16 = arith.truncf %15 : vector<320x128xf32> to vector<320x128xbf16>
    %c0_16 = arith.constant 0 : index
    %c42 = arith.constant 42 : index
    %c0_17 = arith.constant 0 : index
    %17 = vector.load %arg1[%c0_16, %c42, %c0_17] : memref<1x420x128xf32, #tpu.memory_space<vmem>>, vector<1x320x128xf32>
    %18 = vector.shape_cast %17 : vector<1x320x128xf32> to vector<320x128xf32>
    %19 = arith.truncf %18 : vector<320x128xf32> to vector<320x128xbf16>
    %c0_18 = arith.constant 0 : index
    %c44 = arith.constant 44 : index
    %c0_19 = arith.constant 0 : index
    %20 = vector.load %arg1[%c0_18, %c44, %c0_19] : memref<1x420x128xf32, #tpu.memory_space<vmem>>, vector<1x320x128xf32>
    %21 = vector.shape_cast %20 : vector<1x320x128xf32> to vector<320x128xf32>
    %22 = arith.truncf %21 : vector<320x128xf32> to vector<320x128xbf16>
    %c0_20 = arith.constant 0 : index
    %c80 = arith.constant 80 : index
    %c0_21 = arith.constant 0 : index
    %23 = vector.load %arg1[%c0_20, %c80, %c0_21] : memref<1x420x128xf32, #tpu.memory_space<vmem>>, vector<1x320x128xf32>
    %24 = vector.shape_cast %23 : vector<1x320x128xf32> to vector<320x128xf32>
    %25 = arith.truncf %24 : vector<320x128xf32> to vector<320x128xbf16>
    %c0_22 = arith.constant 0 : index
    %c82 = arith.constant 82 : index
    %c0_23 = arith.constant 0 : index
    %26 = vector.load %arg1[%c0_22, %c82, %c0_23] : memref<1x420x128xf32, #tpu.memory_space<vmem>>, vector<1x320x128xf32>
    %27 = vector.shape_cast %26 : vector<1x320x128xf32> to vector<320x128xf32>
    %28 = arith.truncf %27 : vector<320x128xf32> to vector<320x128xbf16>
    %c0_24 = arith.constant 0 : index
    %c84 = arith.constant 84 : index
    %c0_25 = arith.constant 0 : index
    %29 = vector.load %arg1[%c0_24, %c84, %c0_25] : memref<1x420x128xf32, #tpu.memory_space<vmem>>, vector<1x320x128xf32>
    %30 = vector.shape_cast %29 : vector<1x320x128xf32> to vector<320x128xf32>
    %31 = arith.truncf %30 : vector<320x128xf32> to vector<320x128xbf16>
    %32 = tpu.concatenate %7, %10, %13, %16, %19, %22, %25, %28, %31 in 1 : vector<320x128xbf16>, vector<320x128xbf16>, vector<320x128xbf16>, vector<320x128xbf16>, vector<320x128xbf16>, vector<320x128xbf16>, vector<320x128xbf16>, vector<320x128xbf16>, vector<320x128xbf16> -> vector<320x1152xbf16>
    %c0_26 = arith.constant 0 : index
    %c0_27 = arith.constant 0 : index
    %33 = vector.load %arg3[%c0_26, %c0_27] : memref<1152x128xbf16, #tpu.memory_space<vmem>>, vector<1152x128xbf16>
    %cst = arith.constant dense<0.000000e+00> : vector<320x128xf32>
    %34 = tpu.matmul %32, %33, %cst {dimension_numbers = #tpu.dot_dimension_numbers<[1], [0], [0], [1], [0, 0, 1, 1], [], []>} : vector<320x1152xbf16>, vector<1152x128xbf16>, vector<320x128xf32> -> vector<320x128xf32>
    %c0_28 = arith.constant 0 : index
    %c0_29 = arith.constant 0 : index
    %35 = vector.load %arg4[%c0_28, %c0_29] : memref<1x128xf32, #tpu.memory_space<vmem>>, vector<1x128xf32>
    %36 = vector.broadcast %35 : vector<1x128xf32> to vector<320x128xf32>
    %37 = arith.addf %34, %36 : vector<320x128xf32>
    %38 = vector.broadcast %0 : vector<320x1xf32> to vector<320x128xf32>
    %39 = arith.mulf %37, %38 : vector<320x128xf32>
    %40 = vector.shape_cast %39 : vector<320x128xf32> to vector<1x320x128xf32>
    %cst_30 = arith.constant dense<0.000000e+00> : vector<1xf32>
    %41 = vector.multi_reduction <add>, %40, %cst_30 [1, 2] : vector<1x320x128xf32> to vector<1xf32>
    %42 = vector.shape_cast %41 : vector<1xf32> to vector<1x1x1xf32>
    %43 = vector.extract %42[0, 0, 0] : f32 from vector<1x1x1xf32>
    %cst_31 = arith.constant 1.22070313E-4 : f32
    %44 = arith.mulf %43, %cst_31 : f32
    %45 = arith.mulf %39, %39 : vector<320x128xf32>
    %46 = vector.shape_cast %45 : vector<320x128xf32> to vector<1x320x128xf32>
    %cst_32 = arith.constant dense<0.000000e+00> : vector<1xf32>
    %47 = vector.multi_reduction <add>, %46, %cst_32 [1, 2] : vector<1x320x128xf32> to vector<1xf32>
    %48 = vector.shape_cast %47 : vector<1xf32> to vector<1x1x1xf32>
    %49 = vector.extract %48[0, 0, 0] : f32 from vector<1x1x1xf32>
    %cst_33 = arith.constant 1.22070313E-4 : f32
    %50 = arith.mulf %49, %cst_33 : f32
    %51 = arith.mulf %44, %44 : f32
    %52 = arith.subf %50, %51 : f32
    %53 = vector.broadcast %44 : f32 to vector<320x128xf32>
    %54 = arith.subf %37, %53 : vector<320x128xf32>
    %cst_34 = arith.constant 9.99999974E-6 : f32
    %55 = arith.addf %52, %cst_34 : f32
    %56 = math.rsqrt %55 : f32
    %57 = vector.broadcast %56 : f32 to vector<320x128xf32>
    %58 = arith.mulf %54, %57 : vector<320x128xf32>
    %59 = vector.broadcast %2 : vector<1x128xf32> to vector<320x128xf32>
    %60 = arith.mulf %58, %59 : vector<320x128xf32>
    %61 = vector.broadcast %4 : vector<1x128xf32> to vector<320x128xf32>
    %62 = arith.addf %60, %61 : vector<320x128xf32>
    %cst_35 = arith.constant 0.000000e+00 : f32
    %63 = vector.broadcast %cst_35 : f32 to vector<320x128xf32>
    %64 = arith.maximumf %62, %63 : vector<320x128xf32>
    %c0_36 = arith.constant 0 : index
    %c42_37 = arith.constant 42 : index
    %c0_38 = arith.constant 0 : index
    %65 = vector.load %arg1[%c0_36, %c42_37, %c0_38] : memref<1x420x128xf32, #tpu.memory_space<vmem>>, vector<1x320x128xf32>
    %66 = vector.shape_cast %65 : vector<1x320x128xf32> to vector<320x128xf32>
    %cst_39 = arith.constant 0.000000e+00 : f32
    %67 = vector.broadcast %cst_39 : f32 to vector<420x128xf32>
    %c0_40 = arith.constant 0 : index
    %c0_41 = arith.constant 0 : index
    %68 = vector.load %arg10[%c0_40, %c0_41] : memref<420x128xf32, #tpu.memory_space<vmem>>, vector<420x128xf32>
    tpu.vector_store %arg10[%c0_40, %c0_41], %67 {strides = array<i32>} : memref<420x128xf32, #tpu.memory_space<vmem>>, vector<420x128xf32>,
    %69 = vector.broadcast %0 : vector<320x1xf32> to vector<320x128xf32>
    %70 = arith.mulf %64, %69 : vector<320x128xf32>
    %c42_42 = arith.constant 42 : index
    %c0_43 = arith.constant 0 : index
    %71 = vector.load %arg10[%c42_42, %c0_43] : memref<420x128xf32, #tpu.memory_space<vmem>>, vector<320x128xf32>
    tpu.vector_store %arg10[%c42_42, %c0_43], %70 {strides = array<i32>} : memref<420x128xf32, #tpu.memory_space<vmem>>, vector<320x128xf32>,
    %c0_44 = arith.constant 0 : index
    %c0_45 = arith.constant 0 : index
    %72 = vector.load %arg10[%c0_44, %c0_45] : memref<420x128xf32, #tpu.memory_space<vmem>>, vector<320x128xf32>
    %73 = arith.truncf %72 : vector<320x128xf32> to vector<320x128xbf16>
    %c2_46 = arith.constant 2 : index
    %c0_47 = arith.constant 0 : index
    %74 = vector.load %arg10[%c2_46, %c0_47] : memref<420x128xf32, #tpu.memory_space<vmem>>, vector<320x128xf32>
    %75 = arith.truncf %74 : vector<320x128xf32> to vector<320x128xbf16>
    %c4_48 = arith.constant 4 : index
    %c0_49 = arith.constant 0 : index
    %76 = vector.load %arg10[%c4_48, %c0_49] : memref<420x128xf32, #tpu.memory_space<vmem>>, vector<320x128xf32>
    %77 = arith.truncf %76 : vector<320x128xf32> to vector<320x128xbf16>
    %c40_50 = arith.constant 40 : index
    %c0_51 = arith.constant 0 : index
    %78 = vector.load %arg10[%c40_50, %c0_51] : memref<420x128xf32, #tpu.memory_space<vmem>>, vector<320x128xf32>
    %79 = arith.truncf %78 : vector<320x128xf32> to vector<320x128xbf16>
    %c42_52 = arith.constant 42 : index
    %c0_53 = arith.constant 0 : index
    %80 = vector.load %arg10[%c42_52, %c0_53] : memref<420x128xf32, #tpu.memory_space<vmem>>, vector<320x128xf32>
    %81 = arith.truncf %80 : vector<320x128xf32> to vector<320x128xbf16>
    %c44_54 = arith.constant 44 : index
    %c0_55 = arith.constant 0 : index
    %82 = vector.load %arg10[%c44_54, %c0_55] : memref<420x128xf32, #tpu.memory_space<vmem>>, vector<320x128xf32>
    %83 = arith.truncf %82 : vector<320x128xf32> to vector<320x128xbf16>
    %c80_56 = arith.constant 80 : index
    %c0_57 = arith.constant 0 : index
    %84 = vector.load %arg10[%c80_56, %c0_57] : memref<420x128xf32, #tpu.memory_space<vmem>>, vector<320x128xf32>
    %85 = arith.truncf %84 : vector<320x128xf32> to vector<320x128xbf16>
    %c82_58 = arith.constant 82 : index
    %c0_59 = arith.constant 0 : index
    %86 = vector.load %arg10[%c82_58, %c0_59] : memref<420x128xf32, #tpu.memory_space<vmem>>, vector<320x128xf32>
    %87 = arith.truncf %86 : vector<320x128xf32> to vector<320x128xbf16>
    %c84_60 = arith.constant 84 : index
    %c0_61 = arith.constant 0 : index
    %88 = vector.load %arg10[%c84_60, %c0_61] : memref<420x128xf32, #tpu.memory_space<vmem>>, vector<320x128xf32>
    %89 = arith.truncf %88 : vector<320x128xf32> to vector<320x128xbf16>
    %90 = tpu.concatenate %73, %75, %77, %79, %81, %83, %85, %87, %89 in 1 : vector<320x128xbf16>, vector<320x128xbf16>, vector<320x128xbf16>, vector<320x128xbf16>, vector<320x128xbf16>, vector<320x128xbf16>, vector<320x128xbf16>, vector<320x128xbf16>, vector<320x128xbf16> -> vector<320x1152xbf16>
    %c0_62 = arith.constant 0 : index
    %c0_63 = arith.constant 0 : index
    %91 = vector.load %arg5[%c0_62, %c0_63] : memref<1152x128xbf16, #tpu.memory_space<vmem>>, vector<1152x128xbf16>
    %cst_64 = arith.constant dense<0.000000e+00> : vector<320x128xf32>
    %92 = tpu.matmul %90, %91, %cst_64 {dimension_numbers = #tpu.dot_dimension_numbers<[1], [0], [0], [1], [0, 0, 1, 1], [], []>} : vector<320x1152xbf16>, vector<1152x128xbf16>, vector<320x128xf32> -> vector<320x128xf32>
    %c0_65 = arith.constant 0 : index
    %c0_66 = arith.constant 0 : index
    %93 = vector.load %arg6[%c0_65, %c0_66] : memref<1x128xf32, #tpu.memory_space<vmem>>, vector<1x128xf32>
    %94 = vector.broadcast %93 : vector<1x128xf32> to vector<320x128xf32>
    %95 = arith.addf %92, %94 : vector<320x128xf32>
    %96 = vector.broadcast %0 : vector<320x1xf32> to vector<320x128xf32>
    %97 = arith.mulf %95, %96 : vector<320x128xf32>
    %98 = vector.shape_cast %97 : vector<320x128xf32> to vector<1x320x128xf32>
    %cst_67 = arith.constant dense<0.000000e+00> : vector<1xf32>
    %99 = vector.multi_reduction <add>, %98, %cst_67 [1, 2] : vector<1x320x128xf32> to vector<1xf32>
    %100 = vector.shape_cast %99 : vector<1xf32> to vector<1x1x1xf32>
    %101 = vector.extract %100[0, 0, 0] : f32 from vector<1x1x1xf32>
    %cst_68 = arith.constant 1.22070313E-4 : f32
    %102 = arith.mulf %101, %cst_68 : f32
    %103 = arith.mulf %97, %97 : vector<320x128xf32>
    %104 = vector.shape_cast %103 : vector<320x128xf32> to vector<1x320x128xf32>
    %cst_69 = arith.constant dense<0.000000e+00> : vector<1xf32>
    %105 = vector.multi_reduction <add>, %104, %cst_69 [1, 2] : vector<1x320x128xf32> to vector<1xf32>
    %106 = vector.shape_cast %105 : vector<1xf32> to vector<1x1x1xf32>
    %107 = vector.extract %106[0, 0, 0] : f32 from vector<1x1x1xf32>
    %cst_70 = arith.constant 1.22070313E-4 : f32
    %108 = arith.mulf %107, %cst_70 : f32
    %109 = arith.mulf %102, %102 : f32
    %110 = arith.subf %108, %109 : f32
    %111 = vector.broadcast %102 : f32 to vector<320x128xf32>
    %112 = arith.subf %95, %111 : vector<320x128xf32>
    %cst_71 = arith.constant 9.99999974E-6 : f32
    %113 = arith.addf %110, %cst_71 : f32
    %114 = math.rsqrt %113 : f32
    %115 = vector.broadcast %114 : f32 to vector<320x128xf32>
    %116 = arith.mulf %112, %115 : vector<320x128xf32>
    %117 = vector.broadcast %2 : vector<1x128xf32> to vector<320x128xf32>
    %118 = arith.mulf %116, %117 : vector<320x128xf32>
    %119 = vector.broadcast %4 : vector<1x128xf32> to vector<320x128xf32>
    %120 = arith.addf %118, %119 : vector<320x128xf32>
    %cst_72 = arith.constant 0.000000e+00 : f32
    %121 = vector.broadcast %cst_72 : f32 to vector<320x128xf32>
    %122 = arith.maximumf %120, %121 : vector<320x128xf32>
    %123 = arith.addf %122, %66 : vector<320x128xf32>
    %c0_73 = arith.constant 0 : index
    %c0_74 = arith.constant 0 : index
    %c0_75 = arith.constant 0 : index
    %124 = vector.load %arg9[%c0_73, %c0_74, %c0_75] : memref<1x320x128xf32, #tpu.memory_space<vmem>>, vector<1x320x128xf32>
    %125 = vector.shape_cast %124 : vector<1x320x128xf32> to vector<320x128xf32>
    %126 = vector.shape_cast %123 : vector<320x128xf32> to vector<1x320x128xf32>
    tpu.vector_store %arg9[%c0_73, %c0_74, %c0_75], %126 {strides = array<i32>} : memref<1x320x128xf32, #tpu.memory_space<vmem>>, vector<1x320x128xf32>,
    return
  }
  func.func @transform_0(%arg0: i32) -> (i32, i32, i32) {
    %c0_i32 = arith.constant 0 : i32
    %c0_i32_0 = arith.constant 0 : i32
    %c0_i32_1 = arith.constant 0 : i32
    return %arg0, %c0_i32, %c0_i32_0 : i32, i32, i32
  }
  func.func @transform_1(%arg0: i32) -> (i32, i32) {
    %c0_i32 = arith.constant 0 : i32
    %c0_i32_0 = arith.constant 0 : i32
    %c0_i32_1 = arith.constant 0 : i32
    return %c0_i32, %c0_i32_0 : i32, i32
  }
  func.func @transform_2(%arg0: i32) -> (i32, i32) {
    %c0_i32 = arith.constant 0 : i32
    %c0_i32_0 = arith.constant 0 : i32
    %c0_i32_1 = arith.constant 0 : i32
    return %c0_i32, %c0_i32_0 : i32, i32
  }
  func.func @transform_3(%arg0: i32) -> (i32, i32) {
    %c0_i32 = arith.constant 0 : i32
    %c0_i32_0 = arith.constant 0 : i32
    %c0_i32_1 = arith.constant 0 : i32
    return %c0_i32, %c0_i32_0 : i32, i32
  }
  func.func @transform_4(%arg0: i32) -> (i32, i32) {
    %c0_i32 = arith.constant 0 : i32
    %c0_i32_0 = arith.constant 0 : i32
    %c0_i32_1 = arith.constant 0 : i32
    return %c0_i32, %c0_i32_0 : i32, i32
  }
  func.func @transform_5(%arg0: i32) -> (i32, i32) {
    %c0_i32 = arith.constant 0 : i32
    %c0_i32_0 = arith.constant 0 : i32
    %c0_i32_1 = arith.constant 0 : i32
    return %c0_i32, %c0_i32_0 : i32, i32
  }
  func.func @transform_6(%arg0: i32) -> (i32, i32, i32) {
    %c0_i32 = arith.constant 0 : i32
    %c0_i32_0 = arith.constant 0 : i32
    %c0_i32_1 = arith.constant 0 : i32
    return %arg0, %c0_i32, %c0_i32_0 : i32, i32, i32
  }
  func.func @transform_7(%arg0: i32) -> (i32, i32, i32) {
    %c0_i32 = arith.constant 0 : i32
    %c0_i32_0 = arith.constant 0 : i32
    %c0_i32_1 = arith.constant 0 : i32
    return %arg0, %c0_i32, %c0_i32_0 : i32, i32, i32
  }
  func.func @transform_8(%arg0: i32) -> (i32, i32, i32) {
    %c0_i32 = arith.constant 0 : i32
    %c0_i32_0 = arith.constant 0 : i32
    %c0_i32_1 = arith.constant 0 : i32
    return %arg0, %c0_i32, %c0_i32_0 : i32, i32, i32
  }
}

</mosaic_0001>

<llo_original>
// kernel: dilated_net_forward.3
$region0: #{dilated_net_forward.3}
  #allocation0 [shape = 'u32[]', space=smem, size = 0x4, offset = 0x4, fixed_abs, tag = 'smem constant byte address 0x4 - core index']
  #allocation1 [shape = 'u32[144,128]{1,0:T(1,128)}', space=vmem, size = 0x12000, scoped, tag = 'internal scratch']
  #allocation2 [shape = 'f32[420,128]{1,0:T(8,128)}', space=vmem, size = 0x35000, scoped, tag = 'scratch operand']
  %s0 = inlined_call_operand.vmem [shape: f32[2,420,128], index: 0, kind: input, shape index: {}]
  %s1 = inlined_call_operand.vmem [shape: f32[320,1], index: 1, kind: input, shape index: {}]
  %s2 = inlined_call_operand.vmem [shape: bf16[1152,128], index: 2, kind: input, shape index: {}]
  %s3 = inlined_call_operand.vmem [shape: f32[1,128], index: 3, kind: input, shape index: {}]
  %s4 = inlined_call_operand.vmem [shape: bf16[1152,128], index: 4, kind: input, shape index: {}]
  %s5 = inlined_call_operand.vmem [shape: f32[1,128], index: 5, kind: input, shape index: {}]
  %s6 = inlined_call_operand.vmem [shape: f32[2,1,128], index: 6, kind: input, shape index: {}]
  %s7 = inlined_call_operand.vmem [shape: f32[2,1,128], index: 7, kind: input, shape index: {}]
  %s8 = inlined_call_operand.vmem [shape: f32[2,320,128], index: 8, kind: output, shape index: {}]
  %s9 = sld [smem:[#allocation0]]
  $region65: #{dilated_net_forward.3} parent=0
    _
  %s11 = ssub.s32 1, %s9
  %s12 = scalar_select 0, %s11, %s9
  loop: start=0, step=1, limit=4
  $region2: #{dilated_net_forward.3} parent=0 // loop_pre_header
    _
  $region3: #{dilated_net_forward.3} parent=0 // loop_header
    %s14 = sphi 0, %s18
    %p15 = scmp.ge.s32.totalorder %s14, 4
    %s24 = sphi 0, %s26
    %s27 = sphi 0, %s24
    %s28 = sphi 0, %s27
    %s44 = sphi 0, %s28
    %s48 = sphi 0, %s48
    %s50 = sphi 0, %s48
    %s51 = sphi 0, %s50
    %s65 = sphi 0, %s51
    %s69 = sphi 0, %s69
    %s71 = sphi 0, %s69
    %s72 = sphi 0, %s71
    %s86 = sphi 0, %s72
    %s90 = sphi 0, %s90
    %s92 = sphi 0, %s90
    %s93 = sphi 0, %s92
    %s107 = sphi 0, %s93
    %s111 = sphi 0, %s111
    %s113 = sphi 0, %s111
    %s114 = sphi 0, %s113
    %s128 = sphi 0, %s114
    %s132 = sphi 0, %s132
    %s134 = sphi 0, %s132
    %s135 = sphi 0, %s134
    %s149 = sphi 0, %s135
    %s155 = sphi 0, %s157
    %s158 = sphi 0, %s155
    %s159 = sphi 0, %s158
    %s175 = sphi 0, %s159
    %s181 = sphi 0, %s183
    %s184 = sphi 0, %s181
    %s185 = sphi 0, %s184
    %s201 = sphi 0, %s185
    %s207 = sphi 0, %s209
    %s210 = sphi 0, %s207
    %s211 = sphi 0, %s210
    %s227 = sphi 0, %s211
  $region4: #{dilated_net_forward.3} parent=0 // loop_header_branch
    %17 = sbr.rel (%p15) target = $region8
  $region5: #{dilated_net_forward.3} parent=0 // loop_body
    %s19 = ssub.s32 %s14, 1
    %s20 = ssub.s32 %s14, 2
    %s21 = sadd.s32 %s14, 1
    %s22 = ssub.s32 %s14, %s21
    %p23 = scmp.eq.s32.totalorder %s22, 0
    %s25 = sadd.s32 %s24, 1
    %s26 = scalar_select %p23, %s24, %s25
    %p29 = pneg %p23
    %p30 = scmp.eq.s32.totalorder %s14, 1
    %p31 = por %p29, %p30
    %p32 = scmp.ne.s32.totalorder %s24, %s27
    %p33 = scmp.eq.s32.totalorder %s14, 0
    %p34 = por %p32, %p33
    %p35 = scmp.ne.s32.totalorder %s24, %s27
    %p36 = scmp.eq.s32.totalorder %s19, 1
    %p37 = por %p35, %p36
    %p38 = scmp.ne.s32.totalorder %s27, %s28
    %p39 = scmp.eq.s32.totalorder %s19, 0
    %p40 = por %p38, %p39
    %p41 = scmp.ne.s32.totalorder %s27, %s28
    %p42 = scmp.eq.s32.totalorder %s20, 1
    %p43 = por %p41, %p42
    %p45 = scmp.ne.s32.totalorder %s28, %s44
    %p46 = scmp.eq.s32.totalorder %s20, 0
    %p47 = por %p45, %p46
    %s49 = sadd.s32 %s48, 1
    %p52 = scmp.eq.s32.totalorder %s14, 1
    %p53 = scmp.ne.s32.totalorder %s48, %s50
    %p54 = scmp.eq.s32.totalorder %s14, 0
    %p55 = por %p53, %p54
    %p56 = scmp.ne.s32.totalorder %s48, %s50
    %p57 = scmp.eq.s32.totalorder %s19, 1
    %p58 = por %p56, %p57
    %p59 = scmp.ne.s32.totalorder %s50, %s51
    %p60 = scmp.eq.s32.totalorder %s19, 0
    %p61 = por %p59, %p60
    %p62 = scmp.ne.s32.totalorder %s50, %s51
    %p63 = scmp.eq.s32.totalorder %s20, 1
    %p64 = por %p62, %p63
    %p66 = scmp.ne.s32.totalorder %s51, %s65
    %p67 = scmp.eq.s32.totalorder %s20, 0
    %p68 = por %p66, %p67
    %s70 = sadd.s32 %s69, 1
    %p73 = scmp.eq.s32.totalorder %s14, 1
    %p74 = scmp.ne.s32.totalorder %s69, %s71
    %p75 = scmp.eq.s32.totalorder %s14, 0
    %p76 = por %p74, %p75
    %p77 = scmp.ne.s32.totalorder %s69, %s71
    %p78 = scmp.eq.s32.totalorder %s19, 1
    %p79 = por %p77, %p78
    %p80 = scmp.ne.s32.totalorder %s71, %s72
    %p81 = scmp.eq.s32.totalorder %s19, 0
    %p82 = por %p80, %p81
    %p83 = scmp.ne.s32.totalorder %s71, %s72
    %p84 = scmp.eq.s32.totalorder %s20, 1
    %p85 = por %p83, %p84
    %p87 = scmp.ne.s32.totalorder %s72, %s86
    %p88 = scmp.eq.s32.totalorder %s20, 0
    %p89 = por %p87, %p88
    %s91 = sadd.s32 %s90, 1
    %p94 = scmp.eq.s32.totalorder %s14, 1
    %p95 = scmp.ne.s32.totalorder %s90, %s92
    %p96 = scmp.eq.s32.totalorder %s14, 0
    %p97 = por %p95, %p96
    %p98 = scmp.ne.s32.totalorder %s90, %s92
    %p99 = scmp.eq.s32.totalorder %s19, 1
    %p100 = por %p98, %p99
    %p101 = scmp.ne.s32.totalorder %s92, %s93
    %p102 = scmp.eq.s32.totalorder %s19, 0
    %p103 = por %p101, %p102
    %p104 = scmp.ne.s32.totalorder %s92, %s93
    %p105 = scmp.eq.s32.totalorder %s20, 1
    %p106 = por %p104, %p105
    %p108 = scmp.ne.s32.totalorder %s93, %s107
    %p109 = scmp.eq.s32.totalorder %s20, 0
    %p110 = por %p108, %p109
    %s112 = sadd.s32 %s111, 1
    %p115 = scmp.eq.s32.totalorder %s14, 1
    %p116 = scmp.ne.s32.totalorder %s111, %s113
    %p117 = scmp.eq.s32.totalorder %s14, 0
    %p118 = por %p116, %p117
    %p119 = scmp.ne.s32.totalorder %s111, %s113
    %p120 = scmp.eq.s32.totalorder %s19, 1
    %p121 = por %p119, %p120
    %p122 = scmp.ne.s32.totalorder %s113, %s114
    %p123 = scmp.eq.s32.totalorder %s19, 0
    %p124 = por %p122, %p123
    %p125 = scmp.ne.s32.totalorder %s113, %s114
    %p126 = scmp.eq.s32.totalorder %s20, 1
    %p127 = por %p125, %p126
    %p129 = scmp.ne.s32.totalorder %s114, %s128
    %p130 = scmp.eq.s32.totalorder %s20, 0
    %p131 = por %p129, %p130
    %s133 = sadd.s32 %s132, 1
    %p136 = scmp.eq.s32.totalorder %s14, 1
    %p137 = scmp.ne.s32.totalorder %s132, %s134
    %p138 = scmp.eq.s32.totalorder %s14, 0
    %p139 = por %p137, %p138
    %p140 = scmp.ne.s32.totalorder %s132, %s134
    %p141 = scmp.eq.s32.totalorder %s19, 1
    %p142 = por %p140, %p141
    %p143 = scmp.ne.s32.totalorder %s134, %s135
    %p144 = scmp.eq.s32.totalorder %s19, 0
    %p145 = por %p143, %p144
    %p146 = scmp.ne.s32.totalorder %s134, %s135
    %p147 = scmp.eq.s32.totalorder %s20, 1
    %p148 = por %p146, %p147
    %p150 = scmp.ne.s32.totalorder %s135, %s149
    %p151 = scmp.eq.s32.totalorder %s20, 0
    %p152 = por %p150, %p151
    %s153 = ssub.s32 %s14, %s21
    %p154 = scmp.eq.s32.totalorder %s153, 0
    %s156 = sadd.s32 %s155, 1
    %s157 = scalar_select %p154, %s155, %s156
    %p160 = pneg %p154
    %p161 = scmp.eq.s32.totalorder %s14, 1
    %p162 = por %p160, %p161
    %p163 = scmp.ne.s32.totalorder %s155, %s158
    %p164 = scmp.eq.s32.totalorder %s14, 0
    %p165 = por %p163, %p164
    %p166 = scmp.ne.s32.totalorder %s155, %s158
    %p167 = scmp.eq.s32.totalorder %s19, 1
    %p168 = por %p166, %p167
    %p169 = scmp.ne.s32.totalorder %s158, %s159
    %p170 = scmp.eq.s32.totalorder %s19, 0
    %p171 = por %p169, %p170
    %p172 = scmp.ne.s32.totalorder %s158, %s159
    %p173 = scmp.eq.s32.totalorder %s20, 1
    %p174 = por %p172, %p173
    %p176 = scmp.ne.s32.totalorder %s159, %s175
    %p177 = scmp.eq.s32.totalorder %s20, 0
    %p178 = por %p176, %p177
    %s179 = ssub.s32 %s14, %s21
    %p180 = scmp.eq.s32.totalorder %s179, 0
    %s182 = sadd.s32 %s181, 1
    %s183 = scalar_select %p180, %s181, %s182
    %p186 = pneg %p180
    %p187 = scmp.eq.s32.totalorder %s14, 1
    %p188 = por %p186, %p187
    %p189 = scmp.ne.s32.totalorder %s181, %s184
    %p190 = scmp.eq.s32.totalorder %s14, 0
    %p191 = por %p189, %p190
    %p192 = scmp.ne.s32.totalorder %s181, %s184
    %p193 = scmp.eq.s32.totalorder %s19, 1
    %p194 = por %p192, %p193
    %p195 = scmp.ne.s32.totalorder %s184, %s185
    %p196 = scmp.eq.s32.totalorder %s19, 0
    %p197 = por %p195, %p196
    %p198 = scmp.ne.s32.totalorder %s184, %s185
    %p199 = scmp.eq.s32.totalorder %s20, 1
    %p200 = por %p198, %p199
    %p202 = scmp.ne.s32.totalorder %s185, %s201
    %p203 = scmp.eq.s32.totalorder %s20, 0
    %p204 = por %p202, %p203
    %s205 = ssub.s32 %s14, %s21
    %p206 = scmp.eq.s32.totalorder %s205, 0
    %s208 = sadd.s32 %s207, 1
    %s209 = scalar_select %p206, %s207, %s208
    %p212 = pneg %p206
    %p213 = scmp.eq.s32.totalorder %s14, 1
    %p214 = por %p212, %p213
    %p215 = scmp.ne.s32.totalorder %s207, %s210
    %p216 = scmp.eq.s32.totalorder %s14, 0
    %p217 = por %p215, %p216
    %p218 = scmp.ne.s32.totalorder %s207, %s210
    %p219 = scmp.eq.s32.totalorder %s19, 1
    %p220 = por %p218, %p219
    %p221 = scmp.ne.s32.totalorder %s210, %s211
    %p222 = scmp.eq.s32.totalorder %s19, 0
    %p223 = por %p221, %p222
    %p224 = scmp.ne.s32.totalorder %s210, %s211
    %p225 = scmp.eq.s32.totalorder %s20, 1
    %p226 = por %p224, %p225
    %p228 = scmp.ne.s32.totalorder %s211, %s227
    %p229 = scmp.eq.s32.totalorder %s20, 0
    %p230 = por %p228, %p229
    %p231 = scmp.le.s32.totalorder 1, %s14
    %p232 = scmp.lt.s32.totalorder %s14, 3
    %p233 = pnand %p231, %p232
    %p234 = pneg %p233
    // Predicated region
    $region9: #{dilated_net_forward.3} parent=5 // pred_check
      _
    $region10: #{dilated_net_forward.3} parent=5 // pred_check_branch
      %236 = sbr.rel (%p233) target = $region12
    $region11: #{dilated_net_forward.3} parent=5 // pred_region
      %s237 = ssub.s32 %s14, 1
      // Predicated region
      $region13: #{dilated_net_forward.3} parent=11 // pred_check
        %p238 = pneg %p61
      $region14: #{dilated_net_forward.3} parent=11 // pred_check_branch
        %240 = sbr.rel (%p238) target = $region16
      $region15: #{dilated_net_forward.3} parent=11 // pred_region
        _
      $region16: #{dilated_net_forward.3} parent=11 // pred_fallthru
        _
      // Predicated region
      $region17: #{dilated_net_forward.3} parent=11 // pred_check
        %p241 = pneg %p82
      $region18: #{dilated_net_forward.3} parent=11 // pred_check_branch
        %243 = sbr.rel (%p241) target = $region20
      $region19: #{dilated_net_forward.3} parent=11 // pred_region
        _
      $region20: #{dilated_net_forward.3} parent=11 // pred_fallthru
        _
      // Predicated region
      $region21: #{dilated_net_forward.3} parent=11 // pred_check
        %p244 = pneg %p103
      $region22: #{dilated_net_forward.3} parent=11 // pred_check_branch
        %246 = sbr.rel (%p244) target = $region24
      $region23: #{dilated_net_forward.3} parent=11 // pred_region
        _
      $region24: #{dilated_net_forward.3} parent=11 // pred_fallthru
        _
      // Predicated region
      $region25: #{dilated_net_forward.3} parent=11 // pred_check
        %p247 = pneg %p124
      $region26: #{dilated_net_forward.3} parent=11 // pred_check_branch
        %249 = sbr.rel (%p247) target = $region28
      $region27: #{dilated_net_forward.3} parent=11 // pred_region
        _
      $region28: #{dilated_net_forward.3} parent=11 // pred_fallthru
        _
      // Predicated region
      $region29: #{dilated_net_forward.3} parent=11 // pred_check
        %p250 = pneg %p145
      $region30: #{dilated_net_forward.3} parent=11 // pred_check_branch
        %252 = sbr.rel (%p250) target = $region32
      $region31: #{dilated_net_forward.3} parent=11 // pred_region
        _
      $region32: #{dilated_net_forward.3} parent=11 // pred_fallthru
        _
    $region12: #{dilated_net_forward.3} parent=5 // pred_fallthru
      _
    %p253 = scmp.lt.s32.totalorder %s14, 2
    // Predicated region
    $region33: #{dilated_net_forward.3} parent=5 // pred_check
      %p254 = pneg %p253
    $region34: #{dilated_net_forward.3} parent=5 // pred_check_branch
      %256 = sbr.rel (%p254) target = $region36
    $region35: #{dilated_net_forward.3} parent=5 // pred_region
      // Predicated region
      $region37: #{dilated_net_forward.3} parent=35 // pred_check
        %p257 = pneg %p34
      $region38: #{dilated_net_forward.3} parent=35 // pred_check_branch
        %259 = sbr.rel (%p257) target = $region40
      $region39: #{dilated_net_forward.3} parent=35 // pred_region
        %p260 = scmp.lt.s32.totalorder %s14, 1
        %s261 = scalar_select %p260, %s14, 1
        %s262 = smul.addr %s261, 53
        %s263 = smul.addr %s262, 8
        %s264 = scalar_lea.vmem %s0, %s263
      $region40: #{dilated_net_forward.3} parent=35 // pred_fallthru
        _
      // Predicated region
      $region41: #{dilated_net_forward.3} parent=35 // pred_check
        %p265 = pneg %p165
      $region42: #{dilated_net_forward.3} parent=35 // pred_check_branch
        %267 = sbr.rel (%p265) target = $region44
      $region43: #{dilated_net_forward.3} parent=35 // pred_region
        %p268 = scmp.lt.s32.totalorder %s14, 1
        %s269 = scalar_select %p268, %s14, 1
        %s270 = scalar_lea.vmem %s6, %s269
      $region44: #{dilated_net_forward.3} parent=35 // pred_fallthru
        _
      // Predicated region
      $region45: #{dilated_net_forward.3} parent=35 // pred_check
        %p271 = pneg %p191
      $region46: #{dilated_net_forward.3} parent=35 // pred_check_branch
        %273 = sbr.rel (%p271) target = $region48
      $region47: #{dilated_net_forward.3} parent=35 // pred_region
        %p274 = scmp.lt.s32.totalorder %s14, 1
        %s275 = scalar_select %p274, %s14, 1
        %s276 = scalar_lea.vmem %s7, %s275
      $region48: #{dilated_net_forward.3} parent=35 // pred_fallthru
        _
    $region36: #{dilated_net_forward.3} parent=5 // pred_fallthru
      _
    %p277 = scmp.le.s32.totalorder 1, %s14
    %p278 = scmp.lt.s32.totalorder %s14, 3
    %p279 = pnand %p277, %p278
    %p280 = pneg %p279
    // Predicated region
    $region49: #{dilated_net_forward.3} parent=5 // pred_check
      _
    $region50: #{dilated_net_forward.3} parent=5 // pred_check_branch
      %282 = sbr.rel (%p279) target = $region52
    $region51: #{dilated_net_forward.3} parent=5 // pred_region
      %s283 = ssub.s32 %s14, 1
      %p284 = scmp.lt.s32.totalorder %s19, 1
      %s285 = scalar_select %p284, %s19, 1
      %s286 = smul.addr %s285, 53
      %s287 = smul.addr %s286, 8
      %s288 = scalar_lea.vmem %s0, %s287
      %p289 = pneg %p40
      %p290 = pneg %p37
      %p291 = pneg %p61
      %p292 = pneg %p58
      %p293 = pneg %p82
      %p294 = pneg %p79
      %p295 = pneg %p103
      %p296 = pneg %p100
      %p297 = pneg %p124
      %p298 = pneg %p121
      %p299 = pneg %p145
      %p300 = pneg %p142
      %p301 = scmp.lt.s32.totalorder %s19, 1
      %s302 = scalar_select %p301, %s19, 1
      %s303 = scalar_lea.vmem %s6, %s302
      %p304 = pneg %p171
      %p305 = pneg %p168
      %p306 = scmp.lt.s32.totalorder %s19, 1
      %s307 = scalar_select %p306, %s19, 1
      %s308 = scalar_lea.vmem %s7, %s307
      %p309 = pneg %p197
      %p310 = pneg %p194
      %p311 = pneg %p223
      %p312 = pneg %p220
      %p313 = scmp.lt.s32.totalorder %s19, 1
      %s314 = scalar_select %p313, %s19, 1
      %s315 = smul.addr %s314, 40
      %s316 = smul.addr %s315, 8
      %s317 = scalar_lea.vmem %s8, %s316
      %p318 = scmp.lt.s32.totalorder %s19, 1
      %s319 = scalar_select %p318, %s19, 1
      %s320 = smul.addr %s319, 53
      %s321 = smul.addr %s320, 8
      %s322 = scalar_lea.vmem %s0, %s321
      %p323 = scmp.lt.s32.totalorder %s19, 1
      %s324 = scalar_select %p323, %s19, 1
      %s325 = scalar_lea.vmem %s6, %s324
      %p326 = scmp.lt.s32.totalorder %s19, 1
      %s327 = scalar_select %p326, %s19, 1
      %s328 = scalar_lea.vmem %s7, %s327
      %p329 = scmp.lt.s32.totalorder %s19, 1
      %s330 = scalar_select %p329, %s19, 1
      %s331 = smul.addr %s330, 40
      %s332 = smul.addr %s331, 8
      %s333 = scalar_lea.vmem %s8, %s332
      %v335 = vld [vmem:[%s1] sm:$0xff]
      %v336 = vld [vmem:[%s1 + $0x8] sm:$0xff]
      %v337 = vld [vmem:[%s1 + $0x10] sm:$0xff]
      %v338 = vld [vmem:[%s1 + $0x18] sm:$0xff]
      %v339 = vld [vmem:[%s1 + $0x20] sm:$0xff]
      %v340 = vld [vmem:[%s1 + $0x28] sm:$0xff]
      %v341 = vld [vmem:[%s1 + $0x30] sm:$0xff]
      %v342 = vld [vmem:[%s1 + $0x38] sm:$0xff]
      %v343 = vld [vmem:[%s1 + $0x40] sm:$0xff]
      %v344 = vld [vmem:[%s1 + $0x48] sm:$0xff]
      %v345 = vld [vmem:[%s1 + $0x50] sm:$0xff]
      %v346 = vld [vmem:[%s1 + $0x58] sm:$0xff]
      %v347 = vld [vmem:[%s1 + $0x60] sm:$0xff]
      %v348 = vld [vmem:[%s1 + $0x68] sm:$0xff]
      %v349 = vld [vmem:[%s1 + $0x70] sm:$0xff]
      %v350 = vld [vmem:[%s1 + $0x78] sm:$0xff]
      %v351 = vld [vmem:[%s1 + $0x80] sm:$0xff]
      %v352 = vld [vmem:[%s1 + $0x88] sm:$0xff]
      %v353 = vld [vmem:[%s1 + $0x90] sm:$0xff]
      %v354 = vld [vmem:[%s1 + $0x98] sm:$0xff]
      %v355 = vld [vmem:[%s1 + $0xa0] sm:$0xff]
      %v356 = vld [vmem:[%s1 + $0xa8] sm:$0xff]
      %v357 = vld [vmem:[%s1 + $0xb0] sm:$0xff]
      %v358 = vld [vmem:[%s1 + $0xb8] sm:$0xff]
      %v359 = vld [vmem:[%s1 + $0xc0] sm:$0xff]
      %v360 = vld [vmem:[%s1 + $0xc8] sm:$0xff]
      %v361 = vld [vmem:[%s1 + $0xd0] sm:$0xff]
      %v362 = vld [vmem:[%s1 + $0xd8] sm:$0xff]
      %v363 = vld [vmem:[%s1 + $0xe0] sm:$0xff]
      %v364 = vld [vmem:[%s1 + $0xe8] sm:$0xff]
      %v365 = vld [vmem:[%s1 + $0xf0] sm:$0xff]
      %v366 = vld [vmem:[%s1 + $0xf8] sm:$0xff]
      %v367 = vld [vmem:[%s1 + $0x100] sm:$0xff]
      %v368 = vld [vmem:[%s1 + $0x108] sm:$0xff]
      %v369 = vld [vmem:[%s1 + $0x110] sm:$0xff]
      %v370 = vld [vmem:[%s1 + $0x118] sm:$0xff]
      %v371 = vld [vmem:[%s1 + $0x120] sm:$0xff]
      %v372 = vld [vmem:[%s1 + $0x128] sm:$0xff]
      %v373 = vld [vmem:[%s1 + $0x130] sm:$0xff]
      %v374 = vld [vmem:[%s1 + $0x138] sm:$0xff]
      %v375 = vld [vmem:[%s325] sm:$0x1]
      %v376 = vld [vmem:[%s328] sm:$0x1]
      %v377 = vld [vmem:[%s322] sm:$0xff]
      %v378 = vld [vmem:[%s322 + $0x8] sm:$0xff]
      %v379 = vld [vmem:[%s322 + $0x10] sm:$0xff]
      %v380 = vld [vmem:[%s322 + $0x18] sm:$0xff]
      %v381 = vld [vmem:[%s322 + $0x20] sm:$0xff]
      %v382 = vld [vmem:[%s322 + $0x28] sm:$0xff]
      %v383 = vld [vmem:[%s322 + $0x30] sm:$0xff]
      %v384 = vld [vmem:[%s322 + $0x38] sm:$0xff]
      %v385 = vld [vmem:[%s322 + $0x40] sm:$0xff]
      %v386 = vld [vmem:[%s322 + $0x48] sm:$0xff]
      %v387 = vld [vmem:[%s322 + $0x50] sm:$0xff]
      %v388 = vld [vmem:[%s322 + $0x58] sm:$0xff]
      %v389 = vld [vmem:[%s322 + $0x60] sm:$0xff]
      %v390 = vld [vmem:[%s322 + $0x68] sm:$0xff]
      %v391 = vld [vmem:[%s322 + $0x70] sm:$0xff]
      %v392 = vld [vmem:[%s322 + $0x78] sm:$0xff]
      %v393 = vld [vmem:[%s322 + $0x80] sm:$0xff]
      %v394 = vld [vmem:[%s322 + $0x88] sm:$0xff]
      %v395 = vld [vmem:[%s322 + $0x90] sm:$0xff]
      %v396 = vld [vmem:[%s322 + $0x98] sm:$0xff]
      %v397 = vld [vmem:[%s322 + $0xa0] sm:$0xff]
      %v398 = vld [vmem:[%s322 + $0xa8] sm:$0xff]
      %v399 = vld [vmem:[%s322 + $0xb0] sm:$0xff]
      %v400 = vld [vmem:[%s322 + $0xb8] sm:$0xff]
      %v401 = vld [vmem:[%s322 + $0xc0] sm:$0xff]
      %v402 = vld [vmem:[%s322 + $0xc8] sm:$0xff]
      %v403 = vld [vmem:[%s322 + $0xd0] sm:$0xff]
      %v404 = vld [vmem:[%s322 + $0xd8] sm:$0xff]
      %v405 = vld [vmem:[%s322 + $0xe0] sm:$0xff]
      %v406 = vld [vmem:[%s322 + $0xe8] sm:$0xff]
      %v407 = vld [vmem:[%s322 + $0xf0] sm:$0xff]
      %v408 = vld [vmem:[%s322 + $0xf8] sm:$0xff]
      %v409 = vld [vmem:[%s322 + $0x100] sm:$0xff]
      %v410 = vld [vmem:[%s322 + $0x108] sm:$0xff]
      %v411 = vld [vmem:[%s322 + $0x110] sm:$0xff]
      %v412 = vld [vmem:[%s322 + $0x118] sm:$0xff]
      %v413 = vld [vmem:[%s322 + $0x120] sm:$0xff]
      %v414 = vld [vmem:[%s322 + $0x128] sm:$0xff]
      %v415 = vld [vmem:[%s322 + $0x130] sm:$0xff]
      %v416 = vld [vmem:[%s322 + $0x138] sm:$0xff]
      %v417 = vpack.c.bf16 %v378, %v377
      %v418 = vpack.c.bf16 %v380, %v379
      %v419 = vpack.c.bf16 %v382, %v381
      %v420 = vpack.c.bf16 %v384, %v383
      %v421 = vpack.c.bf16 %v386, %v385
      %v422 = vpack.c.bf16 %v388, %v387
      %v423 = vpack.c.bf16 %v390, %v389
      %v424 = vpack.c.bf16 %v392, %v391
      %v425 = vpack.c.bf16 %v394, %v393
      %v426 = vpack.c.bf16 %v396, %v395
      %v427 = vpack.c.bf16 %v398, %v397
      %v428 = vpack.c.bf16 %v400, %v399
      %v429 = vpack.c.bf16 %v402, %v401
      %v430 = vpack.c.bf16 %v404, %v403
      %v431 = vpack.c.bf16 %v406, %v405
      %v432 = vpack.c.bf16 %v408, %v407
      %v433 = vpack.c.bf16 %v410, %v409
      %v434 = vpack.c.bf16 %v412, %v411
      %v435 = vpack.c.bf16 %v414, %v413
      %v436 = vpack.c.bf16 %v416, %v415
      %v437 = vld [vmem:[%s322 + $0x2] sm:$0xff]
      %v438 = vld [vmem:[%s322 + $0xa] sm:$0xff]
      %v439 = vld [vmem:[%s322 + $0x12] sm:$0xff]
      %v440 = vld [vmem:[%s322 + $0x1a] sm:$0xff]
      %v441 = vld [vmem:[%s322 + $0x22] sm:$0xff]
      %v442 = vld [vmem:[%s322 + $0x2a] sm:$0xff]
      %v443 = vld [vmem:[%s322 + $0x32] sm:$0xff]
      %v444 = vld [vmem:[%s322 + $0x3a] sm:$0xff]
      %v445 = vld [vmem:[%s322 + $0x42] sm:$0xff]
      %v446 = vld [vmem:[%s322 + $0x4a] sm:$0xff]
      %v447 = vld [vmem:[%s322 + $0x52] sm:$0xff]
      %v448 = vld [vmem:[%s322 + $0x5a] sm:$0xff]
      %v449 = vld [vmem:[%s322 + $0x62] sm:$0xff]
      %v450 = vld [vmem:[%s322 + $0x6a] sm:$0xff]
      %v451 = vld [vmem:[%s322 + $0x72] sm:$0xff]
      %v452 = vld [vmem:[%s322 + $0x7a] sm:$0xff]
      %v453 = vld [vmem:[%s322 + $0x82] sm:$0xff]
      %v454 = vld [vmem:[%s322 + $0x8a] sm:$0xff]
      %v455 = vld [vmem:[%s322 + $0x92] sm:$0xff]
      %v456 = vld [vmem:[%s322 + $0x9a] sm:$0xff]
      %v457 = vld [vmem:[%s322 + $0xa2] sm:$0xff]
      %v458 = vld [vmem:[%s322 + $0xaa] sm:$0xff]
      %v459 = vld [vmem:[%s322 + $0xb2] sm:$0xff]
      %v460 = vld [vmem:[%s322 + $0xba] sm:$0xff]
      %v461 = vld [vmem:[%s322 + $0xc2] sm:$0xff]
      %v462 = vld [vmem:[%s322 + $0xca] sm:$0xff]
      %v463 = vld [vmem:[%s322 + $0xd2] sm:$0xff]
      %v464 = vld [vmem:[%s322 + $0xda] sm:$0xff]
      %v465 = vld [vmem:[%s322 + $0xe2] sm:$0xff]
      %v466 = vld [vmem:[%s322 + $0xea] sm:$0xff]
      %v467 = vld [vmem:[%s322 + $0xf2] sm:$0xff]
      %v468 = vld [vmem:[%s322 + $0xfa] sm:$0xff]
      %v469 = vld [vmem:[%s322 + $0x102] sm:$0xff]
      %v470 = vld [vmem:[%s322 + $0x10a] sm:$0xff]
      %v471 = vld [vmem:[%s322 + $0x112] sm:$0xff]
      %v472 = vld [vmem:[%s322 + $0x11a] sm:$0xff]
      %v473 = vld [vmem:[%s322 + $0x122] sm:$0xff]
      %v474 = vld [vmem:[%s322 + $0x12a] sm:$0xff]
      %v475 = vld [vmem:[%s322 + $0x132] sm:$0xff]
      %v476 = vld [vmem:[%s322 + $0x13a] sm:$0xff]
      %v477 = vpack.c.bf16 %v438, %v437
      %v478 = vpack.c.bf16 %v440, %v439
      %v479 = vpack.c.bf16 %v442, %v441
      %v480 = vpack.c.bf16 %v444, %v443
      %v481 = vpack.c.bf16 %v446, %v445
      %v482 = vpack.c.bf16 %v448, %v447
      %v483 = vpack.c.bf16 %v450, %v449
      %v484 = vpack.c.bf16 %v452, %v451
      %v485 = vpack.c.bf16 %v454, %v453
      %v486 = vpack.c.bf16 %v456, %v455
      %v487 = vpack.c.bf16 %v458, %v457
      %v488 = vpack.c.bf16 %v460, %v459
      %v489 = vpack.c.bf16 %v462, %v461
      %v490 = vpack.c.bf16 %v464, %v463
      %v491 = vpack.c.bf16 %v466, %v465
      %v492 = vpack.c.bf16 %v468, %v467
      %v493 = vpack.c.bf16 %v470, %v469
      %v494 = vpack.c.bf16 %v472, %v471
      %v495 = vpack.c.bf16 %v474, %v473
      %v496 = vpack.c.bf16 %v476, %v475
      %v497 = vld [vmem:[%s322 + $0x4] sm:$0xff]
      %v498 = vld [vmem:[%s322 + $0xc] sm:$0xff]
      %v499 = vld [vmem:[%s322 + $0x14] sm:$0xff]
      %v500 = vld [vmem:[%s322 + $0x1c] sm:$0xff]
      %v501 = vld [vmem:[%s322 + $0x24] sm:$0xff]
      %v502 = vld [vmem:[%s322 + $0x2c] sm:$0xff]
      %v503 = vld [vmem:[%s322 + $0x34] sm:$0xff]
      %v504 = vld [vmem:[%s322 + $0x3c] sm:$0xff]
      %v505 = vld [vmem:[%s322 + $0x44] sm:$0xff]
      %v506 = vld [vmem:[%s322 + $0x4c] sm:$0xff]
      %v507 = vld [vmem:[%s322 + $0x54] sm:$0xff]
      %v508 = vld [vmem:[%s322 + $0x5c] sm:$0xff]
      %v509 = vld [vmem:[%s322 + $0x64] sm:$0xff]
      %v510 = vld [vmem:[%s322 + $0x6c] sm:$0xff]
      %v511 = vld [vmem:[%s322 + $0x74] sm:$0xff]
      %v512 = vld [vmem:[%s322 + $0x7c] sm:$0xff]
      %v513 = vld [vmem:[%s322 + $0x84] sm:$0xff]
      %v514 = vld [vmem:[%s322 + $0x8c] sm:$0xff]
      %v515 = vld [vmem:[%s322 + $0x94] sm:$0xff]
      %v516 = vld [vmem:[%s322 + $0x9c] sm:$0xff]
      %v517 = vld [vmem:[%s322 + $0xa4] sm:$0xff]
      %v518 = vld [vmem:[%s322 + $0xac] sm:$0xff]
      %v519 = vld [vmem:[%s322 + $0xb4] sm:$0xff]
      %v520 = vld [vmem:[%s322 + $0xbc] sm:$0xff]
      %v521 = vld [vmem:[%s322 + $0xc4] sm:$0xff]
      %v522 = vld [vmem:[%s322 + $0xcc] sm:$0xff]
      %v523 = vld [vmem:[%s322 + $0xd4] sm:$0xff]
      %v524 = vld [vmem:[%s322 + $0xdc] sm:$0xff]
      %v525 = vld [vmem:[%s322 + $0xe4] sm:$0xff]
      %v526 = vld [vmem:[%s322 + $0xec] sm:$0xff]
      %v527 = vld [vmem:[%s322 + $0xf4] sm:$0xff]
      %v528 = vld [vmem:[%s322 + $0xfc] sm:$0xff]
      %v529 = vld [vmem:[%s322 + $0x104] sm:$0xff]
      %v530 = vld [vmem:[%s322 + $0x10c] sm:$0xff]
      %v531 = vld [vmem:[%s322 + $0x114] sm:$0xff]
      %v532 = vld [vmem:[%s322 + $0x11c] sm:$0xff]
      %v533 = vld [vmem:[%s322 + $0x124] sm:$0xff]
      %v534 = vld [vmem:[%s322 + $0x12c] sm:$0xff]
      %v535 = vld [vmem:[%s322 + $0x134] sm:$0xff]
      %v536 = vld [vmem:[%s322 + $0x13c] sm:$0xff]
      %v537 = vpack.c.bf16 %v498, %v497
      %v538 = vpack.c.bf16 %v500, %v499
      %v539 = vpack.c.bf16 %v502, %v501
      %v540 = vpack.c.bf16 %v504, %v503
      %v541 = vpack.c.bf16 %v506, %v505
      %v542 = vpack.c.bf16 %v508, %v507
      %v543 = vpack.c.bf16 %v510, %v509
      %v544 = vpack.c.bf16 %v512, %v511
      %v545 = vpack.c.bf16 %v514, %v513
      %v546 = vpack.c.bf16 %v516, %v515
      %v547 = vpack.c.bf16 %v518, %v517
      %v548 = vpack.c.bf16 %v520, %v519
      %v549 = vpack.c.bf16 %v522, %v521
      %v550 = vpack.c.bf16 %v524, %v523
      %v551 = vpack.c.bf16 %v526, %v525
      %v552 = vpack.c.bf16 %v528, %v527
      %v553 = vpack.c.bf16 %v530, %v529
      %v554 = vpack.c.bf16 %v532, %v531
      %v555 = vpack.c.bf16 %v534, %v533
      %v556 = vpack.c.bf16 %v536, %v535
      %v557 = vld [vmem:[%s322 + $0x140] sm:$0xff]
      %v558 = vld [vmem:[%s322 + $0x148] sm:$0xff]
      %v559 = vld [vmem:[%s322 + $0x150] sm:$0xff]
      %v560 = vld [vmem:[%s322 + $0x158] sm:$0xff]
      %v561 = vld [vmem:[%s322 + $0x160] sm:$0xff]
      %v562 = vpack.c.bf16 %v383, %v382
      %v563 = vpack.c.bf16 %v385, %v384
      %v564 = vpack.c.bf16 %v387, %v386
      %v565 = vpack.c.bf16 %v389, %v388
      %v566 = vpack.c.bf16 %v391, %v390
      %v567 = vpack.c.bf16 %v393, %v392
      %v568 = vpack.c.bf16 %v395, %v394
      %v569 = vpack.c.bf16 %v397, %v396
      %v570 = vpack.c.bf16 %v399, %v398
      %v571 = vpack.c.bf16 %v401, %v400
      %v572 = vpack.c.bf16 %v403, %v402
      %v573 = vpack.c.bf16 %v405, %v404
      %v574 = vpack.c.bf16 %v407, %v406
      %v575 = vpack.c.bf16 %v409, %v408
      %v576 = vpack.c.bf16 %v411, %v410
      %v577 = vpack.c.bf16 %v413, %v412
      %v578 = vpack.c.bf16 %v415, %v414
      %v579 = vpack.c.bf16 %v557, %v416
      %v580 = vpack.c.bf16 %v559, %v558
      %v581 = vpack.c.bf16 %v561, %v560
      %v582 = vld [vmem:[%s322 + $0x142] sm:$0xff]
      %v583 = vld [vmem:[%s322 + $0x14a] sm:$0xff]
      %v584 = vld [vmem:[%s322 + $0x152] sm:$0xff]
      %v585 = vld [vmem:[%s322 + $0x15a] sm:$0xff]
      %v586 = vld [vmem:[%s322 + $0x162] sm:$0xff]
      %v587 = vpack.c.bf16 %v443, %v442
      %v588 = vpack.c.bf16 %v445, %v444
      %v589 = vpack.c.bf16 %v447, %v446
      %v590 = vpack.c.bf16 %v449, %v448
      %v591 = vpack.c.bf16 %v451, %v450
      %v592 = vpack.c.bf16 %v453, %v452
      %v593 = vpack.c.bf16 %v455, %v454
      %v594 = vpack.c.bf16 %v457, %v456
      %v595 = vpack.c.bf16 %v459, %v458
      %v596 = vpack.c.bf16 %v461, %v460
      %v597 = vpack.c.bf16 %v463, %v462
      %v598 = vpack.c.bf16 %v465, %v464
      %v599 = vpack.c.bf16 %v467, %v466
      %v600 = vpack.c.bf16 %v469, %v468
      %v601 = vpack.c.bf16 %v471, %v470
      %v602 = vpack.c.bf16 %v473, %v472
      %v603 = vpack.c.bf16 %v475, %v474
      %v604 = vpack.c.bf16 %v582, %v476
      %v605 = vpack.c.bf16 %v584, %v583
      %v606 = vpack.c.bf16 %v586, %v585
      %v607 = vld [vmem:[%s322 + $0x144] sm:$0xff]
      %v608 = vld [vmem:[%s322 + $0x14c] sm:$0xff]
      %v609 = vld [vmem:[%s322 + $0x154] sm:$0xff]
      %v610 = vld [vmem:[%s322 + $0x15c] sm:$0xff]
      %v611 = vld [vmem:[%s322 + $0x164] sm:$0xff]
      %v612 = vpack.c.bf16 %v503, %v502
      %v613 = vpack.c.bf16 %v505, %v504
      %v614 = vpack.c.bf16 %v507, %v506
      %v615 = vpack.c.bf16 %v509, %v508
      %v616 = vpack.c.bf16 %v511, %v510
      %v617 = vpack.c.bf16 %v513, %v512
      %v618 = vpack.c.bf16 %v515, %v514
      %v619 = vpack.c.bf16 %v517, %v516
      %v620 = vpack.c.bf16 %v519, %v518
      %v621 = vpack.c.bf16 %v521, %v520
      %v622 = vpack.c.bf16 %v523, %v522
      %v623 = vpack.c.bf16 %v525, %v524
      %v624 = vpack.c.bf16 %v527, %v526
      %v625 = vpack.c.bf16 %v529, %v528
      %v626 = vpack.c.bf16 %v531, %v530
      %v627 = vpack.c.bf16 %v533, %v532
      %v628 = vpack.c.bf16 %v535, %v534
      %v629 = vpack.c.bf16 %v607, %v536
      %v630 = vpack.c.bf16 %v609, %v608
      %v631 = vpack.c.bf16 %v611, %v610
      %v632 = vld [vmem:[%s322 + $0x168] sm:$0xff]
      %v633 = vld [vmem:[%s322 + $0x170] sm:$0xff]
      %v634 = vld [vmem:[%s322 + $0x178] sm:$0xff]
      %v635 = vld [vmem:[%s322 + $0x180] sm:$0xff]
      %v636 = vld [vmem:[%s322 + $0x188] sm:$0xff]
      %v637 = vpack.c.bf16 %v558, %v557
      %v638 = vpack.c.bf16 %v560, %v559
      %v639 = vpack.c.bf16 %v632, %v561
      %v640 = vpack.c.bf16 %v634, %v633
      %v641 = vpack.c.bf16 %v636, %v635
      %v642 = vld [vmem:[%s322 + $0x16a] sm:$0xff]
      %v643 = vld [vmem:[%s322 + $0x172] sm:$0xff]
      %v644 = vld [vmem:[%s322 + $0x17a] sm:$0xff]
      %v645 = vld [vmem:[%s322 + $0x182] sm:$0xff]
      %v646 = vld [vmem:[%s322 + $0x18a] sm:$0xff]
      %v647 = vpack.c.bf16 %v583, %v582
      %v648 = vpack.c.bf16 %v585, %v584
      %v649 = vpack.c.bf16 %v642, %v586
      %v650 = vpack.c.bf16 %v644, %v643
      %v651 = vpack.c.bf16 %v646, %v645
      %v652 = vld [vmem:[%s322 + $0x16c] sm:$0xff]
      %v653 = vld [vmem:[%s322 + $0x174] sm:$0xff]
      %v654 = vld [vmem:[%s322 + $0x17c] sm:$0xff]
      %v655 = vld [vmem:[%s322 + $0x184] sm:$0xff]
      %v656 = vld [vmem:[%s322 + $0x18c] sm:$0xff]
      %v657 = vpack.c.bf16 %v608, %v607
      %v658 = vpack.c.bf16 %v610, %v609
      %v659 = vpack.c.bf16 %v652, %v611
      %v660 = vpack.c.bf16 %v654, %v653
      %v661 = vpack.c.bf16 %v656, %v655
      %v662 = vld [vmem:[%s2] sm:$0xf]
      %v663 = vld [vmem:[%s2 + $0x4] sm:$0xf]
      %v664 = vld [vmem:[%s2 + $0x8] sm:$0xf]
      %v665 = vld [vmem:[%s2 + $0xc] sm:$0xf]
      %v666 = vld [vmem:[%s2 + $0x10] sm:$0xf]
      %v667 = vld [vmem:[%s2 + $0x14] sm:$0xf]
      %v668 = vld [vmem:[%s2 + $0x18] sm:$0xf]
      %v669 = vld [vmem:[%s2 + $0x1c] sm:$0xf]
      %v670 = vld [vmem:[%s2 + $0x20] sm:$0xf]
      %v671 = vld [vmem:[%s2 + $0x24] sm:$0xf]
      %v672 = vld [vmem:[%s2 + $0x28] sm:$0xf]
      %v673 = vld [vmem:[%s2 + $0x2c] sm:$0xf]
      %v674 = vld [vmem:[%s2 + $0x30] sm:$0xf]
      %v675 = vld [vmem:[%s2 + $0x34] sm:$0xf]
      %v676 = vld [vmem:[%s2 + $0x38] sm:$0xf]
      %v677 = vld [vmem:[%s2 + $0x3c] sm:$0xf]
      %v678 = vld [vmem:[%s2 + $0x40] sm:$0xf]
      %v679 = vld [vmem:[%s2 + $0x44] sm:$0xf]
      %v680 = vld [vmem:[%s2 + $0x48] sm:$0xf]
      %v681 = vld [vmem:[%s2 + $0x4c] sm:$0xf]
      %v682 = vld [vmem:[%s2 + $0x50] sm:$0xf]
      %v683 = vld [vmem:[%s2 + $0x54] sm:$0xf]
      %v684 = vld [vmem:[%s2 + $0x58] sm:$0xf]
      %v685 = vld [vmem:[%s2 + $0x5c] sm:$0xf]
      %v686 = vld [vmem:[%s2 + $0x60] sm:$0xf]
      %v687 = vld [vmem:[%s2 + $0x64] sm:$0xf]
      %v688 = vld [vmem:[%s2 + $0x68] sm:$0xf]
      %v689 = vld [vmem:[%s2 + $0x6c] sm:$0xf]
      %v690 = vld [vmem:[%s2 + $0x70] sm:$0xf]
      %v691 = vld [vmem:[%s2 + $0x74] sm:$0xf]
      %v692 = vld [vmem:[%s2 + $0x78] sm:$0xf]
      %v693 = vld [vmem:[%s2 + $0x7c] sm:$0xf]
      %v694 = vld [vmem:[%s2 + $0x80] sm:$0xf]
      %v695 = vld [vmem:[%s2 + $0x84] sm:$0xf]
      %v696 = vld [vmem:[%s2 + $0x88] sm:$0xf]
      %v697 = vld [vmem:[%s2 + $0x8c] sm:$0xf]
      %v698 = vld [vmem:[%s2 + $0x90] sm:$0xf]
      %v699 = vld [vmem:[%s2 + $0x94] sm:$0xf]
      %v700 = vld [vmem:[%s2 + $0x98] sm:$0xf]
      %v701 = vld [vmem:[%s2 + $0x9c] sm:$0xf]
      %v702 = vld [vmem:[%s2 + $0xa0] sm:$0xf]
      %v703 = vld [vmem:[%s2 + $0xa4] sm:$0xf]
      %v704 = vld [vmem:[%s2 + $0xa8] sm:$0xf]
      %v705 = vld [vmem:[%s2 + $0xac] sm:$0xf]
      %v706 = vld [vmem:[%s2 + $0xb0] sm:$0xf]
      %v707 = vld [vmem:[%s2 + $0xb4] sm:$0xf]
      %v708 = vld [vmem:[%s2 + $0xb8] sm:$0xf]
      %v709 = vld [vmem:[%s2 + $0xbc] sm:$0xf]
      %v710 = vld [vmem:[%s2 + $0xc0] sm:$0xf]
      %v711 = vld [vmem:[%s2 + $0xc4] sm:$0xf]
      %v712 = vld [vmem:[%s2 + $0xc8] sm:$0xf]
      %v713 = vld [vmem:[%s2 + $0xcc] sm:$0xf]
      %v714 = vld [vmem:[%s2 + $0xd0] sm:$0xf]
      %v715 = vld [vmem:[%s2 + $0xd4] sm:$0xf]
      %v716 = vld [vmem:[%s2 + $0xd8] sm:$0xf]
      %v717 = vld [vmem:[%s2 + $0xdc] sm:$0xf]
      %v718 = vld [vmem:[%s2 + $0xe0] sm:$0xf]
      %v719 = vld [vmem:[%s2 + $0xe4] sm:$0xf]
      %v720 = vld [vmem:[%s2 + $0xe8] sm:$0xf]
      %v721 = vld [vmem:[%s2 + $0xec] sm:$0xf]
      %v722 = vld [vmem:[%s2 + $0xf0] sm:$0xf]
      %v723 = vld [vmem:[%s2 + $0xf4] sm:$0xf]
      %v724 = vld [vmem:[%s2 + $0xf8] sm:$0xf]
      %v725 = vld [vmem:[%s2 + $0xfc] sm:$0xf]
      %v726 = vld [vmem:[%s2 + $0x100] sm:$0xf]
      %v727 = vld [vmem:[%s2 + $0x104] sm:$0xf]
      %v728 = vld [vmem:[%s2 + $0x108] sm:$0xf]
      %v729 = vld [vmem:[%s2 + $0x10c] sm:$0xf]
      %v730 = vld [vmem:[%s2 + $0x110] sm:$0xf]
      %v731 = vld [vmem:[%s2 + $0x114] sm:$0xf]
      %v732 = vld [vmem:[%s2 + $0x118] sm:$0xf]
      %v733 = vld [vmem:[%s2 + $0x11c] sm:$0xf]
      %v734 = vld [vmem:[%s2 + $0x120] sm:$0xf]
      %v735 = vld [vmem:[%s2 + $0x124] sm:$0xf]
      %v736 = vld [vmem:[%s2 + $0x128] sm:$0xf]
      %v737 = vld [vmem:[%s2 + $0x12c] sm:$0xf]
      %v738 = vld [vmem:[%s2 + $0x130] sm:$0xf]
      %v739 = vld [vmem:[%s2 + $0x134] sm:$0xf]
      %v740 = vld [vmem:[%s2 + $0x138] sm:$0xf]
      %v741 = vld [vmem:[%s2 + $0x13c] sm:$0xf]
      %v742 = vld [vmem:[%s2 + $0x140] sm:$0xf]
      %v743 = vld [vmem:[%s2 + $0x144] sm:$0xf]
      %v744 = vld [vmem:[%s2 + $0x148] sm:$0xf]
      %v745 = vld [vmem:[%s2 + $0x14c] sm:$0xf]
      %v746 = vld [vmem:[%s2 + $0x150] sm:$0xf]
      %v747 = vld [vmem:[%s2 + $0x154] sm:$0xf]
      %v748 = vld [vmem:[%s2 + $0x158] sm:$0xf]
      %v749 = vld [vmem:[%s2 + $0x15c] sm:$0xf]
      %v750 = vld [vmem:[%s2 + $0x160] sm:$0xf]
      %v751 = vld [vmem:[%s2 + $0x164] sm:$0xf]
      %v752 = vld [vmem:[%s2 + $0x168] sm:$0xf]
      %v753 = vld [vmem:[%s2 + $0x16c] sm:$0xf]
      %v754 = vld [vmem:[%s2 + $0x170] sm:$0xf]
      %v755 = vld [vmem:[%s2 + $0x174] sm:$0xf]
      %v756 = vld [vmem:[%s2 + $0x178] sm:$0xf]
      %v757 = vld [vmem:[%s2 + $0x17c] sm:$0xf]
      %v758 = vld [vmem:[%s2 + $0x180] sm:$0xf]
      %v759 = vld [vmem:[%s2 + $0x184] sm:$0xf]
      %v760 = vld [vmem:[%s2 + $0x188] sm:$0xf]
      %v761 = vld [vmem:[%s2 + $0x18c] sm:$0xf]
      %v762 = vld [vmem:[%s2 + $0x190] sm:$0xf]
      %v763 = vld [vmem:[%s2 + $0x194] sm:$0xf]
      %v764 = vld [vmem:[%s2 + $0x198] sm:$0xf]
      %v765 = vld [vmem:[%s2 + $0x19c] sm:$0xf]
      %v766 = vld [vmem:[%s2 + $0x1a0] sm:$0xf]
      %v767 = vld [vmem:[%s2 + $0x1a4] sm:$0xf]
      %v768 = vld [vmem:[%s2 + $0x1a8] sm:$0xf]
      %v769 = vld [vmem:[%s2 + $0x1ac] sm:$0xf]
      %v770 = vld [vmem:[%s2 + $0x1b0] sm:$0xf]
      %v771 = vld [vmem:[%s2 + $0x1b4] sm:$0xf]
      %v772 = vld [vmem:[%s2 + $0x1b8] sm:$0xf]
      %v773 = vld [vmem:[%s2 + $0x1bc] sm:$0xf]
      %v774 = vld [vmem:[%s2 + $0x1c0] sm:$0xf]
      %v775 = vld [vmem:[%s2 + $0x1c4] sm:$0xf]
      %v776 = vld [vmem:[%s2 + $0x1c8] sm:$0xf]
      %v777 = vld [vmem:[%s2 + $0x1cc] sm:$0xf]
      %v778 = vld [vmem:[%s2 + $0x1d0] sm:$0xf]
      %v779 = vld [vmem:[%s2 + $0x1d4] sm:$0xf]
      %v780 = vld [vmem:[%s2 + $0x1d8] sm:$0xf]
      %v781 = vld [vmem:[%s2 + $0x1dc] sm:$0xf]
      %v782 = vld [vmem:[%s2 + $0x1e0] sm:$0xf]
      %v783 = vld [vmem:[%s2 + $0x1e4] sm:$0xf]
      %v784 = vld [vmem:[%s2 + $0x1e8] sm:$0xf]
      %v785 = vld [vmem:[%s2 + $0x1ec] sm:$0xf]
      %v786 = vld [vmem:[%s2 + $0x1f0] sm:$0xf]
      %v787 = vld [vmem:[%s2 + $0x1f4] sm:$0xf]
      %v788 = vld [vmem:[%s2 + $0x1f8] sm:$0xf]
      %v789 = vld [vmem:[%s2 + $0x1fc] sm:$0xf]
      %v790 = vld [vmem:[%s2 + $0x200] sm:$0xf]
      %v791 = vld [vmem:[%s2 + $0x204] sm:$0xf]
      %v792 = vld [vmem:[%s2 + $0x208] sm:$0xf]
      %v793 = vld [vmem:[%s2 + $0x20c] sm:$0xf]
      %v794 = vld [vmem:[%s2 + $0x210] sm:$0xf]
      %v795 = vld [vmem:[%s2 + $0x214] sm:$0xf]
      %v796 = vld [vmem:[%s2 + $0x218] sm:$0xf]
      %v797 = vld [vmem:[%s2 + $0x21c] sm:$0xf]
      %v798 = vld [vmem:[%s2 + $0x220] sm:$0xf]
      %v799 = vld [vmem:[%s2 + $0x224] sm:$0xf]
      %v800 = vld [vmem:[%s2 + $0x228] sm:$0xf]
      %v801 = vld [vmem:[%s2 + $0x22c] sm:$0xf]
      %v802 = vld [vmem:[%s2 + $0x230] sm:$0xf]
      %v803 = vld [vmem:[%s2 + $0x234] sm:$0xf]
      %v804 = vld [vmem:[%s2 + $0x238] sm:$0xf]
      %v805 = vld [vmem:[%s2 + $0x23c] sm:$0xf]
      %v806 = vld [vmem:[%s3] sm:$0x1]
      %v808 = vlaneseq
      %v809 = vshrl.u32 %v808, 7
      %v810 = vsub.s32 0, %v809
      %v811 = vrot.slane %v806, %v810
      %v957 = vunpack.c.l.b16 %v662
      %v958 = vunpack.c.l.b16 %v663
      %v959 = vunpack.c.l.b16 %v664
      %v960 = vunpack.c.l.b16 %v665
      %v961 = vunpack.c.l.b16 %v666
      %v962 = vunpack.c.l.b16 %v667
      %v963 = vunpack.c.l.b16 %v668
      %v964 = vunpack.c.l.b16 %v669
      %v965 = vunpack.c.l.b16 %v670
      %v966 = vunpack.c.l.b16 %v671
      %v967 = vunpack.c.l.b16 %v672
      %v968 = vunpack.c.l.b16 %v673
      %v969 = vunpack.c.l.b16 %v674
      %v970 = vunpack.c.l.b16 %v675
      %v971 = vunpack.c.l.b16 %v676
      %v972 = vunpack.c.l.b16 %v677
      %v973 = vunpack.c.l.b16 %v678
      %v974 = vunpack.c.l.b16 %v679
      %v975 = vunpack.c.l.b16 %v680
      %v976 = vunpack.c.l.b16 %v681
      %v977 = vunpack.c.l.b16 %v682
      %v978 = vunpack.c.l.b16 %v683
      %v979 = vunpack.c.l.b16 %v684
      %v980 = vunpack.c.l.b16 %v685
      %v981 = vunpack.c.l.b16 %v686
      %v982 = vunpack.c.l.b16 %v687
      %v983 = vunpack.c.l.b16 %v688
      %v984 = vunpack.c.l.b16 %v689
      %v985 = vunpack.c.l.b16 %v690
      %v986 = vunpack.c.l.b16 %v691
      %v987 = vunpack.c.l.b16 %v692
      %v988 = vunpack.c.l.b16 %v693
      %v989 = vunpack.c.l.b16 %v694
      %v990 = vunpack.c.l.b16 %v695
      %v991 = vunpack.c.l.b16 %v696
      %v992 = vunpack.c.l.b16 %v697
      %v993 = vunpack.c.l.b16 %v698
      %v994 = vunpack.c.l.b16 %v699
      %v995 = vunpack.c.l.b16 %v700
      %v996 = vunpack.c.l.b16 %v701
      %v997 = vunpack.c.l.b16 %v702
      %v998 = vunpack.c.l.b16 %v703
      %v999 = vunpack.c.l.b16 %v704
      %v1000 = vunpack.c.l.b16 %v705
      %v1001 = vunpack.c.l.b16 %v706
      %v1002 = vunpack.c.l.b16 %v707
      %v1003 = vunpack.c.l.b16 %v708
      %v1004 = vunpack.c.l.b16 %v709
      %v1005 = vunpack.c.l.b16 %v710
      %v1006 = vunpack.c.l.b16 %v711
      %v1007 = vunpack.c.l.b16 %v712
      %v1008 = vunpack.c.l.b16 %v713
      %v1009 = vunpack.c.l.b16 %v714
      %v1010 = vunpack.c.l.b16 %v715
      %v1011 = vunpack.c.l.b16 %v716
      %v1012 = vunpack.c.l.b16 %v717
      %v1013 = vunpack.c.l.b16 %v718
      %v1014 = vunpack.c.l.b16 %v719
      %v1015 = vunpack.c.l.b16 %v720
      %v1016 = vunpack.c.l.b16 %v721
      %v1017 = vunpack.c.l.b16 %v722
      %v1018 = vunpack.c.l.b16 %v723
      %v1019 = vunpack.c.l.b16 %v724
      %v1020 = vunpack.c.l.b16 %v725
      %v1021 = vunpack.c.l.b16 %v726
      %v1022 = vunpack.c.l.b16 %v727
      %v1023 = vunpack.c.l.b16 %v728
      %v1024 = vunpack.c.l.b16 %v729
      %v1025 = vunpack.c.l.b16 %v730
      %v1026 = vunpack.c.l.b16 %v731
      %v1027 = vunpack.c.l.b16 %v732
      %v1028 = vunpack.c.l.b16 %v733
      %v1029 = vunpack.c.l.b16 %v734
      %v1030 = vunpack.c.l.b16 %v735
      %v1031 = vunpack.c.l.b16 %v736
      %v1032 = vunpack.c.l.b16 %v737
      %v1033 = vunpack.c.l.b16 %v738
      %v1034 = vunpack.c.l.b16 %v739
      %v1035 = vunpack.c.l.b16 %v740
      %v1036 = vunpack.c.l.b16 %v741
      %v1037 = vunpack.c.l.b16 %v742
      %v1038 = vunpack.c.l.b16 %v743
      %v1039 = vunpack.c.l.b16 %v744
      %v1040 = vunpack.c.l.b16 %v745
      %v1041 = vunpack.c.l.b16 %v746
      %v1042 = vunpack.c.l.b16 %v747
      %v1043 = vunpack.c.l.b16 %v748
      %v1044 = vunpack.c.l.b16 %v749
      %v1045 = vunpack.c.l.b16 %v750
      %v1046 = vunpack.c.l.b16 %v751
      %v1047 = vunpack.c.l.b16 %v752
      %v1048 = vunpack.c.l.b16 %v753
      %v1049 = vunpack.c.l.b16 %v754
      %v1050 = vunpack.c.l.b16 %v755
      %v1051 = vunpack.c.l.b16 %v756
      %v1052 = vunpack.c.l.b16 %v757
      %v1053 = vunpack.c.l.b16 %v758
      %v1054 = vunpack.c.l.b16 %v759
      %v1055 = vunpack.c.l.b16 %v760
      %v1056 = vunpack.c.l.b16 %v761
      %v1057 = vunpack.c.l.b16 %v762
      %v1058 = vunpack.c.l.b16 %v763
      %v1059 = vunpack.c.l.b16 %v764
      %v1060 = vunpack.c.l.b16 %v765
      %v1061 = vunpack.c.l.b16 %v766
      %v1062 = vunpack.c.l.b16 %v767
      %v1063 = vunpack.c.l.b16 %v768
      %v1064 = vunpack.c.l.b16 %v769
      %v1065 = vunpack.c.l.b16 %v770
      %v1066 = vunpack.c.l.b16 %v771
      %v1067 = vunpack.c.l.b16 %v772
      %v1068 = vunpack.c.l.b16 %v773
      %v1069 = vunpack.c.l.b16 %v774
      %v1070 = vunpack.c.l.b16 %v775
      %v1071 = vunpack.c.l.b16 %v776
      %v1072 = vunpack.c.l.b16 %v777
      %v1073 = vunpack.c.l.b16 %v778
      %v1074 = vunpack.c.l.b16 %v779
      %v1075 = vunpack.c.l.b16 %v780
      %v1076 = vunpack.c.l.b16 %v781
      %v1077 = vunpack.c.l.b16 %v782
      %v1078 = vunpack.c.l.b16 %v783
      %v1079 = vunpack.c.l.b16 %v784
      %v1080 = vunpack.c.l.b16 %v785
      %v1081 = vunpack.c.l.b16 %v786
      %v1082 = vunpack.c.l.b16 %v787
      %v1083 = vunpack.c.l.b16 %v788
      %v1084 = vunpack.c.l.b16 %v789
      %v1085 = vunpack.c.l.b16 %v790
      %v1086 = vunpack.c.l.b16 %v791
      %v1087 = vunpack.c.l.b16 %v792
      %v1088 = vunpack.c.l.b16 %v793
      %v1089 = vunpack.c.l.b16 %v794
      %v1090 = vunpack.c.l.b16 %v795
      %v1091 = vunpack.c.l.b16 %v796
      %v1092 = vunpack.c.l.b16 %v797
      %v1093 = vunpack.c.l.b16 %v798
      %v1094 = vunpack.c.l.b16 %v799
      %v1095 = vunpack.c.l.b16 %v800
      %v1096 = vunpack.c.l.b16 %v801
      %v1097 = vunpack.c.l.b16 %v802
      %v1098 = vunpack.c.l.b16 %v803
      %v1099 = vunpack.c.l.b16 %v804
      %v1100 = vunpack.c.l.b16 %v805
      %v1101 = vpack.c.b16 %v958, %v957
      %v1102 = vpack.c.b16 %v960, %v959
      %v1103 = vpack.c.b16 %v962, %v961
      %v1104 = vpack.c.b16 %v964, %v963
      %v1105 = vpack.c.b16 %v966, %v965
      %v1106 = vpack.c.b16 %v968, %v967
      %v1107 = vpack.c.b16 %v970, %v969
      %v1108 = vpack.c.b16 %v972, %v971
      %v1109 = vpack.c.b16 %v974, %v973
      %v1110 = vpack.c.b16 %v976, %v975
      %v1111 = vpack.c.b16 %v978, %v977
      %v1112 = vpack.c.b16 %v980, %v979
      %v1113 = vpack.c.b16 %v982, %v981
      %v1114 = vpack.c.b16 %v984, %v983
      %v1115 = vpack.c.b16 %v986, %v985
      %v1116 = vpack.c.b16 %v988, %v987
      %v1117 = vpack.c.b16 %v990, %v989
      %v1118 = vpack.c.b16 %v992, %v991
      %v1119 = vpack.c.b16 %v994, %v993
      %v1120 = vpack.c.b16 %v996, %v995
      %v1121 = vpack.c.b16 %v998, %v997
      %v1122 = vpack.c.b16 %v1000, %v999
      %v1123 = vpack.c.b16 %v1002, %v1001
      %v1124 = vpack.c.b16 %v1004, %v1003
      %v1125 = vpack.c.b16 %v1006, %v1005
      %v1126 = vpack.c.b16 %v1008, %v1007
      %v1127 = vpack.c.b16 %v1010, %v1009
      %v1128 = vpack.c.b16 %v1012, %v1011
      %v1129 = vpack.c.b16 %v1014, %v1013
      %v1130 = vpack.c.b16 %v1016, %v1015
      %v1131 = vpack.c.b16 %v1018, %v1017
      %v1132 = vpack.c.b16 %v1020, %v1019
      %v1133 = vpack.c.b16 %v1022, %v1021
      %v1134 = vpack.c.b16 %v1024, %v1023
      %v1135 = vpack.c.b16 %v1026, %v1025
      %v1136 = vpack.c.b16 %v1028, %v1027
      %v1137 = vpack.c.b16 %v1030, %v1029
      %v1138 = vpack.c.b16 %v1032, %v1031
      %v1139 = vpack.c.b16 %v1034, %v1033
      %v1140 = vpack.c.b16 %v1036, %v1035
      %v1141 = vpack.c.b16 %v1038, %v1037
      %v1142 = vpack.c.b16 %v1040, %v1039
      %v1143 = vpack.c.b16 %v1042, %v1041
      %v1144 = vpack.c.b16 %v1044, %v1043
      %v1145 = vpack.c.b16 %v1046, %v1045
      %v1146 = vpack.c.b16 %v1048, %v1047
      %v1147 = vpack.c.b16 %v1050, %v1049
      %v1148 = vpack.c.b16 %v1052, %v1051
      %v1149 = vpack.c.b16 %v1054, %v1053
      %v1150 = vpack.c.b16 %v1056, %v1055
      %v1151 = vpack.c.b16 %v1058, %v1057
      %v1152 = vpack.c.b16 %v1060, %v1059
      %v1153 = vpack.c.b16 %v1062, %v1061
      %v1154 = vpack.c.b16 %v1064, %v1063
      %v1155 = vpack.c.b16 %v1066, %v1065
      %v1156 = vpack.c.b16 %v1068, %v1067
      %v1157 = vpack.c.b16 %v1070, %v1069
      %v1158 = vpack.c.b16 %v1072, %v1071
      %v1159 = vpack.c.b16 %v1074, %v1073
      %v1160 = vpack.c.b16 %v1076, %v1075
      %v1161 = vpack.c.b16 %v1078, %v1077
      %v1162 = vpack.c.b16 %v1080, %v1079
      %v1163 = vpack.c.b16 %v1082, %v1081
      %v1164 = vpack.c.b16 %v1084, %v1083
      %v1165 = vpack.c.b16 %v1086, %v1085
      %v1166 = vpack.c.b16 %v1088, %v1087
      %v1167 = vpack.c.b16 %v1090, %v1089
      %v1168 = vpack.c.b16 %v1092, %v1091
      %v1169 = vpack.c.b16 %v1094, %v1093
      %v1170 = vpack.c.b16 %v1096, %v1095
      %v1171 = vpack.c.b16 %v1098, %v1097
      %v1172 = vpack.c.b16 %v1100, %v1099
      %1245 = vmatprep.subr.bf16.mxu0 0
      %1246 = vmatpush1.bf16.msra.mxu0 %v1101
      %1247 = vmatprep.subr.bf16.mxu0 0
      %1248 = vmatpush1.bf16.msra.mxu0 %v1102
      %1249 = vmatprep.subr.bf16.mxu0 0
      %1250 = vmatpush1.bf16.msra.mxu0 %v1103
      %1251 = vmatprep.subr.bf16.mxu0 0
      %1252 = vmatpush1.bf16.msra.mxu0 %v1104
      %1253 = vmatprep.subr.bf16.mxu0 0
      %1254 = vmatpush1.bf16.msra.mxu0 %v1105
      %1255 = vmatprep.subr.bf16.mxu0 0
      %1256 = vmatpush1.bf16.msra.mxu0 %v1106
      %1257 = vmatprep.subr.bf16.mxu0 0
      %1258 = vmatpush1.bf16.msra.mxu0 %v1107
      %1259 = vmatprep.subr.bf16.mxu0 0
      %1260 = vmatpush1.bf16.msra.mxu0 %v1108
      %1261 = vmatprep.subr.bf16.mxu0 0
      %1262 = vmatpush1.bf16.msra.mxu0 %v1109
      %1263 = vmatprep.subr.bf16.mxu0 0
      %1264 = vmatpush1.bf16.msra.mxu0 %v1110
      %1265 = vmatprep.subr.bf16.mxu0 0
      %1266 = vmatpush1.bf16.msra.mxu0 %v1111
      %1267 = vmatprep.subr.bf16.mxu0 0
      %1268 = vmatpush1.bf16.msra.mxu0 %v1112
      %1269 = vmatprep.subr.bf16.mxu0 0
      %1270 = vmatpush1.bf16.msra.mxu0 %v1113
      %1271 = vmatprep.subr.bf16.mxu0 0
      %1272 = vmatpush1.bf16.msra.mxu0 %v1114
      %1273 = vmatprep.subr.bf16.mxu0 0
      %1274 = vmatpush1.bf16.msra.mxu0 %v1115
      %1275 = vmatprep.subr.bf16.mxu0 0
      %1276 = vmatpush1.bf16.msra.mxu0 %v1116
      %1277 = vmatprep.mubr.bf16.mxu0 %v477
      %1278 = vmatmul.mubr.bf16.gmra.mrb[0].mxu0 %v417
      %v1279 = vpop.f32.mrb[0].mxu0
      %v1280 = vadd.f32 %v811, %v1279
      %v1281 = vpop.f32.mrb[0].mxu0
      %v1282 = vpop.f32.mrb[0].mxu0
      %v1283 = vadd.f32 %v811, %v1282
      %v1284 = vpop.f32.mrb[0].mxu0
      %1285 = vmatprep.mubr.bf16.mxu0 %v478
      %1286 = vmatmul.mubr.bf16.gmra.mrb[0].mxu0 %v418
      %v1287 = vpop.f32.mrb[0].mxu0
      %v1288 = vadd.f32 %v811, %v1287
      %v1289 = vpop.f32.mrb[0].mxu0
      %v1290 = vpop.f32.mrb[0].mxu0
      %v1291 = vadd.f32 %v811, %v1290
      %v1292 = vpop.f32.mrb[0].mxu0
      %1293 = vmatprep.mubr.bf16.mxu0 %v479
      %1294 = vmatmul.mubr.bf16.gmra.mrb[0].mxu0 %v419
      %v1295 = vpop.f32.mrb[0].mxu0
      %v1296 = vadd.f32 %v811, %v1295
      %v1297 = vpop.f32.mrb[0].mxu0
      %v1298 = vpop.f32.mrb[0].mxu0
      %v1299 = vadd.f32 %v811, %v1298
      %v1300 = vpop.f32.mrb[0].mxu0
      %1301 = vmatprep.mubr.bf16.mxu0 %v480
      %1302 = vmatmul.mubr.bf16.gmra.mrb[0].mxu0 %v420
      %v1303 = vpop.f32.mrb[0].mxu0
      %v1304 = vadd.f32 %v811, %v1303
      %v1305 = vpop.f32.mrb[0].mxu0
      %v1306 = vpop.f32.mrb[0].mxu0
      %v1307 = vadd.f32 %v811, %v1306
      %v1308 = vpop.f32.mrb[0].mxu0
      %1309 = vmatprep.mubr.bf16.mxu0 %v481
      %1310 = vmatmul.mubr.bf16.gmra.mrb[0].mxu0 %v421
      %v1311 = vpop.f32.mrb[0].mxu0
      %v1312 = vadd.f32 %v811, %v1311
      %v1313 = vpop.f32.mrb[0].mxu0
      %v1314 = vpop.f32.mrb[0].mxu0
      %v1315 = vadd.f32 %v811, %v1314
      %v1316 = vpop.f32.mrb[0].mxu0
      %1317 = vmatprep.mubr.bf16.mxu0 %v482
      %1318 = vmatmul.mubr.bf16.gmra.mrb[0].mxu0 %v422
      %v1319 = vpop.f32.mrb[0].mxu0
      %v1320 = vadd.f32 %v811, %v1319
      %v1321 = vpop.f32.mrb[0].mxu0
      %v1322 = vpop.f32.mrb[0].mxu0
      %v1323 = vadd.f32 %v811, %v1322
      %v1324 = vpop.f32.mrb[0].mxu0
      %1325 = vmatprep.mubr.bf16.mxu0 %v483
      %1326 = vmatmul.mubr.bf16.gmra.mrb[0].mxu0 %v423
      %v1327 = vpop.f32.mrb[0].mxu0
      %v1328 = vadd.f32 %v811, %v1327
      %v1329 = vpop.f32.mrb[0].mxu0
      %v1330 = vpop.f32.mrb[0].mxu0
      %v1331 = vadd.f32 %v811, %v1330
      %v1332 = vpop.f32.mrb[0].mxu0
      %1333 = vmatprep.mubr.bf16.mxu0 %v484
      %1334 = vmatmul.mubr.bf16.gmra.mrb[0].mxu0 %v424
      %v1335 = vpop.f32.mrb[0].mxu0
      %v1336 = vadd.f32 %v811, %v1335
      %v1337 = vpop.f32.mrb[0].mxu0
      %v1338 = vpop.f32.mrb[0].mxu0
      %v1339 = vadd.f32 %v811, %v1338
      %v1340 = vpop.f32.mrb[0].mxu0
      %1341 = vmatprep.mubr.bf16.mxu0 %v485
      %1342 = vmatmul.mubr.bf16.gmra.mrb[0].mxu0 %v425
      %v1343 = vpop.f32.mrb[0].mxu0
      %v1344 = vadd.f32 %v811, %v1343
      %v1345 = vpop.f32.mrb[0].mxu0
      %v1346 = vpop.f32.mrb[0].mxu0
      %v1347 = vadd.f32 %v811, %v1346
      %v1348 = vpop.f32.mrb[0].mxu0
      %1349 = vmatprep.mubr.bf16.mxu0 %v486
      %1350 = vmatmul.mubr.bf16.gmra.mrb[0].mxu0 %v426
      %v1351 = vpop.f32.mrb[0].mxu0
      %v1352 = vadd.f32 %v811, %v1351
      %v1353 = vpop.f32.mrb[0].mxu0
      %v1354 = vpop.f32.mrb[0].mxu0
      %v1355 = vadd.f32 %v811, %v1354
      %v1356 = vpop.f32.mrb[0].mxu0
      %1357 = vmatprep.mubr.bf16.mxu0 %v487
      %1358 = vmatmul.mubr.bf16.gmra.mrb[0].mxu0 %v427
      %v1359 = vpop.f32.mrb[0].mxu0
      %v1360 = vadd.f32 %v811, %v1359
      %v1361 = vpop.f32.mrb[0].mxu0
      %v1362 = vpop.f32.mrb[0].mxu0
      %v1363 = vadd.f32 %v811, %v1362
      %v1364 = vpop.f32.mrb[0].mxu0
      %1365 = vmatprep.mubr.bf16.mxu0 %v488
      %1366 = vmatmul.mubr.bf16.gmra.mrb[0].mxu0 %v428
      %v1367 = vpop.f32.mrb[0].mxu0
      %v1368 = vadd.f32 %v811, %v1367
      %v1369 = vpop.f32.mrb[0].mxu0
      %v1370 = vpop.f32.mrb[0].mxu0
      %v1371 = vadd.f32 %v811, %v1370
      %v1372 = vpop.f32.mrb[0].mxu0
      %1373 = vmatprep.mubr.bf16.mxu0 %v489
      %1374 = vmatmul.mubr.bf16.gmra.mrb[0].mxu0 %v429
      %v1375 = vpop.f32.mrb[0].mxu0
      %v1376 = vadd.f32 %v811, %v1375
      %v1377 = vpop.f32.mrb[0].mxu0
      %v1378 = vpop.f32.mrb[0].mxu0
      %v1379 = vadd.f32 %v811, %v1378
      %v1380 = vpop.f32.mrb[0].mxu0
      %1381 = vmatprep.mubr.bf16.mxu0 %v490
      %1382 = vmatmul.mubr.bf16.gmra.mrb[0].mxu0 %v430
      %v1383 = vpop.f32.mrb[0].mxu0
      %v1384 = vadd.f32 %v811, %v1383
      %v1385 = vpop.f32.mrb[0].mxu0
      %v1386 = vpop.f32.mrb[0].mxu0
      %v1387 = vadd.f32 %v811, %v1386
      %v1388 = vpop.f32.mrb[0].mxu0
      %1389 = vmatprep.mubr.bf16.mxu0 %v491
      %1390 = vmatmul.mubr.bf16.gmra.mrb[0].mxu0 %v431
      %v1391 = vpop.f32.mrb[0].mxu0
      %v1392 = vadd.f32 %v811, %v1391
      %v1393 = vpop.f32.mrb[0].mxu0
      %v1394 = vpop.f32.mrb[0].mxu0
      %v1395 = vadd.f32 %v811, %v1394
      %v1396 = vpop.f32.mrb[0].mxu0
      %1397 = vmatprep.mubr.bf16.mxu0 %v492
      %1398 = vmatmul.mubr.bf16.gmra.mrb[0].mxu0 %v432
      %v1399 = vpop.f32.mrb[0].mxu0
      %v1400 = vadd.f32 %v811, %v1399
      %v1401 = vpop.f32.mrb[0].mxu0
      %v1402 = vpop.f32.mrb[0].mxu0
      %v1403 = vadd.f32 %v811, %v1402
      %v1404 = vpop.f32.mrb[0].mxu0
      %1405 = vmatprep.mubr.bf16.mxu0 %v493
      %1406 = vmatmul.mubr.bf16.gmra.mrb[0].mxu0 %v433
      %v1407 = vpop.f32.mrb[0].mxu0
      %v1408 = vadd.f32 %v811, %v1407
      %v1409 = vpop.f32.mrb[0].mxu0
      %v1410 = vpop.f32.mrb[0].mxu0
      %v1411 = vadd.f32 %v811, %v1410
      %v1412 = vpop.f32.mrb[0].mxu0
      %1413 = vmatprep.mubr.bf16.mxu0 %v494
      %1414 = vmatmul.mubr.bf16.gmra.mrb[0].mxu0 %v434
      %v1415 = vpop.f32.mrb[0].mxu0
      %v1416 = vadd.f32 %v811, %v1415
      %v1417 = vpop.f32.mrb[0].mxu0
      %v1418 = vpop.f32.mrb[0].mxu0
      %v1419 = vadd.f32 %v811, %v1418
      %v1420 = vpop.f32.mrb[0].mxu0
      %1421 = vmatprep.mubr.bf16.mxu0 %v495
      %1422 = vmatmul.mubr.bf16.gmra.mrb[0].mxu0 %v435
      %v1423 = vpop.f32.mrb[0].mxu0
      %v1424 = vadd.f32 %v811, %v1423
      %v1425 = vpop.f32.mrb[0].mxu0
      %v1426 = vpop.f32.mrb[0].mxu0
      %v1427 = vadd.f32 %v811, %v1426
      %v1428 = vpop.f32.mrb[0].mxu0
      %1429 = vmatprep.mubr.bf16.mxu0 %v496
      %1430 = vmatmul.mubr.bf16.gmra.mrb[0].mxu0 %v436
      %v1431 = vpop.f32.mrb[0].mxu0
      %v1432 = vadd.f32 %v811, %v1431
      %v1433 = vpop.f32.mrb[0].mxu0
      %v1434 = vpop.f32.mrb[0].mxu0
      %v1435 = vadd.f32 %v811, %v1434
      %v1436 = vpop.f32.mrb[0].mxu0
      %1437 = vdwg.mxu0
      %1438 = vmatprep.subr.bf16.mxu0 0
      %1439 = vmatpush1.bf16.msra.mxu0 %v1117
      %1440 = vmatprep.subr.bf16.mxu0 0
      %1441 = vmatpush1.bf16.msra.mxu0 %v1118
      %1442 = vmatprep.subr.bf16.mxu0 0
      %1443 = vmatpush1.bf16.msra.mxu0 %v1119
      %1444 = vmatprep.subr.bf16.mxu0 0
      %1445 = vmatpush1.bf16.msra.mxu0 %v1120
      %1446 = vmatprep.subr.bf16.mxu0 0
      %1447 = vmatpush1.bf16.msra.mxu0 %v1121
      %1448 = vmatprep.subr.bf16.mxu0 0
      %1449 = vmatpush1.bf16.msra.mxu0 %v1122
      %1450 = vmatprep.subr.bf16.mxu0 0
      %1451 = vmatpush1.bf16.msra.mxu0 %v1123
      %1452 = vmatprep.subr.bf16.mxu0 0
      %1453 = vmatpush1.bf16.msra.mxu0 %v1124
      %1454 = vmatprep.subr.bf16.mxu0 0
      %1455 = vmatpush1.bf16.msra.mxu0 %v1125
      %1456 = vmatprep.subr.bf16.mxu0 0
      %1457 = vmatpush1.bf16.msra.mxu0 %v1126
      %1458 = vmatprep.subr.bf16.mxu0 0
      %1459 = vmatpush1.bf16.msra.mxu0 %v1127
      %1460 = vmatprep.subr.bf16.mxu0 0
      %1461 = vmatpush1.bf16.msra.mxu0 %v1128
      %1462 = vmatprep.subr.bf16.mxu0 0
      %1463 = vmatpush1.bf16.msra.mxu0 %v1129
      %1464 = vmatprep.subr.bf16.mxu0 0
      %1465 = vmatpush1.bf16.msra.mxu0 %v1130
      %1466 = vmatprep.subr.bf16.mxu0 0
      %1467 = vmatpush1.bf16.msra.mxu0 %v1131
      %1468 = vmatprep.subr.bf16.mxu0 0
      %1469 = vmatpush1.bf16.msra.mxu0 %v1132
      %1470 = vmatprep.mubr.bf16.mxu0 %v562
      %1471 = vmatmul.mubr.bf16.gmra.mrb[0].mxu0 %v537
      %v1472 = vpop.f32.mrb[0].mxu0
      %v1473 = vadd.f32 %v1280, %v1472
      %v1474 = vpop.f32.mrb[0].mxu0
      %v1475 = vpop.f32.mrb[0].mxu0
      %v1476 = vadd.f32 %v1283, %v1475
      %v1477 = vpop.f32.mrb[0].mxu0
      %1478 = vmatprep.mubr.bf16.mxu0 %v563
      %1479 = vmatmul.mubr.bf16.gmra.mrb[0].mxu0 %v538
      %v1480 = vpop.f32.mrb[0].mxu0
      %v1481 = vadd.f32 %v1288, %v1480
      %v1482 = vpop.f32.mrb[0].mxu0
      %v1483 = vpop.f32.mrb[0].mxu0
      %v1484 = vadd.f32 %v1291, %v1483
      %v1485 = vpop.f32.mrb[0].mxu0
      %1486 = vmatprep.mubr.bf16.mxu0 %v564
      %1487 = vmatmul.mubr.bf16.gmra.mrb[0].mxu0 %v539
      %v1488 = vpop.f32.mrb[0].mxu0
      %v1489 = vadd.f32 %v1296, %v1488
      %v1490 = vpop.f32.mrb[0].mxu0
      %v1491 = vpop.f32.mrb[0].mxu0
      %v1492 = vadd.f32 %v1299, %v1491
      %v1493 = vpop.f32.mrb[0].mxu0
      %1494 = vmatprep.mubr.bf16.mxu0 %v565
      %1495 = vmatmul.mubr.bf16.gmra.mrb[0].mxu0 %v540
      %v1496 = vpop.f32.mrb[0].mxu0
      %v1497 = vadd.f32 %v1304, %v1496
      %v1498 = vpop.f32.mrb[0].mxu0
      %v1499 = vpop.f32.mrb[0].mxu0
      %v1500 = vadd.f32 %v1307, %v1499
      %v1501 = vpop.f32.mrb[0].mxu0
      %1502 = vmatprep.mubr.bf16.mxu0 %v566
      %1503 = vmatmul.mubr.bf16.gmra.mrb[0].mxu0 %v541
      %v1504 = vpop.f32.mrb[0].mxu0
      %v1505 = vadd.f32 %v1312, %v1504
      %v1506 = vpop.f32.mrb[0].mxu0
      %v1507 = vpop.f32.mrb[0].mxu0
      %v1508 = vadd.f32 %v1315, %v1507
      %v1509 = vpop.f32.mrb[0].mxu0
      %1510 = vmatprep.mubr.bf16.mxu0 %v567
      %1511 = vmatmul.mubr.bf16.gmra.mrb[0].mxu0 %v542
      %v1512 = vpop.f32.mrb[0].mxu0
      %v1513 = vadd.f32 %v1320, %v1512
      %v1514 = vpop.f32.mrb[0].mxu0
      %v1515 = vpop.f32.mrb[0].mxu0
      %v1516 = vadd.f32 %v1323, %v1515
      %v1517 = vpop.f32.mrb[0].mxu0
      %1518 = vmatprep.mubr.bf16.mxu0 %v568
      %1519 = vmatmul.mubr.bf16.gmra.mrb[0].mxu0 %v543
      %v1520 = vpop.f32.mrb[0].mxu0
      %v1521 = vadd.f32 %v1328, %v1520
      %v1522 = vpop.f32.mrb[0].mxu0
      %v1523 = vpop.f32.mrb[0].mxu0
      %v1524 = vadd.f32 %v1331, %v1523
      %v1525 = vpop.f32.mrb[0].mxu0
      %1526 = vmatprep.mubr.bf16.mxu0 %v569
      %1527 = vmatmul.mubr.bf16.gmra.mrb[0].mxu0 %v544
      %v1528 = vpop.f32.mrb[0].mxu0
      %v1529 = vadd.f32 %v1336, %v1528
      %v1530 = vpop.f32.mrb[0].mxu0
      %v1531 = vpop.f32.mrb[0].mxu0
      %v1532 = vadd.f32 %v1339, %v1531
      %v1533 = vpop.f32.mrb[0].mxu0
      %1534 = vmatprep.mubr.bf16.mxu0 %v570
      %1535 = vmatmul.mubr.bf16.gmra.mrb[0].mxu0 %v545
      %v1536 = vpop.f32.mrb[0].mxu0
      %v1537 = vadd.f32 %v1344, %v1536
      %v1538 = vpop.f32.mrb[0].mxu0
      %v1539 = vpop.f32.mrb[0].mxu0
      %v1540 = vadd.f32 %v1347, %v1539
      %v1541 = vpop.f32.mrb[0].mxu0
      %1542 = vmatprep.mubr.bf16.mxu0 %v571
      %1543 = vmatmul.mubr.bf16.gmra.mrb[0].mxu0 %v546
      %v1544 = vpop.f32.mrb[0].mxu0
      %v1545 = vadd.f32 %v1352, %v1544
      %v1546 = vpop.f32.mrb[0].mxu0
      %v1547 = vpop.f32.mrb[0].mxu0
      %v1548 = vadd.f32 %v1355, %v1547
      %v1549 = vpop.f32.mrb[0].mxu0
      %1550 = vmatprep.mubr.bf16.mxu0 %v572
      %1551 = vmatmul.mubr.bf16.gmra.mrb[0].mxu0 %v547
      %v1552 = vpop.f32.mrb[0].mxu0
      %v1553 = vadd.f32 %v1360, %v1552
      %v1554 = vpop.f32.mrb[0].mxu0
      %v1555 = vpop.f32.mrb[0].mxu0
      %v1556 = vadd.f32 %v1363, %v1555
      %v1557 = vpop.f32.mrb[0].mxu0
      %1558 = vmatprep.mubr.bf16.mxu0 %v573
      %1559 = vmatmul.mubr.bf16.gmra.mrb[0].mxu0 %v548
      %v1560 = vpop.f32.mrb[0].mxu0
      %v1561 = vadd.f32 %v1368, %v1560
      %v1562 = vpop.f32.mrb[0].mxu0
      %v1563 = vpop.f32.mrb[0].mxu0
      %v1564 = vadd.f32 %v1371, %v1563
      %v1565 = vpop.f32.mrb[0].mxu0
      %1566 = vmatprep.mubr.bf16.mxu0 %v574
      %1567 = vmatmul.mubr.bf16.gmra.mrb[0].mxu0 %v549
      %v1568 = vpop.f32.mrb[0].mxu0
      %v1569 = vadd.f32 %v1376, %v1568
      %v1570 = vpop.f32.mrb[0].mxu0
      %v1571 = vpop.f32.mrb[0].mxu0
      %v1572 = vadd.f32 %v1379, %v1571
      %v1573 = vpop.f32.mrb[0].mxu0
      %1574 = vmatprep.mubr.bf16.mxu0 %v575
      %1575 = vmatmul.mubr.bf16.gmra.mrb[0].mxu0 %v550
      %v1576 = vpop.f32.mrb[0].mxu0
      %v1577 = vadd.f32 %v1384, %v1576
      %v1578 = vpop.f32.mrb[0].mxu0
      %v1579 = vpop.f32.mrb[0].mxu0
      %v1580 = vadd.f32 %v1387, %v1579
      %v1581 = vpop.f32.mrb[0].mxu0
      %1582 = vmatprep.mubr.bf16.mxu0 %v576
      %1583 = vmatmul.mubr.bf16.gmra.mrb[0].mxu0 %v551
      %v1584 = vpop.f32.mrb[0].mxu0
      %v1585 = vadd.f32 %v1392, %v1584
      %v1586 = vpop.f32.mrb[0].mxu0
      %v1587 = vpop.f32.mrb[0].mxu0
      %v1588 = vadd.f32 %v1395, %v1587
      %v1589 = vpop.f32.mrb[0].mxu0
      %1590 = vmatprep.mubr.bf16.mxu0 %v577
      %1591 = vmatmul.mubr.bf16.gmra.mrb[0].mxu0 %v552
      %v1592 = vpop.f32.mrb[0].mxu0
      %v1593 = vadd.f32 %v1400, %v1592
      %v1594 = vpop.f32.mrb[0].mxu0
      %v1595 = vpop.f32.mrb[0].mxu0
      %v1596 = vadd.f32 %v1403, %v1595
      %v1597 = vpop.f32.mrb[0].mxu0
      %1598 = vmatprep.mubr.bf16.mxu0 %v578
      %1599 = vmatmul.mubr.bf16.gmra.mrb[0].mxu0 %v553
      %v1600 = vpop.f32.mrb[0].mxu0
      %v1601 = vadd.f32 %v1408, %v1600
      %v1602 = vpop.f32.mrb[0].mxu0
      %v1603 = vpop.f32.mrb[0].mxu0
      %v1604 = vadd.f32 %v1411, %v1603
      %v1605 = vpop.f32.mrb[0].mxu0
      %1606 = vmatprep.mubr.bf16.mxu0 %v579
      %1607 = vmatmul.mubr.bf16.gmra.mrb[0].mxu0 %v554
      %v1608 = vpop.f32.mrb[0].mxu0
      %v1609 = vadd.f32 %v1416, %v1608
      %v1610 = vpop.f32.mrb[0].mxu0
      %v1611 = vpop.f32.mrb[0].mxu0
      %v1612 = vadd.f32 %v1419, %v1611
      %v1613 = vpop.f32.mrb[0].mxu0
      %1614 = vmatprep.mubr.bf16.mxu0 %v580
      %1615 = vmatmul.mubr.bf16.gmra.mrb[0].mxu0 %v555
      %v1616 = vpop.f32.mrb[0].mxu0
      %v1617 = vadd.f32 %v1424, %v1616
      %v1618 = vpop.f32.mrb[0].mxu0
      %v1619 = vpop.f32.mrb[0].mxu0
      %v1620 = vadd.f32 %v1427, %v1619
      %v1621 = vpop.f32.mrb[0].mxu0
      %1622 = vmatprep.mubr.bf16.mxu0 %v581
      %1623 = vmatmul.mubr.bf16.gmra.mrb[0].mxu0 %v556
      %v1624 = vpop.f32.mrb[0].mxu0
      %v1625 = vadd.f32 %v1432, %v1624
      %v1626 = vpop.f32.mrb[0].mxu0
      %v1627 = vpop.f32.mrb[0].mxu0
      %v1628 = vadd.f32 %v1435, %v1627
      %v1629 = vpop.f32.mrb[0].mxu0
      %1630 = vdwg.mxu0
      %1631 = vmatprep.subr.bf16.mxu0 0
      %1632 = vmatpush1.bf16.msra.mxu0 %v1133
      %1633 = vmatprep.subr.bf16.mxu0 0
      %1634 = vmatpush1.bf16.msra.mxu0 %v1134
      %1635 = vmatprep.subr.bf16.mxu0 0
      %1636 = vmatpush1.bf16.msra.mxu0 %v1135
      %1637 = vmatprep.subr.bf16.mxu0 0
      %1638 = vmatpush1.bf16.msra.mxu0 %v1136
      %1639 = vmatprep.subr.bf16.mxu0 0
      %1640 = vmatpush1.bf16.msra.mxu0 %v1137
      %1641 = vmatprep.subr.bf16.mxu0 0
      %1642 = vmatpush1.bf16.msra.mxu0 %v1138
      %1643 = vmatprep.subr.bf16.mxu0 0
      %1644 = vmatpush1.bf16.msra.mxu0 %v1139
      %1645 = vmatprep.subr.bf16.mxu0 0
      %1646 = vmatpush1.bf16.msra.mxu0 %v1140
      %1647 = vmatprep.subr.bf16.mxu0 0
      %1648 = vmatpush1.bf16.msra.mxu0 %v1141
      %1649 = vmatprep.subr.bf16.mxu0 0
      %1650 = vmatpush1.bf16.msra.mxu0 %v1142
      %1651 = vmatprep.subr.bf16.mxu0 0
      %1652 = vmatpush1.bf16.msra.mxu0 %v1143
      %1653 = vmatprep.subr.bf16.mxu0 0
      %1654 = vmatpush1.bf16.msra.mxu0 %v1144
      %1655 = vmatprep.subr.bf16.mxu0 0
      %1656 = vmatpush1.bf16.msra.mxu0 %v1145
      %1657 = vmatprep.subr.bf16.mxu0 0
      %1658 = vmatpush1.bf16.msra.mxu0 %v1146
      %1659 = vmatprep.subr.bf16.mxu0 0
      %1660 = vmatpush1.bf16.msra.mxu0 %v1147
      %1661 = vmatprep.subr.bf16.mxu0 0
      %1662 = vmatpush1.bf16.msra.mxu0 %v1148
      %1663 = vmatprep.mubr.bf16.mxu0 %v612
      %1664 = vmatmul.mubr.bf16.gmra.mrb[0].mxu0 %v587
      %v1665 = vpop.f32.mrb[0].mxu0
      %v1666 = vadd.f32 %v1473, %v1665
      %v1667 = vpop.f32.mrb[0].mxu0
      %v1668 = vpop.f32.mrb[0].mxu0
      %v1669 = vadd.f32 %v1476, %v1668
      %v1670 = vpop.f32.mrb[0].mxu0
      %1671 = vmatprep.mubr.bf16.mxu0 %v613
      %1672 = vmatmul.mubr.bf16.gmra.mrb[0].mxu0 %v588
      %v1673 = vpop.f32.mrb[0].mxu0
      %v1674 = vadd.f32 %v1481, %v1673
      %v1675 = vpop.f32.mrb[0].mxu0
      %v1676 = vpop.f32.mrb[0].mxu0
      %v1677 = vadd.f32 %v1484, %v1676
      %v1678 = vpop.f32.mrb[0].mxu0
      %1679 = vmatprep.mubr.bf16.mxu0 %v614
      %1680 = vmatmul.mubr.bf16.gmra.mrb[0].mxu0 %v589
      %v1681 = vpop.f32.mrb[0].mxu0
      %v1682 = vadd.f32 %v1489, %v1681
      %v1683 = vpop.f32.mrb[0].mxu0
      %v1684 = vpop.f32.mrb[0].mxu0
      %v1685 = vadd.f32 %v1492, %v1684
      %v1686 = vpop.f32.mrb[0].mxu0
      %1687 = vmatprep.mubr.bf16.mxu0 %v615
      %1688 = vmatmul.mubr.bf16.gmra.mrb[0].mxu0 %v590
      %v1689 = vpop.f32.mrb[0].mxu0
      %v1690 = vadd.f32 %v1497, %v1689
      %v1691 = vpop.f32.mrb[0].mxu0
      %v1692 = vpop.f32.mrb[0].mxu0
      %v1693 = vadd.f32 %v1500, %v1692
      %v1694 = vpop.f32.mrb[0].mxu0
      %1695 = vmatprep.mubr.bf16.mxu0 %v616
      %1696 = vmatmul.mubr.bf16.gmra.mrb[0].mxu0 %v591
      %v1697 = vpop.f32.mrb[0].mxu0
      %v1698 = vadd.f32 %v1505, %v1697
      %v1699 = vpop.f32.mrb[0].mxu0
      %v1700 = vpop.f32.mrb[0].mxu0
      %v1701 = vadd.f32 %v1508, %v1700
      %v1702 = vpop.f32.mrb[0].mxu0
      %1703 = vmatprep.mubr.bf16.mxu0 %v617
      %1704 = vmatmul.mubr.bf16.gmra.mrb[0].mxu0 %v592
      %v1705 = vpop.f32.mrb[0].mxu0
      %v1706 = vadd.f32 %v1513, %v1705
      %v1707 = vpop.f32.mrb[0].mxu0
      %v1708 = vpop.f32.mrb[0].mxu0
      %v1709 = vadd.f32 %v1516, %v1708
      %v1710 = vpop.f32.mrb[0].mxu0
      %1711 = vmatprep.mubr.bf16.mxu0 %v618
      %1712 = vmatmul.mubr.bf16.gmra.mrb[0].mxu0 %v593
      %v1713 = vpop.f32.mrb[0].mxu0
      %v1714 = vadd.f32 %v1521, %v1713
      %v1715 = vpop.f32.mrb[0].mxu0
      %v1716 = vpop.f32.mrb[0].mxu0
      %v1717 = vadd.f32 %v1524, %v1716
      %v1718 = vpop.f32.mrb[0].mxu0
      %1719 = vmatprep.mubr.bf16.mxu0 %v619
      %1720 = vmatmul.mubr.bf16.gmra.mrb[0].mxu0 %v594
      %v1721 = vpop.f32.mrb[0].mxu0
      %v1722 = vadd.f32 %v1529, %v1721
      %v1723 = vpop.f32.mrb[0].mxu0
      %v1724 = vpop.f32.mrb[0].mxu0
      %v1725 = vadd.f32 %v1532, %v1724
      %v1726 = vpop.f32.mrb[0].mxu0
      %1727 = vmatprep.mubr.bf16.mxu0 %v620
      %1728 = vmatmul.mubr.bf16.gmra.mrb[0].mxu0 %v595
      %v1729 = vpop.f32.mrb[0].mxu0
      %v1730 = vadd.f32 %v1537, %v1729
      %v1731 = vpop.f32.mrb[0].mxu0
      %v1732 = vpop.f32.mrb[0].mxu0
      %v1733 = vadd.f32 %v1540, %v1732
      %v1734 = vpop.f32.mrb[0].mxu0
      %1735 = vmatprep.mubr.bf16.mxu0 %v621
      %1736 = vmatmul.mubr.bf16.gmra.mrb[0].mxu0 %v596
      %v1737 = vpop.f32.mrb[0].mxu0
      %v1738 = vadd.f32 %v1545, %v1737
      %v1739 = vpop.f32.mrb[0].mxu0
      %v1740 = vpop.f32.mrb[0].mxu0
      %v1741 = vadd.f32 %v1548, %v1740
      %v1742 = vpop.f32.mrb[0].mxu0
      %1743 = vmatprep.mubr.bf16.mxu0 %v622
      %1744 = vmatmul.mubr.bf16.gmra.mrb[0].mxu0 %v597
      %v1745 = vpop.f32.mrb[0].mxu0
      %v1746 = vadd.f32 %v1553, %v1745
      %v1747 = vpop.f32.mrb[0].mxu0
      %v1748 = vpop.f32.mrb[0].mxu0
      %v1749 = vadd.f32 %v1556, %v1748
      %v1750 = vpop.f32.mrb[0].mxu0
      %1751 = vmatprep.mubr.bf16.mxu0 %v623
      %1752 = vmatmul.mubr.bf16.gmra.mrb[0].mxu0 %v598
      %v1753 = vpop.f32.mrb[0].mxu0
      %v1754 = vadd.f32 %v1561, %v1753
      %v1755 = vpop.f32.mrb[0].mxu0
      %v1756 = vpop.f32.mrb[0].mxu0
      %v1757 = vadd.f32 %v1564, %v1756
      %v1758 = vpop.f32.mrb[0].mxu0
      %1759 = vmatprep.mubr.bf16.mxu0 %v624
      %1760 = vmatmul.mubr.bf16.gmra.mrb[0].mxu0 %v599
      %v1761 = vpop.f32.mrb[0].mxu0
      %v1762 = vadd.f32 %v1569, %v1761
      %v1763 = vpop.f32.mrb[0].mxu0
      %v1764 = vpop.f32.mrb[0].mxu0
      %v1765 = vadd.f32 %v1572, %v1764
      %v1766 = vpop.f32.mrb[0].mxu0
      %1767 = vmatprep.mubr.bf16.mxu0 %v625
      %1768 = vmatmul.mubr.bf16.gmra.mrb[0].mxu0 %v600
      %v1769 = vpop.f32.mrb[0].mxu0
      %v1770 = vadd.f32 %v1577, %v1769
      %v1771 = vpop.f32.mrb[0].mxu0
      %v1772 = vpop.f32.mrb[0].mxu0
      %v1773 = vadd.f32 %v1580, %v1772
      %v1774 = vpop.f32.mrb[0].mxu0
      %1775 = vmatprep.mubr.bf16.mxu0 %v626
      %1776 = vmatmul.mubr.bf16.gmra.mrb[0].mxu0 %v601
      %v1777 = vpop.f32.mrb[0].mxu0
      %v1778 = vadd.f32 %v1585, %v1777
      %v1779 = vpop.f32.mrb[0].mxu0
      %v1780 = vpop.f32.mrb[0].mxu0
      %v1781 = vadd.f32 %v1588, %v1780
      %v1782 = vpop.f32.mrb[0].mxu0
      %1783 = vmatprep.mubr.bf16.mxu0 %v627
      %1784 = vmatmul.mubr.bf16.gmra.mrb[0].mxu0 %v602
      %v1785 = vpop.f32.mrb[0].mxu0
      %v1786 = vadd.f32 %v1593, %v1785
      %v1787 = vpop.f32.mrb[0].mxu0
      %v1788 = vpop.f32.mrb[0].mxu0
      %v1789 = vadd.f32 %v1596, %v1788
      %v1790 = vpop.f32.mrb[0].mxu0
      %1791 = vmatprep.mubr.bf16.mxu0 %v628
      %1792 = vmatmul.mubr.bf16.gmra.mrb[0].mxu0 %v603
      %v1793 = vpop.f32.mrb[0].mxu0
      %v1794 = vadd.f32 %v1601, %v1793
      %v1795 = vpop.f32.mrb[0].mxu0
      %v1796 = vpop.f32.mrb[0].mxu0
      %v1797 = vadd.f32 %v1604, %v1796
      %v1798 = vpop.f32.mrb[0].mxu0
      %1799 = vmatprep.mubr.bf16.mxu0 %v629
      %1800 = vmatmul.mubr.bf16.gmra.mrb[0].mxu0 %v604
      %v1801 = vpop.f32.mrb[0].mxu0
      %v1802 = vadd.f32 %v1609, %v1801
      %v1803 = vpop.f32.mrb[0].mxu0
      %v1804 = vpop.f32.mrb[0].mxu0
      %v1805 = vadd.f32 %v1612, %v1804
      %v1806 = vpop.f32.mrb[0].mxu0
      %1807 = vmatprep.mubr.bf16.mxu0 %v630
      %1808 = vmatmul.mubr.bf16.gmra.mrb[0].mxu0 %v605
      %v1809 = vpop.f32.mrb[0].mxu0
      %v1810 = vadd.f32 %v1617, %v1809
      %v1811 = vpop.f32.mrb[0].mxu0
      %v1812 = vpop.f32.mrb[0].mxu0
      %v1813 = vadd.f32 %v1620, %v1812
      %v1814 = vpop.f32.mrb[0].mxu0
      %1815 = vmatprep.mubr.bf16.mxu0 %v631
      %1816 = vmatmul.mubr.bf16.gmra.mrb[0].mxu0 %v606
      %v1817 = vpop.f32.mrb[0].mxu0
      %v1818 = vadd.f32 %v1625, %v1817
      %v1819 = vpop.f32.mrb[0].mxu0
      %v1820 = vpop.f32.mrb[0].mxu0
      %v1821 = vadd.f32 %v1628, %v1820
      %v1822 = vpop.f32.mrb[0].mxu0
      %1823 = vdwg.mxu0
      %1824 = vmatprep.subr.bf16.mxu0 0
      %1825 = vmatpush1.bf16.msra.mxu0 %v1149
      %1826 = vmatprep.subr.bf16.mxu0 0
      %1827 = vmatpush1.bf16.msra.mxu0 %v1150
      %1828 = vmatprep.subr.bf16.mxu0 0
      %1829 = vmatpush1.bf16.msra.mxu0 %v1151
      %1830 = vmatprep.subr.bf16.mxu0 0
      %1831 = vmatpush1.bf16.msra.mxu0 %v1152
      %1832 = vmatprep.subr.bf16.mxu0 0
      %1833 = vmatpush1.bf16.msra.mxu0 %v1153
      %1834 = vmatprep.subr.bf16.mxu0 0
      %1835 = vmatpush1.bf16.msra.mxu0 %v1154
      %1836 = vmatprep.subr.bf16.mxu0 0
      %1837 = vmatpush1.bf16.msra.mxu0 %v1155
      %1838 = vmatprep.subr.bf16.mxu0 0
      %1839 = vmatpush1.bf16.msra.mxu0 %v1156
      %1840 = vmatprep.subr.bf16.mxu0 0
      %1841 = vmatpush1.bf16.msra.mxu0 %v1157
      %1842 = vmatprep.subr.bf16.mxu0 0
      %1843 = vmatpush1.bf16.msra.mxu0 %v1158
      %1844 = vmatprep.subr.bf16.mxu0 0
      %1845 = vmatpush1.bf16.msra.mxu0 %v1159
      %1846 = vmatprep.subr.bf16.mxu0 0
      %1847 = vmatpush1.bf16.msra.mxu0 %v1160
      %1848 = vmatprep.subr.bf16.mxu0 0
      %1849 = vmatpush1.bf16.msra.mxu0 %v1161
      %1850 = vmatprep.subr.bf16.mxu0 0
      %1851 = vmatpush1.bf16.msra.mxu0 %v1162
      %1852 = vmatprep.subr.bf16.mxu0 0
      %1853 = vmatpush1.bf16.msra.mxu0 %v1163
      %1854 = vmatprep.subr.bf16.mxu0 0
      %1855 = vmatpush1.bf16.msra.mxu0 %v1164
      %1856 = vmatprep.mubr.bf16.mxu0 %v482
      %1857 = vmatmul.mubr.bf16.gmra.mrb[0].mxu0 %v422
      %v1858 = vpop.f32.mrb[0].mxu0
      %v1859 = vadd.f32 %v1666, %v1858
      %v1860 = vpop.f32.mrb[0].mxu0
      %v1861 = vpop.f32.mrb[0].mxu0
      %v1862 = vadd.f32 %v1669, %v1861
      %v1863 = vpop.f32.mrb[0].mxu0
      %1864 = vmatprep.mubr.bf16.mxu0 %v483
      %1865 = vmatmul.mubr.bf16.gmra.mrb[0].mxu0 %v423
      %v1866 = vpop.f32.mrb[0].mxu0
      %v1867 = vadd.f32 %v1674, %v1866
      %v1868 = vpop.f32.mrb[0].mxu0
      %v1869 = vpop.f32.mrb[0].mxu0
      %v1870 = vadd.f32 %v1677, %v1869
      %v1871 = vpop.f32.mrb[0].mxu0
      %1872 = vmatprep.mubr.bf16.mxu0 %v484
      %1873 = vmatmul.mubr.bf16.gmra.mrb[0].mxu0 %v424
      %v1874 = vpop.f32.mrb[0].mxu0
      %v1875 = vadd.f32 %v1682, %v1874
      %v1876 = vpop.f32.mrb[0].mxu0
      %v1877 = vpop.f32.mrb[0].mxu0
      %v1878 = vadd.f32 %v1685, %v1877
      %v1879 = vpop.f32.mrb[0].mxu0
      %1880 = vmatprep.mubr.bf16.mxu0 %v485
      %1881 = vmatmul.mubr.bf16.gmra.mrb[0].mxu0 %v425
      %v1882 = vpop.f32.mrb[0].mxu0
      %v1883 = vadd.f32 %v1690, %v1882
      %v1884 = vpop.f32.mrb[0].mxu0
      %v1885 = vpop.f32.mrb[0].mxu0
      %v1886 = vadd.f32 %v1693, %v1885
      %v1887 = vpop.f32.mrb[0].mxu0
      %1888 = vmatprep.mubr.bf16.mxu0 %v486
      %1889 = vmatmul.mubr.bf16.gmra.mrb[0].mxu0 %v426
      %v1890 = vpop.f32.mrb[0].mxu0
      %v1891 = vadd.f32 %v1698, %v1890
      %v1892 = vpop.f32.mrb[0].mxu0
      %v1893 = vpop.f32.mrb[0].mxu0
      %v1894 = vadd.f32 %v1701, %v1893
      %v1895 = vpop.f32.mrb[0].mxu0
      %1896 = vmatprep.mubr.bf16.mxu0 %v487
      %1897 = vmatmul.mubr.bf16.gmra.mrb[0].mxu0 %v427
      %v1898 = vpop.f32.mrb[0].mxu0
      %v1899 = vadd.f32 %v1706, %v1898
      %v1900 = vpop.f32.mrb[0].mxu0
      %v1901 = vpop.f32.mrb[0].mxu0
      %v1902 = vadd.f32 %v1709, %v1901
      %v1903 = vpop.f32.mrb[0].mxu0
      %1904 = vmatprep.mubr.bf16.mxu0 %v488
      %1905 = vmatmul.mubr.bf16.gmra.mrb[0].mxu0 %v428
      %v1906 = vpop.f32.mrb[0].mxu0
      %v1907 = vadd.f32 %v1714, %v1906
      %v1908 = vpop.f32.mrb[0].mxu0
      %v1909 = vpop.f32.mrb[0].mxu0
      %v1910 = vadd.f32 %v1717, %v1909
      %v1911 = vpop.f32.mrb[0].mxu0
      %1912 = vmatprep.mubr.bf16.mxu0 %v489
      %1913 = vmatmul.mubr.bf16.gmra.mrb[0].mxu0 %v429
      %v1914 = vpop.f32.mrb[0].mxu0
      %v1915 = vadd.f32 %v1722, %v1914
      %v1916 = vpop.f32.mrb[0].mxu0
      %v1917 = vpop.f32.mrb[0].mxu0
      %v1918 = vadd.f32 %v1725, %v1917
      %v1919 = vpop.f32.mrb[0].mxu0
      %1920 = vmatprep.mubr.bf16.mxu0 %v490
      %1921 = vmatmul.mubr.bf16.gmra.mrb[0].mxu0 %v430
      %v1922 = vpop.f32.mrb[0].mxu0
      %v1923 = vadd.f32 %v1730, %v1922
      %v1924 = vpop.f32.mrb[0].mxu0
      %v1925 = vpop.f32.mrb[0].mxu0
      %v1926 = vadd.f32 %v1733, %v1925
      %v1927 = vpop.f32.mrb[0].mxu0
      %1928 = vmatprep.mubr.bf16.mxu0 %v491
      %1929 = vmatmul.mubr.bf16.gmra.mrb[0].mxu0 %v431
      %v1930 = vpop.f32.mrb[0].mxu0
      %v1931 = vadd.f32 %v1738, %v1930
      %v1932 = vpop.f32.mrb[0].mxu0
      %v1933 = vpop.f32.mrb[0].mxu0
      %v1934 = vadd.f32 %v1741, %v1933
      %v1935 = vpop.f32.mrb[0].mxu0
      %1936 = vmatprep.mubr.bf16.mxu0 %v492
      %1937 = vmatmul.mubr.bf16.gmra.mrb[0].mxu0 %v432
      %v1938 = vpop.f32.mrb[0].mxu0
      %v1939 = vadd.f32 %v1746, %v1938
      %v1940 = vpop.f32.mrb[0].mxu0
      %v1941 = vpop.f32.mrb[0].mxu0
      %v1942 = vadd.f32 %v1749, %v1941
      %v1943 = vpop.f32.mrb[0].mxu0
      %1944 = vmatprep.mubr.bf16.mxu0 %v493
      %1945 = vmatmul.mubr.bf16.gmra.mrb[0].mxu0 %v433
      %v1946 = vpop.f32.mrb[0].mxu0
      %v1947 = vadd.f32 %v1754, %v1946
      %v1948 = vpop.f32.mrb[0].mxu0
      %v1949 = vpop.f32.mrb[0].mxu0
      %v1950 = vadd.f32 %v1757, %v1949
      %v1951 = vpop.f32.mrb[0].mxu0
      %1952 = vmatprep.mubr.bf16.mxu0 %v494
      %1953 = vmatmul.mubr.bf16.gmra.mrb[0].mxu0 %v434
      %v1954 = vpop.f32.mrb[0].mxu0
      %v1955 = vadd.f32 %v1762, %v1954
      %v1956 = vpop.f32.mrb[0].mxu0
      %v1957 = vpop.f32.mrb[0].mxu0
      %v1958 = vadd.f32 %v1765, %v1957
      %v1959 = vpop.f32.mrb[0].mxu0
      %1960 = vmatprep.mubr.bf16.mxu0 %v495
      %1961 = vmatmul.mubr.bf16.gmra.mrb[0].mxu0 %v435
      %v1962 = vpop.f32.mrb[0].mxu0
      %v1963 = vadd.f32 %v1770, %v1962
      %v1964 = vpop.f32.mrb[0].mxu0
      %v1965 = vpop.f32.mrb[0].mxu0
      %v1966 = vadd.f32 %v1773, %v1965
      %v1967 = vpop.f32.mrb[0].mxu0
      %1968 = vmatprep.mubr.bf16.mxu0 %v496
      %1969 = vmatmul.mubr.bf16.gmra.mrb[0].mxu0 %v436
      %v1970 = vpop.f32.mrb[0].mxu0
      %v1971 = vadd.f32 %v1778, %v1970
      %v1972 = vpop.f32.mrb[0].mxu0
      %v1973 = vpop.f32.mrb[0].mxu0
      %v1974 = vadd.f32 %v1781, %v1973
      %v1975 = vpop.f32.mrb[0].mxu0
      %1976 = vmatprep.mubr.bf16.mxu0 %v647
      %1977 = vmatmul.mubr.bf16.gmra.mrb[0].mxu0 %v637
      %v1978 = vpop.f32.mrb[0].mxu0
      %v1979 = vadd.f32 %v1786, %v1978
      %v1980 = vpop.f32.mrb[0].mxu0
      %v1981 = vpop.f32.mrb[0].mxu0
      %v1982 = vadd.f32 %v1789, %v1981
      %v1983 = vpop.f32.mrb[0].mxu0
      %1984 = vmatprep.mubr.bf16.mxu0 %v648
      %1985 = vmatmul.mubr.bf16.gmra.mrb[0].mxu0 %v638
      %v1986 = vpop.f32.mrb[0].mxu0
      %v1987 = vadd.f32 %v1794, %v1986
      %v1988 = vpop.f32.mrb[0].mxu0
      %v1989 = vpop.f32.mrb[0].mxu0
      %v1990 = vadd.f32 %v1797, %v1989
      %v1991 = vpop.f32.mrb[0].mxu0
      %1992 = vmatprep.mubr.bf16.mxu0 %v649
      %1993 = vmatmul.mubr.bf16.gmra.mrb[0].mxu0 %v639
      %v1994 = vpop.f32.mrb[0].mxu0
      %v1995 = vadd.f32 %v1802, %v1994
      %v1996 = vpop.f32.mrb[0].mxu0
      %v1997 = vpop.f32.mrb[0].mxu0
      %v1998 = vadd.f32 %v1805, %v1997
      %v1999 = vpop.f32.mrb[0].mxu0
      %2000 = vmatprep.mubr.bf16.mxu0 %v650
      %2001 = vmatmul.mubr.bf16.gmra.mrb[0].mxu0 %v640
      %v2002 = vpop.f32.mrb[0].mxu0
      %v2003 = vadd.f32 %v1810, %v2002
      %v2004 = vpop.f32.mrb[0].mxu0
      %v2005 = vpop.f32.mrb[0].mxu0
      %v2006 = vadd.f32 %v1813, %v2005
      %v2007 = vpop.f32.mrb[0].mxu0
      %2008 = vmatprep.mubr.bf16.mxu0 %v651
      %2009 = vmatmul.mubr.bf16.gmra.mrb[0].mxu0 %v641
      %v2010 = vpop.f32.mrb[0].mxu0
      %v2011 = vadd.f32 %v1818, %v2010
      %v2012 = vpop.f32.mrb[0].mxu0
      %v2013 = vpop.f32.mrb[0].mxu0
      %v2014 = vadd.f32 %v1821, %v2013
      %v2015 = vpop.f32.mrb[0].mxu0
      %2016 = vdwg.mxu0
      %2017 = vmatprep.subr.bf16.mxu0 0
      %2018 = vmatpush1.bf16.msra.mxu0 %v1165
      %2019 = vmatprep.subr.bf16.mxu0 0
      %2020 = vmatpush1.bf16.msra.mxu0 %v1166
      %2021 = vmatprep.subr.bf16.mxu0 0
      %2022 = vmatpush1.bf16.msra.mxu0 %v1167
      %2023 = vmatprep.subr.bf16.mxu0 0
      %2024 = vmatpush1.bf16.msra.mxu0 %v1168
      %2025 = vmatprep.subr.bf16.mxu0 0
      %2026 = vmatpush1.bf16.msra.mxu0 %v1169
      %2027 = vmatprep.subr.bf16.mxu0 0
      %2028 = vmatpush1.bf16.msra.mxu0 %v1170
      %2029 = vmatprep.subr.bf16.mxu0 0
      %2030 = vmatpush1.bf16.msra.mxu0 %v1171
      %2031 = vmatprep.subr.bf16.mxu0 0
      %2032 = vmatpush1.bf16.msra.mxu0 %v1172
      %2033 = vmatprep.subr.bf16.mxu0 0
      %2034 = vmatpush1.bf16.msra.mxu0 0
      %2035 = vmatprep.subr.bf16.mxu0 0
      %2036 = vmatpush1.bf16.msra.mxu0 0
      %2037 = vmatprep.subr.bf16.mxu0 0
      %2038 = vmatpush1.bf16.msra.mxu0 0
      %2039 = vmatprep.subr.bf16.mxu0 0
      %2040 = vmatpush1.bf16.msra.mxu0 0
      %2041 = vmatprep.subr.bf16.mxu0 0
      %2042 = vmatpush1.bf16.msra.mxu0 0
      %2043 = vmatprep.subr.bf16.mxu0 0
      %2044 = vmatpush1.bf16.msra.mxu0 0
      %2045 = vmatprep.subr.bf16.mxu0 0
      %2046 = vmatpush1.bf16.msra.mxu0 0
      %2047 = vmatprep.subr.bf16.mxu0 0
      %2048 = vmatpush1.bf16.msra.mxu0 0
      %2049 = vmatprep.mubr.bf16.mxu0 0
      %2050 = vmatmul.mubr.bf16.gmra.mrb[0].mxu0 %v542
      %v2051 = vpop.f32.mrb[0].mxu0
      %v2052 = vadd.f32 %v1859, %v2051
      %v2053 = vpop.f32.mrb[0].mxu0
      %v2054 = vpop.f32.mrb[0].mxu0
      %v2055 = vadd.f32 %v1862, %v2054
      %v2056 = vpop.f32.mrb[0].mxu0
      %2057 = vmatprep.mubr.bf16.mxu0 0
      %2058 = vmatmul.mubr.bf16.gmra.mrb[0].mxu0 %v543
      %v2059 = vpop.f32.mrb[0].mxu0
      %v2060 = vadd.f32 %v1867, %v2059
      %v2061 = vpop.f32.mrb[0].mxu0
      %v2062 = vpop.f32.mrb[0].mxu0
      %v2063 = vadd.f32 %v1870, %v2062
      %v2064 = vpop.f32.mrb[0].mxu0
      %2065 = vmatprep.mubr.bf16.mxu0 0
      %2066 = vmatmul.mubr.bf16.gmra.mrb[0].mxu0 %v544
      %v2067 = vpop.f32.mrb[0].mxu0
      %v2068 = vadd.f32 %v1875, %v2067
      %v2069 = vpop.f32.mrb[0].mxu0
      %v2070 = vpop.f32.mrb[0].mxu0
      %v2071 = vadd.f32 %v1878, %v2070
      %v2072 = vpop.f32.mrb[0].mxu0
      %2073 = vmatprep.mubr.bf16.mxu0 0
      %2074 = vmatmul.mubr.bf16.gmra.mrb[0].mxu0 %v545
      %v2075 = vpop.f32.mrb[0].mxu0
      %v2076 = vadd.f32 %v1883, %v2075
      %v2077 = vpop.f32.mrb[0].mxu0
      %v2078 = vpop.f32.mrb[0].mxu0
      %v2079 = vadd.f32 %v1886, %v2078
      %v2080 = vpop.f32.mrb[0].mxu0
      %2081 = vmatprep.mubr.bf16.mxu0 0
      %2082 = vmatmul.mubr.bf16.gmra.mrb[0].mxu0 %v546
      %v2083 = vpop.f32.mrb[0].mxu0
      %v2084 = vadd.f32 %v1891, %v2083
      %v2085 = vpop.f32.mrb[0].mxu0
      %v2086 = vpop.f32.mrb[0].mxu0
      %v2087 = vadd.f32 %v1894, %v2086
      %v2088 = vpop.f32.mrb[0].mxu0
      %2089 = vmatprep.mubr.bf16.mxu0 0
      %2090 = vmatmul.mubr.bf16.gmra.mrb[0].mxu0 %v547
      %v2091 = vpop.f32.mrb[0].mxu0
      %v2092 = vadd.f32 %v1899, %v2091
      %v2093 = vpop.f32.mrb[0].mxu0
      %v2094 = vpop.f32.mrb[0].mxu0
      %v2095 = vadd.f32 %v1902, %v2094
      %v2096 = vpop.f32.mrb[0].mxu0
      %2097 = vmatprep.mubr.bf16.mxu0 0
      %2098 = vmatmul.mubr.bf16.gmra.mrb[0].mxu0 %v548
      %v2099 = vpop.f32.mrb[0].mxu0
      %v2100 = vadd.f32 %v1907, %v2099
      %v2101 = vpop.f32.mrb[0].mxu0
      %v2102 = vpop.f32.mrb[0].mxu0
      %v2103 = vadd.f32 %v1910, %v2102
      %v2104 = vpop.f32.mrb[0].mxu0
      %2105 = vmatprep.mubr.bf16.mxu0 0
      %2106 = vmatmul.mubr.bf16.gmra.mrb[0].mxu0 %v549
      %v2107 = vpop.f32.mrb[0].mxu0
      %v2108 = vadd.f32 %v1915, %v2107
      %v2109 = vpop.f32.mrb[0].mxu0
      %v2110 = vpop.f32.mrb[0].mxu0
      %v2111 = vadd.f32 %v1918, %v2110
      %v2112 = vpop.f32.mrb[0].mxu0
      %2113 = vmatprep.mubr.bf16.mxu0 0
      %2114 = vmatmul.mubr.bf16.gmra.mrb[0].mxu0 %v550
      %v2115 = vpop.f32.mrb[0].mxu0
      %v2116 = vadd.f32 %v1923, %v2115
      %v2117 = vpop.f32.mrb[0].mxu0
      %v2118 = vpop.f32.mrb[0].mxu0
      %v2119 = vadd.f32 %v1926, %v2118
      %v2120 = vpop.f32.mrb[0].mxu0
      %2121 = vmatprep.mubr.bf16.mxu0 0
      %2122 = vmatmul.mubr.bf16.gmra.mrb[0].mxu0 %v551
      %v2123 = vpop.f32.mrb[0].mxu0
      %v2124 = vadd.f32 %v1931, %v2123
      %v2125 = vpop.f32.mrb[0].mxu0
      %v2126 = vpop.f32.mrb[0].mxu0
      %v2127 = vadd.f32 %v1934, %v2126
      %v2128 = vpop.f32.mrb[0].mxu0
      %2129 = vmatprep.mubr.bf16.mxu0 0
      %2130 = vmatmul.mubr.bf16.gmra.mrb[0].mxu0 %v552
      %v2131 = vpop.f32.mrb[0].mxu0
      %v2132 = vadd.f32 %v1939, %v2131
      %v2133 = vpop.f32.mrb[0].mxu0
      %v2134 = vpop.f32.mrb[0].mxu0
      %v2135 = vadd.f32 %v1942, %v2134
      %v2136 = vpop.f32.mrb[0].mxu0
      %2137 = vmatprep.mubr.bf16.mxu0 0
      %2138 = vmatmul.mubr.bf16.gmra.mrb[0].mxu0 %v553
      %v2139 = vpop.f32.mrb[0].mxu0
      %v2140 = vadd.f32 %v1947, %v2139
      %v2141 = vpop.f32.mrb[0].mxu0
      %v2142 = vpop.f32.mrb[0].mxu0
      %v2143 = vadd.f32 %v1950, %v2142
      %v2144 = vpop.f32.mrb[0].mxu0
      %2145 = vmatprep.mubr.bf16.mxu0 0
      %2146 = vmatmul.mubr.bf16.gmra.mrb[0].mxu0 %v554
      %v2147 = vpop.f32.mrb[0].mxu0
      %v2148 = vadd.f32 %v1955, %v2147
      %v2149 = vpop.f32.mrb[0].mxu0
      %v2150 = vpop.f32.mrb[0].mxu0
      %v2151 = vadd.f32 %v1958, %v2150
      %v2152 = vpop.f32.mrb[0].mxu0
      %2153 = vmatprep.mubr.bf16.mxu0 0
      %2154 = vmatmul.mubr.bf16.gmra.mrb[0].mxu0 %v555
      %v2155 = vpop.f32.mrb[0].mxu0
      %v2156 = vadd.f32 %v1963, %v2155
      %v2157 = vpop.f32.mrb[0].mxu0
      %v2158 = vpop.f32.mrb[0].mxu0
      %v2159 = vadd.f32 %v1966, %v2158
      %v2160 = vpop.f32.mrb[0].mxu0
      %2161 = vmatprep.mubr.bf16.mxu0 0
      %2162 = vmatmul.mubr.bf16.gmra.mrb[0].mxu0 %v556
      %v2163 = vpop.f32.mrb[0].mxu0
      %v2164 = vadd.f32 %v1971, %v2163
      %v2165 = vpop.f32.mrb[0].mxu0
      %v2166 = vpop.f32.mrb[0].mxu0
      %v2167 = vadd.f32 %v1974, %v2166
      %v2168 = vpop.f32.mrb[0].mxu0
      %2169 = vmatprep.mubr.bf16.mxu0 0
      %2170 = vmatmul.mubr.bf16.gmra.mrb[0].mxu0 %v657
      %v2171 = vpop.f32.mrb[0].mxu0
      %v2172 = vadd.f32 %v1979, %v2171
      %v2173 = vpop.f32.mrb[0].mxu0
      %v2174 = vpop.f32.mrb[0].mxu0
      %v2175 = vadd.f32 %v1982, %v2174
      %v2176 = vpop.f32.mrb[0].mxu0
      %2177 = vmatprep.mubr.bf16.mxu0 0
      %2178 = vmatmul.mubr.bf16.gmra.mrb[0].mxu0 %v658
      %v2179 = vpop.f32.mrb[0].mxu0
      %v2180 = vadd.f32 %v1987, %v2179
      %v2181 = vpop.f32.mrb[0].mxu0
      %v2182 = vpop.f32.mrb[0].mxu0
      %v2183 = vadd.f32 %v1990, %v2182
      %v2184 = vpop.f32.mrb[0].mxu0
      %2185 = vmatprep.mubr.bf16.mxu0 0
      %2186 = vmatmul.mubr.bf16.gmra.mrb[0].mxu0 %v659
      %v2187 = vpop.f32.mrb[0].mxu0
      %v2188 = vadd.f32 %v1995, %v2187
      %v2189 = vpop.f32.mrb[0].mxu0
      %v2190 = vpop.f32.mrb[0].mxu0
      %v2191 = vadd.f32 %v1998, %v2190
      %v2192 = vpop.f32.mrb[0].mxu0
      %2193 = vmatprep.mubr.bf16.mxu0 0
      %2194 = vmatmul.mubr.bf16.gmra.mrb[0].mxu0 %v660
      %v2195 = vpop.f32.mrb[0].mxu0
      %v2196 = vadd.f32 %v2003, %v2195
      %v2197 = vpop.f32.mrb[0].mxu0
      %v2198 = vpop.f32.mrb[0].mxu0
      %v2199 = vadd.f32 %v2006, %v2198
      %v2200 = vpop.f32.mrb[0].mxu0
      %2201 = vmatprep.mubr.bf16.mxu0 0
      %2202 = vmatmul.mubr.bf16.gmra.mrb[0].mxu0 %v661
      %v2203 = vpop.f32.mrb[0].mxu0
      %v2204 = vadd.f32 %v2011, %v2203
      %v2205 = vpop.f32.mrb[0].mxu0
      %v2206 = vpop.f32.mrb[0].mxu0
      %v2207 = vadd.f32 %v2014, %v2206
      %v2208 = vpop.f32.mrb[0].mxu0
      %2209 = vdwg.mxu0
      %2211 = vset.pattern.permute.xlu0 0
      %2212 = vperm.xlu0 %2211, %v335
      %v2213 = vpop.permute.xlu0 %2212
      %2216 = vset.pattern.permute.xlu0 0
      %2217 = vperm.xlu0 %2216, %v336
      %v2218 = vpop.permute.xlu0 %2217
      %2221 = vset.pattern.permute.xlu0 0
      %2222 = vperm.xlu0 %2221, %v337
      %v2223 = vpop.permute.xlu0 %2222
      %2226 = vset.pattern.permute.xlu0 0
      %2227 = vperm.xlu0 %2226, %v338
      %v2228 = vpop.permute.xlu0 %2227
      %2231 = vset.pattern.permute.xlu0 0
      %2232 = vperm.xlu0 %2231, %v339
      %v2233 = vpop.permute.xlu0 %2232
      %2236 = vset.pattern.permute.xlu0 0
      %2237 = vperm.xlu0 %2236, %v340
      %v2238 = vpop.permute.xlu0 %2237
      %2241 = vset.pattern.permute.xlu0 0
      %2242 = vperm.xlu0 %2241, %v341
      %v2243 = vpop.permute.xlu0 %2242
      %2246 = vset.pattern.permute.xlu0 0
      %2247 = vperm.xlu0 %2246, %v342
      %v2248 = vpop.permute.xlu0 %2247
      %2251 = vset.pattern.permute.xlu0 0
      %2252 = vperm.xlu0 %2251, %v343
      %v2253 = vpop.permute.xlu0 %2252
      %2256 = vset.pattern.permute.xlu0 0
      %2257 = vperm.xlu0 %2256, %v344
      %v2258 = vpop.permute.xlu0 %2257
      %2261 = vset.pattern.permute.xlu0 0
      %2262 = vperm.xlu0 %2261, %v345
      %v2263 = vpop.permute.xlu0 %2262
      %2266 = vset.pattern.permute.xlu0 0
      %2267 = vperm.xlu0 %2266, %v346
      %v2268 = vpop.permute.xlu0 %2267
      %2271 = vset.pattern.permute.xlu0 0
      %2272 = vperm.xlu0 %2271, %v347
      %v2273 = vpop.permute.xlu0 %2272
      %2276 = vset.pattern.permute.xlu0 0
      %2277 = vperm.xlu0 %2276, %v348
      %v2278 = vpop.permute.xlu0 %2277
      %2281 = vset.pattern.permute.xlu0 0
      %2282 = vperm.xlu0 %2281, %v349
      %v2283 = vpop.permute.xlu0 %2282
      %2286 = vset.pattern.permute.xlu0 0
      %2287 = vperm.xlu0 %2286, %v350
      %v2288 = vpop.permute.xlu0 %2287
      %2291 = vset.pattern.permute.xlu0 0
      %2292 = vperm.xlu0 %2291, %v351
      %v2293 = vpop.permute.xlu0 %2292
      %2296 = vset.pattern.permute.xlu0 0
      %2297 = vperm.xlu0 %2296, %v352
      %v2298 = vpop.permute.xlu0 %2297
      %2301 = vset.pattern.permute.xlu0 0
      %2302 = vperm.xlu0 %2301, %v353
      %v2303 = vpop.permute.xlu0 %2302
      %2306 = vset.pattern.permute.xlu0 0
      %2307 = vperm.xlu0 %2306, %v354
      %v2308 = vpop.permute.xlu0 %2307
      %2311 = vset.pattern.permute.xlu0 0
      %2312 = vperm.xlu0 %2311, %v355
      %v2313 = vpop.permute.xlu0 %2312
      %2316 = vset.pattern.permute.xlu0 0
      %2317 = vperm.xlu0 %2316, %v356
      %v2318 = vpop.permute.xlu0 %2317
      %2321 = vset.pattern.permute.xlu0 0
      %2322 = vperm.xlu0 %2321, %v357
      %v2323 = vpop.permute.xlu0 %2322
      %2326 = vset.pattern.permute.xlu0 0
      %2327 = vperm.xlu0 %2326, %v358
      %v2328 = vpop.permute.xlu0 %2327
      %2331 = vset.pattern.permute.xlu0 0
      %2332 = vperm.xlu0 %2331, %v359
      %v2333 = vpop.permute.xlu0 %2332
      %2336 = vset.pattern.permute.xlu0 0
      %2337 = vperm.xlu0 %2336, %v360
      %v2338 = vpop.permute.xlu0 %2337
      %2341 = vset.pattern.permute.xlu0 0
      %2342 = vperm.xlu0 %2341, %v361
      %v2343 = vpop.permute.xlu0 %2342
      %2346 = vset.pattern.permute.xlu0 0
      %2347 = vperm.xlu0 %2346, %v362
      %v2348 = vpop.permute.xlu0 %2347
      %2351 = vset.pattern.permute.xlu0 0
      %2352 = vperm.xlu0 %2351, %v363
      %v2353 = vpop.permute.xlu0 %2352
      %2356 = vset.pattern.permute.xlu0 0
      %2357 = vperm.xlu0 %2356, %v364
      %v2358 = vpop.permute.xlu0 %2357
      %2361 = vset.pattern.permute.xlu0 0
      %2362 = vperm.xlu0 %2361, %v365
      %v2363 = vpop.permute.xlu0 %2362
      %2366 = vset.pattern.permute.xlu0 0
      %2367 = vperm.xlu0 %2366, %v366
      %v2368 = vpop.permute.xlu0 %2367
      %2371 = vset.pattern.permute.xlu0 0
      %2372 = vperm.xlu0 %2371, %v367
      %v2373 = vpop.permute.xlu0 %2372
      %2376 = vset.pattern.permute.xlu0 0
      %2377 = vperm.xlu0 %2376, %v368
      %v2378 = vpop.permute.xlu0 %2377
      %2381 = vset.pattern.permute.xlu0 0
      %2382 = vperm.xlu0 %2381, %v369
      %v2383 = vpop.permute.xlu0 %2382
      %2386 = vset.pattern.permute.xlu0 0
      %2387 = vperm.xlu0 %2386, %v370
      %v2388 = vpop.permute.xlu0 %2387
      %2391 = vset.pattern.permute.xlu0 0
      %2392 = vperm.xlu0 %2391, %v371
      %v2393 = vpop.permute.xlu0 %2392
      %2396 = vset.pattern.permute.xlu0 0
      %2397 = vperm.xlu0 %2396, %v372
      %v2398 = vpop.permute.xlu0 %2397
      %2401 = vset.pattern.permute.xlu0 0
      %2402 = vperm.xlu0 %2401, %v373
      %v2403 = vpop.permute.xlu0 %2402
      %2406 = vset.pattern.permute.xlu0 0
      %2407 = vperm.xlu0 %2406, %v374
      %v2408 = vpop.permute.xlu0 %2407
      %v2410 = vmul.f32 %v2052, %v2213
      %v2411 = vmul.f32 %v2055, %v2218
      %v2412 = vmul.f32 %v2060, %v2223
      %v2413 = vmul.f32 %v2063, %v2228
      %v2414 = vmul.f32 %v2068, %v2233
      %v2415 = vmul.f32 %v2071, %v2238
      %v2416 = vmul.f32 %v2076, %v2243
      %v2417 = vmul.f32 %v2079, %v2248
      %v2418 = vmul.f32 %v2084, %v2253
      %v2419 = vmul.f32 %v2087, %v2258
      %v2420 = vmul.f32 %v2092, %v2263
      %v2421 = vmul.f32 %v2095, %v2268
      %v2422 = vmul.f32 %v2100, %v2273
      %v2423 = vmul.f32 %v2103, %v2278
      %v2424 = vmul.f32 %v2108, %v2283
      %v2425 = vmul.f32 %v2111, %v2288
      %v2426 = vmul.f32 %v2116, %v2293
      %v2427 = vmul.f32 %v2119, %v2298
      %v2428 = vmul.f32 %v2124, %v2303
      %v2429 = vmul.f32 %v2127, %v2308
      %v2430 = vmul.f32 %v2132, %v2313
      %v2431 = vmul.f32 %v2135, %v2318
      %v2432 = vmul.f32 %v2140, %v2323
      %v2433 = vmul.f32 %v2143, %v2328
      %v2434 = vmul.f32 %v2148, %v2333
      %v2435 = vmul.f32 %v2151, %v2338
      %v2436 = vmul.f32 %v2156, %v2343
      %v2437 = vmul.f32 %v2159, %v2348
      %v2438 = vmul.f32 %v2164, %v2353
      %v2439 = vmul.f32 %v2167, %v2358
      %v2440 = vmul.f32 %v2172, %v2363
      %v2441 = vmul.f32 %v2175, %v2368
      %v2442 = vmul.f32 %v2180, %v2373
      %v2443 = vmul.f32 %v2183, %v2378
      %v2444 = vmul.f32 %v2188, %v2383
      %v2445 = vmul.f32 %v2191, %v2388
      %v2446 = vmul.f32 %v2196, %v2393
      %v2447 = vmul.f32 %v2199, %v2398
      %v2448 = vmul.f32 %v2204, %v2403
      %v2449 = vmul.f32 %v2207, %v2408
      %v2450 = vadd.f32 %v2410, %v2411
      %v2451 = vadd.f32 %v2450, %v2412
      %v2452 = vadd.f32 %v2451, %v2413
      %v2453 = vadd.f32 %v2452, %v2414
      %v2454 = vadd.f32 %v2453, %v2415
      %v2455 = vadd.f32 %v2454, %v2416
      %v2456 = vadd.f32 %v2455, %v2417
      %v2457 = vadd.f32 %v2456, %v2418
      %v2458 = vadd.f32 %v2457, %v2419
      %v2459 = vadd.f32 %v2458, %v2420
      %v2460 = vadd.f32 %v2459, %v2421
      %v2461 = vadd.f32 %v2460, %v2422
      %v2462 = vadd.f32 %v2461, %v2423
      %v2463 = vadd.f32 %v2462, %v2424
      %v2464 = vadd.f32 %v2463, %v2425
      %v2465 = vadd.f32 %v2464, %v2426
      %v2466 = vadd.f32 %v2465, %v2427
      %v2467 = vadd.f32 %v2466, %v2428
      %v2468 = vadd.f32 %v2467, %v2429
      %v2469 = vadd.f32 %v2468, %v2430
      %v2470 = vadd.f32 %v2469, %v2431
      %v2471 = vadd.f32 %v2470, %v2432
      %v2472 = vadd.f32 %v2471, %v2433
      %v2473 = vadd.f32 %v2472, %v2434
      %v2474 = vadd.f32 %v2473, %v2435
      %v2475 = vadd.f32 %v2474, %v2436
      %v2476 = vadd.f32 %v2475, %v2437
      %v2477 = vadd.f32 %v2476, %v2438
      %v2478 = vadd.f32 %v2477, %v2439
      %v2479 = vadd.f32 %v2478, %v2440
      %v2480 = vadd.f32 %v2479, %v2441
      %v2481 = vadd.f32 %v2480, %v2442
      %v2482 = vadd.f32 %v2481, %v2443
      %v2483 = vadd.f32 %v2482, %v2444
      %v2484 = vadd.f32 %v2483, %v2445
      %v2485 = vadd.f32 %v2484, %v2446
      %v2486 = vadd.f32 %v2485, %v2447
      %v2487 = vadd.f32 %v2486, %v2448
      %v2488 = vadd.f32 %v2487, %v2449
      %2489 = vadd.xlane.f32.xlu0 %v2488
      %v2490 = vpop.xlane.xlu0 %2489
      %v2491 = vrot.slane %v2490, 4
      %v2492 = vadd.f32 %v2490, %v2491
      %v2493 = vrot.slane %v2492, 2
      %v2494 = vadd.f32 %v2492, %v2493
      %v2495 = vrot.slane %v2494, 1
      %v2496 = vadd.f32 %v2494, %v2495
      %s2497 = vtos %v2496
      %s2498 = smul.f32 %s2497, 0.00012207031
      %v2499 = vmul.f32 %v2410, %v2410
      %v2500 = vmul.f32 %v2411, %v2411
      %v2501 = vmul.f32 %v2412, %v2412
      %v2502 = vmul.f32 %v2413, %v2413
      %v2503 = vmul.f32 %v2414, %v2414
      %v2504 = vmul.f32 %v2415, %v2415
      %v2505 = vmul.f32 %v2416, %v2416
      %v2506 = vmul.f32 %v2417, %v2417
      %v2507 = vmul.f32 %v2418, %v2418
      %v2508 = vmul.f32 %v2419, %v2419
      %v2509 = vmul.f32 %v2420, %v2420
      %v2510 = vmul.f32 %v2421, %v2421
      %v2511 = vmul.f32 %v2422, %v2422
      %v2512 = vmul.f32 %v2423, %v2423
      %v2513 = vmul.f32 %v2424, %v2424
      %v2514 = vmul.f32 %v2425, %v2425
      %v2515 = vmul.f32 %v2426, %v2426
      %v2516 = vmul.f32 %v2427, %v2427
      %v2517 = vmul.f32 %v2428, %v2428
      %v2518 = vmul.f32 %v2429, %v2429
      %v2519 = vmul.f32 %v2430, %v2430
      %v2520 = vmul.f32 %v2431, %v2431
      %v2521 = vmul.f32 %v2432, %v2432
      %v2522 = vmul.f32 %v2433, %v2433
      %v2523 = vmul.f32 %v2434, %v2434
      %v2524 = vmul.f32 %v2435, %v2435
      %v2525 = vmul.f32 %v2436, %v2436
      %v2526 = vmul.f32 %v2437, %v2437
      %v2527 = vmul.f32 %v2438, %v2438
      %v2528 = vmul.f32 %v2439, %v2439
      %v2529 = vmul.f32 %v2440, %v2440
      %v2530 = vmul.f32 %v2441, %v2441
      %v2531 = vmul.f32 %v2442, %v2442
      %v2532 = vmul.f32 %v2443, %v2443
      %v2533 = vmul.f32 %v2444, %v2444
      %v2534 = vmul.f32 %v2445, %v2445
      %v2535 = vmul.f32 %v2446, %v2446
      %v2536 = vmul.f32 %v2447, %v2447
      %v2537 = vmul.f32 %v2448, %v2448
      %v2538 = vmul.f32 %v2449, %v2449
      %v2539 = vadd.f32 %v2499, %v2500
      %v2540 = vadd.f32 %v2539, %v2501
      %v2541 = vadd.f32 %v2540, %v2502
      %v2542 = vadd.f32 %v2541, %v2503
      %v2543 = vadd.f32 %v2542, %v2504
      %v2544 = vadd.f32 %v2543, %v2505
      %v2545 = vadd.f32 %v2544, %v2506
      %v2546 = vadd.f32 %v2545, %v2507
      %v2547 = vadd.f32 %v2546, %v2508
      %v2548 = vadd.f32 %v2547, %v2509
      %v2549 = vadd.f32 %v2548, %v2510
      %v2550 = vadd.f32 %v2549, %v2511
      %v2551 = vadd.f32 %v2550, %v2512
      %v2552 = vadd.f32 %v2551, %v2513
      %v2553 = vadd.f32 %v2552, %v2514
      %v2554 = vadd.f32 %v2553, %v2515
      %v2555 = vadd.f32 %v2554, %v2516
      %v2556 = vadd.f32 %v2555, %v2517
      %v2557 = vadd.f32 %v2556, %v2518
      %v2558 = vadd.f32 %v2557, %v2519
      %v2559 = vadd.f32 %v2558, %v2520
      %v2560 = vadd.f32 %v2559, %v2521
      %v2561 = vadd.f32 %v2560, %v2522
      %v2562 = vadd.f32 %v2561, %v2523
      %v2563 = vadd.f32 %v2562, %v2524
      %v2564 = vadd.f32 %v2563, %v2525
      %v2565 = vadd.f32 %v2564, %v2526
      %v2566 = vadd.f32 %v2565, %v2527
      %v2567 = vadd.f32 %v2566, %v2528
      %v2568 = vadd.f32 %v2567, %v2529
      %v2569 = vadd.f32 %v2568, %v2530
      %v2570 = vadd.f32 %v2569, %v2531
      %v2571 = vadd.f32 %v2570, %v2532
      %v2572 = vadd.f32 %v2571, %v2533
      %v2573 = vadd.f32 %v2572, %v2534
      %v2574 = vadd.f32 %v2573, %v2535
      %v2575 = vadd.f32 %v2574, %v2536
      %v2576 = vadd.f32 %v2575, %v2537
      %v2577 = vadd.f32 %v2576, %v2538
      %2578 = vadd.xlane.f32.xlu0 %v2577
      %v2579 = vpop.xlane.xlu0 %2578
      %v2580 = vrot.slane %v2579, 4
      %v2581 = vadd.f32 %v2579, %v2580
      %v2582 = vrot.slane %v2581, 2
      %v2583 = vadd.f32 %v2581, %v2582
      %v2584 = vrot.slane %v2583, 1
      %v2585 = vadd.f32 %v2583, %v2584
      %s2586 = vtos %v2585
      %s2587 = smul.f32 %s2586, 0.00012207031
      %s2588 = smul.f32 %s2498, %s2498
      %s2589 = ssub.f32 %s2587, %s2588
      %v2590 = vstv %s2498
      %v2591 = vsub.f32 %v2052, %v2590
      %v2592 = vsub.f32 %v2055, %v2590
      %v2593 = vsub.f32 %v2060, %v2590
      %v2594 = vsub.f32 %v2063, %v2590
      %v2595 = vsub.f32 %v2068, %v2590
      %v2596 = vsub.f32 %v2071, %v2590
      %v2597 = vsub.f32 %v2076, %v2590
      %v2598 = vsub.f32 %v2079, %v2590
      %v2599 = vsub.f32 %v2084, %v2590
      %v2600 = vsub.f32 %v2087, %v2590
      %v2601 = vsub.f32 %v2092, %v2590
      %v2602 = vsub.f32 %v2095, %v2590
      %v2603 = vsub.f32 %v2100, %v2590
      %v2604 = vsub.f32 %v2103, %v2590
      %v2605 = vsub.f32 %v2108, %v2590
      %v2606 = vsub.f32 %v2111, %v2590
      %v2607 = vsub.f32 %v2116, %v2590
      %v2608 = vsub.f32 %v2119, %v2590
      %v2609 = vsub.f32 %v2124, %v2590
      %v2610 = vsub.f32 %v2127, %v2590
      %v2611 = vsub.f32 %v2132, %v2590
      %v2612 = vsub.f32 %v2135, %v2590
      %v2613 = vsub.f32 %v2140, %v2590
      %v2614 = vsub.f32 %v2143, %v2590
      %v2615 = vsub.f32 %v2148, %v2590
      %v2616 = vsub.f32 %v2151, %v2590
      %v2617 = vsub.f32 %v2156, %v2590
      %v2618 = vsub.f32 %v2159, %v2590
      %v2619 = vsub.f32 %v2164, %v2590
      %v2620 = vsub.f32 %v2167, %v2590
      %v2621 = vsub.f32 %v2172, %v2590
      %v2622 = vsub.f32 %v2175, %v2590
      %v2623 = vsub.f32 %v2180, %v2590
      %v2624 = vsub.f32 %v2183, %v2590
      %v2625 = vsub.f32 %v2188, %v2590
      %v2626 = vsub.f32 %v2191, %v2590
      %v2627 = vsub.f32 %v2196, %v2590
      %v2628 = vsub.f32 %v2199, %v2590
      %v2629 = vsub.f32 %v2204, %v2590
      %v2630 = vsub.f32 %v2207, %v2590
      %s2631 = sadd.f32 %s2589, 1e-05
      %v2632 = vstv %s2631
      %v2633 = vrsqrt.pop %v2632
      %s2634 = vtos %v2633
      %v2635 = vstv %s2634
      %v2636 = vmul.f32 %v2591, %v2635
      %v2637 = vmul.f32 %v2592, %v2635
      %v2638 = vmul.f32 %v2593, %v2635
      %v2639 = vmul.f32 %v2594, %v2635
      %v2640 = vmul.f32 %v2595, %v2635
      %v2641 = vmul.f32 %v2596, %v2635
      %v2642 = vmul.f32 %v2597, %v2635
      %v2643 = vmul.f32 %v2598, %v2635
      %v2644 = vmul.f32 %v2599, %v2635
      %v2645 = vmul.f32 %v2600, %v2635
      %v2646 = vmul.f32 %v2601, %v2635
      %v2647 = vmul.f32 %v2602, %v2635
      %v2648 = vmul.f32 %v2603, %v2635
      %v2649 = vmul.f32 %v2604, %v2635
      %v2650 = vmul.f32 %v2605, %v2635
      %v2651 = vmul.f32 %v2606, %v2635
      %v2652 = vmul.f32 %v2607, %v2635
      %v2653 = vmul.f32 %v2608, %v2635
      %v2654 = vmul.f32 %v2609, %v2635
      %v2655 = vmul.f32 %v2610, %v2635
      %v2656 = vmul.f32 %v2611, %v2635
      %v2657 = vmul.f32 %v2612, %v2635
      %v2658 = vmul.f32 %v2613, %v2635
      %v2659 = vmul.f32 %v2614, %v2635
      %v2660 = vmul.f32 %v2615, %v2635
      %v2661 = vmul.f32 %v2616, %v2635
      %v2662 = vmul.f32 %v2617, %v2635
      %v2663 = vmul.f32 %v2618, %v2635
      %v2664 = vmul.f32 %v2619, %v2635
      %v2665 = vmul.f32 %v2620, %v2635
      %v2666 = vmul.f32 %v2621, %v2635
      %v2667 = vmul.f32 %v2622, %v2635
      %v2668 = vmul.f32 %v2623, %v2635
      %v2669 = vmul.f32 %v2624, %v2635
      %v2670 = vmul.f32 %v2625, %v2635
      %v2671 = vmul.f32 %v2626, %v2635
      %v2672 = vmul.f32 %v2627, %v2635
      %v2673 = vmul.f32 %v2628, %v2635
      %v2674 = vmul.f32 %v2629, %v2635
      %v2675 = vmul.f32 %v2630, %v2635
      %v2677 = vlaneseq
      %v2678 = vshrl.u32 %v2677, 7
      %v2679 = vsub.s32 0, %v2678
      %v2680 = vrot.slane %v375, %v2679
      %v2682 = vmul.f32 %v2636, %v2680
      %v2683 = vmul.f32 %v2637, %v2680
      %v2684 = vmul.f32 %v2638, %v2680
      %v2685 = vmul.f32 %v2639, %v2680
      %v2686 = vmul.f32 %v2640, %v2680
      %v2687 = vmul.f32 %v2641, %v2680
      %v2688 = vmul.f32 %v2642, %v2680
      %v2689 = vmul.f32 %v2643, %v2680
      %v2690 = vmul.f32 %v2644, %v2680
      %v2691 = vmul.f32 %v2645, %v2680
      %v2692 = vmul.f32 %v2646, %v2680
      %v2693 = vmul.f32 %v2647, %v2680
      %v2694 = vmul.f32 %v2648, %v2680
      %v2695 = vmul.f32 %v2649, %v2680
      %v2696 = vmul.f32 %v2650, %v2680
      %v2697 = vmul.f32 %v2651, %v2680
      %v2698 = vmul.f32 %v2652, %v2680
      %v2699 = vmul.f32 %v2653, %v2680
      %v2700 = vmul.f32 %v2654, %v2680
      %v2701 = vmul.f32 %v2655, %v2680
      %v2702 = vmul.f32 %v2656, %v2680
      %v2703 = vmul.f32 %v2657, %v2680
      %v2704 = vmul.f32 %v2658, %v2680
      %v2705 = vmul.f32 %v2659, %v2680
      %v2706 = vmul.f32 %v2660, %v2680
      %v2707 = vmul.f32 %v2661, %v2680
      %v2708 = vmul.f32 %v2662, %v2680
      %v2709 = vmul.f32 %v2663, %v2680
      %v2710 = vmul.f32 %v2664, %v2680
      %v2711 = vmul.f32 %v2665, %v2680
      %v2712 = vmul.f32 %v2666, %v2680
      %v2713 = vmul.f32 %v2667, %v2680
      %v2714 = vmul.f32 %v2668, %v2680
      %v2715 = vmul.f32 %v2669, %v2680
      %v2716 = vmul.f32 %v2670, %v2680
      %v2717 = vmul.f32 %v2671, %v2680
      %v2718 = vmul.f32 %v2672, %v2680
      %v2719 = vmul.f32 %v2673, %v2680
      %v2720 = vmul.f32 %v2674, %v2680
      %v2721 = vmul.f32 %v2675, %v2680
      %v2723 = vlaneseq
      %v2724 = vshrl.u32 %v2723, 7
      %v2725 = vsub.s32 0, %v2724
      %v2726 = vrot.slane %v376, %v2725
      %v2728 = vadd.f32 %v2682, %v2726
      %v2729 = vadd.f32 %v2683, %v2726
      %v2730 = vadd.f32 %v2684, %v2726
      %v2731 = vadd.f32 %v2685, %v2726
      %v2732 = vadd.f32 %v2686, %v2726
      %v2733 = vadd.f32 %v2687, %v2726
      %v2734 = vadd.f32 %v2688, %v2726
      %v2735 = vadd.f32 %v2689, %v2726
      %v2736 = vadd.f32 %v2690, %v2726
      %v2737 = vadd.f32 %v2691, %v2726
      %v2738 = vadd.f32 %v2692, %v2726
      %v2739 = vadd.f32 %v2693, %v2726
      %v2740 = vadd.f32 %v2694, %v2726
      %v2741 = vadd.f32 %v2695, %v2726
      %v2742 = vadd.f32 %v2696, %v2726
      %v2743 = vadd.f32 %v2697, %v2726
      %v2744 = vadd.f32 %v2698, %v2726
      %v2745 = vadd.f32 %v2699, %v2726
      %v2746 = vadd.f32 %v2700, %v2726
      %v2747 = vadd.f32 %v2701, %v2726
      %v2748 = vadd.f32 %v2702, %v2726
      %v2749 = vadd.f32 %v2703, %v2726
      %v2750 = vadd.f32 %v2704, %v2726
      %v2751 = vadd.f32 %v2705, %v2726
      %v2752 = vadd.f32 %v2706, %v2726
      %v2753 = vadd.f32 %v2707, %v2726
      %v2754 = vadd.f32 %v2708, %v2726
      %v2755 = vadd.f32 %v2709, %v2726
      %v2756 = vadd.f32 %v2710, %v2726
      %v2757 = vadd.f32 %v2711, %v2726
      %v2758 = vadd.f32 %v2712, %v2726
      %v2759 = vadd.f32 %v2713, %v2726
      %v2760 = vadd.f32 %v2714, %v2726
      %v2761 = vadd.f32 %v2715, %v2726
      %v2762 = vadd.f32 %v2716, %v2726
      %v2763 = vadd.f32 %v2717, %v2726
      %v2764 = vadd.f32 %v2718, %v2726
      %v2765 = vadd.f32 %v2719, %v2726
      %v2766 = vadd.f32 %v2720, %v2726
      %v2767 = vadd.f32 %v2721, %v2726
      %v2768 = vmax.f32 %v2728, 0.0
      %v2769 = vmax.f32 %v2729, 0.0
      %v2770 = vmax.f32 %v2730, 0.0
      %v2771 = vmax.f32 %v2731, 0.0
      %v2772 = vmax.f32 %v2732, 0.0
      %v2773 = vmax.f32 %v2733, 0.0
      %v2774 = vmax.f32 %v2734, 0.0
      %v2775 = vmax.f32 %v2735, 0.0
      %v2776 = vmax.f32 %v2736, 0.0
      %v2777 = vmax.f32 %v2737, 0.0
      %v2778 = vmax.f32 %v2738, 0.0
      %v2779 = vmax.f32 %v2739, 0.0
      %v2780 = vmax.f32 %v2740, 0.0
      %v2781 = vmax.f32 %v2741, 0.0
      %v2782 = vmax.f32 %v2742, 0.0
      %v2783 = vmax.f32 %v2743, 0.0
      %v2784 = vmax.f32 %v2744, 0.0
      %v2785 = vmax.f32 %v2745, 0.0
      %v2786 = vmax.f32 %v2746, 0.0
      %v2787 = vmax.f32 %v2747, 0.0
      %v2788 = vmax.f32 %v2748, 0.0
      %v2789 = vmax.f32 %v2749, 0.0
      %v2790 = vmax.f32 %v2750, 0.0
      %v2791 = vmax.f32 %v2751, 0.0
      %v2792 = vmax.f32 %v2752, 0.0
      %v2793 = vmax.f32 %v2753, 0.0
      %v2794 = vmax.f32 %v2754, 0.0
      %v2795 = vmax.f32 %v2755, 0.0
      %v2796 = vmax.f32 %v2756, 0.0
      %v2797 = vmax.f32 %v2757, 0.0
      %v2798 = vmax.f32 %v2758, 0.0
      %v2799 = vmax.f32 %v2759, 0.0
      %v2800 = vmax.f32 %v2760, 0.0
      %v2801 = vmax.f32 %v2761, 0.0
      %v2802 = vmax.f32 %v2762, 0.0
      %v2803 = vmax.f32 %v2763, 0.0
      %v2804 = vmax.f32 %v2764, 0.0
      %v2805 = vmax.f32 %v2765, 0.0
      %v2806 = vmax.f32 %v2766, 0.0
      %v2807 = vmax.f32 %v2767, 0.0
      %2808 = vst [vmem:[#allocation2] sm:$0xff] 0.0
      %2809 = vst [vmem:[#allocation2 + $0x8] sm:$0xff] 0.0
      %2810 = vst [vmem:[#allocation2 + $0x10] sm:$0xff] 0.0
      %2811 = vst [vmem:[#allocation2 + $0x18] sm:$0xff] 0.0
      %2812 = vst [vmem:[#allocation2 + $0x20] sm:$0xff] 0.0
      %2813 = vst [vmem:[#allocation2 + $0x28] sm:$0xff] 0.0
      %2814 = vst [vmem:[#allocation2 + $0x30] sm:$0xff] 0.0
      %2815 = vst [vmem:[#allocation2 + $0x38] sm:$0xff] 0.0
      %2816 = vst [vmem:[#allocation2 + $0x40] sm:$0xff] 0.0
      %2817 = vst [vmem:[#allocation2 + $0x48] sm:$0xff] 0.0
      %2818 = vst [vmem:[#allocation2 + $0x50] sm:$0xff] 0.0
      %2819 = vst [vmem:[#allocation2 + $0x58] sm:$0xff] 0.0
      %2820 = vst [vmem:[#allocation2 + $0x60] sm:$0xff] 0.0
      %2821 = vst [vmem:[#allocation2 + $0x68] sm:$0xff] 0.0
      %2822 = vst [vmem:[#allocation2 + $0x70] sm:$0xff] 0.0
      %2823 = vst [vmem:[#allocation2 + $0x78] sm:$0xff] 0.0
      %2824 = vst [vmem:[#allocation2 + $0x80] sm:$0xff] 0.0
      %2825 = vst [vmem:[#allocation2 + $0x88] sm:$0xff] 0.0
      %2826 = vst [vmem:[#allocation2 + $0x90] sm:$0xff] 0.0
      %2827 = vst [vmem:[#allocation2 + $0x98] sm:$0xff] 0.0
      %2828 = vst [vmem:[#allocation2 + $0xa0] sm:$0xff] 0.0
      %2829 = vst [vmem:[#allocation2 + $0xa8] sm:$0xff] 0.0
      %2830 = vst [vmem:[#allocation2 + $0xb0] sm:$0xff] 0.0
      %2831 = vst [vmem:[#allocation2 + $0xb8] sm:$0xff] 0.0
      %2832 = vst [vmem:[#allocation2 + $0xc0] sm:$0xff] 0.0
      %2833 = vst [vmem:[#allocation2 + $0xc8] sm:$0xff] 0.0
      %2834 = vst [vmem:[#allocation2 + $0xd0] sm:$0xff] 0.0
      %2835 = vst [vmem:[#allocation2 + $0xd8] sm:$0xff] 0.0
      %2836 = vst [vmem:[#allocation2 + $0xe0] sm:$0xff] 0.0
      %2837 = vst [vmem:[#allocation2 + $0xe8] sm:$0xff] 0.0
      %2838 = vst [vmem:[#allocation2 + $0xf0] sm:$0xff] 0.0
      %2839 = vst [vmem:[#allocation2 + $0xf8] sm:$0xff] 0.0
      %2840 = vst [vmem:[#allocation2 + $0x100] sm:$0xff] 0.0
      %2841 = vst [vmem:[#allocation2 + $0x108] sm:$0xff] 0.0
      %2842 = vst [vmem:[#allocation2 + $0x110] sm:$0xff] 0.0
      %2843 = vst [vmem:[#allocation2 + $0x118] sm:$0xff] 0.0
      %2844 = vst [vmem:[#allocation2 + $0x120] sm:$0xff] 0.0
      %2845 = vst [vmem:[#allocation2 + $0x128] sm:$0xff] 0.0
      %2846 = vst [vmem:[#allocation2 + $0x130] sm:$0xff] 0.0
      %2847 = vst [vmem:[#allocation2 + $0x138] sm:$0xff] 0.0
      %2848 = vst [vmem:[#allocation2 + $0x140] sm:$0xff] 0.0
      %2849 = vst [vmem:[#allocation2 + $0x148] sm:$0xff] 0.0
      %2850 = vst [vmem:[#allocation2 + $0x150] sm:$0xff] 0.0
      %2851 = vst [vmem:[#allocation2 + $0x158] sm:$0xff] 0.0
      %2852 = vst [vmem:[#allocation2 + $0x160] sm:$0xff] 0.0
      %2853 = vst [vmem:[#allocation2 + $0x168] sm:$0xff] 0.0
      %2854 = vst [vmem:[#allocation2 + $0x170] sm:$0xff] 0.0
      %2855 = vst [vmem:[#allocation2 + $0x178] sm:$0xff] 0.0
      %2856 = vst [vmem:[#allocation2 + $0x180] sm:$0xff] 0.0
      %2857 = vst [vmem:[#allocation2 + $0x188] sm:$0xff] 0.0
      %2858 = vst [vmem:[#allocation2 + $0x190] sm:$0xff] 0.0
      %2859 = vst [vmem:[#allocation2 + $0x198] sm:$0xff] 0.0
      %2860 = vst [vmem:[#allocation2 + $0x1a0] sm:$0xf] 0.0
      %v2861 = vmul.f32 %v2768, %v2213
      %v2862 = vmul.f32 %v2769, %v2218
      %v2863 = vmul.f32 %v2770, %v2223
      %v2864 = vmul.f32 %v2771, %v2228
      %v2865 = vmul.f32 %v2772, %v2233
      %v2866 = vmul.f32 %v2773, %v2238
      %v2867 = vmul.f32 %v2774, %v2243
      %v2868 = vmul.f32 %v2775, %v2248
      %v2869 = vmul.f32 %v2776, %v2253
      %v2870 = vmul.f32 %v2777, %v2258
      %v2871 = vmul.f32 %v2778, %v2263
      %v2872 = vmul.f32 %v2779, %v2268
      %v2873 = vmul.f32 %v2780, %v2273
      %v2874 = vmul.f32 %v2781, %v2278
      %v2875 = vmul.f32 %v2782, %v2283
      %v2876 = vmul.f32 %v2783, %v2288
      %v2877 = vmul.f32 %v2784, %v2293
      %v2878 = vmul.f32 %v2785, %v2298
      %v2879 = vmul.f32 %v2786, %v2303
      %v2880 = vmul.f32 %v2787, %v2308
      %v2881 = vmul.f32 %v2788, %v2313
      %v2882 = vmul.f32 %v2789, %v2318
      %v2883 = vmul.f32 %v2790, %v2323
      %v2884 = vmul.f32 %v2791, %v2328
      %v2885 = vmul.f32 %v2792, %v2333
      %v2886 = vmul.f32 %v2793, %v2338
      %v2887 = vmul.f32 %v2794, %v2343
      %v2888 = vmul.f32 %v2795, %v2348
      %v2889 = vmul.f32 %v2796, %v2353
      %v2890 = vmul.f32 %v2797, %v2358
      %v2891 = vmul.f32 %v2798, %v2363
      %v2892 = vmul.f32 %v2799, %v2368
      %v2893 = vmul.f32 %v2800, %v2373
      %v2894 = vmul.f32 %v2801, %v2378
      %v2895 = vmul.f32 %v2802, %v2383
      %v2896 = vmul.f32 %v2803, %v2388
      %v2897 = vmul.f32 %v2804, %v2393
      %v2898 = vmul.f32 %v2805, %v2398
      %v2899 = vmul.f32 %v2806, %v2403
      %v2900 = vmul.f32 %v2807, %v2408
      %2901 = vst [vmem:[#allocation2 + $0x2a] sm:$0xff] %v2861
      %2902 = vst [vmem:[#allocation2 + $0x32] sm:$0xff] %v2862
      %2903 = vst [vmem:[#allocation2 + $0x3a] sm:$0xff] %v2863
      %2904 = vst [vmem:[#allocation2 + $0x42] sm:$0xff] %v2864
      %2905 = vst [vmem:[#allocation2 + $0x4a] sm:$0xff] %v2865
      %2906 = vst [vmem:[#allocation2 + $0x52] sm:$0xff] %v2866
      %2907 = vst [vmem:[#allocation2 + $0x5a] sm:$0xff] %v2867
      %2908 = vst [vmem:[#allocation2 + $0x62] sm:$0xff] %v2868
      %2909 = vst [vmem:[#allocation2 + $0x6a] sm:$0xff] %v2869
      %2910 = vst [vmem:[#allocation2 + $0x72] sm:$0xff] %v2870
      %2911 = vst [vmem:[#allocation2 + $0x7a] sm:$0xff] %v2871
      %2912 = vst [vmem:[#allocation2 + $0x82] sm:$0xff] %v2872
      %2913 = vst [vmem:[#allocation2 + $0x8a] sm:$0xff] %v2873
      %2914 = vst [vmem:[#allocation2 + $0x92] sm:$0xff] %v2874
      %2915 = vst [vmem:[#allocation2 + $0x9a] sm:$0xff] %v2875
      %2916 = vst [vmem:[#allocation2 + $0xa2] sm:$0xff] %v2876
      %2917 = vst [vmem:[#allocation2 + $0xaa] sm:$0xff] %v2877
      %2918 = vst [vmem:[#allocation2 + $0xb2] sm:$0xff] %v2878
      %2919 = vst [vmem:[#allocation2 + $0xba] sm:$0xff] %v2879
      %2920 = vst [vmem:[#allocation2 + $0xc2] sm:$0xff] %v2880
      %2921 = vst [vmem:[#allocation2 + $0xca] sm:$0xff] %v2881
      %2922 = vst [vmem:[#allocation2 + $0xd2] sm:$0xff] %v2882
      %2923 = vst [vmem:[#allocation2 + $0xda] sm:$0xff] %v2883
      %2924 = vst [vmem:[#allocation2 + $0xe2] sm:$0xff] %v2884
      %2925 = vst [vmem:[#allocation2 + $0xea] sm:$0xff] %v2885
      %2926 = vst [vmem:[#allocation2 + $0xf2] sm:$0xff] %v2886
      %2927 = vst [vmem:[#allocation2 + $0xfa] sm:$0xff] %v2887
      %2928 = vst [vmem:[#allocation2 + $0x102] sm:$0xff] %v2888
      %2929 = vst [vmem:[#allocation2 + $0x10a] sm:$0xff] %v2889
      %2930 = vst [vmem:[#allocation2 + $0x112] sm:$0xff] %v2890
      %2931 = vst [vmem:[#allocation2 + $0x11a] sm:$0xff] %v2891
      %2932 = vst [vmem:[#allocation2 + $0x122] sm:$0xff] %v2892
      %2933 = vst [vmem:[#allocation2 + $0x12a] sm:$0xff] %v2893
      %2934 = vst [vmem:[#allocation2 + $0x132] sm:$0xff] %v2894
      %2935 = vst [vmem:[#allocation2 + $0x13a] sm:$0xff] %v2895
      %2936 = vst [vmem:[#allocation2 + $0x142] sm:$0xff] %v2896
      %2937 = vst [vmem:[#allocation2 + $0x14a] sm:$0xff] %v2897
      %2938 = vst [vmem:[#allocation2 + $0x152] sm:$0xff] %v2898
      %2939 = vst [vmem:[#allocation2 + $0x15a] sm:$0xff] %v2899
      %2940 = vst [vmem:[#allocation2 + $0x162] sm:$0xff] %v2900
      %v2941 = vld [vmem:[#allocation2] sm:$0xff]
      %v2942 = vld [vmem:[#allocation2 + $0x8] sm:$0xff]
      %v2943 = vld [vmem:[#allocation2 + $0x10] sm:$0xff]
      %v2944 = vld [vmem:[#allocation2 + $0x18] sm:$0xff]
      %v2945 = vld [vmem:[#allocation2 + $0x20] sm:$0xff]
      %v2946 = vld [vmem:[#allocation2 + $0x28] sm:$0xff]
      %v2947 = vld [vmem:[#allocation2 + $0x30] sm:$0xff]
      %v2948 = vld [vmem:[#allocation2 + $0x38] sm:$0xff]
      %v2949 = vld [vmem:[#allocation2 + $0x40] sm:$0xff]
      %v2950 = vld [vmem:[#allocation2 + $0x48] sm:$0xff]
      %v2951 = vld [vmem:[#allocation2 + $0x50] sm:$0xff]
      %v2952 = vld [vmem:[#allocation2 + $0x58] sm:$0xff]
      %v2953 = vld [vmem:[#allocation2 + $0x60] sm:$0xff]
      %v2954 = vld [vmem:[#allocation2 + $0x68] sm:$0xff]
      %v2955 = vld [vmem:[#allocation2 + $0x70] sm:$0xff]
      %v2956 = vld [vmem:[#allocation2 + $0x78] sm:$0xff]
      %v2957 = vld [vmem:[#allocation2 + $0x80] sm:$0xff]
      %v2958 = vld [vmem:[#allocation2 + $0x88] sm:$0xff]
      %v2959 = vld [vmem:[#allocation2 + $0x90] sm:$0xff]
      %v2960 = vld [vmem:[#allocation2 + $0x98] sm:$0xff]
      %v2961 = vld [vmem:[#allocation2 + $0xa0] sm:$0xff]
      %v2962 = vld [vmem:[#allocation2 + $0xa8] sm:$0xff]
      %v2963 = vld [vmem:[#allocation2 + $0xb0] sm:$0xff]
      %v2964 = vld [vmem:[#allocation2 + $0xb8] sm:$0xff]
      %v2965 = vld [vmem:[#allocation2 + $0xc0] sm:$0xff]
      %v2966 = vld [vmem:[#allocation2 + $0xc8] sm:$0xff]
      %v2967 = vld [vmem:[#allocation2 + $0xd0] sm:$0xff]
      %v2968 = vld [vmem:[#allocation2 + $0xd8] sm:$0xff]
      %v2969 = vld [vmem:[#allocation2 + $0xe0] sm:$0xff]
      %v2970 = vld [vmem:[#allocation2 + $0xe8] sm:$0xff]
      %v2971 = vld [vmem:[#allocation2 + $0xf0] sm:$0xff]
      %v2972 = vld [vmem:[#allocation2 + $0xf8] sm:$0xff]
      %v2973 = vld [vmem:[#allocation2 + $0x100] sm:$0xff]
      %v2974 = vld [vmem:[#allocation2 + $0x108] sm:$0xff]
      %v2975 = vld [vmem:[#allocation2 + $0x110] sm:$0xff]
      %v2976 = vld [vmem:[#allocation2 + $0x118] sm:$0xff]
      %v2977 = vld [vmem:[#allocation2 + $0x120] sm:$0xff]
      %v2978 = vld [vmem:[#allocation2 + $0x128] sm:$0xff]
      %v2979 = vld [vmem:[#allocation2 + $0x130] sm:$0xff]
      %v2980 = vld [vmem:[#allocation2 + $0x138] sm:$0xff]
      %v2981 = vpack.c.bf16 %v2942, %v2941
      %v2982 = vpack.c.bf16 %v2944, %v2943
      %v2983 = vpack.c.bf16 %v2946, %v2945
      %v2984 = vpack.c.bf16 %v2948, %v2947
      %v2985 = vpack.c.bf16 %v2950, %v2949
      %v2986 = vpack.c.bf16 %v2952, %v2951
      %v2987 = vpack.c.bf16 %v2954, %v2953
      %v2988 = vpack.c.bf16 %v2956, %v2955
      %v2989 = vpack.c.bf16 %v2958, %v2957
      %v2990 = vpack.c.bf16 %v2960, %v2959
      %v2991 = vpack.c.bf16 %v2962, %v2961
      %v2992 = vpack.c.bf16 %v2964, %v2963
      %v2993 = vpack.c.bf16 %v2966, %v2965
      %v2994 = vpack.c.bf16 %v2968, %v2967
      %v2995 = vpack.c.bf16 %v2970, %v2969
      %v2996 = vpack.c.bf16 %v2972, %v2971
      %v2997 = vpack.c.bf16 %v2974, %v2973
      %v2998 = vpack.c.bf16 %v2976, %v2975
      %v2999 = vpack.c.bf16 %v2978, %v2977
      %v3000 = vpack.c.bf16 %v2980, %v2979
      %v3001 = vld [vmem:[#allocation2 + $0x2] sm:$0xff]
      %v3002 = vld [vmem:[#allocation2 + $0xa] sm:$0xff]
      %v3003 = vld [vmem:[#allocation2 + $0x12] sm:$0xff]
      %v3004 = vld [vmem:[#allocation2 + $0x1a] sm:$0xff]
      %v3005 = vld [vmem:[#allocation2 + $0x22] sm:$0xff]
      %v3006 = vld [vmem:[#allocation2 + $0x2a] sm:$0xff]
      %v3007 = vld [vmem:[#allocation2 + $0x32] sm:$0xff]
      %v3008 = vld [vmem:[#allocation2 + $0x3a] sm:$0xff]
      %v3009 = vld [vmem:[#allocation2 + $0x42] sm:$0xff]
      %v3010 = vld [vmem:[#allocation2 + $0x4a] sm:$0xff]
      %v3011 = vld [vmem:[#allocation2 + $0x52] sm:$0xff]
      %v3012 = vld [vmem:[#allocation2 + $0x5a] sm:$0xff]
      %v3013 = vld [vmem:[#allocation2 + $0x62] sm:$0xff]
      %v3014 = vld [vmem:[#allocation2 + $0x6a] sm:$0xff]
      %v3015 = vld [vmem:[#allocation2 + $0x72] sm:$0xff]
      %v3016 = vld [vmem:[#allocation2 + $0x7a] sm:$0xff]
      %v3017 = vld [vmem:[#allocation2 + $0x82] sm:$0xff]
      %v3018 = vld [vmem:[#allocation2 + $0x8a] sm:$0xff]
      %v3019 = vld [vmem:[#allocation2 + $0x92] sm:$0xff]
      %v3020 = vld [vmem:[#allocation2 + $0x9a] sm:$0xff]
      %v3021 = vld [vmem:[#allocation2 + $0xa2] sm:$0xff]
      %v3022 = vld [vmem:[#allocation2 + $0xaa] sm:$0xff]
      %v3023 = vld [vmem:[#allocation2 + $0xb2] sm:$0xff]
      %v3024 = vld [vmem:[#allocation2 + $0xba] sm:$0xff]
      %v3025 = vld [vmem:[#allocation2 + $0xc2] sm:$0xff]
      %v3026 = vld [vmem:[#allocation2 + $0xca] sm:$0xff]
      %v3027 = vld [vmem:[#allocation2 + $0xd2] sm:$0xff]
      %v3028 = vld [vmem:[#allocation2 + $0xda] sm:$0xff]
      %v3029 = vld [vmem:[#allocation2 + $0xe2] sm:$0xff]
      %v3030 = vld [vmem:[#allocation2 + $0xea] sm:$0xff]
      %v3031 = vld [vmem:[#allocation2 + $0xf2] sm:$0xff]
      %v3032 = vld [vmem:[#allocation2 + $0xfa] sm:$0xff]
      %v3033 = vld [vmem:[#allocation2 + $0x102] sm:$0xff]
      %v3034 = vld [vmem:[#allocation2 + $0x10a] sm:$0xff]
      %v3035 = vld [vmem:[#allocation2 + $0x112] sm:$0xff]
      %v3036 = vld [vmem:[#allocation2 + $0x11a] sm:$0xff]
      %v3037 = vld [vmem:[#allocation2 + $0x122] sm:$0xff]
      %v3038 = vld [vmem:[#allocation2 + $0x12a] sm:$0xff]
      %v3039 = vld [vmem:[#allocation2 + $0x132] sm:$0xff]
      %v3040 = vld [vmem:[#allocation2 + $0x13a] sm:$0xff]
      %v3041 = vpack.c.bf16 %v3002, %v3001
      %v3042 = vpack.c.bf16 %v3004, %v3003
      %v3043 = vpack.c.bf16 %v3006, %v3005
      %v3044 = vpack.c.bf16 %v3008, %v3007
      %v3045 = vpack.c.bf16 %v3010, %v3009
      %v3046 = vpack.c.bf16 %v3012, %v3011
      %v3047 = vpack.c.bf16 %v3014, %v3013
      %v3048 = vpack.c.bf16 %v3016, %v3015
      %v3049 = vpack.c.bf16 %v3018, %v3017
      %v3050 = vpack.c.bf16 %v3020, %v3019
      %v3051 = vpack.c.bf16 %v3022, %v3021
      %v3052 = vpack.c.bf16 %v3024, %v3023
      %v3053 = vpack.c.bf16 %v3026, %v3025
      %v3054 = vpack.c.bf16 %v3028, %v3027
      %v3055 = vpack.c.bf16 %v3030, %v3029
      %v3056 = vpack.c.bf16 %v3032, %v3031
      %v3057 = vpack.c.bf16 %v3034, %v3033
      %v3058 = vpack.c.bf16 %v3036, %v3035
      %v3059 = vpack.c.bf16 %v3038, %v3037
      %v3060 = vpack.c.bf16 %v3040, %v3039
      %v3061 = vld [vmem:[#allocation2 + $0x4] sm:$0xff]
      %v3062 = vld [vmem:[#allocation2 + $0xc] sm:$0xff]
      %v3063 = vld [vmem:[#allocation2 + $0x14] sm:$0xff]
      %v3064 = vld [vmem:[#allocation2 + $0x1c] sm:$0xff]
      %v3065 = vld [vmem:[#allocation2 + $0x24] sm:$0xff]
      %v3066 = vld [vmem:[#allocation2 + $0x2c] sm:$0xff]
      %v3067 = vld [vmem:[#allocation2 + $0x34] sm:$0xff]
      %v3068 = vld [vmem:[#allocation2 + $0x3c] sm:$0xff]
      %v3069 = vld [vmem:[#allocation2 + $0x44] sm:$0xff]
      %v3070 = vld [vmem:[#allocation2 + $0x4c] sm:$0xff]
      %v3071 = vld [vmem:[#allocation2 + $0x54] sm:$0xff]
      %v3072 = vld [vmem:[#allocation2 + $0x5c] sm:$0xff]
      %v3073 = vld [vmem:[#allocation2 + $0x64] sm:$0xff]
      %v3074 = vld [vmem:[#allocation2 + $0x6c] sm:$0xff]
      %v3075 = vld [vmem:[#allocation2 + $0x74] sm:$0xff]
      %v3076 = vld [vmem:[#allocation2 + $0x7c] sm:$0xff]
      %v3077 = vld [vmem:[#allocation2 + $0x84] sm:$0xff]
      %v3078 = vld [vmem:[#allocation2 + $0x8c] sm:$0xff]
      %v3079 = vld [vmem:[#allocation2 + $0x94] sm:$0xff]
      %v3080 = vld [vmem:[#allocation2 + $0x9c] sm:$0xff]
      %v3081 = vld [vmem:[#allocation2 + $0xa4] sm:$0xff]
      %v3082 = vld [vmem:[#allocation2 + $0xac] sm:$0xff]
      %v3083 = vld [vmem:[#allocation2 + $0xb4] sm:$0xff]
      %v3084 = vld [vmem:[#allocation2 + $0xbc] sm:$0xff]
      %v3085 = vld [vmem:[#allocation2 + $0xc4] sm:$0xff]
      %v3086 = vld [vmem:[#allocation2 + $0xcc] sm:$0xff]
      %v3087 = vld [vmem:[#allocation2 + $0xd4] sm:$0xff]
      %v3088 = vld [vmem:[#allocation2 + $0xdc] sm:$0xff]
      %v3089 = vld [vmem:[#allocation2 + $0xe4] sm:$0xff]
      %v3090 = vld [vmem:[#allocation2 + $0xec] sm:$0xff]
      %v3091 = vld [vmem:[#allocation2 + $0xf4] sm:$0xff]
      %v3092 = vld [vmem:[#allocation2 + $0xfc] sm:$0xff]
      %v3093 = vld [vmem:[#allocation2 + $0x104] sm:$0xff]
      %v3094 = vld [vmem:[#allocation2 + $0x10c] sm:$0xff]
      %v3095 = vld [vmem:[#allocation2 + $0x114] sm:$0xff]
      %v3096 = vld [vmem:[#allocation2 + $0x11c] sm:$0xff]
      %v3097 = vld [vmem:[#allocation2 + $0x124] sm:$0xff]
      %v3098 = vld [vmem:[#allocation2 + $0x12c] sm:$0xff]
      %v3099 = vld [vmem:[#allocation2 + $0x134] sm:$0xff]
      %v3100 = vld [vmem:[#allocation2 + $0x13c] sm:$0xff]
      %v3101 = vpack.c.bf16 %v3062, %v3061
      %v3102 = vpack.c.bf16 %v3064, %v3063
      %v3103 = vpack.c.bf16 %v3066, %v3065
      %v3104 = vpack.c.bf16 %v3068, %v3067
      %v3105 = vpack.c.bf16 %v3070, %v3069
      %v3106 = vpack.c.bf16 %v3072, %v3071
      %v3107 = vpack.c.bf16 %v3074, %v3073
      %v3108 = vpack.c.bf16 %v3076, %v3075
      %v3109 = vpack.c.bf16 %v3078, %v3077
      %v3110 = vpack.c.bf16 %v3080, %v3079
      %v3111 = vpack.c.bf16 %v3082, %v3081
      %v3112 = vpack.c.bf16 %v3084, %v3083
      %v3113 = vpack.c.bf16 %v3086, %v3085
      %v3114 = vpack.c.bf16 %v3088, %v3087
      %v3115 = vpack.c.bf16 %v3090, %v3089
      %v3116 = vpack.c.bf16 %v3092, %v3091
      %v3117 = vpack.c.bf16 %v3094, %v3093
      %v3118 = vpack.c.bf16 %v3096, %v3095
      %v3119 = vpack.c.bf16 %v3098, %v3097
      %v3120 = vpack.c.bf16 %v3100, %v3099
      %v3121 = vld [vmem:[#allocation2 + $0x140] sm:$0xff]
      %v3122 = vld [vmem:[#allocation2 + $0x148] sm:$0xff]
      %v3123 = vld [vmem:[#allocation2 + $0x150] sm:$0xff]
      %v3124 = vld [vmem:[#allocation2 + $0x158] sm:$0xff]
      %v3125 = vld [vmem:[#allocation2 + $0x160] sm:$0xff]
      %v3126 = vpack.c.bf16 %v2947, %v2946
      %v3127 = vpack.c.bf16 %v2949, %v2948
      %v3128 = vpack.c.bf16 %v2951, %v2950
      %v3129 = vpack.c.bf16 %v2953, %v2952
      %v3130 = vpack.c.bf16 %v2955, %v2954
      %v3131 = vpack.c.bf16 %v2957, %v2956
      %v3132 = vpack.c.bf16 %v2959, %v2958
      %v3133 = vpack.c.bf16 %v2961, %v2960
      %v3134 = vpack.c.bf16 %v2963, %v2962
      %v3135 = vpack.c.bf16 %v2965, %v2964
      %v3136 = vpack.c.bf16 %v2967, %v2966
      %v3137 = vpack.c.bf16 %v2969, %v2968
      %v3138 = vpack.c.bf16 %v2971, %v2970
      %v3139 = vpack.c.bf16 %v2973, %v2972
      %v3140 = vpack.c.bf16 %v2975, %v2974
      %v3141 = vpack.c.bf16 %v2977, %v2976
      %v3142 = vpack.c.bf16 %v2979, %v2978
      %v3143 = vpack.c.bf16 %v3121, %v2980
      %v3144 = vpack.c.bf16 %v3123, %v3122
      %v3145 = vpack.c.bf16 %v3125, %v3124
      %v3146 = vld [vmem:[#allocation2 + $0x142] sm:$0xff]
      %v3147 = vld [vmem:[#allocation2 + $0x14a] sm:$0xff]
      %v3148 = vld [vmem:[#allocation2 + $0x152] sm:$0xff]
      %v3149 = vld [vmem:[#allocation2 + $0x15a] sm:$0xff]
      %v3150 = vld [vmem:[#allocation2 + $0x162] sm:$0xff]
      %v3151 = vpack.c.bf16 %v3007, %v3006
      %v3152 = vpack.c.bf16 %v3009, %v3008
      %v3153 = vpack.c.bf16 %v3011, %v3010
      %v3154 = vpack.c.bf16 %v3013, %v3012
      %v3155 = vpack.c.bf16 %v3015, %v3014
      %v3156 = vpack.c.bf16 %v3017, %v3016
      %v3157 = vpack.c.bf16 %v3019, %v3018
      %v3158 = vpack.c.bf16 %v3021, %v3020
      %v3159 = vpack.c.bf16 %v3023, %v3022
      %v3160 = vpack.c.bf16 %v3025, %v3024
      %v3161 = vpack.c.bf16 %v3027, %v3026
      %v3162 = vpack.c.bf16 %v3029, %v3028
      %v3163 = vpack.c.bf16 %v3031, %v3030
      %v3164 = vpack.c.bf16 %v3033, %v3032
      %v3165 = vpack.c.bf16 %v3035, %v3034
      %v3166 = vpack.c.bf16 %v3037, %v3036
      %v3167 = vpack.c.bf16 %v3039, %v3038
      %v3168 = vpack.c.bf16 %v3146, %v3040
      %v3169 = vpack.c.bf16 %v3148, %v3147
      %v3170 = vpack.c.bf16 %v3150, %v3149
      %v3171 = vld [vmem:[#allocation2 + $0x144] sm:$0xff]
      %v3172 = vld [vmem:[#allocation2 + $0x14c] sm:$0xff]
      %v3173 = vld [vmem:[#allocation2 + $0x154] sm:$0xff]
      %v3174 = vld [vmem:[#allocation2 + $0x15c] sm:$0xff]
      %v3175 = vld [vmem:[#allocation2 + $0x164] sm:$0xff]
      %v3176 = vpack.c.bf16 %v3067, %v3066
      %v3177 = vpack.c.bf16 %v3069, %v3068
      %v3178 = vpack.c.bf16 %v3071, %v3070
      %v3179 = vpack.c.bf16 %v3073, %v3072
      %v3180 = vpack.c.bf16 %v3075, %v3074
      %v3181 = vpack.c.bf16 %v3077, %v3076
      %v3182 = vpack.c.bf16 %v3079, %v3078
      %v3183 = vpack.c.bf16 %v3081, %v3080
      %v3184 = vpack.c.bf16 %v3083, %v3082
      %v3185 = vpack.c.bf16 %v3085, %v3084
      %v3186 = vpack.c.bf16 %v3087, %v3086
      %v3187 = vpack.c.bf16 %v3089, %v3088
      %v3188 = vpack.c.bf16 %v3091, %v3090
      %v3189 = vpack.c.bf16 %v3093, %v3092
      %v3190 = vpack.c.bf16 %v3095, %v3094
      %v3191 = vpack.c.bf16 %v3097, %v3096
      %v3192 = vpack.c.bf16 %v3099, %v3098
      %v3193 = vpack.c.bf16 %v3171, %v3100
      %v3194 = vpack.c.bf16 %v3173, %v3172
      %v3195 = vpack.c.bf16 %v3175, %v3174
      %v3196 = vld [vmem:[#allocation2 + $0x168] sm:$0xff]
      %v3197 = vld [vmem:[#allocation2 + $0x170] sm:$0xff]
      %v3198 = vld [vmem:[#allocation2 + $0x178] sm:$0xff]
      %v3199 = vld [vmem:[#allocation2 + $0x180] sm:$0xff]
      %v3200 = vld [vmem:[#allocation2 + $0x188] sm:$0xff]
      %v3201 = vpack.c.bf16 %v3122, %v3121
      %v3202 = vpack.c.bf16 %v3124, %v3123
      %v3203 = vpack.c.bf16 %v3196, %v3125
      %v3204 = vpack.c.bf16 %v3198, %v3197
      %v3205 = vpack.c.bf16 %v3200, %v3199
      %v3206 = vld [vmem:[#allocation2 + $0x16a] sm:$0xff]
      %v3207 = vld [vmem:[#allocation2 + $0x172] sm:$0xff]
      %v3208 = vld [vmem:[#allocation2 + $0x17a] sm:$0xff]
      %v3209 = vld [vmem:[#allocation2 + $0x182] sm:$0xff]
      %v3210 = vld [vmem:[#allocation2 + $0x18a] sm:$0xff]
      %v3211 = vpack.c.bf16 %v3147, %v3146
      %v3212 = vpack.c.bf16 %v3149, %v3148
      %v3213 = vpack.c.bf16 %v3206, %v3150
      %v3214 = vpack.c.bf16 %v3208, %v3207
      %v3215 = vpack.c.bf16 %v3210, %v3209
      %v3216 = vld [vmem:[#allocation2 + $0x16c] sm:$0xff]
      %v3217 = vld [vmem:[#allocation2 + $0x174] sm:$0xff]
      %v3218 = vld [vmem:[#allocation2 + $0x17c] sm:$0xff]
      %v3219 = vld [vmem:[#allocation2 + $0x184] sm:$0xff]
      %v3220 = vld [vmem:[#allocation2 + $0x18c] sm:$0xff]
      %v3221 = vpack.c.bf16 %v3172, %v3171
      %v3222 = vpack.c.bf16 %v3174, %v3173
      %v3223 = vpack.c.bf16 %v3216, %v3175
      %v3224 = vpack.c.bf16 %v3218, %v3217
      %v3225 = vpack.c.bf16 %v3220, %v3219
      %v3226 = vld [vmem:[%s4] sm:$0xf]
      %v3227 = vld [vmem:[%s4 + $0x4] sm:$0xf]
      %v3228 = vld [vmem:[%s4 + $0x8] sm:$0xf]
      %v3229 = vld [vmem:[%s4 + $0xc] sm:$0xf]
      %v3230 = vld [vmem:[%s4 + $0x10] sm:$0xf]
      %v3231 = vld [vmem:[%s4 + $0x14] sm:$0xf]
      %v3232 = vld [vmem:[%s4 + $0x18] sm:$0xf]
      %v3233 = vld [vmem:[%s4 + $0x1c] sm:$0xf]
      %v3234 = vld [vmem:[%s4 + $0x20] sm:$0xf]
      %v3235 = vld [vmem:[%s4 + $0x24] sm:$0xf]
      %v3236 = vld [vmem:[%s4 + $0x28] sm:$0xf]
      %v3237 = vld [vmem:[%s4 + $0x2c] sm:$0xf]
      %v3238 = vld [vmem:[%s4 + $0x30] sm:$0xf]
      %v3239 = vld [vmem:[%s4 + $0x34] sm:$0xf]
      %v3240 = vld [vmem:[%s4 + $0x38] sm:$0xf]
      %v3241 = vld [vmem:[%s4 + $0x3c] sm:$0xf]
      %v3242 = vld [vmem:[%s4 + $0x40] sm:$0xf]
      %v3243 = vld [vmem:[%s4 + $0x44] sm:$0xf]
      %v3244 = vld [vmem:[%s4 + $0x48] sm:$0xf]
      %v3245 = vld [vmem:[%s4 + $0x4c] sm:$0xf]
      %v3246 = vld [vmem:[%s4 + $0x50] sm:$0xf]
      %v3247 = vld [vmem:[%s4 + $0x54] sm:$0xf]
      %v3248 = vld [vmem:[%s4 + $0x58] sm:$0xf]
      %v3249 = vld [vmem:[%s4 + $0x5c] sm:$0xf]
      %v3250 = vld [vmem:[%s4 + $0x60] sm:$0xf]
      %v3251 = vld [vmem:[%s4 + $0x64] sm:$0xf]
      %v3252 = vld [vmem:[%s4 + $0x68] sm:$0xf]
      %v3253 = vld [vmem:[%s4 + $0x6c] sm:$0xf]
      %v3254 = vld [vmem:[%s4 + $0x70] sm:$0xf]
      %v3255 = vld [vmem:[%s4 + $0x74] sm:$0xf]
      %v3256 = vld [vmem:[%s4 + $0x78] sm:$0xf]
      %v3257 = vld [vmem:[%s4 + $0x7c] sm:$0xf]
      %v3258 = vld [vmem:[%s4 + $0x80] sm:$0xf]
      %v3259 = vld [vmem:[%s4 + $0x84] sm:$0xf]
      %v3260 = vld [vmem:[%s4 + $0x88] sm:$0xf]
      %v3261 = vld [vmem:[%s4 + $0x8c] sm:$0xf]
      %v3262 = vld [vmem:[%s4 + $0x90] sm:$0xf]
      %v3263 = vld [vmem:[%s4 + $0x94] sm:$0xf]
      %v3264 = vld [vmem:[%s4 + $0x98] sm:$0xf]
      %v3265 = vld [vmem:[%s4 + $0x9c] sm:$0xf]
      %v3266 = vld [vmem:[%s4 + $0xa0] sm:$0xf]
      %v3267 = vld [vmem:[%s4 + $0xa4] sm:$0xf]
      %v3268 = vld [vmem:[%s4 + $0xa8] sm:$0xf]
      %v3269 = vld [vmem:[%s4 + $0xac] sm:$0xf]
      %v3270 = vld [vmem:[%s4 + $0xb0] sm:$0xf]
      %v3271 = vld [vmem:[%s4 + $0xb4] sm:$0xf]
      %v3272 = vld [vmem:[%s4 + $0xb8] sm:$0xf]
      %v3273 = vld [vmem:[%s4 + $0xbc] sm:$0xf]
      %v3274 = vld [vmem:[%s4 + $0xc0] sm:$0xf]
      %v3275 = vld [vmem:[%s4 + $0xc4] sm:$0xf]
      %v3276 = vld [vmem:[%s4 + $0xc8] sm:$0xf]
      %v3277 = vld [vmem:[%s4 + $0xcc] sm:$0xf]
      %v3278 = vld [vmem:[%s4 + $0xd0] sm:$0xf]
      %v3279 = vld [vmem:[%s4 + $0xd4] sm:$0xf]
      %v3280 = vld [vmem:[%s4 + $0xd8] sm:$0xf]
      %v3281 = vld [vmem:[%s4 + $0xdc] sm:$0xf]
      %v3282 = vld [vmem:[%s4 + $0xe0] sm:$0xf]
      %v3283 = vld [vmem:[%s4 + $0xe4] sm:$0xf]
      %v3284 = vld [vmem:[%s4 + $0xe8] sm:$0xf]
      %v3285 = vld [vmem:[%s4 + $0xec] sm:$0xf]
      %v3286 = vld [vmem:[%s4 + $0xf0] sm:$0xf]
      %v3287 = vld [vmem:[%s4 + $0xf4] sm:$0xf]
      %v3288 = vld [vmem:[%s4 + $0xf8] sm:$0xf]
      %v3289 = vld [vmem:[%s4 + $0xfc] sm:$0xf]
      %v3290 = vld [vmem:[%s4 + $0x100] sm:$0xf]
      %v3291 = vld [vmem:[%s4 + $0x104] sm:$0xf]
      %v3292 = vld [vmem:[%s4 + $0x108] sm:$0xf]
      %v3293 = vld [vmem:[%s4 + $0x10c] sm:$0xf]
      %v3294 = vld [vmem:[%s4 + $0x110] sm:$0xf]
      %v3295 = vld [vmem:[%s4 + $0x114] sm:$0xf]
      %v3296 = vld [vmem:[%s4 + $0x118] sm:$0xf]
      %v3297 = vld [vmem:[%s4 + $0x11c] sm:$0xf]
      %v3298 = vld [vmem:[%s4 + $0x120] sm:$0xf]
      %v3299 = vld [vmem:[%s4 + $0x124] sm:$0xf]
      %v3300 = vld [vmem:[%s4 + $0x128] sm:$0xf]
      %v3301 = vld [vmem:[%s4 + $0x12c] sm:$0xf]
      %v3302 = vld [vmem:[%s4 + $0x130] sm:$0xf]
      %v3303 = vld [vmem:[%s4 + $0x134] sm:$0xf]
      %v3304 = vld [vmem:[%s4 + $0x138] sm:$0xf]
      %v3305 = vld [vmem:[%s4 + $0x13c] sm:$0xf]
      %v3306 = vld [vmem:[%s4 + $0x140] sm:$0xf]
      %v3307 = vld [vmem:[%s4 + $0x144] sm:$0xf]
      %v3308 = vld [vmem:[%s4 + $0x148] sm:$0xf]
      %v3309 = vld [vmem:[%s4 + $0x14c] sm:$0xf]
      %v3310 = vld [vmem:[%s4 + $0x150] sm:$0xf]
      %v3311 = vld [vmem:[%s4 + $0x154] sm:$0xf]
      %v3312 = vld [vmem:[%s4 + $0x158] sm:$0xf]
      %v3313 = vld [vmem:[%s4 + $0x15c] sm:$0xf]
      %v3314 = vld [vmem:[%s4 + $0x160] sm:$0xf]
      %v3315 = vld [vmem:[%s4 + $0x164] sm:$0xf]
      %v3316 = vld [vmem:[%s4 + $0x168] sm:$0xf]
      %v3317 = vld [vmem:[%s4 + $0x16c] sm:$0xf]
      %v3318 = vld [vmem:[%s4 + $0x170] sm:$0xf]
      %v3319 = vld [vmem:[%s4 + $0x174] sm:$0xf]
      %v3320 = vld [vmem:[%s4 + $0x178] sm:$0xf]
      %v3321 = vld [vmem:[%s4 + $0x17c] sm:$0xf]
      %v3322 = vld [vmem:[%s4 + $0x180] sm:$0xf]
      %v3323 = vld [vmem:[%s4 + $0x184] sm:$0xf]
      %v3324 = vld [vmem:[%s4 + $0x188] sm:$0xf]
      %v3325 = vld [vmem:[%s4 + $0x18c] sm:$0xf]
      %v3326 = vld [vmem:[%s4 + $0x190] sm:$0xf]
      %v3327 = vld [vmem:[%s4 + $0x194] sm:$0xf]
      %v3328 = vld [vmem:[%s4 + $0x198] sm:$0xf]
      %v3329 = vld [vmem:[%s4 + $0x19c] sm:$0xf]
      %v3330 = vld [vmem:[%s4 + $0x1a0] sm:$0xf]
      %v3331 = vld [vmem:[%s4 + $0x1a4] sm:$0xf]
      %v3332 = vld [vmem:[%s4 + $0x1a8] sm:$0xf]
      %v3333 = vld [vmem:[%s4 + $0x1ac] sm:$0xf]
      %v3334 = vld [vmem:[%s4 + $0x1b0] sm:$0xf]
      %v3335 = vld [vmem:[%s4 + $0x1b4] sm:$0xf]
      %v3336 = vld [vmem:[%s4 + $0x1b8] sm:$0xf]
      %v3337 = vld [vmem:[%s4 + $0x1bc] sm:$0xf]
      %v3338 = vld [vmem:[%s4 + $0x1c0] sm:$0xf]
      %v3339 = vld [vmem:[%s4 + $0x1c4] sm:$0xf]
      %v3340 = vld [vmem:[%s4 + $0x1c8] sm:$0xf]
      %v3341 = vld [vmem:[%s4 + $0x1cc] sm:$0xf]
      %v3342 = vld [vmem:[%s4 + $0x1d0] sm:$0xf]
      %v3343 = vld [vmem:[%s4 + $0x1d4] sm:$0xf]
      %v3344 = vld [vmem:[%s4 + $0x1d8] sm:$0xf]
      %v3345 = vld [vmem:[%s4 + $0x1dc] sm:$0xf]
      %v3346 = vld [vmem:[%s4 + $0x1e0] sm:$0xf]
      %v3347 = vld [vmem:[%s4 + $0x1e4] sm:$0xf]
      %v3348 = vld [vmem:[%s4 + $0x1e8] sm:$0xf]
      %v3349 = vld [vmem:[%s4 + $0x1ec] sm:$0xf]
      %v3350 = vld [vmem:[%s4 + $0x1f0] sm:$0xf]
      %v3351 = vld [vmem:[%s4 + $0x1f4] sm:$0xf]
      %v3352 = vld [vmem:[%s4 + $0x1f8] sm:$0xf]
      %v3353 = vld [vmem:[%s4 + $0x1fc] sm:$0xf]
      %v3354 = vld [vmem:[%s4 + $0x200] sm:$0xf]
      %v3355 = vld [vmem:[%s4 + $0x204] sm:$0xf]
      %v3356 = vld [vmem:[%s4 + $0x208] sm:$0xf]
      %v3357 = vld [vmem:[%s4 + $0x20c] sm:$0xf]
      %v3358 = vld [vmem:[%s4 + $0x210] sm:$0xf]
      %v3359 = vld [vmem:[%s4 + $0x214] sm:$0xf]
      %v3360 = vld [vmem:[%s4 + $0x218] sm:$0xf]
      %v3361 = vld [vmem:[%s4 + $0x21c] sm:$0xf]
      %v3362 = vld [vmem:[%s4 + $0x220] sm:$0xf]
      %v3363 = vld [vmem:[%s4 + $0x224] sm:$0xf]
      %v3364 = vld [vmem:[%s4 + $0x228] sm:$0xf]
      %v3365 = vld [vmem:[%s4 + $0x22c] sm:$0xf]
      %v3366 = vld [vmem:[%s4 + $0x230] sm:$0xf]
      %v3367 = vld [vmem:[%s4 + $0x234] sm:$0xf]
      %v3368 = vld [vmem:[%s4 + $0x238] sm:$0xf]
      %v3369 = vld [vmem:[%s4 + $0x23c] sm:$0xf]
      %v3370 = vld [vmem:[%s5] sm:$0x1]
      %v3372 = vlaneseq
      %v3373 = vshrl.u32 %v3372, 7
      %v3374 = vsub.s32 0, %v3373
      %v3375 = vrot.slane %v3370, %v3374
      %v3521 = vunpack.c.l.b16 %v3226
      %v3522 = vunpack.c.l.b16 %v3227
      %v3523 = vunpack.c.l.b16 %v3228
      %v3524 = vunpack.c.l.b16 %v3229
      %v3525 = vunpack.c.l.b16 %v3230
      %v3526 = vunpack.c.l.b16 %v3231
      %v3527 = vunpack.c.l.b16 %v3232
      %v3528 = vunpack.c.l.b16 %v3233
      %v3529 = vunpack.c.l.b16 %v3234
      %v3530 = vunpack.c.l.b16 %v3235
      %v3531 = vunpack.c.l.b16 %v3236
      %v3532 = vunpack.c.l.b16 %v3237
      %v3533 = vunpack.c.l.b16 %v3238
      %v3534 = vunpack.c.l.b16 %v3239
      %v3535 = vunpack.c.l.b16 %v3240
      %v3536 = vunpack.c.l.b16 %v3241
      %v3537 = vunpack.c.l.b16 %v3242
      %v3538 = vunpack.c.l.b16 %v3243
      %v3539 = vunpack.c.l.b16 %v3244
      %v3540 = vunpack.c.l.b16 %v3245
      %v3541 = vunpack.c.l.b16 %v3246
      %v3542 = vunpack.c.l.b16 %v3247
      %v3543 = vunpack.c.l.b16 %v3248
      %v3544 = vunpack.c.l.b16 %v3249
      %v3545 = vunpack.c.l.b16 %v3250
      %v3546 = vunpack.c.l.b16 %v3251
      %v3547 = vunpack.c.l.b16 %v3252
      %v3548 = vunpack.c.l.b16 %v3253
      %v3549 = vunpack.c.l.b16 %v3254
      %v3550 = vunpack.c.l.b16 %v3255
      %v3551 = vunpack.c.l.b16 %v3256
      %v3552 = vunpack.c.l.b16 %v3257
      %v3553 = vunpack.c.l.b16 %v3258
      %v3554 = vunpack.c.l.b16 %v3259
      %v3555 = vunpack.c.l.b16 %v3260
      %v3556 = vunpack.c.l.b16 %v3261
      %v3557 = vunpack.c.l.b16 %v3262
      %v3558 = vunpack.c.l.b16 %v3263
      %v3559 = vunpack.c.l.b16 %v3264
      %v3560 = vunpack.c.l.b16 %v3265
      %v3561 = vunpack.c.l.b16 %v3266
      %v3562 = vunpack.c.l.b16 %v3267
      %v3563 = vunpack.c.l.b16 %v3268
      %v3564 = vunpack.c.l.b16 %v3269
      %v3565 = vunpack.c.l.b16 %v3270
      %v3566 = vunpack.c.l.b16 %v3271
      %v3567 = vunpack.c.l.b16 %v3272
      %v3568 = vunpack.c.l.b16 %v3273
      %v3569 = vunpack.c.l.b16 %v3274
      %v3570 = vunpack.c.l.b16 %v3275
      %v3571 = vunpack.c.l.b16 %v3276
      %v3572 = vunpack.c.l.b16 %v3277
      %v3573 = vunpack.c.l.b16 %v3278
      %v3574 = vunpack.c.l.b16 %v3279
      %v3575 = vunpack.c.l.b16 %v3280
      %v3576 = vunpack.c.l.b16 %v3281
      %v3577 = vunpack.c.l.b16 %v3282
      %v3578 = vunpack.c.l.b16 %v3283
      %v3579 = vunpack.c.l.b16 %v3284
      %v3580 = vunpack.c.l.b16 %v3285
      %v3581 = vunpack.c.l.b16 %v3286
      %v3582 = vunpack.c.l.b16 %v3287
      %v3583 = vunpack.c.l.b16 %v3288
      %v3584 = vunpack.c.l.b16 %v3289
      %v3585 = vunpack.c.l.b16 %v3290
      %v3586 = vunpack.c.l.b16 %v3291
      %v3587 = vunpack.c.l.b16 %v3292
      %v3588 = vunpack.c.l.b16 %v3293
      %v3589 = vunpack.c.l.b16 %v3294
      %v3590 = vunpack.c.l.b16 %v3295
      %v3591 = vunpack.c.l.b16 %v3296
      %v3592 = vunpack.c.l.b16 %v3297
      %v3593 = vunpack.c.l.b16 %v3298
      %v3594 = vunpack.c.l.b16 %v3299
      %v3595 = vunpack.c.l.b16 %v3300
      %v3596 = vunpack.c.l.b16 %v3301
      %v3597 = vunpack.c.l.b16 %v3302
      %v3598 = vunpack.c.l.b16 %v3303
      %v3599 = vunpack.c.l.b16 %v3304
      %v3600 = vunpack.c.l.b16 %v3305
      %v3601 = vunpack.c.l.b16 %v3306
      %v3602 = vunpack.c.l.b16 %v3307
      %v3603 = vunpack.c.l.b16 %v3308
      %v3604 = vunpack.c.l.b16 %v3309
      %v3605 = vunpack.c.l.b16 %v3310
      %v3606 = vunpack.c.l.b16 %v3311
      %v3607 = vunpack.c.l.b16 %v3312
      %v3608 = vunpack.c.l.b16 %v3313
      %v3609 = vunpack.c.l.b16 %v3314
      %v3610 = vunpack.c.l.b16 %v3315
      %v3611 = vunpack.c.l.b16 %v3316
      %v3612 = vunpack.c.l.b16 %v3317
      %v3613 = vunpack.c.l.b16 %v3318
      %v3614 = vunpack.c.l.b16 %v3319
      %v3615 = vunpack.c.l.b16 %v3320
      %v3616 = vunpack.c.l.b16 %v3321
      %v3617 = vunpack.c.l.b16 %v3322
      %v3618 = vunpack.c.l.b16 %v3323
      %v3619 = vunpack.c.l.b16 %v3324
      %v3620 = vunpack.c.l.b16 %v3325
      %v3621 = vunpack.c.l.b16 %v3326
      %v3622 = vunpack.c.l.b16 %v3327
      %v3623 = vunpack.c.l.b16 %v3328
      %v3624 = vunpack.c.l.b16 %v3329
      %v3625 = vunpack.c.l.b16 %v3330
      %v3626 = vunpack.c.l.b16 %v3331
      %v3627 = vunpack.c.l.b16 %v3332
      %v3628 = vunpack.c.l.b16 %v3333
      %v3629 = vunpack.c.l.b16 %v3334
      %v3630 = vunpack.c.l.b16 %v3335
      %v3631 = vunpack.c.l.b16 %v3336
      %v3632 = vunpack.c.l.b16 %v3337
      %v3633 = vunpack.c.l.b16 %v3338
      %v3634 = vunpack.c.l.b16 %v3339
      %v3635 = vunpack.c.l.b16 %v3340
      %v3636 = vunpack.c.l.b16 %v3341
      %v3637 = vunpack.c.l.b16 %v3342
      %v3638 = vunpack.c.l.b16 %v3343
      %v3639 = vunpack.c.l.b16 %v3344
      %v3640 = vunpack.c.l.b16 %v3345
      %v3641 = vunpack.c.l.b16 %v3346
      %v3642 = vunpack.c.l.b16 %v3347
      %v3643 = vunpack.c.l.b16 %v3348
      %v3644 = vunpack.c.l.b16 %v3349
      %v3645 = vunpack.c.l.b16 %v3350
      %v3646 = vunpack.c.l.b16 %v3351
      %v3647 = vunpack.c.l.b16 %v3352
      %v3648 = vunpack.c.l.b16 %v3353
      %v3649 = vunpack.c.l.b16 %v3354
      %v3650 = vunpack.c.l.b16 %v3355
      %v3651 = vunpack.c.l.b16 %v3356
      %v3652 = vunpack.c.l.b16 %v3357
      %v3653 = vunpack.c.l.b16 %v3358
      %v3654 = vunpack.c.l.b16 %v3359
      %v3655 = vunpack.c.l.b16 %v3360
      %v3656 = vunpack.c.l.b16 %v3361
      %v3657 = vunpack.c.l.b16 %v3362
      %v3658 = vunpack.c.l.b16 %v3363
      %v3659 = vunpack.c.l.b16 %v3364
      %v3660 = vunpack.c.l.b16 %v3365
      %v3661 = vunpack.c.l.b16 %v3366
      %v3662 = vunpack.c.l.b16 %v3367
      %v3663 = vunpack.c.l.b16 %v3368
      %v3664 = vunpack.c.l.b16 %v3369
      %v3665 = vpack.c.b16 %v3522, %v3521
      %v3666 = vpack.c.b16 %v3524, %v3523
      %v3667 = vpack.c.b16 %v3526, %v3525
      %v3668 = vpack.c.b16 %v3528, %v3527
      %v3669 = vpack.c.b16 %v3530, %v3529
      %v3670 = vpack.c.b16 %v3532, %v3531
      %v3671 = vpack.c.b16 %v3534, %v3533
      %v3672 = vpack.c.b16 %v3536, %v3535
      %v3673 = vpack.c.b16 %v3538, %v3537
      %v3674 = vpack.c.b16 %v3540, %v3539
      %v3675 = vpack.c.b16 %v3542, %v3541
      %v3676 = vpack.c.b16 %v3544, %v3543
      %v3677 = vpack.c.b16 %v3546, %v3545
      %v3678 = vpack.c.b16 %v3548, %v3547
      %v3679 = vpack.c.b16 %v3550, %v3549
      %v3680 = vpack.c.b16 %v3552, %v3551
      %v3681 = vpack.c.b16 %v3554, %v3553
      %v3682 = vpack.c.b16 %v3556, %v3555
      %v3683 = vpack.c.b16 %v3558, %v3557
      %v3684 = vpack.c.b16 %v3560, %v3559
      %v3685 = vpack.c.b16 %v3562, %v3561
      %v3686 = vpack.c.b16 %v3564, %v3563
      %v3687 = vpack.c.b16 %v3566, %v3565
      %v3688 = vpack.c.b16 %v3568, %v3567
      %v3689 = vpack.c.b16 %v3570, %v3569
      %v3690 = vpack.c.b16 %v3572, %v3571
      %v3691 = vpack.c.b16 %v3574, %v3573
      %v3692 = vpack.c.b16 %v3576, %v3575
      %v3693 = vpack.c.b16 %v3578, %v3577
      %v3694 = vpack.c.b16 %v3580, %v3579
      %v3695 = vpack.c.b16 %v3582, %v3581
      %v3696 = vpack.c.b16 %v3584, %v3583
      %v3697 = vpack.c.b16 %v3586, %v3585
      %v3698 = vpack.c.b16 %v3588, %v3587
      %v3699 = vpack.c.b16 %v3590, %v3589
      %v3700 = vpack.c.b16 %v3592, %v3591
      %v3701 = vpack.c.b16 %v3594, %v3593
      %v3702 = vpack.c.b16 %v3596, %v3595
      %v3703 = vpack.c.b16 %v3598, %v3597
      %v3704 = vpack.c.b16 %v3600, %v3599
      %v3705 = vpack.c.b16 %v3602, %v3601
      %v3706 = vpack.c.b16 %v3604, %v3603
      %v3707 = vpack.c.b16 %v3606, %v3605
      %v3708 = vpack.c.b16 %v3608, %v3607
      %v3709 = vpack.c.b16 %v3610, %v3609
      %v3710 = vpack.c.b16 %v3612, %v3611
      %v3711 = vpack.c.b16 %v3614, %v3613
      %v3712 = vpack.c.b16 %v3616, %v3615
      %v3713 = vpack.c.b16 %v3618, %v3617
      %v3714 = vpack.c.b16 %v3620, %v3619
      %v3715 = vpack.c.b16 %v3622, %v3621
      %v3716 = vpack.c.b16 %v3624, %v3623
      %v3717 = vpack.c.b16 %v3626, %v3625
      %v3718 = vpack.c.b16 %v3628, %v3627
      %v3719 = vpack.c.b16 %v3630, %v3629
      %v3720 = vpack.c.b16 %v3632, %v3631
      %v3721 = vpack.c.b16 %v3634, %v3633
      %v3722 = vpack.c.b16 %v3636, %v3635
      %v3723 = vpack.c.b16 %v3638, %v3637
      %v3724 = vpack.c.b16 %v3640, %v3639
      %v3725 = vpack.c.b16 %v3642, %v3641
      %v3726 = vpack.c.b16 %v3644, %v3643
      %v3727 = vpack.c.b16 %v3646, %v3645
      %v3728 = vpack.c.b16 %v3648, %v3647
      %v3729 = vpack.c.b16 %v3650, %v3649
      %v3730 = vpack.c.b16 %v3652, %v3651
      %v3731 = vpack.c.b16 %v3654, %v3653
      %v3732 = vpack.c.b16 %v3656, %v3655
      %v3733 = vpack.c.b16 %v3658, %v3657
      %v3734 = vpack.c.b16 %v3660, %v3659
      %v3735 = vpack.c.b16 %v3662, %v3661
      %v3736 = vpack.c.b16 %v3664, %v3663
      %3809 = vmatprep.subr.bf16.mxu0 0
      %3810 = vmatpush1.bf16.msra.mxu0 %v3665
      %3811 = vmatprep.subr.bf16.mxu0 0
      %3812 = vmatpush1.bf16.msra.mxu0 %v3666
      %3813 = vmatprep.subr.bf16.mxu0 0
      %3814 = vmatpush1.bf16.msra.mxu0 %v3667
      %3815 = vmatprep.subr.bf16.mxu0 0
      %3816 = vmatpush1.bf16.msra.mxu0 %v3668
      %3817 = vmatprep.subr.bf16.mxu0 0
      %3818 = vmatpush1.bf16.msra.mxu0 %v3669
      %3819 = vmatprep.subr.bf16.mxu0 0
      %3820 = vmatpush1.bf16.msra.mxu0 %v3670
      %3821 = vmatprep.subr.bf16.mxu0 0
      %3822 = vmatpush1.bf16.msra.mxu0 %v3671
      %3823 = vmatprep.subr.bf16.mxu0 0
      %3824 = vmatpush1.bf16.msra.mxu0 %v3672
      %3825 = vmatprep.subr.bf16.mxu0 0
      %3826 = vmatpush1.bf16.msra.mxu0 %v3673
      %3827 = vmatprep.subr.bf16.mxu0 0
      %3828 = vmatpush1.bf16.msra.mxu0 %v3674
      %3829 = vmatprep.subr.bf16.mxu0 0
      %3830 = vmatpush1.bf16.msra.mxu0 %v3675
      %3831 = vmatprep.subr.bf16.mxu0 0
      %3832 = vmatpush1.bf16.msra.mxu0 %v3676
      %3833 = vmatprep.subr.bf16.mxu0 0
      %3834 = vmatpush1.bf16.msra.mxu0 %v3677
      %3835 = vmatprep.subr.bf16.mxu0 0
      %3836 = vmatpush1.bf16.msra.mxu0 %v3678
      %3837 = vmatprep.subr.bf16.mxu0 0
      %3838 = vmatpush1.bf16.msra.mxu0 %v3679
      %3839 = vmatprep.subr.bf16.mxu0 0
      %3840 = vmatpush1.bf16.msra.mxu0 %v3680
      %3841 = vmatprep.mubr.bf16.mxu0 %v3041
      %3842 = vmatmul.mubr.bf16.gmra.mrb[0].mxu0 %v2981
      %v3843 = vpop.f32.mrb[0].mxu0
      %v3844 = vadd.f32 %v3375, %v3843
      %v3845 = vpop.f32.mrb[0].mxu0
      %v3846 = vpop.f32.mrb[0].mxu0
      %v3847 = vadd.f32 %v3375, %v3846
      %v3848 = vpop.f32.mrb[0].mxu0
      %3849 = vmatprep.mubr.bf16.mxu0 %v3042
      %3850 = vmatmul.mubr.bf16.gmra.mrb[0].mxu0 %v2982
      %v3851 = vpop.f32.mrb[0].mxu0
      %v3852 = vadd.f32 %v3375, %v3851
      %v3853 = vpop.f32.mrb[0].mxu0
      %v3854 = vpop.f32.mrb[0].mxu0
      %v3855 = vadd.f32 %v3375, %v3854
      %v3856 = vpop.f32.mrb[0].mxu0
      %3857 = vmatprep.mubr.bf16.mxu0 %v3043
      %3858 = vmatmul.mubr.bf16.gmra.mrb[0].mxu0 %v2983
      %v3859 = vpop.f32.mrb[0].mxu0
      %v3860 = vadd.f32 %v3375, %v3859
      %v3861 = vpop.f32.mrb[0].mxu0
      %v3862 = vpop.f32.mrb[0].mxu0
      %v3863 = vadd.f32 %v3375, %v3862
      %v3864 = vpop.f32.mrb[0].mxu0
      %3865 = vmatprep.mubr.bf16.mxu0 %v3044
      %3866 = vmatmul.mubr.bf16.gmra.mrb[0].mxu0 %v2984
      %v3867 = vpop.f32.mrb[0].mxu0
      %v3868 = vadd.f32 %v3375, %v3867
      %v3869 = vpop.f32.mrb[0].mxu0
      %v3870 = vpop.f32.mrb[0].mxu0
      %v3871 = vadd.f32 %v3375, %v3870
      %v3872 = vpop.f32.mrb[0].mxu0
      %3873 = vmatprep.mubr.bf16.mxu0 %v3045
      %3874 = vmatmul.mubr.bf16.gmra.mrb[0].mxu0 %v2985
      %v3875 = vpop.f32.mrb[0].mxu0
      %v3876 = vadd.f32 %v3375, %v3875
      %v3877 = vpop.f32.mrb[0].mxu0
      %v3878 = vpop.f32.mrb[0].mxu0
      %v3879 = vadd.f32 %v3375, %v3878
      %v3880 = vpop.f32.mrb[0].mxu0
      %3881 = vmatprep.mubr.bf16.mxu0 %v3046
      %3882 = vmatmul.mubr.bf16.gmra.mrb[0].mxu0 %v2986
      %v3883 = vpop.f32.mrb[0].mxu0
      %v3884 = vadd.f32 %v3375, %v3883
      %v3885 = vpop.f32.mrb[0].mxu0
      %v3886 = vpop.f32.mrb[0].mxu0
      %v3887 = vadd.f32 %v3375, %v3886
      %v3888 = vpop.f32.mrb[0].mxu0
      %3889 = vmatprep.mubr.bf16.mxu0 %v3047
      %3890 = vmatmul.mubr.bf16.gmra.mrb[0].mxu0 %v2987
      %v3891 = vpop.f32.mrb[0].mxu0
      %v3892 = vadd.f32 %v3375, %v3891
      %v3893 = vpop.f32.mrb[0].mxu0
      %v3894 = vpop.f32.mrb[0].mxu0
      %v3895 = vadd.f32 %v3375, %v3894
      %v3896 = vpop.f32.mrb[0].mxu0
      %3897 = vmatprep.mubr.bf16.mxu0 %v3048
      %3898 = vmatmul.mubr.bf16.gmra.mrb[0].mxu0 %v2988
      %v3899 = vpop.f32.mrb[0].mxu0
      %v3900 = vadd.f32 %v3375, %v3899
      %v3901 = vpop.f32.mrb[0].mxu0
      %v3902 = vpop.f32.mrb[0].mxu0
      %v3903 = vadd.f32 %v3375, %v3902
      %v3904 = vpop.f32.mrb[0].mxu0
      %3905 = vmatprep.mubr.bf16.mxu0 %v3049
      %3906 = vmatmul.mubr.bf16.gmra.mrb[0].mxu0 %v2989
      %v3907 = vpop.f32.mrb[0].mxu0
      %v3908 = vadd.f32 %v3375, %v3907
      %v3909 = vpop.f32.mrb[0].mxu0
      %v3910 = vpop.f32.mrb[0].mxu0
      %v3911 = vadd.f32 %v3375, %v3910
      %v3912 = vpop.f32.mrb[0].mxu0
      %3913 = vmatprep.mubr.bf16.mxu0 %v3050
      %3914 = vmatmul.mubr.bf16.gmra.mrb[0].mxu0 %v2990
      %v3915 = vpop.f32.mrb[0].mxu0
      %v3916 = vadd.f32 %v3375, %v3915
      %v3917 = vpop.f32.mrb[0].mxu0
      %v3918 = vpop.f32.mrb[0].mxu0
      %v3919 = vadd.f32 %v3375, %v3918
      %v3920 = vpop.f32.mrb[0].mxu0
      %3921 = vmatprep.mubr.bf16.mxu0 %v3051
      %3922 = vmatmul.mubr.bf16.gmra.mrb[0].mxu0 %v2991
      %v3923 = vpop.f32.mrb[0].mxu0
      %v3924 = vadd.f32 %v3375, %v3923
      %v3925 = vpop.f32.mrb[0].mxu0
      %v3926 = vpop.f32.mrb[0].mxu0
      %v3927 = vadd.f32 %v3375, %v3926
      %v3928 = vpop.f32.mrb[0].mxu0
      %3929 = vmatprep.mubr.bf16.mxu0 %v3052
      %3930 = vmatmul.mubr.bf16.gmra.mrb[0].mxu0 %v2992
      %v3931 = vpop.f32.mrb[0].mxu0
      %v3932 = vadd.f32 %v3375, %v3931
      %v3933 = vpop.f32.mrb[0].mxu0
      %v3934 = vpop.f32.mrb[0].mxu0
      %v3935 = vadd.f32 %v3375, %v3934
      %v3936 = vpop.f32.mrb[0].mxu0
      %3937 = vmatprep.mubr.bf16.mxu0 %v3053
      %3938 = vmatmul.mubr.bf16.gmra.mrb[0].mxu0 %v2993
      %v3939 = vpop.f32.mrb[0].mxu0
      %v3940 = vadd.f32 %v3375, %v3939
      %v3941 = vpop.f32.mrb[0].mxu0
      %v3942 = vpop.f32.mrb[0].mxu0
      %v3943 = vadd.f32 %v3375, %v3942
      %v3944 = vpop.f32.mrb[0].mxu0
      %3945 = vmatprep.mubr.bf16.mxu0 %v3054
      %3946 = vmatmul.mubr.bf16.gmra.mrb[0].mxu0 %v2994
      %v3947 = vpop.f32.mrb[0].mxu0
      %v3948 = vadd.f32 %v3375, %v3947
      %v3949 = vpop.f32.mrb[0].mxu0
      %v3950 = vpop.f32.mrb[0].mxu0
      %v3951 = vadd.f32 %v3375, %v3950
      %v3952 = vpop.f32.mrb[0].mxu0
      %3953 = vmatprep.mubr.bf16.mxu0 %v3055
      %3954 = vmatmul.mubr.bf16.gmra.mrb[0].mxu0 %v2995
      %v3955 = vpop.f32.mrb[0].mxu0
      %v3956 = vadd.f32 %v3375, %v3955
      %v3957 = vpop.f32.mrb[0].mxu0
      %v3958 = vpop.f32.mrb[0].mxu0
      %v3959 = vadd.f32 %v3375, %v3958
      %v3960 = vpop.f32.mrb[0].mxu0
      %3961 = vmatprep.mubr.bf16.mxu0 %v3056
      %3962 = vmatmul.mubr.bf16.gmra.mrb[0].mxu0 %v2996
      %v3963 = vpop.f32.mrb[0].mxu0
      %v3964 = vadd.f32 %v3375, %v3963
      %v3965 = vpop.f32.mrb[0].mxu0
      %v3966 = vpop.f32.mrb[0].mxu0
      %v3967 = vadd.f32 %v3375, %v3966
      %v3968 = vpop.f32.mrb[0].mxu0
      %3969 = vmatprep.mubr.bf16.mxu0 %v3057
      %3970 = vmatmul.mubr.bf16.gmra.mrb[0].mxu0 %v2997
      %v3971 = vpop.f32.mrb[0].mxu0
      %v3972 = vadd.f32 %v3375, %v3971
      %v3973 = vpop.f32.mrb[0].mxu0
      %v3974 = vpop.f32.mrb[0].mxu0
      %v3975 = vadd.f32 %v3375, %v3974
      %v3976 = vpop.f32.mrb[0].mxu0
      %3977 = vmatprep.mubr.bf16.mxu0 %v3058
      %3978 = vmatmul.mubr.bf16.gmra.mrb[0].mxu0 %v2998
      %v3979 = vpop.f32.mrb[0].mxu0
      %v3980 = vadd.f32 %v3375, %v3979
      %v3981 = vpop.f32.mrb[0].mxu0
      %v3982 = vpop.f32.mrb[0].mxu0
      %v3983 = vadd.f32 %v3375, %v3982
      %v3984 = vpop.f32.mrb[0].mxu0
      %3985 = vmatprep.mubr.bf16.mxu0 %v3059
      %3986 = vmatmul.mubr.bf16.gmra.mrb[0].mxu0 %v2999
      %v3987 = vpop.f32.mrb[0].mxu0
      %v3988 = vadd.f32 %v3375, %v3987
      %v3989 = vpop.f32.mrb[0].mxu0
      %v3990 = vpop.f32.mrb[0].mxu0
      %v3991 = vadd.f32 %v3375, %v3990
      %v3992 = vpop.f32.mrb[0].mxu0
      %3993 = vmatprep.mubr.bf16.mxu0 %v3060
      %3994 = vmatmul.mubr.bf16.gmra.mrb[0].mxu0 %v3000
      %v3995 = vpop.f32.mrb[0].mxu0
      %v3996 = vadd.f32 %v3375, %v3995
      %v3997 = vpop.f32.mrb[0].mxu0
      %v3998 = vpop.f32.mrb[0].mxu0
      %v3999 = vadd.f32 %v3375, %v3998
      %v4000 = vpop.f32.mrb[0].mxu0
      %4001 = vdwg.mxu0
      %4002 = vmatprep.subr.bf16.mxu0 0
      %4003 = vmatpush1.bf16.msra.mxu0 %v3681
      %4004 = vmatprep.subr.bf16.mxu0 0
      %4005 = vmatpush1.bf16.msra.mxu0 %v3682
      %4006 = vmatprep.subr.bf16.mxu0 0
      %4007 = vmatpush1.bf16.msra.mxu0 %v3683
      %4008 = vmatprep.subr.bf16.mxu0 0
      %4009 = vmatpush1.bf16.msra.mxu0 %v3684
      %4010 = vmatprep.subr.bf16.mxu0 0
      %4011 = vmatpush1.bf16.msra.mxu0 %v3685
      %4012 = vmatprep.subr.bf16.mxu0 0
      %4013 = vmatpush1.bf16.msra.mxu0 %v3686
      %4014 = vmatprep.subr.bf16.mxu0 0
      %4015 = vmatpush1.bf16.msra.mxu0 %v3687
      %4016 = vmatprep.subr.bf16.mxu0 0
      %4017 = vmatpush1.bf16.msra.mxu0 %v3688
      %4018 = vmatprep.subr.bf16.mxu0 0
      %4019 = vmatpush1.bf16.msra.mxu0 %v3689
      %4020 = vmatprep.subr.bf16.mxu0 0
      %4021 = vmatpush1.bf16.msra.mxu0 %v3690
      %4022 = vmatprep.subr.bf16.mxu0 0
      %4023 = vmatpush1.bf16.msra.mxu0 %v3691
      %4024 = vmatprep.subr.bf16.mxu0 0
      %4025 = vmatpush1.bf16.msra.mxu0 %v3692
      %4026 = vmatprep.subr.bf16.mxu0 0
      %4027 = vmatpush1.bf16.msra.mxu0 %v3693
      %4028 = vmatprep.subr.bf16.mxu0 0
      %4029 = vmatpush1.bf16.msra.mxu0 %v3694
      %4030 = vmatprep.subr.bf16.mxu0 0
      %4031 = vmatpush1.bf16.msra.mxu0 %v3695
      %4032 = vmatprep.subr.bf16.mxu0 0
      %4033 = vmatpush1.bf16.msra.mxu0 %v3696
      %4034 = vmatprep.mubr.bf16.mxu0 %v3126
      %4035 = vmatmul.mubr.bf16.gmra.mrb[0].mxu0 %v3101
      %v4036 = vpop.f32.mrb[0].mxu0
      %v4037 = vadd.f32 %v3844, %v4036
      %v4038 = vpop.f32.mrb[0].mxu0
      %v4039 = vpop.f32.mrb[0].mxu0
      %v4040 = vadd.f32 %v3847, %v4039
      %v4041 = vpop.f32.mrb[0].mxu0
      %4042 = vmatprep.mubr.bf16.mxu0 %v3127
      %4043 = vmatmul.mubr.bf16.gmra.mrb[0].mxu0 %v3102
      %v4044 = vpop.f32.mrb[0].mxu0
      %v4045 = vadd.f32 %v3852, %v4044
      %v4046 = vpop.f32.mrb[0].mxu0
      %v4047 = vpop.f32.mrb[0].mxu0
      %v4048 = vadd.f32 %v3855, %v4047
      %v4049 = vpop.f32.mrb[0].mxu0
      %4050 = vmatprep.mubr.bf16.mxu0 %v3128
      %4051 = vmatmul.mubr.bf16.gmra.mrb[0].mxu0 %v3103
      %v4052 = vpop.f32.mrb[0].mxu0
      %v4053 = vadd.f32 %v3860, %v4052
      %v4054 = vpop.f32.mrb[0].mxu0
      %v4055 = vpop.f32.mrb[0].mxu0
      %v4056 = vadd.f32 %v3863, %v4055
      %v4057 = vpop.f32.mrb[0].mxu0
      %4058 = vmatprep.mubr.bf16.mxu0 %v3129
      %4059 = vmatmul.mubr.bf16.gmra.mrb[0].mxu0 %v3104
      %v4060 = vpop.f32.mrb[0].mxu0
      %v4061 = vadd.f32 %v3868, %v4060
      %v4062 = vpop.f32.mrb[0].mxu0
      %v4063 = vpop.f32.mrb[0].mxu0
      %v4064 = vadd.f32 %v3871, %v4063
      %v4065 = vpop.f32.mrb[0].mxu0
      %4066 = vmatprep.mubr.bf16.mxu0 %v3130
      %4067 = vmatmul.mubr.bf16.gmra.mrb[0].mxu0 %v3105
      %v4068 = vpop.f32.mrb[0].mxu0
      %v4069 = vadd.f32 %v3876, %v4068
      %v4070 = vpop.f32.mrb[0].mxu0
      %v4071 = vpop.f32.mrb[0].mxu0
      %v4072 = vadd.f32 %v3879, %v4071
      %v4073 = vpop.f32.mrb[0].mxu0
      %4074 = vmatprep.mubr.bf16.mxu0 %v3131
      %4075 = vmatmul.mubr.bf16.gmra.mrb[0].mxu0 %v3106
      %v4076 = vpop.f32.mrb[0].mxu0
      %v4077 = vadd.f32 %v3884, %v4076
      %v4078 = vpop.f32.mrb[0].mxu0
      %v4079 = vpop.f32.mrb[0].mxu0
      %v4080 = vadd.f32 %v3887, %v4079
      %v4081 = vpop.f32.mrb[0].mxu0
      %4082 = vmatprep.mubr.bf16.mxu0 %v3132
      %4083 = vmatmul.mubr.bf16.gmra.mrb[0].mxu0 %v3107
      %v4084 = vpop.f32.mrb[0].mxu0
      %v4085 = vadd.f32 %v3892, %v4084
      %v4086 = vpop.f32.mrb[0].mxu0
      %v4087 = vpop.f32.mrb[0].mxu0
      %v4088 = vadd.f32 %v3895, %v4087
      %v4089 = vpop.f32.mrb[0].mxu0
      %4090 = vmatprep.mubr.bf16.mxu0 %v3133
      %4091 = vmatmul.mubr.bf16.gmra.mrb[0].mxu0 %v3108
      %v4092 = vpop.f32.mrb[0].mxu0
      %v4093 = vadd.f32 %v3900, %v4092
      %v4094 = vpop.f32.mrb[0].mxu0
      %v4095 = vpop.f32.mrb[0].mxu0
      %v4096 = vadd.f32 %v3903, %v4095
      %v4097 = vpop.f32.mrb[0].mxu0
      %4098 = vmatprep.mubr.bf16.mxu0 %v3134
      %4099 = vmatmul.mubr.bf16.gmra.mrb[0].mxu0 %v3109
      %v4100 = vpop.f32.mrb[0].mxu0
      %v4101 = vadd.f32 %v3908, %v4100
      %v4102 = vpop.f32.mrb[0].mxu0
      %v4103 = vpop.f32.mrb[0].mxu0
      %v4104 = vadd.f32 %v3911, %v4103
      %v4105 = vpop.f32.mrb[0].mxu0
      %4106 = vmatprep.mubr.bf16.mxu0 %v3135
      %4107 = vmatmul.mubr.bf16.gmra.mrb[0].mxu0 %v3110
      %v4108 = vpop.f32.mrb[0].mxu0
      %v4109 = vadd.f32 %v3916, %v4108
      %v4110 = vpop.f32.mrb[0].mxu0
      %v4111 = vpop.f32.mrb[0].mxu0
      %v4112 = vadd.f32 %v3919, %v4111
      %v4113 = vpop.f32.mrb[0].mxu0
      %4114 = vmatprep.mubr.bf16.mxu0 %v3136
      %4115 = vmatmul.mubr.bf16.gmra.mrb[0].mxu0 %v3111
      %v4116 = vpop.f32.mrb[0].mxu0
      %v4117 = vadd.f32 %v3924, %v4116
      %v4118 = vpop.f32.mrb[0].mxu0
      %v4119 = vpop.f32.mrb[0].mxu0
      %v4120 = vadd.f32 %v3927, %v4119
      %v4121 = vpop.f32.mrb[0].mxu0
      %4122 = vmatprep.mubr.bf16.mxu0 %v3137
      %4123 = vmatmul.mubr.bf16.gmra.mrb[0].mxu0 %v3112
      %v4124 = vpop.f32.mrb[0].mxu0
      %v4125 = vadd.f32 %v3932, %v4124
      %v4126 = vpop.f32.mrb[0].mxu0
      %v4127 = vpop.f32.mrb[0].mxu0
      %v4128 = vadd.f32 %v3935, %v4127
      %v4129 = vpop.f32.mrb[0].mxu0
      %4130 = vmatprep.mubr.bf16.mxu0 %v3138
      %4131 = vmatmul.mubr.bf16.gmra.mrb[0].mxu0 %v3113
      %v4132 = vpop.f32.mrb[0].mxu0
      %v4133 = vadd.f32 %v3940, %v4132
      %v4134 = vpop.f32.mrb[0].mxu0
      %v4135 = vpop.f32.mrb[0].mxu0
      %v4136 = vadd.f32 %v3943, %v4135
      %v4137 = vpop.f32.mrb[0].mxu0
      %4138 = vmatprep.mubr.bf16.mxu0 %v3139
      %4139 = vmatmul.mubr.bf16.gmra.mrb[0].mxu0 %v3114
      %v4140 = vpop.f32.mrb[0].mxu0
      %v4141 = vadd.f32 %v3948, %v4140
      %v4142 = vpop.f32.mrb[0].mxu0
      %v4143 = vpop.f32.mrb[0].mxu0
      %v4144 = vadd.f32 %v3951, %v4143
      %v4145 = vpop.f32.mrb[0].mxu0
      %4146 = vmatprep.mubr.bf16.mxu0 %v3140
      %4147 = vmatmul.mubr.bf16.gmra.mrb[0].mxu0 %v3115
      %v4148 = vpop.f32.mrb[0].mxu0
      %v4149 = vadd.f32 %v3956, %v4148
      %v4150 = vpop.f32.mrb[0].mxu0
      %v4151 = vpop.f32.mrb[0].mxu0
      %v4152 = vadd.f32 %v3959, %v4151
      %v4153 = vpop.f32.mrb[0].mxu0
      %4154 = vmatprep.mubr.bf16.mxu0 %v3141
      %4155 = vmatmul.mubr.bf16.gmra.mrb[0].mxu0 %v3116
      %v4156 = vpop.f32.mrb[0].mxu0
      %v4157 = vadd.f32 %v3964, %v4156
      %v4158 = vpop.f32.mrb[0].mxu0
      %v4159 = vpop.f32.mrb[0].mxu0
      %v4160 = vadd.f32 %v3967, %v4159
      %v4161 = vpop.f32.mrb[0].mxu0
      %4162 = vmatprep.mubr.bf16.mxu0 %v3142
      %4163 = vmatmul.mubr.bf16.gmra.mrb[0].mxu0 %v3117
      %v4164 = vpop.f32.mrb[0].mxu0
      %v4165 = vadd.f32 %v3972, %v4164
      %v4166 = vpop.f32.mrb[0].mxu0
      %v4167 = vpop.f32.mrb[0].mxu0
      %v4168 = vadd.f32 %v3975, %v4167
      %v4169 = vpop.f32.mrb[0].mxu0
      %4170 = vmatprep.mubr.bf16.mxu0 %v3143
      %4171 = vmatmul.mubr.bf16.gmra.mrb[0].mxu0 %v3118
      %v4172 = vpop.f32.mrb[0].mxu0
      %v4173 = vadd.f32 %v3980, %v4172
      %v4174 = vpop.f32.mrb[0].mxu0
      %v4175 = vpop.f32.mrb[0].mxu0
      %v4176 = vadd.f32 %v3983, %v4175
      %v4177 = vpop.f32.mrb[0].mxu0
      %4178 = vmatprep.mubr.bf16.mxu0 %v3144
      %4179 = vmatmul.mubr.bf16.gmra.mrb[0].mxu0 %v3119
      %v4180 = vpop.f32.mrb[0].mxu0
      %v4181 = vadd.f32 %v3988, %v4180
      %v4182 = vpop.f32.mrb[0].mxu0
      %v4183 = vpop.f32.mrb[0].mxu0
      %v4184 = vadd.f32 %v3991, %v4183
      %v4185 = vpop.f32.mrb[0].mxu0
      %4186 = vmatprep.mubr.bf16.mxu0 %v3145
      %4187 = vmatmul.mubr.bf16.gmra.mrb[0].mxu0 %v3120
      %v4188 = vpop.f32.mrb[0].mxu0
      %v4189 = vadd.f32 %v3996, %v4188
      %v4190 = vpop.f32.mrb[0].mxu0
      %v4191 = vpop.f32.mrb[0].mxu0
      %v4192 = vadd.f32 %v3999, %v4191
      %v4193 = vpop.f32.mrb[0].mxu0
      %4194 = vdwg.mxu0
      %4195 = vmatprep.subr.bf16.mxu0 0
      %4196 = vmatpush1.bf16.msra.mxu0 %v3697
      %4197 = vmatprep.subr.bf16.mxu0 0
      %4198 = vmatpush1.bf16.msra.mxu0 %v3698
      %4199 = vmatprep.subr.bf16.mxu0 0
      %4200 = vmatpush1.bf16.msra.mxu0 %v3699
      %4201 = vmatprep.subr.bf16.mxu0 0
      %4202 = vmatpush1.bf16.msra.mxu0 %v3700
      %4203 = vmatprep.subr.bf16.mxu0 0
      %4204 = vmatpush1.bf16.msra.mxu0 %v3701
      %4205 = vmatprep.subr.bf16.mxu0 0
      %4206 = vmatpush1.bf16.msra.mxu0 %v3702
      %4207 = vmatprep.subr.bf16.mxu0 0
      %4208 = vmatpush1.bf16.msra.mxu0 %v3703
      %4209 = vmatprep.subr.bf16.mxu0 0
      %4210 = vmatpush1.bf16.msra.mxu0 %v3704
      %4211 = vmatprep.subr.bf16.mxu0 0
      %4212 = vmatpush1.bf16.msra.mxu0 %v3705
      %4213 = vmatprep.subr.bf16.mxu0 0
      %4214 = vmatpush1.bf16.msra.mxu0 %v3706
      %4215 = vmatprep.subr.bf16.mxu0 0
      %4216 = vmatpush1.bf16.msra.mxu0 %v3707
      %4217 = vmatprep.subr.bf16.mxu0 0
      %4218 = vmatpush1.bf16.msra.mxu0 %v3708
      %4219 = vmatprep.subr.bf16.mxu0 0
      %4220 = vmatpush1.bf16.msra.mxu0 %v3709
      %4221 = vmatprep.subr.bf16.mxu0 0
      %4222 = vmatpush1.bf16.msra.mxu0 %v3710
      %4223 = vmatprep.subr.bf16.mxu0 0
      %4224 = vmatpush1.bf16.msra.mxu0 %v3711
      %4225 = vmatprep.subr.bf16.mxu0 0
      %4226 = vmatpush1.bf16.msra.mxu0 %v3712
      %4227 = vmatprep.mubr.bf16.mxu0 %v3176
      %4228 = vmatmul.mubr.bf16.gmra.mrb[0].mxu0 %v3151
      %v4229 = vpop.f32.mrb[0].mxu0
      %v4230 = vadd.f32 %v4037, %v4229
      %v4231 = vpop.f32.mrb[0].mxu0
      %v4232 = vpop.f32.mrb[0].mxu0
      %v4233 = vadd.f32 %v4040, %v4232
      %v4234 = vpop.f32.mrb[0].mxu0
      %4235 = vmatprep.mubr.bf16.mxu0 %v3177
      %4236 = vmatmul.mubr.bf16.gmra.mrb[0].mxu0 %v3152
      %v4237 = vpop.f32.mrb[0].mxu0
      %v4238 = vadd.f32 %v4045, %v4237
      %v4239 = vpop.f32.mrb[0].mxu0
      %v4240 = vpop.f32.mrb[0].mxu0
      %v4241 = vadd.f32 %v4048, %v4240
      %v4242 = vpop.f32.mrb[0].mxu0
      %4243 = vmatprep.mubr.bf16.mxu0 %v3178
      %4244 = vmatmul.mubr.bf16.gmra.mrb[0].mxu0 %v3153
      %v4245 = vpop.f32.mrb[0].mxu0
      %v4246 = vadd.f32 %v4053, %v4245
      %v4247 = vpop.f32.mrb[0].mxu0
      %v4248 = vpop.f32.mrb[0].mxu0
      %v4249 = vadd.f32 %v4056, %v4248
      %v4250 = vpop.f32.mrb[0].mxu0
      %4251 = vmatprep.mubr.bf16.mxu0 %v3179
      %4252 = vmatmul.mubr.bf16.gmra.mrb[0].mxu0 %v3154
      %v4253 = vpop.f32.mrb[0].mxu0
      %v4254 = vadd.f32 %v4061, %v4253
      %v4255 = vpop.f32.mrb[0].mxu0
      %v4256 = vpop.f32.mrb[0].mxu0
      %v4257 = vadd.f32 %v4064, %v4256
      %v4258 = vpop.f32.mrb[0].mxu0
      %4259 = vmatprep.mubr.bf16.mxu0 %v3180
      %4260 = vmatmul.mubr.bf16.gmra.mrb[0].mxu0 %v3155
      %v4261 = vpop.f32.mrb[0].mxu0
      %v4262 = vadd.f32 %v4069, %v4261
      %v4263 = vpop.f32.mrb[0].mxu0
      %v4264 = vpop.f32.mrb[0].mxu0
      %v4265 = vadd.f32 %v4072, %v4264
      %v4266 = vpop.f32.mrb[0].mxu0
      %4267 = vmatprep.mubr.bf16.mxu0 %v3181
      %4268 = vmatmul.mubr.bf16.gmra.mrb[0].mxu0 %v3156
      %v4269 = vpop.f32.mrb[0].mxu0
      %v4270 = vadd.f32 %v4077, %v4269
      %v4271 = vpop.f32.mrb[0].mxu0
      %v4272 = vpop.f32.mrb[0].mxu0
      %v4273 = vadd.f32 %v4080, %v4272
      %v4274 = vpop.f32.mrb[0].mxu0
      %4275 = vmatprep.mubr.bf16.mxu0 %v3182
      %4276 = vmatmul.mubr.bf16.gmra.mrb[0].mxu0 %v3157
      %v4277 = vpop.f32.mrb[0].mxu0
      %v4278 = vadd.f32 %v4085, %v4277
      %v4279 = vpop.f32.mrb[0].mxu0
      %v4280 = vpop.f32.mrb[0].mxu0
      %v4281 = vadd.f32 %v4088, %v4280
      %v4282 = vpop.f32.mrb[0].mxu0
      %4283 = vmatprep.mubr.bf16.mxu0 %v3183
      %4284 = vmatmul.mubr.bf16.gmra.mrb[0].mxu0 %v3158
      %v4285 = vpop.f32.mrb[0].mxu0
      %v4286 = vadd.f32 %v4093, %v4285
      %v4287 = vpop.f32.mrb[0].mxu0
      %v4288 = vpop.f32.mrb[0].mxu0
      %v4289 = vadd.f32 %v4096, %v4288
      %v4290 = vpop.f32.mrb[0].mxu0
      %4291 = vmatprep.mubr.bf16.mxu0 %v3184
      %4292 = vmatmul.mubr.bf16.gmra.mrb[0].mxu0 %v3159
      %v4293 = vpop.f32.mrb[0].mxu0
      %v4294 = vadd.f32 %v4101, %v4293
      %v4295 = vpop.f32.mrb[0].mxu0
      %v4296 = vpop.f32.mrb[0].mxu0
      %v4297 = vadd.f32 %v4104, %v4296
      %v4298 = vpop.f32.mrb[0].mxu0
      %4299 = vmatprep.mubr.bf16.mxu0 %v3185
      %4300 = vmatmul.mubr.bf16.gmra.mrb[0].mxu0 %v3160
      %v4301 = vpop.f32.mrb[0].mxu0
      %v4302 = vadd.f32 %v4109, %v4301
      %v4303 = vpop.f32.mrb[0].mxu0
      %v4304 = vpop.f32.mrb[0].mxu0
      %v4305 = vadd.f32 %v4112, %v4304
      %v4306 = vpop.f32.mrb[0].mxu0
      %4307 = vmatprep.mubr.bf16.mxu0 %v3186
      %4308 = vmatmul.mubr.bf16.gmra.mrb[0].mxu0 %v3161
      %v4309 = vpop.f32.mrb[0].mxu0
      %v4310 = vadd.f32 %v4117, %v4309
      %v4311 = vpop.f32.mrb[0].mxu0
      %v4312 = vpop.f32.mrb[0].mxu0
      %v4313 = vadd.f32 %v4120, %v4312
      %v4314 = vpop.f32.mrb[0].mxu0
      %4315 = vmatprep.mubr.bf16.mxu0 %v3187
      %4316 = vmatmul.mubr.bf16.gmra.mrb[0].mxu0 %v3162
      %v4317 = vpop.f32.mrb[0].mxu0
      %v4318 = vadd.f32 %v4125, %v4317
      %v4319 = vpop.f32.mrb[0].mxu0
      %v4320 = vpop.f32.mrb[0].mxu0
      %v4321 = vadd.f32 %v4128, %v4320
      %v4322 = vpop.f32.mrb[0].mxu0
      %4323 = vmatprep.mubr.bf16.mxu0 %v3188
      %4324 = vmatmul.mubr.bf16.gmra.mrb[0].mxu0 %v3163
      %v4325 = vpop.f32.mrb[0].mxu0
      %v4326 = vadd.f32 %v4133, %v4325
      %v4327 = vpop.f32.mrb[0].mxu0
      %v4328 = vpop.f32.mrb[0].mxu0
      %v4329 = vadd.f32 %v4136, %v4328
      %v4330 = vpop.f32.mrb[0].mxu0
      %4331 = vmatprep.mubr.bf16.mxu0 %v3189
      %4332 = vmatmul.mubr.bf16.gmra.mrb[0].mxu0 %v3164
      %v4333 = vpop.f32.mrb[0].mxu0
      %v4334 = vadd.f32 %v4141, %v4333
      %v4335 = vpop.f32.mrb[0].mxu0
      %v4336 = vpop.f32.mrb[0].mxu0
      %v4337 = vadd.f32 %v4144, %v4336
      %v4338 = vpop.f32.mrb[0].mxu0
      %4339 = vmatprep.mubr.bf16.mxu0 %v3190
      %4340 = vmatmul.mubr.bf16.gmra.mrb[0].mxu0 %v3165
      %v4341 = vpop.f32.mrb[0].mxu0
      %v4342 = vadd.f32 %v4149, %v4341
      %v4343 = vpop.f32.mrb[0].mxu0
      %v4344 = vpop.f32.mrb[0].mxu0
      %v4345 = vadd.f32 %v4152, %v4344
      %v4346 = vpop.f32.mrb[0].mxu0
      %4347 = vmatprep.mubr.bf16.mxu0 %v3191
      %4348 = vmatmul.mubr.bf16.gmra.mrb[0].mxu0 %v3166
      %v4349 = vpop.f32.mrb[0].mxu0
      %v4350 = vadd.f32 %v4157, %v4349
      %v4351 = vpop.f32.mrb[0].mxu0
      %v4352 = vpop.f32.mrb[0].mxu0
      %v4353 = vadd.f32 %v4160, %v4352
      %v4354 = vpop.f32.mrb[0].mxu0
      %4355 = vmatprep.mubr.bf16.mxu0 %v3192
      %4356 = vmatmul.mubr.bf16.gmra.mrb[0].mxu0 %v3167
      %v4357 = vpop.f32.mrb[0].mxu0
      %v4358 = vadd.f32 %v4165, %v4357
      %v4359 = vpop.f32.mrb[0].mxu0
      %v4360 = vpop.f32.mrb[0].mxu0
      %v4361 = vadd.f32 %v4168, %v4360
      %v4362 = vpop.f32.mrb[0].mxu0
      %4363 = vmatprep.mubr.bf16.mxu0 %v3193
      %4364 = vmatmul.mubr.bf16.gmra.mrb[0].mxu0 %v3168
      %v4365 = vpop.f32.mrb[0].mxu0
      %v4366 = vadd.f32 %v4173, %v4365
      %v4367 = vpop.f32.mrb[0].mxu0
      %v4368 = vpop.f32.mrb[0].mxu0
      %v4369 = vadd.f32 %v4176, %v4368
      %v4370 = vpop.f32.mrb[0].mxu0
      %4371 = vmatprep.mubr.bf16.mxu0 %v3194
      %4372 = vmatmul.mubr.bf16.gmra.mrb[0].mxu0 %v3169
      %v4373 = vpop.f32.mrb[0].mxu0
      %v4374 = vadd.f32 %v4181, %v4373
      %v4375 = vpop.f32.mrb[0].mxu0
      %v4376 = vpop.f32.mrb[0].mxu0
      %v4377 = vadd.f32 %v4184, %v4376
      %v4378 = vpop.f32.mrb[0].mxu0
      %4379 = vmatprep.mubr.bf16.mxu0 %v3195
      %4380 = vmatmul.mubr.bf16.gmra.mrb[0].mxu0 %v3170
      %v4381 = vpop.f32.mrb[0].mxu0
      %v4382 = vadd.f32 %v4189, %v4381
      %v4383 = vpop.f32.mrb[0].mxu0
      %v4384 = vpop.f32.mrb[0].mxu0
      %v4385 = vadd.f32 %v4192, %v4384
      %v4386 = vpop.f32.mrb[0].mxu0
      %4387 = vdwg.mxu0
      %4388 = vmatprep.subr.bf16.mxu0 0
      %4389 = vmatpush1.bf16.msra.mxu0 %v3713
      %4390 = vmatprep.subr.bf16.mxu0 0
      %4391 = vmatpush1.bf16.msra.mxu0 %v3714
      %4392 = vmatprep.subr.bf16.mxu0 0
      %4393 = vmatpush1.bf16.msra.mxu0 %v3715
      %4394 = vmatprep.subr.bf16.mxu0 0
      %4395 = vmatpush1.bf16.msra.mxu0 %v3716
      %4396 = vmatprep.subr.bf16.mxu0 0
      %4397 = vmatpush1.bf16.msra.mxu0 %v3717
      %4398 = vmatprep.subr.bf16.mxu0 0
      %4399 = vmatpush1.bf16.msra.mxu0 %v3718
      %4400 = vmatprep.subr.bf16.mxu0 0
      %4401 = vmatpush1.bf16.msra.mxu0 %v3719
      %4402 = vmatprep.subr.bf16.mxu0 0
      %4403 = vmatpush1.bf16.msra.mxu0 %v3720
      %4404 = vmatprep.subr.bf16.mxu0 0
      %4405 = vmatpush1.bf16.msra.mxu0 %v3721
      %4406 = vmatprep.subr.bf16.mxu0 0
      %4407 = vmatpush1.bf16.msra.mxu0 %v3722
      %4408 = vmatprep.subr.bf16.mxu0 0
      %4409 = vmatpush1.bf16.msra.mxu0 %v3723
      %4410 = vmatprep.subr.bf16.mxu0 0
      %4411 = vmatpush1.bf16.msra.mxu0 %v3724
      %4412 = vmatprep.subr.bf16.mxu0 0
      %4413 = vmatpush1.bf16.msra.mxu0 %v3725
      %4414 = vmatprep.subr.bf16.mxu0 0
      %4415 = vmatpush1.bf16.msra.mxu0 %v3726
      %4416 = vmatprep.subr.bf16.mxu0 0
      %4417 = vmatpush1.bf16.msra.mxu0 %v3727
      %4418 = vmatprep.subr.bf16.mxu0 0
      %4419 = vmatpush1.bf16.msra.mxu0 %v3728
      %4420 = vmatprep.mubr.bf16.mxu0 %v3046
      %4421 = vmatmul.mubr.bf16.gmra.mrb[0].mxu0 %v2986
      %v4422 = vpop.f32.mrb[0].mxu0
      %v4423 = vadd.f32 %v4230, %v4422
      %v4424 = vpop.f32.mrb[0].mxu0
      %v4425 = vpop.f32.mrb[0].mxu0
      %v4426 = vadd.f32 %v4233, %v4425
      %v4427 = vpop.f32.mrb[0].mxu0
      %4428 = vmatprep.mubr.bf16.mxu0 %v3047
      %4429 = vmatmul.mubr.bf16.gmra.mrb[0].mxu0 %v2987
      %v4430 = vpop.f32.mrb[0].mxu0
      %v4431 = vadd.f32 %v4238, %v4430
      %v4432 = vpop.f32.mrb[0].mxu0
      %v4433 = vpop.f32.mrb[0].mxu0
      %v4434 = vadd.f32 %v4241, %v4433
      %v4435 = vpop.f32.mrb[0].mxu0
      %4436 = vmatprep.mubr.bf16.mxu0 %v3048
      %4437 = vmatmul.mubr.bf16.gmra.mrb[0].mxu0 %v2988
      %v4438 = vpop.f32.mrb[0].mxu0
      %v4439 = vadd.f32 %v4246, %v4438
      %v4440 = vpop.f32.mrb[0].mxu0
      %v4441 = vpop.f32.mrb[0].mxu0
      %v4442 = vadd.f32 %v4249, %v4441
      %v4443 = vpop.f32.mrb[0].mxu0
      %4444 = vmatprep.mubr.bf16.mxu0 %v3049
      %4445 = vmatmul.mubr.bf16.gmra.mrb[0].mxu0 %v2989
      %v4446 = vpop.f32.mrb[0].mxu0
      %v4447 = vadd.f32 %v4254, %v4446
      %v4448 = vpop.f32.mrb[0].mxu0
      %v4449 = vpop.f32.mrb[0].mxu0
      %v4450 = vadd.f32 %v4257, %v4449
      %v4451 = vpop.f32.mrb[0].mxu0
      %4452 = vmatprep.mubr.bf16.mxu0 %v3050
      %4453 = vmatmul.mubr.bf16.gmra.mrb[0].mxu0 %v2990
      %v4454 = vpop.f32.mrb[0].mxu0
      %v4455 = vadd.f32 %v4262, %v4454
      %v4456 = vpop.f32.mrb[0].mxu0
      %v4457 = vpop.f32.mrb[0].mxu0
      %v4458 = vadd.f32 %v4265, %v4457
      %v4459 = vpop.f32.mrb[0].mxu0
      %4460 = vmatprep.mubr.bf16.mxu0 %v3051
      %4461 = vmatmul.mubr.bf16.gmra.mrb[0].mxu0 %v2991
      %v4462 = vpop.f32.mrb[0].mxu0
      %v4463 = vadd.f32 %v4270, %v4462
      %v4464 = vpop.f32.mrb[0].mxu0
      %v4465 = vpop.f32.mrb[0].mxu0
      %v4466 = vadd.f32 %v4273, %v4465
      %v4467 = vpop.f32.mrb[0].mxu0
      %4468 = vmatprep.mubr.bf16.mxu0 %v3052
      %4469 = vmatmul.mubr.bf16.gmra.mrb[0].mxu0 %v2992
      %v4470 = vpop.f32.mrb[0].mxu0
      %v4471 = vadd.f32 %v4278, %v4470
      %v4472 = vpop.f32.mrb[0].mxu0
      %v4473 = vpop.f32.mrb[0].mxu0
      %v4474 = vadd.f32 %v4281, %v4473
      %v4475 = vpop.f32.mrb[0].mxu0
      %4476 = vmatprep.mubr.bf16.mxu0 %v3053
      %4477 = vmatmul.mubr.bf16.gmra.mrb[0].mxu0 %v2993
      %v4478 = vpop.f32.mrb[0].mxu0
      %v4479 = vadd.f32 %v4286, %v4478
      %v4480 = vpop.f32.mrb[0].mxu0
      %v4481 = vpop.f32.mrb[0].mxu0
      %v4482 = vadd.f32 %v4289, %v4481
      %v4483 = vpop.f32.mrb[0].mxu0
      %4484 = vmatprep.mubr.bf16.mxu0 %v3054
      %4485 = vmatmul.mubr.bf16.gmra.mrb[0].mxu0 %v2994
      %v4486 = vpop.f32.mrb[0].mxu0
      %v4487 = vadd.f32 %v4294, %v4486
      %v4488 = vpop.f32.mrb[0].mxu0
      %v4489 = vpop.f32.mrb[0].mxu0
      %v4490 = vadd.f32 %v4297, %v4489
      %v4491 = vpop.f32.mrb[0].mxu0
      %4492 = vmatprep.mubr.bf16.mxu0 %v3055
      %4493 = vmatmul.mubr.bf16.gmra.mrb[0].mxu0 %v2995
      %v4494 = vpop.f32.mrb[0].mxu0
      %v4495 = vadd.f32 %v4302, %v4494
      %v4496 = vpop.f32.mrb[0].mxu0
      %v4497 = vpop.f32.mrb[0].mxu0
      %v4498 = vadd.f32 %v4305, %v4497
      %v4499 = vpop.f32.mrb[0].mxu0
      %4500 = vmatprep.mubr.bf16.mxu0 %v3056
      %4501 = vmatmul.mubr.bf16.gmra.mrb[0].mxu0 %v2996
      %v4502 = vpop.f32.mrb[0].mxu0
      %v4503 = vadd.f32 %v4310, %v4502
      %v4504 = vpop.f32.mrb[0].mxu0
      %v4505 = vpop.f32.mrb[0].mxu0
      %v4506 = vadd.f32 %v4313, %v4505
      %v4507 = vpop.f32.mrb[0].mxu0
      %4508 = vmatprep.mubr.bf16.mxu0 %v3057
      %4509 = vmatmul.mubr.bf16.gmra.mrb[0].mxu0 %v2997
      %v4510 = vpop.f32.mrb[0].mxu0
      %v4511 = vadd.f32 %v4318, %v4510
      %v4512 = vpop.f32.mrb[0].mxu0
      %v4513 = vpop.f32.mrb[0].mxu0
      %v4514 = vadd.f32 %v4321, %v4513
      %v4515 = vpop.f32.mrb[0].mxu0
      %4516 = vmatprep.mubr.bf16.mxu0 %v3058
      %4517 = vmatmul.mubr.bf16.gmra.mrb[0].mxu0 %v2998
      %v4518 = vpop.f32.mrb[0].mxu0
      %v4519 = vadd.f32 %v4326, %v4518
      %v4520 = vpop.f32.mrb[0].mxu0
      %v4521 = vpop.f32.mrb[0].mxu0
      %v4522 = vadd.f32 %v4329, %v4521
      %v4523 = vpop.f32.mrb[0].mxu0
      %4524 = vmatprep.mubr.bf16.mxu0 %v3059
      %4525 = vmatmul.mubr.bf16.gmra.mrb[0].mxu0 %v2999
      %v4526 = vpop.f32.mrb[0].mxu0
      %v4527 = vadd.f32 %v4334, %v4526
      %v4528 = vpop.f32.mrb[0].mxu0
      %v4529 = vpop.f32.mrb[0].mxu0
      %v4530 = vadd.f32 %v4337, %v4529
      %v4531 = vpop.f32.mrb[0].mxu0
      %4532 = vmatprep.mubr.bf16.mxu0 %v3060
      %4533 = vmatmul.mubr.bf16.gmra.mrb[0].mxu0 %v3000
      %v4534 = vpop.f32.mrb[0].mxu0
      %v4535 = vadd.f32 %v4342, %v4534
      %v4536 = vpop.f32.mrb[0].mxu0
      %v4537 = vpop.f32.mrb[0].mxu0
      %v4538 = vadd.f32 %v4345, %v4537
      %v4539 = vpop.f32.mrb[0].mxu0
      %4540 = vmatprep.mubr.bf16.mxu0 %v3211
      %4541 = vmatmul.mubr.bf16.gmra.mrb[0].mxu0 %v3201
      %v4542 = vpop.f32.mrb[0].mxu0
      %v4543 = vadd.f32 %v4350, %v4542
      %v4544 = vpop.f32.mrb[0].mxu0
      %v4545 = vpop.f32.mrb[0].mxu0
      %v4546 = vadd.f32 %v4353, %v4545
      %v4547 = vpop.f32.mrb[0].mxu0
      %4548 = vmatprep.mubr.bf16.mxu0 %v3212
      %4549 = vmatmul.mubr.bf16.gmra.mrb[0].mxu0 %v3202
      %v4550 = vpop.f32.mrb[0].mxu0
      %v4551 = vadd.f32 %v4358, %v4550
      %v4552 = vpop.f32.mrb[0].mxu0
      %v4553 = vpop.f32.mrb[0].mxu0
      %v4554 = vadd.f32 %v4361, %v4553
      %v4555 = vpop.f32.mrb[0].mxu0
      %4556 = vmatprep.mubr.bf16.mxu0 %v3213
      %4557 = vmatmul.mubr.bf16.gmra.mrb[0].mxu0 %v3203
      %v4558 = vpop.f32.mrb[0].mxu0
      %v4559 = vadd.f32 %v4366, %v4558
      %v4560 = vpop.f32.mrb[0].mxu0
      %v4561 = vpop.f32.mrb[0].mxu0
      %v4562 = vadd.f32 %v4369, %v4561
      %v4563 = vpop.f32.mrb[0].mxu0
      %4564 = vmatprep.mubr.bf16.mxu0 %v3214
      %4565 = vmatmul.mubr.bf16.gmra.mrb[0].mxu0 %v3204
      %v4566 = vpop.f32.mrb[0].mxu0
      %v4567 = vadd.f32 %v4374, %v4566
      %v4568 = vpop.f32.mrb[0].mxu0
      %v4569 = vpop.f32.mrb[0].mxu0
      %v4570 = vadd.f32 %v4377, %v4569
      %v4571 = vpop.f32.mrb[0].mxu0
      %4572 = vmatprep.mubr.bf16.mxu0 %v3215
      %4573 = vmatmul.mubr.bf16.gmra.mrb[0].mxu0 %v3205
      %v4574 = vpop.f32.mrb[0].mxu0
      %v4575 = vadd.f32 %v4382, %v4574
      %v4576 = vpop.f32.mrb[0].mxu0
      %v4577 = vpop.f32.mrb[0].mxu0
      %v4578 = vadd.f32 %v4385, %v4577
      %v4579 = vpop.f32.mrb[0].mxu0
      %4580 = vdwg.mxu0
      %4581 = vmatprep.subr.bf16.mxu0 0
      %4582 = vmatpush1.bf16.msra.mxu0 %v3729
      %4583 = vmatprep.subr.bf16.mxu0 0
      %4584 = vmatpush1.bf16.msra.mxu0 %v3730
      %4585 = vmatprep.subr.bf16.mxu0 0
      %4586 = vmatpush1.bf16.msra.mxu0 %v3731
      %4587 = vmatprep.subr.bf16.mxu0 0
      %4588 = vmatpush1.bf16.msra.mxu0 %v3732
      %4589 = vmatprep.subr.bf16.mxu0 0
      %4590 = vmatpush1.bf16.msra.mxu0 %v3733
      %4591 = vmatprep.subr.bf16.mxu0 0
      %4592 = vmatpush1.bf16.msra.mxu0 %v3734
      %4593 = vmatprep.subr.bf16.mxu0 0
      %4594 = vmatpush1.bf16.msra.mxu0 %v3735
      %4595 = vmatprep.subr.bf16.mxu0 0
      %4596 = vmatpush1.bf16.msra.mxu0 %v3736
      %4597 = vmatprep.subr.bf16.mxu0 0
      %4598 = vmatpush1.bf16.msra.mxu0 0
      %4599 = vmatprep.subr.bf16.mxu0 0
      %4600 = vmatpush1.bf16.msra.mxu0 0
      %4601 = vmatprep.subr.bf16.mxu0 0
      %4602 = vmatpush1.bf16.msra.mxu0 0
      %4603 = vmatprep.subr.bf16.mxu0 0
      %4604 = vmatpush1.bf16.msra.mxu0 0
      %4605 = vmatprep.subr.bf16.mxu0 0
      %4606 = vmatpush1.bf16.msra.mxu0 0
      %4607 = vmatprep.subr.bf16.mxu0 0
      %4608 = vmatpush1.bf16.msra.mxu0 0
      %4609 = vmatprep.subr.bf16.mxu0 0
      %4610 = vmatpush1.bf16.msra.mxu0 0
      %4611 = vmatprep.subr.bf16.mxu0 0
      %4612 = vmatpush1.bf16.msra.mxu0 0
      %4613 = vmatprep.mubr.bf16.mxu0 0
      %4614 = vmatmul.mubr.bf16.gmra.mrb[0].mxu0 %v3106
      %v4615 = vpop.f32.mrb[0].mxu0
      %v4616 = vadd.f32 %v4423, %v4615
      %v4617 = vpop.f32.mrb[0].mxu0
      %v4618 = vpop.f32.mrb[0].mxu0
      %v4619 = vadd.f32 %v4426, %v4618
      %v4620 = vpop.f32.mrb[0].mxu0
      %4621 = vmatprep.mubr.bf16.mxu0 0
      %4622 = vmatmul.mubr.bf16.gmra.mrb[0].mxu0 %v3107
      %v4623 = vpop.f32.mrb[0].mxu0
      %v4624 = vadd.f32 %v4431, %v4623
      %v4625 = vpop.f32.mrb[0].mxu0
      %v4626 = vpop.f32.mrb[0].mxu0
      %v4627 = vadd.f32 %v4434, %v4626
      %v4628 = vpop.f32.mrb[0].mxu0
      %4629 = vmatprep.mubr.bf16.mxu0 0
      %4630 = vmatmul.mubr.bf16.gmra.mrb[0].mxu0 %v3108
      %v4631 = vpop.f32.mrb[0].mxu0
      %v4632 = vadd.f32 %v4439, %v4631
      %v4633 = vpop.f32.mrb[0].mxu0
      %v4634 = vpop.f32.mrb[0].mxu0
      %v4635 = vadd.f32 %v4442, %v4634
      %v4636 = vpop.f32.mrb[0].mxu0
      %4637 = vmatprep.mubr.bf16.mxu0 0
      %4638 = vmatmul.mubr.bf16.gmra.mrb[0].mxu0 %v3109
      %v4639 = vpop.f32.mrb[0].mxu0
      %v4640 = vadd.f32 %v4447, %v4639
      %v4641 = vpop.f32.mrb[0].mxu0
      %v4642 = vpop.f32.mrb[0].mxu0
      %v4643 = vadd.f32 %v4450, %v4642
      %v4644 = vpop.f32.mrb[0].mxu0
      %4645 = vmatprep.mubr.bf16.mxu0 0
      %4646 = vmatmul.mubr.bf16.gmra.mrb[0].mxu0 %v3110
      %v4647 = vpop.f32.mrb[0].mxu0
      %v4648 = vadd.f32 %v4455, %v4647
      %v4649 = vpop.f32.mrb[0].mxu0
      %v4650 = vpop.f32.mrb[0].mxu0
      %v4651 = vadd.f32 %v4458, %v4650
      %v4652 = vpop.f32.mrb[0].mxu0
      %4653 = vmatprep.mubr.bf16.mxu0 0
      %4654 = vmatmul.mubr.bf16.gmra.mrb[0].mxu0 %v3111
      %v4655 = vpop.f32.mrb[0].mxu0
      %v4656 = vadd.f32 %v4463, %v4655
      %v4657 = vpop.f32.mrb[0].mxu0
      %v4658 = vpop.f32.mrb[0].mxu0
      %v4659 = vadd.f32 %v4466, %v4658
      %v4660 = vpop.f32.mrb[0].mxu0
      %4661 = vmatprep.mubr.bf16.mxu0 0
      %4662 = vmatmul.mubr.bf16.gmra.mrb[0].mxu0 %v3112
      %v4663 = vpop.f32.mrb[0].mxu0
      %v4664 = vadd.f32 %v4471, %v4663
      %v4665 = vpop.f32.mrb[0].mxu0
      %v4666 = vpop.f32.mrb[0].mxu0
      %v4667 = vadd.f32 %v4474, %v4666
      %v4668 = vpop.f32.mrb[0].mxu0
      %4669 = vmatprep.mubr.bf16.mxu0 0
      %4670 = vmatmul.mubr.bf16.gmra.mrb[0].mxu0 %v3113
      %v4671 = vpop.f32.mrb[0].mxu0
      %v4672 = vadd.f32 %v4479, %v4671
      %v4673 = vpop.f32.mrb[0].mxu0
      %v4674 = vpop.f32.mrb[0].mxu0
      %v4675 = vadd.f32 %v4482, %v4674
      %v4676 = vpop.f32.mrb[0].mxu0
      %4677 = vmatprep.mubr.bf16.mxu0 0
      %4678 = vmatmul.mubr.bf16.gmra.mrb[0].mxu0 %v3114
      %v4679 = vpop.f32.mrb[0].mxu0
      %v4680 = vadd.f32 %v4487, %v4679
      %v4681 = vpop.f32.mrb[0].mxu0
      %v4682 = vpop.f32.mrb[0].mxu0
      %v4683 = vadd.f32 %v4490, %v4682
      %v4684 = vpop.f32.mrb[0].mxu0
      %4685 = vmatprep.mubr.bf16.mxu0 0
      %4686 = vmatmul.mubr.bf16.gmra.mrb[0].mxu0 %v3115
      %v4687 = vpop.f32.mrb[0].mxu0
      %v4688 = vadd.f32 %v4495, %v4687
      %v4689 = vpop.f32.mrb[0].mxu0
      %v4690 = vpop.f32.mrb[0].mxu0
      %v4691 = vadd.f32 %v4498, %v4690
      %v4692 = vpop.f32.mrb[0].mxu0
      %4693 = vmatprep.mubr.bf16.mxu0 0
      %4694 = vmatmul.mubr.bf16.gmra.mrb[0].mxu0 %v3116
      %v4695 = vpop.f32.mrb[0].mxu0
      %v4696 = vadd.f32 %v4503, %v4695
      %v4697 = vpop.f32.mrb[0].mxu0
      %v4698 = vpop.f32.mrb[0].mxu0
      %v4699 = vadd.f32 %v4506, %v4698
      %v4700 = vpop.f32.mrb[0].mxu0
      %4701 = vmatprep.mubr.bf16.mxu0 0
      %4702 = vmatmul.mubr.bf16.gmra.mrb[0].mxu0 %v3117
      %v4703 = vpop.f32.mrb[0].mxu0
      %v4704 = vadd.f32 %v4511, %v4703
      %v4705 = vpop.f32.mrb[0].mxu0
      %v4706 = vpop.f32.mrb[0].mxu0
      %v4707 = vadd.f32 %v4514, %v4706
      %v4708 = vpop.f32.mrb[0].mxu0
      %4709 = vmatprep.mubr.bf16.mxu0 0
      %4710 = vmatmul.mubr.bf16.gmra.mrb[0].mxu0 %v3118
      %v4711 = vpop.f32.mrb[0].mxu0
      %v4712 = vadd.f32 %v4519, %v4711
      %v4713 = vpop.f32.mrb[0].mxu0
      %v4714 = vpop.f32.mrb[0].mxu0
      %v4715 = vadd.f32 %v4522, %v4714
      %v4716 = vpop.f32.mrb[0].mxu0
      %4717 = vmatprep.mubr.bf16.mxu0 0
      %4718 = vmatmul.mubr.bf16.gmra.mrb[0].mxu0 %v3119
      %v4719 = vpop.f32.mrb[0].mxu0
      %v4720 = vadd.f32 %v4527, %v4719
      %v4721 = vpop.f32.mrb[0].mxu0
      %v4722 = vpop.f32.mrb[0].mxu0
      %v4723 = vadd.f32 %v4530, %v4722
      %v4724 = vpop.f32.mrb[0].mxu0
      %4725 = vmatprep.mubr.bf16.mxu0 0
      %4726 = vmatmul.mubr.bf16.gmra.mrb[0].mxu0 %v3120
      %v4727 = vpop.f32.mrb[0].mxu0
      %v4728 = vadd.f32 %v4535, %v4727
      %v4729 = vpop.f32.mrb[0].mxu0
      %v4730 = vpop.f32.mrb[0].mxu0
      %v4731 = vadd.f32 %v4538, %v4730
      %v4732 = vpop.f32.mrb[0].mxu0
      %4733 = vmatprep.mubr.bf16.mxu0 0
      %4734 = vmatmul.mubr.bf16.gmra.mrb[0].mxu0 %v3221
      %v4735 = vpop.f32.mrb[0].mxu0
      %v4736 = vadd.f32 %v4543, %v4735
      %v4737 = vpop.f32.mrb[0].mxu0
      %v4738 = vpop.f32.mrb[0].mxu0
      %v4739 = vadd.f32 %v4546, %v4738
      %v4740 = vpop.f32.mrb[0].mxu0
      %4741 = vmatprep.mubr.bf16.mxu0 0
      %4742 = vmatmul.mubr.bf16.gmra.mrb[0].mxu0 %v3222
      %v4743 = vpop.f32.mrb[0].mxu0
      %v4744 = vadd.f32 %v4551, %v4743
      %v4745 = vpop.f32.mrb[0].mxu0
      %v4746 = vpop.f32.mrb[0].mxu0
      %v4747 = vadd.f32 %v4554, %v4746
      %v4748 = vpop.f32.mrb[0].mxu0
      %4749 = vmatprep.mubr.bf16.mxu0 0
      %4750 = vmatmul.mubr.bf16.gmra.mrb[0].mxu0 %v3223
      %v4751 = vpop.f32.mrb[0].mxu0
      %v4752 = vadd.f32 %v4559, %v4751
      %v4753 = vpop.f32.mrb[0].mxu0
      %v4754 = vpop.f32.mrb[0].mxu0
      %v4755 = vadd.f32 %v4562, %v4754
      %v4756 = vpop.f32.mrb[0].mxu0
      %4757 = vmatprep.mubr.bf16.mxu0 0
      %4758 = vmatmul.mubr.bf16.gmra.mrb[0].mxu0 %v3224
      %v4759 = vpop.f32.mrb[0].mxu0
      %v4760 = vadd.f32 %v4567, %v4759
      %v4761 = vpop.f32.mrb[0].mxu0
      %v4762 = vpop.f32.mrb[0].mxu0
      %v4763 = vadd.f32 %v4570, %v4762
      %v4764 = vpop.f32.mrb[0].mxu0
      %4765 = vmatprep.mubr.bf16.mxu0 0
      %4766 = vmatmul.mubr.bf16.gmra.mrb[0].mxu0 %v3225
      %v4767 = vpop.f32.mrb[0].mxu0
      %v4768 = vadd.f32 %v4575, %v4767
      %v4769 = vpop.f32.mrb[0].mxu0
      %v4770 = vpop.f32.mrb[0].mxu0
      %v4771 = vadd.f32 %v4578, %v4770
      %v4772 = vpop.f32.mrb[0].mxu0
      %4773 = vdwg.mxu0
      %v4774 = vmul.f32 %v4616, %v2213
      %v4775 = vmul.f32 %v4619, %v2218
      %v4776 = vmul.f32 %v4624, %v2223
      %v4777 = vmul.f32 %v4627, %v2228
      %v4778 = vmul.f32 %v4632, %v2233
      %v4779 = vmul.f32 %v4635, %v2238
      %v4780 = vmul.f32 %v4640, %v2243
      %v4781 = vmul.f32 %v4643, %v2248
      %v4782 = vmul.f32 %v4648, %v2253
      %v4783 = vmul.f32 %v4651, %v2258
      %v4784 = vmul.f32 %v4656, %v2263
      %v4785 = vmul.f32 %v4659, %v2268
      %v4786 = vmul.f32 %v4664, %v2273
      %v4787 = vmul.f32 %v4667, %v2278
      %v4788 = vmul.f32 %v4672, %v2283
      %v4789 = vmul.f32 %v4675, %v2288
      %v4790 = vmul.f32 %v4680, %v2293
      %v4791 = vmul.f32 %v4683, %v2298
      %v4792 = vmul.f32 %v4688, %v2303
      %v4793 = vmul.f32 %v4691, %v2308
      %v4794 = vmul.f32 %v4696, %v2313
      %v4795 = vmul.f32 %v4699, %v2318
      %v4796 = vmul.f32 %v4704, %v2323
      %v4797 = vmul.f32 %v4707, %v2328
      %v4798 = vmul.f32 %v4712, %v2333
      %v4799 = vmul.f32 %v4715, %v2338
      %v4800 = vmul.f32 %v4720, %v2343
      %v4801 = vmul.f32 %v4723, %v2348
      %v4802 = vmul.f32 %v4728, %v2353
      %v4803 = vmul.f32 %v4731, %v2358
      %v4804 = vmul.f32 %v4736, %v2363
      %v4805 = vmul.f32 %v4739, %v2368
      %v4806 = vmul.f32 %v4744, %v2373
      %v4807 = vmul.f32 %v4747, %v2378
      %v4808 = vmul.f32 %v4752, %v2383
      %v4809 = vmul.f32 %v4755, %v2388
      %v4810 = vmul.f32 %v4760, %v2393
      %v4811 = vmul.f32 %v4763, %v2398
      %v4812 = vmul.f32 %v4768, %v2403
      %v4813 = vmul.f32 %v4771, %v2408
      %v4814 = vadd.f32 %v4774, %v4775
      %v4815 = vadd.f32 %v4814, %v4776
      %v4816 = vadd.f32 %v4815, %v4777
      %v4817 = vadd.f32 %v4816, %v4778
      %v4818 = vadd.f32 %v4817, %v4779
      %v4819 = vadd.f32 %v4818, %v4780
      %v4820 = vadd.f32 %v4819, %v4781
      %v4821 = vadd.f32 %v4820, %v4782
      %v4822 = vadd.f32 %v4821, %v4783
      %v4823 = vadd.f32 %v4822, %v4784
      %v4824 = vadd.f32 %v4823, %v4785
      %v4825 = vadd.f32 %v4824, %v4786
      %v4826 = vadd.f32 %v4825, %v4787
      %v4827 = vadd.f32 %v4826, %v4788
      %v4828 = vadd.f32 %v4827, %v4789
      %v4829 = vadd.f32 %v4828, %v4790
      %v4830 = vadd.f32 %v4829, %v4791
      %v4831 = vadd.f32 %v4830, %v4792
      %v4832 = vadd.f32 %v4831, %v4793
      %v4833 = vadd.f32 %v4832, %v4794
      %v4834 = vadd.f32 %v4833, %v4795
      %v4835 = vadd.f32 %v4834, %v4796
      %v4836 = vadd.f32 %v4835, %v4797
      %v4837 = vadd.f32 %v4836, %v4798
      %v4838 = vadd.f32 %v4837, %v4799
      %v4839 = vadd.f32 %v4838, %v4800
      %v4840 = vadd.f32 %v4839, %v4801
      %v4841 = vadd.f32 %v4840, %v4802
      %v4842 = vadd.f32 %v4841, %v4803
      %v4843 = vadd.f32 %v4842, %v4804
      %v4844 = vadd.f32 %v4843, %v4805
      %v4845 = vadd.f32 %v4844, %v4806
      %v4846 = vadd.f32 %v4845, %v4807
      %v4847 = vadd.f32 %v4846, %v4808
      %v4848 = vadd.f32 %v4847, %v4809
      %v4849 = vadd.f32 %v4848, %v4810
      %v4850 = vadd.f32 %v4849, %v4811
      %v4851 = vadd.f32 %v4850, %v4812
      %v4852 = vadd.f32 %v4851, %v4813
      %4853 = vadd.xlane.f32.xlu0 %v4852
      %v4854 = vpop.xlane.xlu0 %4853
      %v4855 = vrot.slane %v4854, 4
      %v4856 = vadd.f32 %v4854, %v4855
      %v4857 = vrot.slane %v4856, 2
      %v4858 = vadd.f32 %v4856, %v4857
      %v4859 = vrot.slane %v4858, 1
      %v4860 = vadd.f32 %v4858, %v4859
      %s4861 = vtos %v4860
      %s4862 = smul.f32 %s4861, 0.00012207031
      %v4863 = vmul.f32 %v4774, %v4774
      %v4864 = vmul.f32 %v4775, %v4775
      %v4865 = vmul.f32 %v4776, %v4776
      %v4866 = vmul.f32 %v4777, %v4777
      %v4867 = vmul.f32 %v4778, %v4778
      %v4868 = vmul.f32 %v4779, %v4779
      %v4869 = vmul.f32 %v4780, %v4780
      %v4870 = vmul.f32 %v4781, %v4781
      %v4871 = vmul.f32 %v4782, %v4782
      %v4872 = vmul.f32 %v4783, %v4783
      %v4873 = vmul.f32 %v4784, %v4784
      %v4874 = vmul.f32 %v4785, %v4785
      %v4875 = vmul.f32 %v4786, %v4786
      %v4876 = vmul.f32 %v4787, %v4787
      %v4877 = vmul.f32 %v4788, %v4788
      %v4878 = vmul.f32 %v4789, %v4789
      %v4879 = vmul.f32 %v4790, %v4790
      %v4880 = vmul.f32 %v4791, %v4791
      %v4881 = vmul.f32 %v4792, %v4792
      %v4882 = vmul.f32 %v4793, %v4793
      %v4883 = vmul.f32 %v4794, %v4794
      %v4884 = vmul.f32 %v4795, %v4795
      %v4885 = vmul.f32 %v4796, %v4796
      %v4886 = vmul.f32 %v4797, %v4797
      %v4887 = vmul.f32 %v4798, %v4798
      %v4888 = vmul.f32 %v4799, %v4799
      %v4889 = vmul.f32 %v4800, %v4800
      %v4890 = vmul.f32 %v4801, %v4801
      %v4891 = vmul.f32 %v4802, %v4802
      %v4892 = vmul.f32 %v4803, %v4803
      %v4893 = vmul.f32 %v4804, %v4804
      %v4894 = vmul.f32 %v4805, %v4805
      %v4895 = vmul.f32 %v4806, %v4806
      %v4896 = vmul.f32 %v4807, %v4807
      %v4897 = vmul.f32 %v4808, %v4808
      %v4898 = vmul.f32 %v4809, %v4809
      %v4899 = vmul.f32 %v4810, %v4810
      %v4900 = vmul.f32 %v4811, %v4811
      %v4901 = vmul.f32 %v4812, %v4812
      %v4902 = vmul.f32 %v4813, %v4813
      %v4903 = vadd.f32 %v4863, %v4864
      %v4904 = vadd.f32 %v4903, %v4865
      %v4905 = vadd.f32 %v4904, %v4866
      %v4906 = vadd.f32 %v4905, %v4867
      %v4907 = vadd.f32 %v4906, %v4868
      %v4908 = vadd.f32 %v4907, %v4869
      %v4909 = vadd.f32 %v4908, %v4870
      %v4910 = vadd.f32 %v4909, %v4871
      %v4911 = vadd.f32 %v4910, %v4872
      %v4912 = vadd.f32 %v4911, %v4873
      %v4913 = vadd.f32 %v4912, %v4874
      %v4914 = vadd.f32 %v4913, %v4875
      %v4915 = vadd.f32 %v4914, %v4876
      %v4916 = vadd.f32 %v4915, %v4877
      %v4917 = vadd.f32 %v4916, %v4878
      %v4918 = vadd.f32 %v4917, %v4879
      %v4919 = vadd.f32 %v4918, %v4880
      %v4920 = vadd.f32 %v4919, %v4881
      %v4921 = vadd.f32 %v4920, %v4882
      %v4922 = vadd.f32 %v4921, %v4883
      %v4923 = vadd.f32 %v4922, %v4884
      %v4924 = vadd.f32 %v4923, %v4885
      %v4925 = vadd.f32 %v4924, %v4886
      %v4926 = vadd.f32 %v4925, %v4887
      %v4927 = vadd.f32 %v4926, %v4888
      %v4928 = vadd.f32 %v4927, %v4889
      %v4929 = vadd.f32 %v4928, %v4890
      %v4930 = vadd.f32 %v4929, %v4891
      %v4931 = vadd.f32 %v4930, %v4892
      %v4932 = vadd.f32 %v4931, %v4893
      %v4933 = vadd.f32 %v4932, %v4894
      %v4934 = vadd.f32 %v4933, %v4895
      %v4935 = vadd.f32 %v4934, %v4896
      %v4936 = vadd.f32 %v4935, %v4897
      %v4937 = vadd.f32 %v4936, %v4898
      %v4938 = vadd.f32 %v4937, %v4899
      %v4939 = vadd.f32 %v4938, %v4900
      %v4940 = vadd.f32 %v4939, %v4901
      %v4941 = vadd.f32 %v4940, %v4902
      %4942 = vadd.xlane.f32.xlu0 %v4941
      %v4943 = vpop.xlane.xlu0 %4942
      %v4944 = vrot.slane %v4943, 4
      %v4945 = vadd.f32 %v4943, %v4944
      %v4946 = vrot.slane %v4945, 2
      %v4947 = vadd.f32 %v4945, %v4946
      %v4948 = vrot.slane %v4947, 1
      %v4949 = vadd.f32 %v4947, %v4948
      %s4950 = vtos %v4949
      %s4951 = smul.f32 %s4950, 0.00012207031
      %s4952 = smul.f32 %s4862, %s4862
      %s4953 = ssub.f32 %s4951, %s4952
      %v4954 = vstv %s4862
      %v4955 = vsub.f32 %v4616, %v4954
      %v4956 = vsub.f32 %v4619, %v4954
      %v4957 = vsub.f32 %v4624, %v4954
      %v4958 = vsub.f32 %v4627, %v4954
      %v4959 = vsub.f32 %v4632, %v4954
      %v4960 = vsub.f32 %v4635, %v4954
      %v4961 = vsub.f32 %v4640, %v4954
      %v4962 = vsub.f32 %v4643, %v4954
      %v4963 = vsub.f32 %v4648, %v4954
      %v4964 = vsub.f32 %v4651, %v4954
      %v4965 = vsub.f32 %v4656, %v4954
      %v4966 = vsub.f32 %v4659, %v4954
      %v4967 = vsub.f32 %v4664, %v4954
      %v4968 = vsub.f32 %v4667, %v4954
      %v4969 = vsub.f32 %v4672, %v4954
      %v4970 = vsub.f32 %v4675, %v4954
      %v4971 = vsub.f32 %v4680, %v4954
      %v4972 = vsub.f32 %v4683, %v4954
      %v4973 = vsub.f32 %v4688, %v4954
      %v4974 = vsub.f32 %v4691, %v4954
      %v4975 = vsub.f32 %v4696, %v4954
      %v4976 = vsub.f32 %v4699, %v4954
      %v4977 = vsub.f32 %v4704, %v4954
      %v4978 = vsub.f32 %v4707, %v4954
      %v4979 = vsub.f32 %v4712, %v4954
      %v4980 = vsub.f32 %v4715, %v4954
      %v4981 = vsub.f32 %v4720, %v4954
      %v4982 = vsub.f32 %v4723, %v4954
      %v4983 = vsub.f32 %v4728, %v4954
      %v4984 = vsub.f32 %v4731, %v4954
      %v4985 = vsub.f32 %v4736, %v4954
      %v4986 = vsub.f32 %v4739, %v4954
      %v4987 = vsub.f32 %v4744, %v4954
      %v4988 = vsub.f32 %v4747, %v4954
      %v4989 = vsub.f32 %v4752, %v4954
      %v4990 = vsub.f32 %v4755, %v4954
      %v4991 = vsub.f32 %v4760, %v4954
      %v4992 = vsub.f32 %v4763, %v4954
      %v4993 = vsub.f32 %v4768, %v4954
      %v4994 = vsub.f32 %v4771, %v4954
      %s4995 = sadd.f32 %s4953, 1e-05
      %v4996 = vstv %s4995
      %v4997 = vrsqrt.pop %v4996
      %s4998 = vtos %v4997
      %v4999 = vstv %s4998
      %v5000 = vmul.f32 %v4955, %v4999
      %v5001 = vmul.f32 %v4956, %v4999
      %v5002 = vmul.f32 %v4957, %v4999
      %v5003 = vmul.f32 %v4958, %v4999
      %v5004 = vmul.f32 %v4959, %v4999
      %v5005 = vmul.f32 %v4960, %v4999
      %v5006 = vmul.f32 %v4961, %v4999
      %v5007 = vmul.f32 %v4962, %v4999
      %v5008 = vmul.f32 %v4963, %v4999
      %v5009 = vmul.f32 %v4964, %v4999
      %v5010 = vmul.f32 %v4965, %v4999
      %v5011 = vmul.f32 %v4966, %v4999
      %v5012 = vmul.f32 %v4967, %v4999
      %v5013 = vmul.f32 %v4968, %v4999
      %v5014 = vmul.f32 %v4969, %v4999
      %v5015 = vmul.f32 %v4970, %v4999
      %v5016 = vmul.f32 %v4971, %v4999
      %v5017 = vmul.f32 %v4972, %v4999
      %v5018 = vmul.f32 %v4973, %v4999
      %v5019 = vmul.f32 %v4974, %v4999
      %v5020 = vmul.f32 %v4975, %v4999
      %v5021 = vmul.f32 %v4976, %v4999
      %v5022 = vmul.f32 %v4977, %v4999
      %v5023 = vmul.f32 %v4978, %v4999
      %v5024 = vmul.f32 %v4979, %v4999
      %v5025 = vmul.f32 %v4980, %v4999
      %v5026 = vmul.f32 %v4981, %v4999
      %v5027 = vmul.f32 %v4982, %v4999
      %v5028 = vmul.f32 %v4983, %v4999
      %v5029 = vmul.f32 %v4984, %v4999
      %v5030 = vmul.f32 %v4985, %v4999
      %v5031 = vmul.f32 %v4986, %v4999
      %v5032 = vmul.f32 %v4987, %v4999
      %v5033 = vmul.f32 %v4988, %v4999
      %v5034 = vmul.f32 %v4989, %v4999
      %v5035 = vmul.f32 %v4990, %v4999
      %v5036 = vmul.f32 %v4991, %v4999
      %v5037 = vmul.f32 %v4992, %v4999
      %v5038 = vmul.f32 %v4993, %v4999
      %v5039 = vmul.f32 %v4994, %v4999
      %v5040 = vmul.f32 %v5000, %v2680
      %v5041 = vmul.f32 %v5001, %v2680
      %v5042 = vmul.f32 %v5002, %v2680
      %v5043 = vmul.f32 %v5003, %v2680
      %v5044 = vmul.f32 %v5004, %v2680
      %v5045 = vmul.f32 %v5005, %v2680
      %v5046 = vmul.f32 %v5006, %v2680
      %v5047 = vmul.f32 %v5007, %v2680
      %v5048 = vmul.f32 %v5008, %v2680
      %v5049 = vmul.f32 %v5009, %v2680
      %v5050 = vmul.f32 %v5010, %v2680
      %v5051 = vmul.f32 %v5011, %v2680
      %v5052 = vmul.f32 %v5012, %v2680
      %v5053 = vmul.f32 %v5013, %v2680
      %v5054 = vmul.f32 %v5014, %v2680
      %v5055 = vmul.f32 %v5015, %v2680
      %v5056 = vmul.f32 %v5016, %v2680
      %v5057 = vmul.f32 %v5017, %v2680
      %v5058 = vmul.f32 %v5018, %v2680
      %v5059 = vmul.f32 %v5019, %v2680
      %v5060 = vmul.f32 %v5020, %v2680
      %v5061 = vmul.f32 %v5021, %v2680
      %v5062 = vmul.f32 %v5022, %v2680
      %v5063 = vmul.f32 %v5023, %v2680
      %v5064 = vmul.f32 %v5024, %v2680
      %v5065 = vmul.f32 %v5025, %v2680
      %v5066 = vmul.f32 %v5026, %v2680
      %v5067 = vmul.f32 %v5027, %v2680
      %v5068 = vmul.f32 %v5028, %v2680
      %v5069 = vmul.f32 %v5029, %v2680
      %v5070 = vmul.f32 %v5030, %v2680
      %v5071 = vmul.f32 %v5031, %v2680
      %v5072 = vmul.f32 %v5032, %v2680
      %v5073 = vmul.f32 %v5033, %v2680
      %v5074 = vmul.f32 %v5034, %v2680
      %v5075 = vmul.f32 %v5035, %v2680
      %v5076 = vmul.f32 %v5036, %v2680
      %v5077 = vmul.f32 %v5037, %v2680
      %v5078 = vmul.f32 %v5038, %v2680
      %v5079 = vmul.f32 %v5039, %v2680
      %v5080 = vadd.f32 %v5040, %v2726
      %v5081 = vadd.f32 %v5041, %v2726
      %v5082 = vadd.f32 %v5042, %v2726
      %v5083 = vadd.f32 %v5043, %v2726
      %v5084 = vadd.f32 %v5044, %v2726
      %v5085 = vadd.f32 %v5045, %v2726
      %v5086 = vadd.f32 %v5046, %v2726
      %v5087 = vadd.f32 %v5047, %v2726
      %v5088 = vadd.f32 %v5048, %v2726
      %v5089 = vadd.f32 %v5049, %v2726
      %v5090 = vadd.f32 %v5050, %v2726
      %v5091 = vadd.f32 %v5051, %v2726
      %v5092 = vadd.f32 %v5052, %v2726
      %v5093 = vadd.f32 %v5053, %v2726
      %v5094 = vadd.f32 %v5054, %v2726
      %v5095 = vadd.f32 %v5055, %v2726
      %v5096 = vadd.f32 %v5056, %v2726
      %v5097 = vadd.f32 %v5057, %v2726
      %v5098 = vadd.f32 %v5058, %v2726
      %v5099 = vadd.f32 %v5059, %v2726
      %v5100 = vadd.f32 %v5060, %v2726
      %v5101 = vadd.f32 %v5061, %v2726
      %v5102 = vadd.f32 %v5062, %v2726
      %v5103 = vadd.f32 %v5063, %v2726
      %v5104 = vadd.f32 %v5064, %v2726
      %v5105 = vadd.f32 %v5065, %v2726
      %v5106 = vadd.f32 %v5066, %v2726
      %v5107 = vadd.f32 %v5067, %v2726
      %v5108 = vadd.f32 %v5068, %v2726
      %v5109 = vadd.f32 %v5069, %v2726
      %v5110 = vadd.f32 %v5070, %v2726
      %v5111 = vadd.f32 %v5071, %v2726
      %v5112 = vadd.f32 %v5072, %v2726
      %v5113 = vadd.f32 %v5073, %v2726
      %v5114 = vadd.f32 %v5074, %v2726
      %v5115 = vadd.f32 %v5075, %v2726
      %v5116 = vadd.f32 %v5076, %v2726
      %v5117 = vadd.f32 %v5077, %v2726
      %v5118 = vadd.f32 %v5078, %v2726
      %v5119 = vadd.f32 %v5079, %v2726
      %v5120 = vmax.f32 %v5080, 0.0
      %v5121 = vmax.f32 %v5081, 0.0
      %v5122 = vmax.f32 %v5082, 0.0
      %v5123 = vmax.f32 %v5083, 0.0
      %v5124 = vmax.f32 %v5084, 0.0
      %v5125 = vmax.f32 %v5085, 0.0
      %v5126 = vmax.f32 %v5086, 0.0
      %v5127 = vmax.f32 %v5087, 0.0
      %v5128 = vmax.f32 %v5088, 0.0
      %v5129 = vmax.f32 %v5089, 0.0
      %v5130 = vmax.f32 %v5090, 0.0
      %v5131 = vmax.f32 %v5091, 0.0
      %v5132 = vmax.f32 %v5092, 0.0
      %v5133 = vmax.f32 %v5093, 0.0
      %v5134 = vmax.f32 %v5094, 0.0
      %v5135 = vmax.f32 %v5095, 0.0
      %v5136 = vmax.f32 %v5096, 0.0
      %v5137 = vmax.f32 %v5097, 0.0
      %v5138 = vmax.f32 %v5098, 0.0
      %v5139 = vmax.f32 %v5099, 0.0
      %v5140 = vmax.f32 %v5100, 0.0
      %v5141 = vmax.f32 %v5101, 0.0
      %v5142 = vmax.f32 %v5102, 0.0
      %v5143 = vmax.f32 %v5103, 0.0
      %v5144 = vmax.f32 %v5104, 0.0
      %v5145 = vmax.f32 %v5105, 0.0
      %v5146 = vmax.f32 %v5106, 0.0
      %v5147 = vmax.f32 %v5107, 0.0
      %v5148 = vmax.f32 %v5108, 0.0
      %v5149 = vmax.f32 %v5109, 0.0
      %v5150 = vmax.f32 %v5110, 0.0
      %v5151 = vmax.f32 %v5111, 0.0
      %v5152 = vmax.f32 %v5112, 0.0
      %v5153 = vmax.f32 %v5113, 0.0
      %v5154 = vmax.f32 %v5114, 0.0
      %v5155 = vmax.f32 %v5115, 0.0
      %v5156 = vmax.f32 %v5116, 0.0
      %v5157 = vmax.f32 %v5117, 0.0
      %v5158 = vmax.f32 %v5118, 0.0
      %v5159 = vmax.f32 %v5119, 0.0
      %v5160 = vadd.f32 %v5120, %v442
      %v5161 = vadd.f32 %v5121, %v443
      %v5162 = vadd.f32 %v5122, %v444
      %v5163 = vadd.f32 %v5123, %v445
      %v5164 = vadd.f32 %v5124, %v446
      %v5165 = vadd.f32 %v5125, %v447
      %v5166 = vadd.f32 %v5126, %v448
      %v5167 = vadd.f32 %v5127, %v449
      %v5168 = vadd.f32 %v5128, %v450
      %v5169 = vadd.f32 %v5129, %v451
      %v5170 = vadd.f32 %v5130, %v452
      %v5171 = vadd.f32 %v5131, %v453
      %v5172 = vadd.f32 %v5132, %v454
      %v5173 = vadd.f32 %v5133, %v455
      %v5174 = vadd.f32 %v5134, %v456
      %v5175 = vadd.f32 %v5135, %v457
      %v5176 = vadd.f32 %v5136, %v458
      %v5177 = vadd.f32 %v5137, %v459
      %v5178 = vadd.f32 %v5138, %v460
      %v5179 = vadd.f32 %v5139, %v461
      %v5180 = vadd.f32 %v5140, %v462
      %v5181 = vadd.f32 %v5141, %v463
      %v5182 = vadd.f32 %v5142, %v464
      %v5183 = vadd.f32 %v5143, %v465
      %v5184 = vadd.f32 %v5144, %v466
      %v5185 = vadd.f32 %v5145, %v467
      %v5186 = vadd.f32 %v5146, %v468
      %v5187 = vadd.f32 %v5147, %v469
      %v5188 = vadd.f32 %v5148, %v470
      %v5189 = vadd.f32 %v5149, %v471
      %v5190 = vadd.f32 %v5150, %v472
      %v5191 = vadd.f32 %v5151, %v473
      %v5192 = vadd.f32 %v5152, %v474
      %v5193 = vadd.f32 %v5153, %v475
      %v5194 = vadd.f32 %v5154, %v476
      %v5195 = vadd.f32 %v5155, %v582
      %v5196 = vadd.f32 %v5156, %v583
      %v5197 = vadd.f32 %v5157, %v584
      %v5198 = vadd.f32 %v5158, %v585
      %v5199 = vadd.f32 %v5159, %v586
      %5200 = vst [vmem:[%s333] sm:$0xff] %v5160
      %5201 = vst [vmem:[%s333 + $0x8] sm:$0xff] %v5161
      %5202 = vst [vmem:[%s333 + $0x10] sm:$0xff] %v5162
      %5203 = vst [vmem:[%s333 + $0x18] sm:$0xff] %v5163
      %5204 = vst [vmem:[%s333 + $0x20] sm:$0xff] %v5164
      %5205 = vst [vmem:[%s333 + $0x28] sm:$0xff] %v5165
      %5206 = vst [vmem:[%s333 + $0x30] sm:$0xff] %v5166
      %5207 = vst [vmem:[%s333 + $0x38] sm:$0xff] %v5167
      %5208 = vst [vmem:[%s333 + $0x40] sm:$0xff] %v5168
      %5209 = vst [vmem:[%s333 + $0x48] sm:$0xff] %v5169
      %5210 = vst [vmem:[%s333 + $0x50] sm:$0xff] %v5170
      %5211 = vst [vmem:[%s333 + $0x58] sm:$0xff] %v5171
      %5212 = vst [vmem:[%s333 + $0x60] sm:$0xff] %v5172
      %5213 = vst [vmem:[%s333 + $0x68] sm:$0xff] %v5173
      %5214 = vst [vmem:[%s333 + $0x70] sm:$0xff] %v5174
      %5215 = vst [vmem:[%s333 + $0x78] sm:$0xff] %v5175
      %5216 = vst [vmem:[%s333 + $0x80] sm:$0xff] %v5176
      %5217 = vst [vmem:[%s333 + $0x88] sm:$0xff] %v5177
      %5218 = vst [vmem:[%s333 + $0x90] sm:$0xff] %v5178
      %5219 = vst [vmem:[%s333 + $0x98] sm:$0xff] %v5179
      %5220 = vst [vmem:[%s333 + $0xa0] sm:$0xff] %v5180
      %5221 = vst [vmem:[%s333 + $0xa8] sm:$0xff] %v5181
      %5222 = vst [vmem:[%s333 + $0xb0] sm:$0xff] %v5182
      %5223 = vst [vmem:[%s333 + $0xb8] sm:$0xff] %v5183
      %5224 = vst [vmem:[%s333 + $0xc0] sm:$0xff] %v5184
      %5225 = vst [vmem:[%s333 + $0xc8] sm:$0xff] %v5185
      %5226 = vst [vmem:[%s333 + $0xd0] sm:$0xff] %v5186
      %5227 = vst [vmem:[%s333 + $0xd8] sm:$0xff] %v5187
      %5228 = vst [vmem:[%s333 + $0xe0] sm:$0xff] %v5188
      %5229 = vst [vmem:[%s333 + $0xe8] sm:$0xff] %v5189
      %5230 = vst [vmem:[%s333 + $0xf0] sm:$0xff] %v5190
      %5231 = vst [vmem:[%s333 + $0xf8] sm:$0xff] %v5191
      %5232 = vst [vmem:[%s333 + $0x100] sm:$0xff] %v5192
      %5233 = vst [vmem:[%s333 + $0x108] sm:$0xff] %v5193
      %5234 = vst [vmem:[%s333 + $0x110] sm:$0xff] %v5194
      %5235 = vst [vmem:[%s333 + $0x118] sm:$0xff] %v5195
      %5236 = vst [vmem:[%s333 + $0x120] sm:$0xff] %v5196
      %5237 = vst [vmem:[%s333 + $0x128] sm:$0xff] %v5197
      %5238 = vst [vmem:[%s333 + $0x130] sm:$0xff] %v5198
      %5239 = vst [vmem:[%s333 + $0x138] sm:$0xff] %v5199
      %p5240 = scmp.lt.s32.totalorder %s19, 1
      %s5241 = scalar_select %p5240, %s19, 1
      %s5242 = smul.addr %s5241, 40
      %s5243 = smul.addr %s5242, 8
      %s5244 = scalar_lea.vmem %s8, %s5243
      // Predicated region
      $region53: #{dilated_net_forward.3} parent=51 // pred_check
        %p5245 = pneg %p220
      $region54: #{dilated_net_forward.3} parent=51 // pred_check_branch
        %5247 = sbr.rel (%p5245) target = $region56
      $region55: #{dilated_net_forward.3} parent=51 // pred_region
        _
      $region56: #{dilated_net_forward.3} parent=51 // pred_fallthru
        _
    $region52: #{dilated_net_forward.3} parent=5 // pred_fallthru
      _
    %p5248 = scmp.le.s32.totalorder 2, %s14
    // Predicated region
    $region57: #{dilated_net_forward.3} parent=5 // pred_check
      %p5249 = pneg %p5248
    $region58: #{dilated_net_forward.3} parent=5 // pred_check_branch
      %5251 = sbr.rel (%p5249) target = $region60
    $region59: #{dilated_net_forward.3} parent=5 // pred_region
      %s5252 = ssub.s32 %s14, 2
      // Predicated region
      $region61: #{dilated_net_forward.3} parent=59 // pred_check
        %p5253 = pneg %p226
      $region62: #{dilated_net_forward.3} parent=59 // pred_check_branch
        %5255 = sbr.rel (%p5253) target = $region64
      $region63: #{dilated_net_forward.3} parent=59 // pred_region
        %p5256 = scmp.lt.s32.totalorder %s20, 1
        %s5257 = scalar_select %p5256, %s20, 1
        %s5258 = smul.addr %s5257, 40
        %s5259 = smul.addr %s5258, 8
        %s5260 = scalar_lea.vmem %s8, %s5259
      $region64: #{dilated_net_forward.3} parent=59 // pred_fallthru
        _
    $region60: #{dilated_net_forward.3} parent=5 // pred_fallthru
      _
  $region6: #{dilated_net_forward.3} parent=0 // loop_footer
    %s18 = sadd.s32 1, %s14
  $region7: #{dilated_net_forward.3} parent=0 // loop_footer_branch
    %13 = sbr.rel target = $region3
  $region8: #{dilated_net_forward.3} parent=0 // loop_exit
    _

// kernel: dilated_net_forward.2
$region0: #{dilated_net_forward.2}
  #allocation0 [shape = 'u32[]', space=smem, size = 0x4, offset = 0x4, fixed_abs, tag = 'smem constant byte address 0x4 - core index']
  #allocation1 [shape = 'u32[144,128]{1,0:T(1,128)}', space=vmem, size = 0x12000, scoped, tag = 'internal scratch']
  #allocation2 [shape = 'f32[342,128]{1,0:T(8,128)}', space=vmem, size = 0x2b000, scoped, tag = 'scratch operand']
  %s0 = inlined_call_operand.vmem [shape: f32[2,342,128], index: 0, kind: input, shape index: {}]
  %s1 = inlined_call_operand.vmem [shape: f32[288,1], index: 1, kind: input, shape index: {}]
  %s2 = inlined_call_operand.vmem [shape: bf16[1152,128], index: 2, kind: input, shape index: {}]
  %s3 = inlined_call_operand.vmem [shape: f32[1,128], index: 3, kind: input, shape index: {}]
  %s4 = inlined_call_operand.vmem [shape: bf16[1152,128], index: 4, kind: input, shape index: {}]
  %s5 = inlined_call_operand.vmem [shape: f32[1,128], index: 5, kind: input, shape index: {}]
  %s6 = inlined_call_operand.vmem [shape: f32[2,1,128], index: 6, kind: input, shape index: {}]
  %s7 = inlined_call_operand.vmem [shape: f32[2,1,128], index: 7, kind: input, shape index: {}]
  %s8 = inlined_call_operand.vmem [shape: bf16[128,128], index: 8, kind: input, shape index: {}]
  %s9 = inlined_call_operand.vmem [shape: f32[1,128], index: 9, kind: input, shape index: {}]
  %s10 = inlined_call_operand.vmem [shape: f32[2,288,128], index: 10, kind: output, shape index: {}]
  %s11 = sld [smem:[#allocation0]]
  $region73: #{dilated_net_forward.2} parent=0
    _
  %s13 = ssub.s32 1, %s11
  %s14 = scalar_select 0, %s13, %s11
  loop: start=0, step=1, limit=4
  $region2: #{dilated_net_forward.2} parent=0 // loop_pre_header
    _
  $region3: #{dilated_net_forward.2} parent=0 // loop_header
    %s16 = sphi 0, %s20
    %p17 = scmp.ge.s32.totalorder %s16, 4
    %s26 = sphi 0, %s28
    %s29 = sphi 0, %s26
    %s30 = sphi 0, %s29
    %s46 = sphi 0, %s30
    %s50 = sphi 0, %s50
    %s52 = sphi 0, %s50
    %s53 = sphi 0, %s52
    %s67 = sphi 0, %s53
    %s71 = sphi 0, %s71
    %s73 = sphi 0, %s71
    %s74 = sphi 0, %s73
    %s88 = sphi 0, %s74
    %s92 = sphi 0, %s92
    %s94 = sphi 0, %s92
    %s95 = sphi 0, %s94
    %s109 = sphi 0, %s95
    %s113 = sphi 0, %s113
    %s115 = sphi 0, %s113
    %s116 = sphi 0, %s115
    %s130 = sphi 0, %s116
    %s134 = sphi 0, %s134
    %s136 = sphi 0, %s134
    %s137 = sphi 0, %s136
    %s151 = sphi 0, %s137
    %s157 = sphi 0, %s159
    %s160 = sphi 0, %s157
    %s161 = sphi 0, %s160
    %s177 = sphi 0, %s161
    %s183 = sphi 0, %s185
    %s186 = sphi 0, %s183
    %s187 = sphi 0, %s186
    %s203 = sphi 0, %s187
    %s207 = sphi 0, %s207
    %s209 = sphi 0, %s207
    %s210 = sphi 0, %s209
    %s224 = sphi 0, %s210
    %s228 = sphi 0, %s228
    %s230 = sphi 0, %s228
    %s231 = sphi 0, %s230
    %s245 = sphi 0, %s231
    %s251 = sphi 0, %s253
    %s254 = sphi 0, %s251
    %s255 = sphi 0, %s254
    %s271 = sphi 0, %s255
  $region4: #{dilated_net_forward.2} parent=0 // loop_header_branch
    %19 = sbr.rel (%p17) target = $region8
  $region5: #{dilated_net_forward.2} parent=0 // loop_body
    %s21 = ssub.s32 %s16, 1
    %s22 = ssub.s32 %s16, 2
    %s23 = sadd.s32 %s16, 1
    %s24 = ssub.s32 %s16, %s23
    %p25 = scmp.eq.s32.totalorder %s24, 0
    %s27 = sadd.s32 %s26, 1
    %s28 = scalar_select %p25, %s26, %s27
    %p31 = pneg %p25
    %p32 = scmp.eq.s32.totalorder %s16, 1
    %p33 = por %p31, %p32
    %p34 = scmp.ne.s32.totalorder %s26, %s29
    %p35 = scmp.eq.s32.totalorder %s16, 0
    %p36 = por %p34, %p35
    %p37 = scmp.ne.s32.totalorder %s26, %s29
    %p38 = scmp.eq.s32.totalorder %s21, 1
    %p39 = por %p37, %p38
    %p40 = scmp.ne.s32.totalorder %s29, %s30
    %p41 = scmp.eq.s32.totalorder %s21, 0
    %p42 = por %p40, %p41
    %p43 = scmp.ne.s32.totalorder %s29, %s30
    %p44 = scmp.eq.s32.totalorder %s22, 1
    %p45 = por %p43, %p44
    %p47 = scmp.ne.s32.totalorder %s30, %s46
    %p48 = scmp.eq.s32.totalorder %s22, 0
    %p49 = por %p47, %p48
    %s51 = sadd.s32 %s50, 1
    %p54 = scmp.eq.s32.totalorder %s16, 1
    %p55 = scmp.ne.s32.totalorder %s50, %s52
    %p56 = scmp.eq.s32.totalorder %s16, 0
    %p57 = por %p55, %p56
    %p58 = scmp.ne.s32.totalorder %s50, %s52
    %p59 = scmp.eq.s32.totalorder %s21, 1
    %p60 = por %p58, %p59
    %p61 = scmp.ne.s32.totalorder %s52, %s53
    %p62 = scmp.eq.s32.totalorder %s21, 0
    %p63 = por %p61, %p62
    %p64 = scmp.ne.s32.totalorder %s52, %s53
    %p65 = scmp.eq.s32.totalorder %s22, 1
    %p66 = por %p64, %p65
    %p68 = scmp.ne.s32.totalorder %s53, %s67
    %p69 = scmp.eq.s32.totalorder %s22, 0
    %p70 = por %p68, %p69
    %s72 = sadd.s32 %s71, 1
    %p75 = scmp.eq.s32.totalorder %s16, 1
    %p76 = scmp.ne.s32.totalorder %s71, %s73
    %p77 = scmp.eq.s32.totalorder %s16, 0
    %p78 = por %p76, %p77
    %p79 = scmp.ne.s32.totalorder %s71, %s73
    %p80 = scmp.eq.s32.totalorder %s21, 1
    %p81 = por %p79, %p80
    %p82 = scmp.ne.s32.totalorder %s73, %s74
    %p83 = scmp.eq.s32.totalorder %s21, 0
    %p84 = por %p82, %p83
    %p85 = scmp.ne.s32.totalorder %s73, %s74
    %p86 = scmp.eq.s32.totalorder %s22, 1
    %p87 = por %p85, %p86
    %p89 = scmp.ne.s32.totalorder %s74, %s88
    %p90 = scmp.eq.s32.totalorder %s22, 0
    %p91 = por %p89, %p90
    %s93 = sadd.s32 %s92, 1
    %p96 = scmp.eq.s32.totalorder %s16, 1
    %p97 = scmp.ne.s32.totalorder %s92, %s94
    %p98 = scmp.eq.s32.totalorder %s16, 0
    %p99 = por %p97, %p98
    %p100 = scmp.ne.s32.totalorder %s92, %s94
    %p101 = scmp.eq.s32.totalorder %s21, 1
    %p102 = por %p100, %p101
    %p103 = scmp.ne.s32.totalorder %s94, %s95
    %p104 = scmp.eq.s32.totalorder %s21, 0
    %p105 = por %p103, %p104
    %p106 = scmp.ne.s32.totalorder %s94, %s95
    %p107 = scmp.eq.s32.totalorder %s22, 1
    %p108 = por %p106, %p107
    %p110 = scmp.ne.s32.totalorder %s95, %s109
    %p111 = scmp.eq.s32.totalorder %s22, 0
    %p112 = por %p110, %p111
    %s114 = sadd.s32 %s113, 1
    %p117 = scmp.eq.s32.totalorder %s16, 1
    %p118 = scmp.ne.s32.totalorder %s113, %s115
    %p119 = scmp.eq.s32.totalorder %s16, 0
    %p120 = por %p118, %p119
    %p121 = scmp.ne.s32.totalorder %s113, %s115
    %p122 = scmp.eq.s32.totalorder %s21, 1
    %p123 = por %p121, %p122
    %p124 = scmp.ne.s32.totalorder %s115, %s116
    %p125 = scmp.eq.s32.totalorder %s21, 0
    %p126 = por %p124, %p125
    %p127 = scmp.ne.s32.totalorder %s115, %s116
    %p128 = scmp.eq.s32.totalorder %s22, 1
    %p129 = por %p127, %p128
    %p131 = scmp.ne.s32.totalorder %s116, %s130
    %p132 = scmp.eq.s32.totalorder %s22, 0
    %p133 = por %p131, %p132
    %s135 = sadd.s32 %s134, 1
    %p138 = scmp.eq.s32.totalorder %s16, 1
    %p139 = scmp.ne.s32.totalorder %s134, %s136
    %p140 = scmp.eq.s32.totalorder %s16, 0
    %p141 = por %p139, %p140
    %p142 = scmp.ne.s32.totalorder %s134, %s136
    %p143 = scmp.eq.s32.totalorder %s21, 1
    %p144 = por %p142, %p143
    %p145 = scmp.ne.s32.totalorder %s136, %s137
    %p146 = scmp.eq.s32.totalorder %s21, 0
    %p147 = por %p145, %p146
    %p148 = scmp.ne.s32.totalorder %s136, %s137
    %p149 = scmp.eq.s32.totalorder %s22, 1
    %p150 = por %p148, %p149
    %p152 = scmp.ne.s32.totalorder %s137, %s151
    %p153 = scmp.eq.s32.totalorder %s22, 0
    %p154 = por %p152, %p153
    %s155 = ssub.s32 %s16, %s23
    %p156 = scmp.eq.s32.totalorder %s155, 0
    %s158 = sadd.s32 %s157, 1
    %s159 = scalar_select %p156, %s157, %s158
    %p162 = pneg %p156
    %p163 = scmp.eq.s32.totalorder %s16, 1
    %p164 = por %p162, %p163
    %p165 = scmp.ne.s32.totalorder %s157, %s160
    %p166 = scmp.eq.s32.totalorder %s16, 0
    %p167 = por %p165, %p166
    %p168 = scmp.ne.s32.totalorder %s157, %s160
    %p169 = scmp.eq.s32.totalorder %s21, 1
    %p170 = por %p168, %p169
    %p171 = scmp.ne.s32.totalorder %s160, %s161
    %p172 = scmp.eq.s32.totalorder %s21, 0
    %p173 = por %p171, %p172
    %p174 = scmp.ne.s32.totalorder %s160, %s161
    %p175 = scmp.eq.s32.totalorder %s22, 1
    %p176 = por %p174, %p175
    %p178 = scmp.ne.s32.totalorder %s161, %s177
    %p179 = scmp.eq.s32.totalorder %s22, 0
    %p180 = por %p178, %p179
    %s181 = ssub.s32 %s16, %s23
    %p182 = scmp.eq.s32.totalorder %s181, 0
    %s184 = sadd.s32 %s183, 1
    %s185 = scalar_select %p182, %s183, %s184
    %p188 = pneg %p182
    %p189 = scmp.eq.s32.totalorder %s16, 1
    %p190 = por %p188, %p189
    %p191 = scmp.ne.s32.totalorder %s183, %s186
    %p192 = scmp.eq.s32.totalorder %s16, 0
    %p193 = por %p191, %p192
    %p194 = scmp.ne.s32.totalorder %s183, %s186
    %p195 = scmp.eq.s32.totalorder %s21, 1
    %p196 = por %p194, %p195
    %p197 = scmp.ne.s32.totalorder %s186, %s187
    %p198 = scmp.eq.s32.totalorder %s21, 0
    %p199 = por %p197, %p198
    %p200 = scmp.ne.s32.totalorder %s186, %s187
    %p201 = scmp.eq.s32.totalorder %s22, 1
    %p202 = por %p200, %p201
    %p204 = scmp.ne.s32.totalorder %s187, %s203
    %p205 = scmp.eq.s32.totalorder %s22, 0
    %p206 = por %p204, %p205
    %s208 = sadd.s32 %s207, 1
    %p211 = scmp.eq.s32.totalorder %s16, 1
    %p212 = scmp.ne.s32.totalorder %s207, %s209
    %p213 = scmp.eq.s32.totalorder %s16, 0
    %p214 = por %p212, %p213
    %p215 = scmp.ne.s32.totalorder %s207, %s209
    %p216 = scmp.eq.s32.totalorder %s21, 1
    %p217 = por %p215, %p216
    %p218 = scmp.ne.s32.totalorder %s209, %s210
    %p219 = scmp.eq.s32.totalorder %s21, 0
    %p220 = por %p218, %p219
    %p221 = scmp.ne.s32.totalorder %s209, %s210
    %p222 = scmp.eq.s32.totalorder %s22, 1
    %p223 = por %p221, %p222
    %p225 = scmp.ne.s32.totalorder %s210, %s224
    %p226 = scmp.eq.s32.totalorder %s22, 0
    %p227 = por %p225, %p226
    %s229 = sadd.s32 %s228, 1
    %p232 = scmp.eq.s32.totalorder %s16, 1
    %p233 = scmp.ne.s32.totalorder %s228, %s230
    %p234 = scmp.eq.s32.totalorder %s16, 0
    %p235 = por %p233, %p234
    %p236 = scmp.ne.s32.totalorder %s228, %s230
    %p237 = scmp.eq.s32.totalorder %s21, 1
    %p238 = por %p236, %p237
    %p239 = scmp.ne.s32.totalorder %s230, %s231
    %p240 = scmp.eq.s32.totalorder %s21, 0
    %p241 = por %p239, %p240
    %p242 = scmp.ne.s32.totalorder %s230, %s231
    %p243 = scmp.eq.s32.totalorder %s22, 1
    %p244 = por %p242, %p243
    %p246 = scmp.ne.s32.totalorder %s231, %s245
    %p247 = scmp.eq.s32.totalorder %s22, 0
    %p248 = por %p246, %p247
    %s249 = ssub.s32 %s16, %s23
    %p250 = scmp.eq.s32.totalorder %s249, 0
    %s252 = sadd.s32 %s251, 1
    %s253 = scalar_select %p250, %s251, %s252
    %p256 = pneg %p250
    %p257 = scmp.eq.s32.totalorder %s16, 1
    %p258 = por %p256, %p257
    %p259 = scmp.ne.s32.totalorder %s251, %s254
    %p260 = scmp.eq.s32.totalorder %s16, 0
    %p261 = por %p259, %p260
    %p262 = scmp.ne.s32.totalorder %s251, %s254
    %p263 = scmp.eq.s32.totalorder %s21, 1
    %p264 = por %p262, %p263
    %p265 = scmp.ne.s32.totalorder %s254, %s255
    %p266 = scmp.eq.s32.totalorder %s21, 0
    %p267 = por %p265, %p266
    %p268 = scmp.ne.s32.totalorder %s254, %s255
    %p269 = scmp.eq.s32.totalorder %s22, 1
    %p270 = por %p268, %p269
    %p272 = scmp.ne.s32.totalorder %s255, %s271
    %p273 = scmp.eq.s32.totalorder %s22, 0
    %p274 = por %p272, %p273
    %p275 = scmp.le.s32.totalorder 1, %s16
    %p276 = scmp.lt.s32.totalorder %s16, 3
    %p277 = pnand %p275, %p276
    %p278 = pneg %p277
    // Predicated region
    $region9: #{dilated_net_forward.2} parent=5 // pred_check
      _
    $region10: #{dilated_net_forward.2} parent=5 // pred_check_branch
      %280 = sbr.rel (%p277) target = $region12
    $region11: #{dilated_net_forward.2} parent=5 // pred_region
      %s281 = ssub.s32 %s16, 1
      // Predicated region
      $region13: #{dilated_net_forward.2} parent=11 // pred_check
        %p282 = pneg %p63
      $region14: #{dilated_net_forward.2} parent=11 // pred_check_branch
        %284 = sbr.rel (%p282) target = $region16
      $region15: #{dilated_net_forward.2} parent=11 // pred_region
        _
      $region16: #{dilated_net_forward.2} parent=11 // pred_fallthru
        _
      // Predicated region
      $region17: #{dilated_net_forward.2} parent=11 // pred_check
        %p285 = pneg %p84
      $region18: #{dilated_net_forward.2} parent=11 // pred_check_branch
        %287 = sbr.rel (%p285) target = $region20
      $region19: #{dilated_net_forward.2} parent=11 // pred_region
        _
      $region20: #{dilated_net_forward.2} parent=11 // pred_fallthru
        _
      // Predicated region
      $region21: #{dilated_net_forward.2} parent=11 // pred_check
        %p288 = pneg %p105
      $region22: #{dilated_net_forward.2} parent=11 // pred_check_branch
        %290 = sbr.rel (%p288) target = $region24
      $region23: #{dilated_net_forward.2} parent=11 // pred_region
        _
      $region24: #{dilated_net_forward.2} parent=11 // pred_fallthru
        _
      // Predicated region
      $region25: #{dilated_net_forward.2} parent=11 // pred_check
        %p291 = pneg %p126
      $region26: #{dilated_net_forward.2} parent=11 // pred_check_branch
        %293 = sbr.rel (%p291) target = $region28
      $region27: #{dilated_net_forward.2} parent=11 // pred_region
        _
      $region28: #{dilated_net_forward.2} parent=11 // pred_fallthru
        _
      // Predicated region
      $region29: #{dilated_net_forward.2} parent=11 // pred_check
        %p294 = pneg %p147
      $region30: #{dilated_net_forward.2} parent=11 // pred_check_branch
        %296 = sbr.rel (%p294) target = $region32
      $region31: #{dilated_net_forward.2} parent=11 // pred_region
        _
      $region32: #{dilated_net_forward.2} parent=11 // pred_fallthru
        _
      // Predicated region
      $region33: #{dilated_net_forward.2} parent=11 // pred_check
        %p297 = pneg %p220
      $region34: #{dilated_net_forward.2} parent=11 // pred_check_branch
        %299 = sbr.rel (%p297) target = $region36
      $region35: #{dilated_net_forward.2} parent=11 // pred_region
        _
      $region36: #{dilated_net_forward.2} parent=11 // pred_fallthru
        _
      // Predicated region
      $region37: #{dilated_net_forward.2} parent=11 // pred_check
        %p300 = pneg %p241
      $region38: #{dilated_net_forward.2} parent=11 // pred_check_branch
        %302 = sbr.rel (%p300) target = $region40
      $region39: #{dilated_net_forward.2} parent=11 // pred_region
        _
      $region40: #{dilated_net_forward.2} parent=11 // pred_fallthru
        _
    $region12: #{dilated_net_forward.2} parent=5 // pred_fallthru
      _
    %p303 = scmp.lt.s32.totalorder %s16, 2
    // Predicated region
    $region41: #{dilated_net_forward.2} parent=5 // pred_check
      %p304 = pneg %p303
    $region42: #{dilated_net_forward.2} parent=5 // pred_check_branch
      %306 = sbr.rel (%p304) target = $region44
    $region43: #{dilated_net_forward.2} parent=5 // pred_region
      // Predicated region
      $region45: #{dilated_net_forward.2} parent=43 // pred_check
        %p307 = pneg %p36
      $region46: #{dilated_net_forward.2} parent=43 // pred_check_branch
        %309 = sbr.rel (%p307) target = $region48
      $region47: #{dilated_net_forward.2} parent=43 // pred_region
        %p310 = scmp.lt.s32.totalorder %s16, 1
        %s311 = scalar_select %p310, %s16, 1
        %s312 = smul.addr %s311, 43
        %s313 = smul.addr %s312, 8
        %s314 = scalar_lea.vmem %s0, %s313
      $region48: #{dilated_net_forward.2} parent=43 // pred_fallthru
        _
      // Predicated region
      $region49: #{dilated_net_forward.2} parent=43 // pred_check
        %p315 = pneg %p167
      $region50: #{dilated_net_forward.2} parent=43 // pred_check_branch
        %317 = sbr.rel (%p315) target = $region52
      $region51: #{dilated_net_forward.2} parent=43 // pred_region
        %p318 = scmp.lt.s32.totalorder %s16, 1
        %s319 = scalar_select %p318, %s16, 1
        %s320 = scalar_lea.vmem %s6, %s319
      $region52: #{dilated_net_forward.2} parent=43 // pred_fallthru
        _
      // Predicated region
      $region53: #{dilated_net_forward.2} parent=43 // pred_check
        %p321 = pneg %p193
      $region54: #{dilated_net_forward.2} parent=43 // pred_check_branch
        %323 = sbr.rel (%p321) target = $region56
      $region55: #{dilated_net_forward.2} parent=43 // pred_region
        %p324 = scmp.lt.s32.totalorder %s16, 1
        %s325 = scalar_select %p324, %s16, 1
        %s326 = scalar_lea.vmem %s7, %s325
      $region56: #{dilated_net_forward.2} parent=43 // pred_fallthru
        _
    $region44: #{dilated_net_forward.2} parent=5 // pred_fallthru
      _
    %p327 = scmp.le.s32.totalorder 1, %s16
    %p328 = scmp.lt.s32.totalorder %s16, 3
    %p329 = pnand %p327, %p328
    %p330 = pneg %p329
    // Predicated region
    $region57: #{dilated_net_forward.2} parent=5 // pred_check
      _
    $region58: #{dilated_net_forward.2} parent=5 // pred_check_branch
      %332 = sbr.rel (%p329) target = $region60
    $region59: #{dilated_net_forward.2} parent=5 // pred_region
      %s333 = ssub.s32 %s16, 1
      %p334 = scmp.lt.s32.totalorder %s21, 1
      %s335 = scalar_select %p334, %s21, 1
      %s336 = smul.addr %s335, 43
      %s337 = smul.addr %s336, 8
      %s338 = scalar_lea.vmem %s0, %s337
      %p339 = pneg %p42
      %p340 = pneg %p39
      %p341 = pneg %p63
      %p342 = pneg %p60
      %p343 = pneg %p84
      %p344 = pneg %p81
      %p345 = pneg %p105
      %p346 = pneg %p102
      %p347 = pneg %p126
      %p348 = pneg %p123
      %p349 = pneg %p147
      %p350 = pneg %p144
      %p351 = scmp.lt.s32.totalorder %s21, 1
      %s352 = scalar_select %p351, %s21, 1
      %s353 = scalar_lea.vmem %s6, %s352
      %p354 = pneg %p173
      %p355 = pneg %p170
      %p356 = scmp.lt.s32.totalorder %s21, 1
      %s357 = scalar_select %p356, %s21, 1
      %s358 = scalar_lea.vmem %s7, %s357
      %p359 = pneg %p199
      %p360 = pneg %p196
      %p361 = pneg %p220
      %p362 = pneg %p217
      %p363 = pneg %p241
      %p364 = pneg %p238
      %p365 = pneg %p267
      %p366 = pneg %p264
      %p367 = scmp.lt.s32.totalorder %s21, 1
      %s368 = scalar_select %p367, %s21, 1
      %s369 = smul.addr %s368, 36
      %s370 = smul.addr %s369, 8
      %s371 = scalar_lea.vmem %s10, %s370
      %p372 = scmp.lt.s32.totalorder %s21, 1
      %s373 = scalar_select %p372, %s21, 1
      %s374 = smul.addr %s373, 43
      %s375 = smul.addr %s374, 8
      %s376 = scalar_lea.vmem %s0, %s375
      %p377 = scmp.lt.s32.totalorder %s21, 1
      %s378 = scalar_select %p377, %s21, 1
      %s379 = scalar_lea.vmem %s6, %s378
      %p380 = scmp.lt.s32.totalorder %s21, 1
      %s381 = scalar_select %p380, %s21, 1
      %s382 = scalar_lea.vmem %s7, %s381
      %p383 = scmp.lt.s32.totalorder %s21, 1
      %s384 = scalar_select %p383, %s21, 1
      %s385 = smul.addr %s384, 36
      %s386 = smul.addr %s385, 8
      %s387 = scalar_lea.vmem %s10, %s386
      %v389 = vld [vmem:[%s1] sm:$0xff]
      %v390 = vld [vmem:[%s1 + $0x8] sm:$0xff]
      %v391 = vld [vmem:[%s1 + $0x10] sm:$0xff]
      %v392 = vld [vmem:[%s1 + $0x18] sm:$0xff]
      %v393 = vld [vmem:[%s1 + $0x20] sm:$0xff]
      %v394 = vld [vmem:[%s1 + $0x28] sm:$0xff]
      %v395 = vld [vmem:[%s1 + $0x30] sm:$0xff]
      %v396 = vld [vmem:[%s1 + $0x38] sm:$0xff]
      %v397 = vld [vmem:[%s1 + $0x40] sm:$0xff]
      %v398 = vld [vmem:[%s1 + $0x48] sm:$0xff]
      %v399 = vld [vmem:[%s1 + $0x50] sm:$0xff]
      %v400 = vld [vmem:[%s1 + $0x58] sm:$0xff]
      %v401 = vld [vmem:[%s1 + $0x60] sm:$0xff]
      %v402 = vld [vmem:[%s1 + $0x68] sm:$0xff]
      %v403 = vld [vmem:[%s1 + $0x70] sm:$0xff]
      %v404 = vld [vmem:[%s1 + $0x78] sm:$0xff]
      %v405 = vld [vmem:[%s1 + $0x80] sm:$0xff]
      %v406 = vld [vmem:[%s1 + $0x88] sm:$0xff]
      %v407 = vld [vmem:[%s1 + $0x90] sm:$0xff]
      %v408 = vld [vmem:[%s1 + $0x98] sm:$0xff]
      %v409 = vld [vmem:[%s1 + $0xa0] sm:$0xff]
      %v410 = vld [vmem:[%s1 + $0xa8] sm:$0xff]
      %v411 = vld [vmem:[%s1 + $0xb0] sm:$0xff]
      %v412 = vld [vmem:[%s1 + $0xb8] sm:$0xff]
      %v413 = vld [vmem:[%s1 + $0xc0] sm:$0xff]
      %v414 = vld [vmem:[%s1 + $0xc8] sm:$0xff]
      %v415 = vld [vmem:[%s1 + $0xd0] sm:$0xff]
      %v416 = vld [vmem:[%s1 + $0xd8] sm:$0xff]
      %v417 = vld [vmem:[%s1 + $0xe0] sm:$0xff]
      %v418 = vld [vmem:[%s1 + $0xe8] sm:$0xff]
      %v419 = vld [vmem:[%s1 + $0xf0] sm:$0xff]
      %v420 = vld [vmem:[%s1 + $0xf8] sm:$0xff]
      %v421 = vld [vmem:[%s1 + $0x100] sm:$0xff]
      %v422 = vld [vmem:[%s1 + $0x108] sm:$0xff]
      %v423 = vld [vmem:[%s1 + $0x110] sm:$0xff]
      %v424 = vld [vmem:[%s1 + $0x118] sm:$0xff]
      %v425 = vld [vmem:[%s379] sm:$0x1]
      %v426 = vld [vmem:[%s382] sm:$0x1]
      %v427 = vld [vmem:[%s376] sm:$0xff]
      %v428 = vld [vmem:[%s376 + $0x8] sm:$0xff]
      %v429 = vld [vmem:[%s376 + $0x10] sm:$0xff]
      %v430 = vld [vmem:[%s376 + $0x18] sm:$0xff]
      %v431 = vld [vmem:[%s376 + $0x20] sm:$0xff]
      %v432 = vld [vmem:[%s376 + $0x28] sm:$0xff]
      %v433 = vld [vmem:[%s376 + $0x30] sm:$0xff]
      %v434 = vld [vmem:[%s376 + $0x38] sm:$0xff]
      %v435 = vld [vmem:[%s376 + $0x40] sm:$0xff]
      %v436 = vld [vmem:[%s376 + $0x48] sm:$0xff]
      %v437 = vld [vmem:[%s376 + $0x50] sm:$0xff]
      %v438 = vld [vmem:[%s376 + $0x58] sm:$0xff]
      %v439 = vld [vmem:[%s376 + $0x60] sm:$0xff]
      %v440 = vld [vmem:[%s376 + $0x68] sm:$0xff]
      %v441 = vld [vmem:[%s376 + $0x70] sm:$0xff]
      %v442 = vld [vmem:[%s376 + $0x78] sm:$0xff]
      %v443 = vld [vmem:[%s376 + $0x80] sm:$0xff]
      %v444 = vld [vmem:[%s376 + $0x88] sm:$0xff]
      %v445 = vld [vmem:[%s376 + $0x90] sm:$0xff]
      %v446 = vld [vmem:[%s376 + $0x98] sm:$0xff]
      %v447 = vld [vmem:[%s376 + $0xa0] sm:$0xff]
      %v448 = vld [vmem:[%s376 + $0xa8] sm:$0xff]
      %v449 = vld [vmem:[%s376 + $0xb0] sm:$0xff]
      %v450 = vld [vmem:[%s376 + $0xb8] sm:$0xff]
      %v451 = vld [vmem:[%s376 + $0xc0] sm:$0xff]
      %v452 = vld [vmem:[%s376 + $0xc8] sm:$0xff]
      %v453 = vld [vmem:[%s376 + $0xd0] sm:$0xff]
      %v454 = vld [vmem:[%s376 + $0xd8] sm:$0xff]
      %v455 = vld [vmem:[%s376 + $0xe0] sm:$0xff]
      %v456 = vld [vmem:[%s376 + $0xe8] sm:$0xff]
      %v457 = vld [vmem:[%s376 + $0xf0] sm:$0xff]
      %v458 = vld [vmem:[%s376 + $0xf8] sm:$0xff]
      %v459 = vld [vmem:[%s376 + $0x100] sm:$0xff]
      %v460 = vld [vmem:[%s376 + $0x108] sm:$0xff]
      %v461 = vld [vmem:[%s376 + $0x110] sm:$0xff]
      %v462 = vld [vmem:[%s376 + $0x118] sm:$0xff]
      %v463 = vpack.c.bf16 %v428, %v427
      %v464 = vpack.c.bf16 %v430, %v429
      %v465 = vpack.c.bf16 %v432, %v431
      %v466 = vpack.c.bf16 %v434, %v433
      %v467 = vpack.c.bf16 %v436, %v435
      %v468 = vpack.c.bf16 %v438, %v437
      %v469 = vpack.c.bf16 %v440, %v439
      %v470 = vpack.c.bf16 %v442, %v441
      %v471 = vpack.c.bf16 %v444, %v443
      %v472 = vpack.c.bf16 %v446, %v445
      %v473 = vpack.c.bf16 %v448, %v447
      %v474 = vpack.c.bf16 %v450, %v449
      %v475 = vpack.c.bf16 %v452, %v451
      %v476 = vpack.c.bf16 %v454, %v453
      %v477 = vpack.c.bf16 %v456, %v455
      %v478 = vpack.c.bf16 %v458, %v457
      %v479 = vpack.c.bf16 %v460, %v459
      %v480 = vpack.c.bf16 %v462, %v461
      %v481 = vld [vmem:[%s376 + $0x1] sm:$0xff]
      %v482 = vld [vmem:[%s376 + $0x9] sm:$0xff]
      %v483 = vld [vmem:[%s376 + $0x11] sm:$0xff]
      %v484 = vld [vmem:[%s376 + $0x19] sm:$0xff]
      %v485 = vld [vmem:[%s376 + $0x21] sm:$0xff]
      %v486 = vld [vmem:[%s376 + $0x29] sm:$0xff]
      %v487 = vld [vmem:[%s376 + $0x31] sm:$0xff]
      %v488 = vld [vmem:[%s376 + $0x39] sm:$0xff]
      %v489 = vld [vmem:[%s376 + $0x41] sm:$0xff]
      %v490 = vld [vmem:[%s376 + $0x49] sm:$0xff]
      %v491 = vld [vmem:[%s376 + $0x51] sm:$0xff]
      %v492 = vld [vmem:[%s376 + $0x59] sm:$0xff]
      %v493 = vld [vmem:[%s376 + $0x61] sm:$0xff]
      %v494 = vld [vmem:[%s376 + $0x69] sm:$0xff]
      %v495 = vld [vmem:[%s376 + $0x71] sm:$0xff]
      %v496 = vld [vmem:[%s376 + $0x79] sm:$0xff]
      %v497 = vld [vmem:[%s376 + $0x81] sm:$0xff]
      %v498 = vld [vmem:[%s376 + $0x89] sm:$0xff]
      %v499 = vld [vmem:[%s376 + $0x91] sm:$0xff]
      %v500 = vld [vmem:[%s376 + $0x99] sm:$0xff]
      %v501 = vld [vmem:[%s376 + $0xa1] sm:$0xff]
      %v502 = vld [vmem:[%s376 + $0xa9] sm:$0xff]
      %v503 = vld [vmem:[%s376 + $0xb1] sm:$0xff]
      %v504 = vld [vmem:[%s376 + $0xb9] sm:$0xff]
      %v505 = vld [vmem:[%s376 + $0xc1] sm:$0xff]
      %v506 = vld [vmem:[%s376 + $0xc9] sm:$0xff]
      %v507 = vld [vmem:[%s376 + $0xd1] sm:$0xff]
      %v508 = vld [vmem:[%s376 + $0xd9] sm:$0xff]
      %v509 = vld [vmem:[%s376 + $0xe1] sm:$0xff]
      %v510 = vld [vmem:[%s376 + $0xe9] sm:$0xff]
      %v511 = vld [vmem:[%s376 + $0xf1] sm:$0xff]
      %v512 = vld [vmem:[%s376 + $0xf9] sm:$0xff]
      %v513 = vld [vmem:[%s376 + $0x101] sm:$0xff]
      %v514 = vld [vmem:[%s376 + $0x109] sm:$0xff]
      %v515 = vld [vmem:[%s376 + $0x111] sm:$0xff]
      %v516 = vld [vmem:[%s376 + $0x119] sm:$0xff]
      %v517 = vpack.c.bf16 %v482, %v481
      %v518 = vpack.c.bf16 %v484, %v483
      %v519 = vpack.c.bf16 %v486, %v485
      %v520 = vpack.c.bf16 %v488, %v487
      %v521 = vpack.c.bf16 %v490, %v489
      %v522 = vpack.c.bf16 %v492, %v491
      %v523 = vpack.c.bf16 %v494, %v493
      %v524 = vpack.c.bf16 %v496, %v495
      %v525 = vpack.c.bf16 %v498, %v497
      %v526 = vpack.c.bf16 %v500, %v499
      %v527 = vpack.c.bf16 %v502, %v501
      %v528 = vpack.c.bf16 %v504, %v503
      %v529 = vpack.c.bf16 %v506, %v505
      %v530 = vpack.c.bf16 %v508, %v507
      %v531 = vpack.c.bf16 %v510, %v509
      %v532 = vpack.c.bf16 %v512, %v511
      %v533 = vpack.c.bf16 %v514, %v513
      %v534 = vpack.c.bf16 %v516, %v515
      %v535 = vld [vmem:[%s376 + $0x2] sm:$0xff]
      %v536 = vld [vmem:[%s376 + $0xa] sm:$0xff]
      %v537 = vld [vmem:[%s376 + $0x12] sm:$0xff]
      %v538 = vld [vmem:[%s376 + $0x1a] sm:$0xff]
      %v539 = vld [vmem:[%s376 + $0x22] sm:$0xff]
      %v540 = vld [vmem:[%s376 + $0x2a] sm:$0xff]
      %v541 = vld [vmem:[%s376 + $0x32] sm:$0xff]
      %v542 = vld [vmem:[%s376 + $0x3a] sm:$0xff]
      %v543 = vld [vmem:[%s376 + $0x42] sm:$0xff]
      %v544 = vld [vmem:[%s376 + $0x4a] sm:$0xff]
      %v545 = vld [vmem:[%s376 + $0x52] sm:$0xff]
      %v546 = vld [vmem:[%s376 + $0x5a] sm:$0xff]
      %v547 = vld [vmem:[%s376 + $0x62] sm:$0xff]
      %v548 = vld [vmem:[%s376 + $0x6a] sm:$0xff]
      %v549 = vld [vmem:[%s376 + $0x72] sm:$0xff]
      %v550 = vld [vmem:[%s376 + $0x7a] sm:$0xff]
      %v551 = vld [vmem:[%s376 + $0x82] sm:$0xff]
      %v552 = vld [vmem:[%s376 + $0x8a] sm:$0xff]
      %v553 = vld [vmem:[%s376 + $0x92] sm:$0xff]
      %v554 = vld [vmem:[%s376 + $0x9a] sm:$0xff]
      %v555 = vld [vmem:[%s376 + $0xa2] sm:$0xff]
      %v556 = vld [vmem:[%s376 + $0xaa] sm:$0xff]
      %v557 = vld [vmem:[%s376 + $0xb2] sm:$0xff]
      %v558 = vld [vmem:[%s376 + $0xba] sm:$0xff]
      %v559 = vld [vmem:[%s376 + $0xc2] sm:$0xff]
      %v560 = vld [vmem:[%s376 + $0xca] sm:$0xff]
      %v561 = vld [vmem:[%s376 + $0xd2] sm:$0xff]
      %v562 = vld [vmem:[%s376 + $0xda] sm:$0xff]
      %v563 = vld [vmem:[%s376 + $0xe2] sm:$0xff]
      %v564 = vld [vmem:[%s376 + $0xea] sm:$0xff]
      %v565 = vld [vmem:[%s376 + $0xf2] sm:$0xff]
      %v566 = vld [vmem:[%s376 + $0xfa] sm:$0xff]
      %v567 = vld [vmem:[%s376 + $0x102] sm:$0xff]
      %v568 = vld [vmem:[%s376 + $0x10a] sm:$0xff]
      %v569 = vld [vmem:[%s376 + $0x112] sm:$0xff]
      %v570 = vld [vmem:[%s376 + $0x11a] sm:$0xff]
      %v571 = vpack.c.bf16 %v536, %v535
      %v572 = vpack.c.bf16 %v538, %v537
      %v573 = vpack.c.bf16 %v540, %v539
      %v574 = vpack.c.bf16 %v542, %v541
      %v575 = vpack.c.bf16 %v544, %v543
      %v576 = vpack.c.bf16 %v546, %v545
      %v577 = vpack.c.bf16 %v548, %v547
      %v578 = vpack.c.bf16 %v550, %v549
      %v579 = vpack.c.bf16 %v552, %v551
      %v580 = vpack.c.bf16 %v554, %v553
      %v581 = vpack.c.bf16 %v556, %v555
      %v582 = vpack.c.bf16 %v558, %v557
      %v583 = vpack.c.bf16 %v560, %v559
      %v584 = vpack.c.bf16 %v562, %v561
      %v585 = vpack.c.bf16 %v564, %v563
      %v586 = vpack.c.bf16 %v566, %v565
      %v587 = vpack.c.bf16 %v568, %v567
      %v588 = vpack.c.bf16 %v570, %v569
      %v589 = vld [vmem:[%s376 + $0x122] sm:$0xff]
      %v590 = vld [vmem:[%s376 + $0x12a] sm:$0xff]
      %v591 = vpack.c.bf16 %v590, %v589
      %v592 = vld [vmem:[%s376 + $0x13] sm:$0xff]
      %v593 = vld [vmem:[%s376 + $0x1b] sm:$0xff]
      %v594 = vld [vmem:[%s376 + $0x23] sm:$0xff]
      %v595 = vld [vmem:[%s376 + $0x2b] sm:$0xff]
      %v596 = vld [vmem:[%s376 + $0x33] sm:$0xff]
      %v597 = vld [vmem:[%s376 + $0x3b] sm:$0xff]
      %v598 = vld [vmem:[%s376 + $0x43] sm:$0xff]
      %v599 = vld [vmem:[%s376 + $0x4b] sm:$0xff]
      %v600 = vld [vmem:[%s376 + $0x53] sm:$0xff]
      %v601 = vld [vmem:[%s376 + $0x5b] sm:$0xff]
      %v602 = vld [vmem:[%s376 + $0x63] sm:$0xff]
      %v603 = vld [vmem:[%s376 + $0x6b] sm:$0xff]
      %v604 = vld [vmem:[%s376 + $0x73] sm:$0xff]
      %v605 = vld [vmem:[%s376 + $0x7b] sm:$0xff]
      %v606 = vld [vmem:[%s376 + $0x83] sm:$0xff]
      %v607 = vld [vmem:[%s376 + $0x8b] sm:$0xff]
      %v608 = vld [vmem:[%s376 + $0x93] sm:$0xff]
      %v609 = vld [vmem:[%s376 + $0x9b] sm:$0xff]
      %v610 = vld [vmem:[%s376 + $0xa3] sm:$0xff]
      %v611 = vld [vmem:[%s376 + $0xab] sm:$0xff]
      %v612 = vld [vmem:[%s376 + $0xb3] sm:$0xff]
      %v613 = vld [vmem:[%s376 + $0xbb] sm:$0xff]
      %v614 = vld [vmem:[%s376 + $0xc3] sm:$0xff]
      %v615 = vld [vmem:[%s376 + $0xcb] sm:$0xff]
      %v616 = vld [vmem:[%s376 + $0xd3] sm:$0xff]
      %v617 = vld [vmem:[%s376 + $0xdb] sm:$0xff]
      %v618 = vld [vmem:[%s376 + $0xe3] sm:$0xff]
      %v619 = vld [vmem:[%s376 + $0xeb] sm:$0xff]
      %v620 = vld [vmem:[%s376 + $0xf3] sm:$0xff]
      %v621 = vld [vmem:[%s376 + $0xfb] sm:$0xff]
      %v622 = vld [vmem:[%s376 + $0x103] sm:$0xff]
      %v623 = vld [vmem:[%s376 + $0x10b] sm:$0xff]
      %v624 = vld [vmem:[%s376 + $0x113] sm:$0xff]
      %v625 = vld [vmem:[%s376 + $0x11b] sm:$0xff]
      %v626 = vld [vmem:[%s376 + $0x123] sm:$0xff]
      %v627 = vld [vmem:[%s376 + $0x12b] sm:$0xff]
      %v628 = vpack.c.bf16 %v593, %v592
      %v629 = vpack.c.bf16 %v595, %v594
      %v630 = vpack.c.bf16 %v597, %v596
      %v631 = vpack.c.bf16 %v599, %v598
      %v632 = vpack.c.bf16 %v601, %v600
      %v633 = vpack.c.bf16 %v603, %v602
      %v634 = vpack.c.bf16 %v605, %v604
      %v635 = vpack.c.bf16 %v607, %v606
      %v636 = vpack.c.bf16 %v609, %v608
      %v637 = vpack.c.bf16 %v611, %v610
      %v638 = vpack.c.bf16 %v613, %v612
      %v639 = vpack.c.bf16 %v615, %v614
      %v640 = vpack.c.bf16 %v617, %v616
      %v641 = vpack.c.bf16 %v619, %v618
      %v642 = vpack.c.bf16 %v621, %v620
      %v643 = vpack.c.bf16 %v623, %v622
      %v644 = vpack.c.bf16 %v625, %v624
      %v645 = vpack.c.bf16 %v627, %v626
      %v646 = vld [vmem:[%s376 + $0x14] sm:$0xff]
      %v647 = vld [vmem:[%s376 + $0x1c] sm:$0xff]
      %v648 = vld [vmem:[%s376 + $0x24] sm:$0xff]
      %v649 = vld [vmem:[%s376 + $0x2c] sm:$0xff]
      %v650 = vld [vmem:[%s376 + $0x34] sm:$0xff]
      %v651 = vld [vmem:[%s376 + $0x3c] sm:$0xff]
      %v652 = vld [vmem:[%s376 + $0x44] sm:$0xff]
      %v653 = vld [vmem:[%s376 + $0x4c] sm:$0xff]
      %v654 = vld [vmem:[%s376 + $0x54] sm:$0xff]
      %v655 = vld [vmem:[%s376 + $0x5c] sm:$0xff]
      %v656 = vld [vmem:[%s376 + $0x64] sm:$0xff]
      %v657 = vld [vmem:[%s376 + $0x6c] sm:$0xff]
      %v658 = vld [vmem:[%s376 + $0x74] sm:$0xff]
      %v659 = vld [vmem:[%s376 + $0x7c] sm:$0xff]
      %v660 = vld [vmem:[%s376 + $0x84] sm:$0xff]
      %v661 = vld [vmem:[%s376 + $0x8c] sm:$0xff]
      %v662 = vld [vmem:[%s376 + $0x94] sm:$0xff]
      %v663 = vld [vmem:[%s376 + $0x9c] sm:$0xff]
      %v664 = vld [vmem:[%s376 + $0xa4] sm:$0xff]
      %v665 = vld [vmem:[%s376 + $0xac] sm:$0xff]
      %v666 = vld [vmem:[%s376 + $0xb4] sm:$0xff]
      %v667 = vld [vmem:[%s376 + $0xbc] sm:$0xff]
      %v668 = vld [vmem:[%s376 + $0xc4] sm:$0xff]
      %v669 = vld [vmem:[%s376 + $0xcc] sm:$0xff]
      %v670 = vld [vmem:[%s376 + $0xd4] sm:$0xff]
      %v671 = vld [vmem:[%s376 + $0xdc] sm:$0xff]
      %v672 = vld [vmem:[%s376 + $0xe4] sm:$0xff]
      %v673 = vld [vmem:[%s376 + $0xec] sm:$0xff]
      %v674 = vld [vmem:[%s376 + $0xf4] sm:$0xff]
      %v675 = vld [vmem:[%s376 + $0xfc] sm:$0xff]
      %v676 = vld [vmem:[%s376 + $0x104] sm:$0xff]
      %v677 = vld [vmem:[%s376 + $0x10c] sm:$0xff]
      %v678 = vld [vmem:[%s376 + $0x114] sm:$0xff]
      %v679 = vld [vmem:[%s376 + $0x11c] sm:$0xff]
      %v680 = vld [vmem:[%s376 + $0x124] sm:$0xff]
      %v681 = vld [vmem:[%s376 + $0x12c] sm:$0xff]
      %v682 = vpack.c.bf16 %v647, %v646
      %v683 = vpack.c.bf16 %v649, %v648
      %v684 = vpack.c.bf16 %v651, %v650
      %v685 = vpack.c.bf16 %v653, %v652
      %v686 = vpack.c.bf16 %v655, %v654
      %v687 = vpack.c.bf16 %v657, %v656
      %v688 = vpack.c.bf16 %v659, %v658
      %v689 = vpack.c.bf16 %v661, %v660
      %v690 = vpack.c.bf16 %v663, %v662
      %v691 = vpack.c.bf16 %v665, %v664
      %v692 = vpack.c.bf16 %v667, %v666
      %v693 = vpack.c.bf16 %v669, %v668
      %v694 = vpack.c.bf16 %v671, %v670
      %v695 = vpack.c.bf16 %v673, %v672
      %v696 = vpack.c.bf16 %v675, %v674
      %v697 = vpack.c.bf16 %v677, %v676
      %v698 = vpack.c.bf16 %v679, %v678
      %v699 = vpack.c.bf16 %v681, %v680
      %v700 = vld [vmem:[%s376 + $0x134] sm:$0xff]
      %v701 = vld [vmem:[%s376 + $0x13c] sm:$0xff]
      %v702 = vpack.c.bf16 %v701, %v700
      %v703 = vld [vmem:[%s376 + $0x25] sm:$0xff]
      %v704 = vld [vmem:[%s376 + $0x2d] sm:$0xff]
      %v705 = vld [vmem:[%s376 + $0x35] sm:$0xff]
      %v706 = vld [vmem:[%s376 + $0x3d] sm:$0xff]
      %v707 = vld [vmem:[%s376 + $0x45] sm:$0xff]
      %v708 = vld [vmem:[%s376 + $0x4d] sm:$0xff]
      %v709 = vld [vmem:[%s376 + $0x55] sm:$0xff]
      %v710 = vld [vmem:[%s376 + $0x5d] sm:$0xff]
      %v711 = vld [vmem:[%s376 + $0x65] sm:$0xff]
      %v712 = vld [vmem:[%s376 + $0x6d] sm:$0xff]
      %v713 = vld [vmem:[%s376 + $0x75] sm:$0xff]
      %v714 = vld [vmem:[%s376 + $0x7d] sm:$0xff]
      %v715 = vld [vmem:[%s376 + $0x85] sm:$0xff]
      %v716 = vld [vmem:[%s376 + $0x8d] sm:$0xff]
      %v717 = vld [vmem:[%s376 + $0x95] sm:$0xff]
      %v718 = vld [vmem:[%s376 + $0x9d] sm:$0xff]
      %v719 = vld [vmem:[%s376 + $0xa5] sm:$0xff]
      %v720 = vld [vmem:[%s376 + $0xad] sm:$0xff]
      %v721 = vld [vmem:[%s376 + $0xb5] sm:$0xff]
      %v722 = vld [vmem:[%s376 + $0xbd] sm:$0xff]
      %v723 = vld [vmem:[%s376 + $0xc5] sm:$0xff]
      %v724 = vld [vmem:[%s376 + $0xcd] sm:$0xff]
      %v725 = vld [vmem:[%s376 + $0xd5] sm:$0xff]
      %v726 = vld [vmem:[%s376 + $0xdd] sm:$0xff]
      %v727 = vld [vmem:[%s376 + $0xe5] sm:$0xff]
      %v728 = vld [vmem:[%s376 + $0xed] sm:$0xff]
      %v729 = vld [vmem:[%s376 + $0xf5] sm:$0xff]
      %v730 = vld [vmem:[%s376 + $0xfd] sm:$0xff]
      %v731 = vld [vmem:[%s376 + $0x105] sm:$0xff]
      %v732 = vld [vmem:[%s376 + $0x10d] sm:$0xff]
      %v733 = vld [vmem:[%s376 + $0x115] sm:$0xff]
      %v734 = vld [vmem:[%s376 + $0x11d] sm:$0xff]
      %v735 = vld [vmem:[%s376 + $0x125] sm:$0xff]
      %v736 = vld [vmem:[%s376 + $0x12d] sm:$0xff]
      %v737 = vld [vmem:[%s376 + $0x135] sm:$0xff]
      %v738 = vld [vmem:[%s376 + $0x13d] sm:$0xff]
      %v739 = vpack.c.bf16 %v704, %v703
      %v740 = vpack.c.bf16 %v706, %v705
      %v741 = vpack.c.bf16 %v708, %v707
      %v742 = vpack.c.bf16 %v710, %v709
      %v743 = vpack.c.bf16 %v712, %v711
      %v744 = vpack.c.bf16 %v714, %v713
      %v745 = vpack.c.bf16 %v716, %v715
      %v746 = vpack.c.bf16 %v718, %v717
      %v747 = vpack.c.bf16 %v720, %v719
      %v748 = vpack.c.bf16 %v722, %v721
      %v749 = vpack.c.bf16 %v724, %v723
      %v750 = vpack.c.bf16 %v726, %v725
      %v751 = vpack.c.bf16 %v728, %v727
      %v752 = vpack.c.bf16 %v730, %v729
      %v753 = vpack.c.bf16 %v732, %v731
      %v754 = vpack.c.bf16 %v734, %v733
      %v755 = vpack.c.bf16 %v736, %v735
      %v756 = vpack.c.bf16 %v738, %v737
      %v757 = vld [vmem:[%s376 + $0x26] sm:$0xff]
      %v758 = vld [vmem:[%s376 + $0x2e] sm:$0xff]
      %v759 = vld [vmem:[%s376 + $0x36] sm:$0xff]
      %v760 = vld [vmem:[%s376 + $0x3e] sm:$0xff]
      %v761 = vld [vmem:[%s376 + $0x46] sm:$0xff]
      %v762 = vld [vmem:[%s376 + $0x4e] sm:$0xff]
      %v763 = vld [vmem:[%s376 + $0x56] sm:$0xff]
      %v764 = vld [vmem:[%s376 + $0x5e] sm:$0xff]
      %v765 = vld [vmem:[%s376 + $0x66] sm:$0xff]
      %v766 = vld [vmem:[%s376 + $0x6e] sm:$0xff]
      %v767 = vld [vmem:[%s376 + $0x76] sm:$0xff]
      %v768 = vld [vmem:[%s376 + $0x7e] sm:$0xff]
      %v769 = vld [vmem:[%s376 + $0x86] sm:$0xff]
      %v770 = vld [vmem:[%s376 + $0x8e] sm:$0xff]
      %v771 = vld [vmem:[%s376 + $0x96] sm:$0xff]
      %v772 = vld [vmem:[%s376 + $0x9e] sm:$0xff]
      %v773 = vld [vmem:[%s376 + $0xa6] sm:$0xff]
      %v774 = vld [vmem:[%s376 + $0xae] sm:$0xff]
      %v775 = vld [vmem:[%s376 + $0xb6] sm:$0xff]
      %v776 = vld [vmem:[%s376 + $0xbe] sm:$0xff]
      %v777 = vld [vmem:[%s376 + $0xc6] sm:$0xff]
      %v778 = vld [vmem:[%s376 + $0xce] sm:$0xff]
      %v779 = vld [vmem:[%s376 + $0xd6] sm:$0xff]
      %v780 = vld [vmem:[%s376 + $0xde] sm:$0xff]
      %v781 = vld [vmem:[%s376 + $0xe6] sm:$0xff]
      %v782 = vld [vmem:[%s376 + $0xee] sm:$0xff]
      %v783 = vld [vmem:[%s376 + $0xf6] sm:$0xff]
      %v784 = vld [vmem:[%s376 + $0xfe] sm:$0xff]
      %v785 = vld [vmem:[%s376 + $0x106] sm:$0xff]
      %v786 = vld [vmem:[%s376 + $0x10e] sm:$0xff]
      %v787 = vld [vmem:[%s376 + $0x116] sm:$0xff]
      %v788 = vld [vmem:[%s376 + $0x11e] sm:$0xff]
      %v789 = vld [vmem:[%s376 + $0x126] sm:$0xff]
      %v790 = vld [vmem:[%s376 + $0x12e] sm:$0xff]
      %v791 = vld [vmem:[%s376 + $0x136] sm:$0xff]
      %v792 = vld [vmem:[%s376 + $0x13e] sm:$0xff]
      %v793 = vpack.c.bf16 %v758, %v757
      %v794 = vpack.c.bf16 %v760, %v759
      %v795 = vpack.c.bf16 %v762, %v761
      %v796 = vpack.c.bf16 %v764, %v763
      %v797 = vpack.c.bf16 %v766, %v765
      %v798 = vpack.c.bf16 %v768, %v767
      %v799 = vpack.c.bf16 %v770, %v769
      %v800 = vpack.c.bf16 %v772, %v771
      %v801 = vpack.c.bf16 %v774, %v773
      %v802 = vpack.c.bf16 %v776, %v775
      %v803 = vpack.c.bf16 %v778, %v777
      %v804 = vpack.c.bf16 %v780, %v779
      %v805 = vpack.c.bf16 %v782, %v781
      %v806 = vpack.c.bf16 %v784, %v783
      %v807 = vpack.c.bf16 %v786, %v785
      %v808 = vpack.c.bf16 %v788, %v787
      %v809 = vpack.c.bf16 %v790, %v789
      %v810 = vpack.c.bf16 %v792, %v791
      %v811 = vld [vmem:[%s2] sm:$0xf]
      %v812 = vld [vmem:[%s2 + $0x4] sm:$0xf]
      %v813 = vld [vmem:[%s2 + $0x8] sm:$0xf]
      %v814 = vld [vmem:[%s2 + $0xc] sm:$0xf]
      %v815 = vld [vmem:[%s2 + $0x10] sm:$0xf]
      %v816 = vld [vmem:[%s2 + $0x14] sm:$0xf]
      %v817 = vld [vmem:[%s2 + $0x18] sm:$0xf]
      %v818 = vld [vmem:[%s2 + $0x1c] sm:$0xf]
      %v819 = vld [vmem:[%s2 + $0x20] sm:$0xf]
      %v820 = vld [vmem:[%s2 + $0x24] sm:$0xf]
      %v821 = vld [vmem:[%s2 + $0x28] sm:$0xf]
      %v822 = vld [vmem:[%s2 + $0x2c] sm:$0xf]
      %v823 = vld [vmem:[%s2 + $0x30] sm:$0xf]
      %v824 = vld [vmem:[%s2 + $0x34] sm:$0xf]
      %v825 = vld [vmem:[%s2 + $0x38] sm:$0xf]
      %v826 = vld [vmem:[%s2 + $0x3c] sm:$0xf]
      %v827 = vld [vmem:[%s2 + $0x40] sm:$0xf]
      %v828 = vld [vmem:[%s2 + $0x44] sm:$0xf]
      %v829 = vld [vmem:[%s2 + $0x48] sm:$0xf]
      %v830 = vld [vmem:[%s2 + $0x4c] sm:$0xf]
      %v831 = vld [vmem:[%s2 + $0x50] sm:$0xf]
      %v832 = vld [vmem:[%s2 + $0x54] sm:$0xf]
      %v833 = vld [vmem:[%s2 + $0x58] sm:$0xf]
      %v834 = vld [vmem:[%s2 + $0x5c] sm:$0xf]
      %v835 = vld [vmem:[%s2 + $0x60] sm:$0xf]
      %v836 = vld [vmem:[%s2 + $0x64] sm:$0xf]
      %v837 = vld [vmem:[%s2 + $0x68] sm:$0xf]
      %v838 = vld [vmem:[%s2 + $0x6c] sm:$0xf]
      %v839 = vld [vmem:[%s2 + $0x70] sm:$0xf]
      %v840 = vld [vmem:[%s2 + $0x74] sm:$0xf]
      %v841 = vld [vmem:[%s2 + $0x78] sm:$0xf]
      %v842 = vld [vmem:[%s2 + $0x7c] sm:$0xf]
      %v843 = vld [vmem:[%s2 + $0x80] sm:$0xf]
      %v844 = vld [vmem:[%s2 + $0x84] sm:$0xf]
      %v845 = vld [vmem:[%s2 + $0x88] sm:$0xf]
      %v846 = vld [vmem:[%s2 + $0x8c] sm:$0xf]
      %v847 = vld [vmem:[%s2 + $0x90] sm:$0xf]
      %v848 = vld [vmem:[%s2 + $0x94] sm:$0xf]
      %v849 = vld [vmem:[%s2 + $0x98] sm:$0xf]
      %v850 = vld [vmem:[%s2 + $0x9c] sm:$0xf]
      %v851 = vld [vmem:[%s2 + $0xa0] sm:$0xf]
      %v852 = vld [vmem:[%s2 + $0xa4] sm:$0xf]
      %v853 = vld [vmem:[%s2 + $0xa8] sm:$0xf]
      %v854 = vld [vmem:[%s2 + $0xac] sm:$0xf]
      %v855 = vld [vmem:[%s2 + $0xb0] sm:$0xf]
      %v856 = vld [vmem:[%s2 + $0xb4] sm:$0xf]
      %v857 = vld [vmem:[%s2 + $0xb8] sm:$0xf]
      %v858 = vld [vmem:[%s2 + $0xbc] sm:$0xf]
      %v859 = vld [vmem:[%s2 + $0xc0] sm:$0xf]
      %v860 = vld [vmem:[%s2 + $0xc4] sm:$0xf]
      %v861 = vld [vmem:[%s2 + $0xc8] sm:$0xf]
      %v862 = vld [vmem:[%s2 + $0xcc] sm:$0xf]
      %v863 = vld [vmem:[%s2 + $0xd0] sm:$0xf]
      %v864 = vld [vmem:[%s2 + $0xd4] sm:$0xf]
      %v865 = vld [vmem:[%s2 + $0xd8] sm:$0xf]
      %v866 = vld [vmem:[%s2 + $0xdc] sm:$0xf]
      %v867 = vld [vmem:[%s2 + $0xe0] sm:$0xf]
      %v868 = vld [vmem:[%s2 + $0xe4] sm:$0xf]
      %v869 = vld [vmem:[%s2 + $0xe8] sm:$0xf]
      %v870 = vld [vmem:[%s2 + $0xec] sm:$0xf]
      %v871 = vld [vmem:[%s2 + $0xf0] sm:$0xf]
      %v872 = vld [vmem:[%s2 + $0xf4] sm:$0xf]
      %v873 = vld [vmem:[%s2 + $0xf8] sm:$0xf]
      %v874 = vld [vmem:[%s2 + $0xfc] sm:$0xf]
      %v875 = vld [vmem:[%s2 + $0x100] sm:$0xf]
      %v876 = vld [vmem:[%s2 + $0x104] sm:$0xf]
      %v877 = vld [vmem:[%s2 + $0x108] sm:$0xf]
      %v878 = vld [vmem:[%s2 + $0x10c] sm:$0xf]
      %v879 = vld [vmem:[%s2 + $0x110] sm:$0xf]
      %v880 = vld [vmem:[%s2 + $0x114] sm:$0xf]
      %v881 = vld [vmem:[%s2 + $0x118] sm:$0xf]
      %v882 = vld [vmem:[%s2 + $0x11c] sm:$0xf]
      %v883 = vld [vmem:[%s2 + $0x120] sm:$0xf]
      %v884 = vld [vmem:[%s2 + $0x124] sm:$0xf]
      %v885 = vld [vmem:[%s2 + $0x128] sm:$0xf]
      %v886 = vld [vmem:[%s2 + $0x12c] sm:$0xf]
      %v887 = vld [vmem:[%s2 + $0x130] sm:$0xf]
      %v888 = vld [vmem:[%s2 + $0x134] sm:$0xf]
      %v889 = vld [vmem:[%s2 + $0x138] sm:$0xf]
      %v890 = vld [vmem:[%s2 + $0x13c] sm:$0xf]
      %v891 = vld [vmem:[%s2 + $0x140] sm:$0xf]
      %v892 = vld [vmem:[%s2 + $0x144] sm:$0xf]
      %v893 = vld [vmem:[%s2 + $0x148] sm:$0xf]
      %v894 = vld [vmem:[%s2 + $0x14c] sm:$0xf]
      %v895 = vld [vmem:[%s2 + $0x150] sm:$0xf]
      %v896 = vld [vmem:[%s2 + $0x154] sm:$0xf]
      %v897 = vld [vmem:[%s2 + $0x158] sm:$0xf]
      %v898 = vld [vmem:[%s2 + $0x15c] sm:$0xf]
      %v899 = vld [vmem:[%s2 + $0x160] sm:$0xf]
      %v900 = vld [vmem:[%s2 + $0x164] sm:$0xf]
      %v901 = vld [vmem:[%s2 + $0x168] sm:$0xf]
      %v902 = vld [vmem:[%s2 + $0x16c] sm:$0xf]
      %v903 = vld [vmem:[%s2 + $0x170] sm:$0xf]
      %v904 = vld [vmem:[%s2 + $0x174] sm:$0xf]
      %v905 = vld [vmem:[%s2 + $0x178] sm:$0xf]
      %v906 = vld [vmem:[%s2 + $0x17c] sm:$0xf]
      %v907 = vld [vmem:[%s2 + $0x180] sm:$0xf]
      %v908 = vld [vmem:[%s2 + $0x184] sm:$0xf]
      %v909 = vld [vmem:[%s2 + $0x188] sm:$0xf]
      %v910 = vld [vmem:[%s2 + $0x18c] sm:$0xf]
      %v911 = vld [vmem:[%s2 + $0x190] sm:$0xf]
      %v912 = vld [vmem:[%s2 + $0x194] sm:$0xf]
      %v913 = vld [vmem:[%s2 + $0x198] sm:$0xf]
      %v914 = vld [vmem:[%s2 + $0x19c] sm:$0xf]
      %v915 = vld [vmem:[%s2 + $0x1a0] sm:$0xf]
      %v916 = vld [vmem:[%s2 + $0x1a4] sm:$0xf]
      %v917 = vld [vmem:[%s2 + $0x1a8] sm:$0xf]
      %v918 = vld [vmem:[%s2 + $0x1ac] sm:$0xf]
      %v919 = vld [vmem:[%s2 + $0x1b0] sm:$0xf]
      %v920 = vld [vmem:[%s2 + $0x1b4] sm:$0xf]
      %v921 = vld [vmem:[%s2 + $0x1b8] sm:$0xf]
      %v922 = vld [vmem:[%s2 + $0x1bc] sm:$0xf]
      %v923 = vld [vmem:[%s2 + $0x1c0] sm:$0xf]
      %v924 = vld [vmem:[%s2 + $0x1c4] sm:$0xf]
      %v925 = vld [vmem:[%s2 + $0x1c8] sm:$0xf]
      %v926 = vld [vmem:[%s2 + $0x1cc] sm:$0xf]
      %v927 = vld [vmem:[%s2 + $0x1d0] sm:$0xf]
      %v928 = vld [vmem:[%s2 + $0x1d4] sm:$0xf]
      %v929 = vld [vmem:[%s2 + $0x1d8] sm:$0xf]
      %v930 = vld [vmem:[%s2 + $0x1dc] sm:$0xf]
      %v931 = vld [vmem:[%s2 + $0x1e0] sm:$0xf]
      %v932 = vld [vmem:[%s2 + $0x1e4] sm:$0xf]
      %v933 = vld [vmem:[%s2 + $0x1e8] sm:$0xf]
      %v934 = vld [vmem:[%s2 + $0x1ec] sm:$0xf]
      %v935 = vld [vmem:[%s2 + $0x1f0] sm:$0xf]
      %v936 = vld [vmem:[%s2 + $0x1f4] sm:$0xf]
      %v937 = vld [vmem:[%s2 + $0x1f8] sm:$0xf]
      %v938 = vld [vmem:[%s2 + $0x1fc] sm:$0xf]
      %v939 = vld [vmem:[%s2 + $0x200] sm:$0xf]
      %v940 = vld [vmem:[%s2 + $0x204] sm:$0xf]
      %v941 = vld [vmem:[%s2 + $0x208] sm:$0xf]
      %v942 = vld [vmem:[%s2 + $0x20c] sm:$0xf]
      %v943 = vld [vmem:[%s2 + $0x210] sm:$0xf]
      %v944 = vld [vmem:[%s2 + $0x214] sm:$0xf]
      %v945 = vld [vmem:[%s2 + $0x218] sm:$0xf]
      %v946 = vld [vmem:[%s2 + $0x21c] sm:$0xf]
      %v947 = vld [vmem:[%s2 + $0x220] sm:$0xf]
      %v948 = vld [vmem:[%s2 + $0x224] sm:$0xf]
      %v949 = vld [vmem:[%s2 + $0x228] sm:$0xf]
      %v950 = vld [vmem:[%s2 + $0x22c] sm:$0xf]
      %v951 = vld [vmem:[%s2 + $0x230] sm:$0xf]
      %v952 = vld [vmem:[%s2 + $0x234] sm:$0xf]
      %v953 = vld [vmem:[%s2 + $0x238] sm:$0xf]
      %v954 = vld [vmem:[%s2 + $0x23c] sm:$0xf]
      %v955 = vld [vmem:[%s3] sm:$0x1]
      %v957 = vlaneseq
      %v958 = vshrl.u32 %v957, 7
      %v959 = vsub.s32 0, %v958
      %v960 = vrot.slane %v955, %v959
      %v1106 = vunpack.c.l.b16 %v811
      %v1107 = vunpack.c.l.b16 %v812
      %v1108 = vunpack.c.l.b16 %v813
      %v1109 = vunpack.c.l.b16 %v814
      %v1110 = vunpack.c.l.b16 %v815
      %v1111 = vunpack.c.l.b16 %v816
      %v1112 = vunpack.c.l.b16 %v817
      %v1113 = vunpack.c.l.b16 %v818
      %v1114 = vunpack.c.l.b16 %v819
      %v1115 = vunpack.c.l.b16 %v820
      %v1116 = vunpack.c.l.b16 %v821
      %v1117 = vunpack.c.l.b16 %v822
      %v1118 = vunpack.c.l.b16 %v823
      %v1119 = vunpack.c.l.b16 %v824
      %v1120 = vunpack.c.l.b16 %v825
      %v1121 = vunpack.c.l.b16 %v826
      %v1122 = vunpack.c.l.b16 %v827
      %v1123 = vunpack.c.l.b16 %v828
      %v1124 = vunpack.c.l.b16 %v829
      %v1125 = vunpack.c.l.b16 %v830
      %v1126 = vunpack.c.l.b16 %v831
      %v1127 = vunpack.c.l.b16 %v832
      %v1128 = vunpack.c.l.b16 %v833
      %v1129 = vunpack.c.l.b16 %v834
      %v1130 = vunpack.c.l.b16 %v835
      %v1131 = vunpack.c.l.b16 %v836
      %v1132 = vunpack.c.l.b16 %v837
      %v1133 = vunpack.c.l.b16 %v838
      %v1134 = vunpack.c.l.b16 %v839
      %v1135 = vunpack.c.l.b16 %v840
      %v1136 = vunpack.c.l.b16 %v841
      %v1137 = vunpack.c.l.b16 %v842
      %v1138 = vunpack.c.l.b16 %v843
      %v1139 = vunpack.c.l.b16 %v844
      %v1140 = vunpack.c.l.b16 %v845
      %v1141 = vunpack.c.l.b16 %v846
      %v1142 = vunpack.c.l.b16 %v847
      %v1143 = vunpack.c.l.b16 %v848
      %v1144 = vunpack.c.l.b16 %v849
      %v1145 = vunpack.c.l.b16 %v850
      %v1146 = vunpack.c.l.b16 %v851
      %v1147 = vunpack.c.l.b16 %v852
      %v1148 = vunpack.c.l.b16 %v853
      %v1149 = vunpack.c.l.b16 %v854
      %v1150 = vunpack.c.l.b16 %v855
      %v1151 = vunpack.c.l.b16 %v856
      %v1152 = vunpack.c.l.b16 %v857
      %v1153 = vunpack.c.l.b16 %v858
      %v1154 = vunpack.c.l.b16 %v859
      %v1155 = vunpack.c.l.b16 %v860
      %v1156 = vunpack.c.l.b16 %v861
      %v1157 = vunpack.c.l.b16 %v862
      %v1158 = vunpack.c.l.b16 %v863
      %v1159 = vunpack.c.l.b16 %v864
      %v1160 = vunpack.c.l.b16 %v865
      %v1161 = vunpack.c.l.b16 %v866
      %v1162 = vunpack.c.l.b16 %v867
      %v1163 = vunpack.c.l.b16 %v868
      %v1164 = vunpack.c.l.b16 %v869
      %v1165 = vunpack.c.l.b16 %v870
      %v1166 = vunpack.c.l.b16 %v871
      %v1167 = vunpack.c.l.b16 %v872
      %v1168 = vunpack.c.l.b16 %v873
      %v1169 = vunpack.c.l.b16 %v874
      %v1170 = vunpack.c.l.b16 %v875
      %v1171 = vunpack.c.l.b16 %v876
      %v1172 = vunpack.c.l.b16 %v877
      %v1173 = vunpack.c.l.b16 %v878
      %v1174 = vunpack.c.l.b16 %v879
      %v1175 = vunpack.c.l.b16 %v880
      %v1176 = vunpack.c.l.b16 %v881
      %v1177 = vunpack.c.l.b16 %v882
      %v1178 = vunpack.c.l.b16 %v883
      %v1179 = vunpack.c.l.b16 %v884
      %v1180 = vunpack.c.l.b16 %v885
      %v1181 = vunpack.c.l.b16 %v886
      %v1182 = vunpack.c.l.b16 %v887
      %v1183 = vunpack.c.l.b16 %v888
      %v1184 = vunpack.c.l.b16 %v889
      %v1185 = vunpack.c.l.b16 %v890
      %v1186 = vunpack.c.l.b16 %v891
      %v1187 = vunpack.c.l.b16 %v892
      %v1188 = vunpack.c.l.b16 %v893
      %v1189 = vunpack.c.l.b16 %v894
      %v1190 = vunpack.c.l.b16 %v895
      %v1191 = vunpack.c.l.b16 %v896
      %v1192 = vunpack.c.l.b16 %v897
      %v1193 = vunpack.c.l.b16 %v898
      %v1194 = vunpack.c.l.b16 %v899
      %v1195 = vunpack.c.l.b16 %v900
      %v1196 = vunpack.c.l.b16 %v901
      %v1197 = vunpack.c.l.b16 %v902
      %v1198 = vunpack.c.l.b16 %v903
      %v1199 = vunpack.c.l.b16 %v904
      %v1200 = vunpack.c.l.b16 %v905
      %v1201 = vunpack.c.l.b16 %v906
      %v1202 = vunpack.c.l.b16 %v907
      %v1203 = vunpack.c.l.b16 %v908
      %v1204 = vunpack.c.l.b16 %v909
      %v1205 = vunpack.c.l.b16 %v910
      %v1206 = vunpack.c.l.b16 %v911
      %v1207 = vunpack.c.l.b16 %v912
      %v1208 = vunpack.c.l.b16 %v913
      %v1209 = vunpack.c.l.b16 %v914
      %v1210 = vunpack.c.l.b16 %v915
      %v1211 = vunpack.c.l.b16 %v916
      %v1212 = vunpack.c.l.b16 %v917
      %v1213 = vunpack.c.l.b16 %v918
      %v1214 = vunpack.c.l.b16 %v919
      %v1215 = vunpack.c.l.b16 %v920
      %v1216 = vunpack.c.l.b16 %v921
      %v1217 = vunpack.c.l.b16 %v922
      %v1218 = vunpack.c.l.b16 %v923
      %v1219 = vunpack.c.l.b16 %v924
      %v1220 = vunpack.c.l.b16 %v925
      %v1221 = vunpack.c.l.b16 %v926
      %v1222 = vunpack.c.l.b16 %v927
      %v1223 = vunpack.c.l.b16 %v928
      %v1224 = vunpack.c.l.b16 %v929
      %v1225 = vunpack.c.l.b16 %v930
      %v1226 = vunpack.c.l.b16 %v931
      %v1227 = vunpack.c.l.b16 %v932
      %v1228 = vunpack.c.l.b16 %v933
      %v1229 = vunpack.c.l.b16 %v934
      %v1230 = vunpack.c.l.b16 %v935
      %v1231 = vunpack.c.l.b16 %v936
      %v1232 = vunpack.c.l.b16 %v937
      %v1233 = vunpack.c.l.b16 %v938
      %v1234 = vunpack.c.l.b16 %v939
      %v1235 = vunpack.c.l.b16 %v940
      %v1236 = vunpack.c.l.b16 %v941
      %v1237 = vunpack.c.l.b16 %v942
      %v1238 = vunpack.c.l.b16 %v943
      %v1239 = vunpack.c.l.b16 %v944
      %v1240 = vunpack.c.l.b16 %v945
      %v1241 = vunpack.c.l.b16 %v946
      %v1242 = vunpack.c.l.b16 %v947
      %v1243 = vunpack.c.l.b16 %v948
      %v1244 = vunpack.c.l.b16 %v949
      %v1245 = vunpack.c.l.b16 %v950
      %v1246 = vunpack.c.l.b16 %v951
      %v1247 = vunpack.c.l.b16 %v952
      %v1248 = vunpack.c.l.b16 %v953
      %v1249 = vunpack.c.l.b16 %v954
      %v1250 = vpack.c.b16 %v1107, %v1106
      %v1251 = vpack.c.b16 %v1109, %v1108
      %v1252 = vpack.c.b16 %v1111, %v1110
      %v1253 = vpack.c.b16 %v1113, %v1112
      %v1254 = vpack.c.b16 %v1115, %v1114
      %v1255 = vpack.c.b16 %v1117, %v1116
      %v1256 = vpack.c.b16 %v1119, %v1118
      %v1257 = vpack.c.b16 %v1121, %v1120
      %v1258 = vpack.c.b16 %v1123, %v1122
      %v1259 = vpack.c.b16 %v1125, %v1124
      %v1260 = vpack.c.b16 %v1127, %v1126
      %v1261 = vpack.c.b16 %v1129, %v1128
      %v1262 = vpack.c.b16 %v1131, %v1130
      %v1263 = vpack.c.b16 %v1133, %v1132
      %v1264 = vpack.c.b16 %v1135, %v1134
      %v1265 = vpack.c.b16 %v1137, %v1136
      %v1266 = vpack.c.b16 %v1139, %v1138
      %v1267 = vpack.c.b16 %v1141, %v1140
      %v1268 = vpack.c.b16 %v1143, %v1142
      %v1269 = vpack.c.b16 %v1145, %v1144
      %v1270 = vpack.c.b16 %v1147, %v1146
      %v1271 = vpack.c.b16 %v1149, %v1148
      %v1272 = vpack.c.b16 %v1151, %v1150
      %v1273 = vpack.c.b16 %v1153, %v1152
      %v1274 = vpack.c.b16 %v1155, %v1154
      %v1275 = vpack.c.b16 %v1157, %v1156
      %v1276 = vpack.c.b16 %v1159, %v1158
      %v1277 = vpack.c.b16 %v1161, %v1160
      %v1278 = vpack.c.b16 %v1163, %v1162
      %v1279 = vpack.c.b16 %v1165, %v1164
      %v1280 = vpack.c.b16 %v1167, %v1166
      %v1281 = vpack.c.b16 %v1169, %v1168
      %v1282 = vpack.c.b16 %v1171, %v1170
      %v1283 = vpack.c.b16 %v1173, %v1172
      %v1284 = vpack.c.b16 %v1175, %v1174
      %v1285 = vpack.c.b16 %v1177, %v1176
      %v1286 = vpack.c.b16 %v1179, %v1178
      %v1287 = vpack.c.b16 %v1181, %v1180
      %v1288 = vpack.c.b16 %v1183, %v1182
      %v1289 = vpack.c.b16 %v1185, %v1184
      %v1290 = vpack.c.b16 %v1187, %v1186
      %v1291 = vpack.c.b16 %v1189, %v1188
      %v1292 = vpack.c.b16 %v1191, %v1190
      %v1293 = vpack.c.b16 %v1193, %v1192
      %v1294 = vpack.c.b16 %v1195, %v1194
      %v1295 = vpack.c.b16 %v1197, %v1196
      %v1296 = vpack.c.b16 %v1199, %v1198
      %v1297 = vpack.c.b16 %v1201, %v1200
      %v1298 = vpack.c.b16 %v1203, %v1202
      %v1299 = vpack.c.b16 %v1205, %v1204
      %v1300 = vpack.c.b16 %v1207, %v1206
      %v1301 = vpack.c.b16 %v1209, %v1208
      %v1302 = vpack.c.b16 %v1211, %v1210
      %v1303 = vpack.c.b16 %v1213, %v1212
      %v1304 = vpack.c.b16 %v1215, %v1214
      %v1305 = vpack.c.b16 %v1217, %v1216
      %v1306 = vpack.c.b16 %v1219, %v1218
      %v1307 = vpack.c.b16 %v1221, %v1220
      %v1308 = vpack.c.b16 %v1223, %v1222
      %v1309 = vpack.c.b16 %v1225, %v1224
      %v1310 = vpack.c.b16 %v1227, %v1226
      %v1311 = vpack.c.b16 %v1229, %v1228
      %v1312 = vpack.c.b16 %v1231, %v1230
      %v1313 = vpack.c.b16 %v1233, %v1232
      %v1314 = vpack.c.b16 %v1235, %v1234
      %v1315 = vpack.c.b16 %v1237, %v1236
      %v1316 = vpack.c.b16 %v1239, %v1238
      %v1317 = vpack.c.b16 %v1241, %v1240
      %v1318 = vpack.c.b16 %v1243, %v1242
      %v1319 = vpack.c.b16 %v1245, %v1244
      %v1320 = vpack.c.b16 %v1247, %v1246
      %v1321 = vpack.c.b16 %v1249, %v1248
      %1394 = vmatprep.subr.bf16.mxu0 0
      %1395 = vmatpush1.bf16.msra.mxu0 %v1250
      %1396 = vmatprep.subr.bf16.mxu0 0
      %1397 = vmatpush1.bf16.msra.mxu0 %v1251
      %1398 = vmatprep.subr.bf16.mxu0 0
      %1399 = vmatpush1.bf16.msra.mxu0 %v1252
      %1400 = vmatprep.subr.bf16.mxu0 0
      %1401 = vmatpush1.bf16.msra.mxu0 %v1253
      %1402 = vmatprep.subr.bf16.mxu0 0
      %1403 = vmatpush1.bf16.msra.mxu0 %v1254
      %1404 = vmatprep.subr.bf16.mxu0 0
      %1405 = vmatpush1.bf16.msra.mxu0 %v1255
      %1406 = vmatprep.subr.bf16.mxu0 0
      %1407 = vmatpush1.bf16.msra.mxu0 %v1256
      %1408 = vmatprep.subr.bf16.mxu0 0
      %1409 = vmatpush1.bf16.msra.mxu0 %v1257
      %1410 = vmatprep.subr.bf16.mxu0 0
      %1411 = vmatpush1.bf16.msra.mxu0 %v1258
      %1412 = vmatprep.subr.bf16.mxu0 0
      %1413 = vmatpush1.bf16.msra.mxu0 %v1259
      %1414 = vmatprep.subr.bf16.mxu0 0
      %1415 = vmatpush1.bf16.msra.mxu0 %v1260
      %1416 = vmatprep.subr.bf16.mxu0 0
      %1417 = vmatpush1.bf16.msra.mxu0 %v1261
      %1418 = vmatprep.subr.bf16.mxu0 0
      %1419 = vmatpush1.bf16.msra.mxu0 %v1262
      %1420 = vmatprep.subr.bf16.mxu0 0
      %1421 = vmatpush1.bf16.msra.mxu0 %v1263
      %1422 = vmatprep.subr.bf16.mxu0 0
      %1423 = vmatpush1.bf16.msra.mxu0 %v1264
      %1424 = vmatprep.subr.bf16.mxu0 0
      %1425 = vmatpush1.bf16.msra.mxu0 %v1265
      %1426 = vmatprep.mubr.bf16.mxu0 %v517
      %1427 = vmatmul.mubr.bf16.gmra.mrb[0].mxu0 %v463
      %v1428 = vpop.f32.mrb[0].mxu0
      %v1429 = vadd.f32 %v960, %v1428
      %v1430 = vpop.f32.mrb[0].mxu0
      %v1431 = vpop.f32.mrb[0].mxu0
      %v1432 = vadd.f32 %v960, %v1431
      %v1433 = vpop.f32.mrb[0].mxu0
      %1434 = vmatprep.mubr.bf16.mxu0 %v518
      %1435 = vmatmul.mubr.bf16.gmra.mrb[0].mxu0 %v464
      %v1436 = vpop.f32.mrb[0].mxu0
      %v1437 = vadd.f32 %v960, %v1436
      %v1438 = vpop.f32.mrb[0].mxu0
      %v1439 = vpop.f32.mrb[0].mxu0
      %v1440 = vadd.f32 %v960, %v1439
      %v1441 = vpop.f32.mrb[0].mxu0
      %1442 = vmatprep.mubr.bf16.mxu0 %v519
      %1443 = vmatmul.mubr.bf16.gmra.mrb[0].mxu0 %v465
      %v1444 = vpop.f32.mrb[0].mxu0
      %v1445 = vadd.f32 %v960, %v1444
      %v1446 = vpop.f32.mrb[0].mxu0
      %v1447 = vpop.f32.mrb[0].mxu0
      %v1448 = vadd.f32 %v960, %v1447
      %v1449 = vpop.f32.mrb[0].mxu0
      %1450 = vmatprep.mubr.bf16.mxu0 %v520
      %1451 = vmatmul.mubr.bf16.gmra.mrb[0].mxu0 %v466
      %v1452 = vpop.f32.mrb[0].mxu0
      %v1453 = vadd.f32 %v960, %v1452
      %v1454 = vpop.f32.mrb[0].mxu0
      %v1455 = vpop.f32.mrb[0].mxu0
      %v1456 = vadd.f32 %v960, %v1455
      %v1457 = vpop.f32.mrb[0].mxu0
      %1458 = vmatprep.mubr.bf16.mxu0 %v521
      %1459 = vmatmul.mubr.bf16.gmra.mrb[0].mxu0 %v467
      %v1460 = vpop.f32.mrb[0].mxu0
      %v1461 = vadd.f32 %v960, %v1460
      %v1462 = vpop.f32.mrb[0].mxu0
      %v1463 = vpop.f32.mrb[0].mxu0
      %v1464 = vadd.f32 %v960, %v1463
      %v1465 = vpop.f32.mrb[0].mxu0
      %1466 = vmatprep.mubr.bf16.mxu0 %v522
      %1467 = vmatmul.mubr.bf16.gmra.mrb[0].mxu0 %v468
      %v1468 = vpop.f32.mrb[0].mxu0
      %v1469 = vadd.f32 %v960, %v1468
      %v1470 = vpop.f32.mrb[0].mxu0
      %v1471 = vpop.f32.mrb[0].mxu0
      %v1472 = vadd.f32 %v960, %v1471
      %v1473 = vpop.f32.mrb[0].mxu0
      %1474 = vmatprep.mubr.bf16.mxu0 %v523
      %1475 = vmatmul.mubr.bf16.gmra.mrb[0].mxu0 %v469
      %v1476 = vpop.f32.mrb[0].mxu0
      %v1477 = vadd.f32 %v960, %v1476
      %v1478 = vpop.f32.mrb[0].mxu0
      %v1479 = vpop.f32.mrb[0].mxu0
      %v1480 = vadd.f32 %v960, %v1479
      %v1481 = vpop.f32.mrb[0].mxu0
      %1482 = vmatprep.mubr.bf16.mxu0 %v524
      %1483 = vmatmul.mubr.bf16.gmra.mrb[0].mxu0 %v470
      %v1484 = vpop.f32.mrb[0].mxu0
      %v1485 = vadd.f32 %v960, %v1484
      %v1486 = vpop.f32.mrb[0].mxu0
      %v1487 = vpop.f32.mrb[0].mxu0
      %v1488 = vadd.f32 %v960, %v1487
      %v1489 = vpop.f32.mrb[0].mxu0
      %1490 = vmatprep.mubr.bf16.mxu0 %v525
      %1491 = vmatmul.mubr.bf16.gmra.mrb[0].mxu0 %v471
      %v1492 = vpop.f32.mrb[0].mxu0
      %v1493 = vadd.f32 %v960, %v1492
      %v1494 = vpop.f32.mrb[0].mxu0
      %v1495 = vpop.f32.mrb[0].mxu0
      %v1496 = vadd.f32 %v960, %v1495
      %v1497 = vpop.f32.mrb[0].mxu0
      %1498 = vmatprep.mubr.bf16.mxu0 %v526
      %1499 = vmatmul.mubr.bf16.gmra.mrb[0].mxu0 %v472
      %v1500 = vpop.f32.mrb[0].mxu0
      %v1501 = vadd.f32 %v960, %v1500
      %v1502 = vpop.f32.mrb[0].mxu0
      %v1503 = vpop.f32.mrb[0].mxu0
      %v1504 = vadd.f32 %v960, %v1503
      %v1505 = vpop.f32.mrb[0].mxu0
      %1506 = vmatprep.mubr.bf16.mxu0 %v527
      %1507 = vmatmul.mubr.bf16.gmra.mrb[0].mxu0 %v473
      %v1508 = vpop.f32.mrb[0].mxu0
      %v1509 = vadd.f32 %v960, %v1508
      %v1510 = vpop.f32.mrb[0].mxu0
      %v1511 = vpop.f32.mrb[0].mxu0
      %v1512 = vadd.f32 %v960, %v1511
      %v1513 = vpop.f32.mrb[0].mxu0
      %1514 = vmatprep.mubr.bf16.mxu0 %v528
      %1515 = vmatmul.mubr.bf16.gmra.mrb[0].mxu0 %v474
      %v1516 = vpop.f32.mrb[0].mxu0
      %v1517 = vadd.f32 %v960, %v1516
      %v1518 = vpop.f32.mrb[0].mxu0
      %v1519 = vpop.f32.mrb[0].mxu0
      %v1520 = vadd.f32 %v960, %v1519
      %v1521 = vpop.f32.mrb[0].mxu0
      %1522 = vmatprep.mubr.bf16.mxu0 %v529
      %1523 = vmatmul.mubr.bf16.gmra.mrb[0].mxu0 %v475
      %v1524 = vpop.f32.mrb[0].mxu0
      %v1525 = vadd.f32 %v960, %v1524
      %v1526 = vpop.f32.mrb[0].mxu0
      %v1527 = vpop.f32.mrb[0].mxu0
      %v1528 = vadd.f32 %v960, %v1527
      %v1529 = vpop.f32.mrb[0].mxu0
      %1530 = vmatprep.mubr.bf16.mxu0 %v530
      %1531 = vmatmul.mubr.bf16.gmra.mrb[0].mxu0 %v476
      %v1532 = vpop.f32.mrb[0].mxu0
      %v1533 = vadd.f32 %v960, %v1532
      %v1534 = vpop.f32.mrb[0].mxu0
      %v1535 = vpop.f32.mrb[0].mxu0
      %v1536 = vadd.f32 %v960, %v1535
      %v1537 = vpop.f32.mrb[0].mxu0
      %1538 = vmatprep.mubr.bf16.mxu0 %v531
      %1539 = vmatmul.mubr.bf16.gmra.mrb[0].mxu0 %v477
      %v1540 = vpop.f32.mrb[0].mxu0
      %v1541 = vadd.f32 %v960, %v1540
      %v1542 = vpop.f32.mrb[0].mxu0
      %v1543 = vpop.f32.mrb[0].mxu0
      %v1544 = vadd.f32 %v960, %v1543
      %v1545 = vpop.f32.mrb[0].mxu0
      %1546 = vmatprep.mubr.bf16.mxu0 %v532
      %1547 = vmatmul.mubr.bf16.gmra.mrb[0].mxu0 %v478
      %v1548 = vpop.f32.mrb[0].mxu0
      %v1549 = vadd.f32 %v960, %v1548
      %v1550 = vpop.f32.mrb[0].mxu0
      %v1551 = vpop.f32.mrb[0].mxu0
      %v1552 = vadd.f32 %v960, %v1551
      %v1553 = vpop.f32.mrb[0].mxu0
      %1554 = vmatprep.mubr.bf16.mxu0 %v533
      %1555 = vmatmul.mubr.bf16.gmra.mrb[0].mxu0 %v479
      %v1556 = vpop.f32.mrb[0].mxu0
      %v1557 = vadd.f32 %v960, %v1556
      %v1558 = vpop.f32.mrb[0].mxu0
      %v1559 = vpop.f32.mrb[0].mxu0
      %v1560 = vadd.f32 %v960, %v1559
      %v1561 = vpop.f32.mrb[0].mxu0
      %1562 = vmatprep.mubr.bf16.mxu0 %v534
      %1563 = vmatmul.mubr.bf16.gmra.mrb[0].mxu0 %v480
      %v1564 = vpop.f32.mrb[0].mxu0
      %v1565 = vadd.f32 %v960, %v1564
      %v1566 = vpop.f32.mrb[0].mxu0
      %v1567 = vpop.f32.mrb[0].mxu0
      %v1568 = vadd.f32 %v960, %v1567
      %v1569 = vpop.f32.mrb[0].mxu0
      %1570 = vdwg.mxu0
      %1571 = vmatprep.subr.bf16.mxu0 0
      %1572 = vmatpush1.bf16.msra.mxu0 %v1266
      %1573 = vmatprep.subr.bf16.mxu0 0
      %1574 = vmatpush1.bf16.msra.mxu0 %v1267
      %1575 = vmatprep.subr.bf16.mxu0 0
      %1576 = vmatpush1.bf16.msra.mxu0 %v1268
      %1577 = vmatprep.subr.bf16.mxu0 0
      %1578 = vmatpush1.bf16.msra.mxu0 %v1269
      %1579 = vmatprep.subr.bf16.mxu0 0
      %1580 = vmatpush1.bf16.msra.mxu0 %v1270
      %1581 = vmatprep.subr.bf16.mxu0 0
      %1582 = vmatpush1.bf16.msra.mxu0 %v1271
      %1583 = vmatprep.subr.bf16.mxu0 0
      %1584 = vmatpush1.bf16.msra.mxu0 %v1272
      %1585 = vmatprep.subr.bf16.mxu0 0
      %1586 = vmatpush1.bf16.msra.mxu0 %v1273
      %1587 = vmatprep.subr.bf16.mxu0 0
      %1588 = vmatpush1.bf16.msra.mxu0 %v1274
      %1589 = vmatprep.subr.bf16.mxu0 0
      %1590 = vmatpush1.bf16.msra.mxu0 %v1275
      %1591 = vmatprep.subr.bf16.mxu0 0
      %1592 = vmatpush1.bf16.msra.mxu0 %v1276
      %1593 = vmatprep.subr.bf16.mxu0 0
      %1594 = vmatpush1.bf16.msra.mxu0 %v1277
      %1595 = vmatprep.subr.bf16.mxu0 0
      %1596 = vmatpush1.bf16.msra.mxu0 %v1278
      %1597 = vmatprep.subr.bf16.mxu0 0
      %1598 = vmatpush1.bf16.msra.mxu0 %v1279
      %1599 = vmatprep.subr.bf16.mxu0 0
      %1600 = vmatpush1.bf16.msra.mxu0 %v1280
      %1601 = vmatprep.subr.bf16.mxu0 0
      %1602 = vmatpush1.bf16.msra.mxu0 %v1281
      %1603 = vmatprep.mubr.bf16.mxu0 %v572
      %1604 = vmatmul.mubr.bf16.gmra.mrb[0].mxu0 %v571
      %v1605 = vpop.f32.mrb[0].mxu0
      %v1606 = vadd.f32 %v1429, %v1605
      %v1607 = vpop.f32.mrb[0].mxu0
      %v1608 = vpop.f32.mrb[0].mxu0
      %v1609 = vadd.f32 %v1432, %v1608
      %v1610 = vpop.f32.mrb[0].mxu0
      %1611 = vmatprep.mubr.bf16.mxu0 %v573
      %1612 = vmatmul.mubr.bf16.gmra.mrb[0].mxu0 %v572
      %v1613 = vpop.f32.mrb[0].mxu0
      %v1614 = vadd.f32 %v1437, %v1613
      %v1615 = vpop.f32.mrb[0].mxu0
      %v1616 = vpop.f32.mrb[0].mxu0
      %v1617 = vadd.f32 %v1440, %v1616
      %v1618 = vpop.f32.mrb[0].mxu0
      %1619 = vmatprep.mubr.bf16.mxu0 %v574
      %1620 = vmatmul.mubr.bf16.gmra.mrb[0].mxu0 %v573
      %v1621 = vpop.f32.mrb[0].mxu0
      %v1622 = vadd.f32 %v1445, %v1621
      %v1623 = vpop.f32.mrb[0].mxu0
      %v1624 = vpop.f32.mrb[0].mxu0
      %v1625 = vadd.f32 %v1448, %v1624
      %v1626 = vpop.f32.mrb[0].mxu0
      %1627 = vmatprep.mubr.bf16.mxu0 %v575
      %1628 = vmatmul.mubr.bf16.gmra.mrb[0].mxu0 %v574
      %v1629 = vpop.f32.mrb[0].mxu0
      %v1630 = vadd.f32 %v1453, %v1629
      %v1631 = vpop.f32.mrb[0].mxu0
      %v1632 = vpop.f32.mrb[0].mxu0
      %v1633 = vadd.f32 %v1456, %v1632
      %v1634 = vpop.f32.mrb[0].mxu0
      %1635 = vmatprep.mubr.bf16.mxu0 %v576
      %1636 = vmatmul.mubr.bf16.gmra.mrb[0].mxu0 %v575
      %v1637 = vpop.f32.mrb[0].mxu0
      %v1638 = vadd.f32 %v1461, %v1637
      %v1639 = vpop.f32.mrb[0].mxu0
      %v1640 = vpop.f32.mrb[0].mxu0
      %v1641 = vadd.f32 %v1464, %v1640
      %v1642 = vpop.f32.mrb[0].mxu0
      %1643 = vmatprep.mubr.bf16.mxu0 %v577
      %1644 = vmatmul.mubr.bf16.gmra.mrb[0].mxu0 %v576
      %v1645 = vpop.f32.mrb[0].mxu0
      %v1646 = vadd.f32 %v1469, %v1645
      %v1647 = vpop.f32.mrb[0].mxu0
      %v1648 = vpop.f32.mrb[0].mxu0
      %v1649 = vadd.f32 %v1472, %v1648
      %v1650 = vpop.f32.mrb[0].mxu0
      %1651 = vmatprep.mubr.bf16.mxu0 %v578
      %1652 = vmatmul.mubr.bf16.gmra.mrb[0].mxu0 %v577
      %v1653 = vpop.f32.mrb[0].mxu0
      %v1654 = vadd.f32 %v1477, %v1653
      %v1655 = vpop.f32.mrb[0].mxu0
      %v1656 = vpop.f32.mrb[0].mxu0
      %v1657 = vadd.f32 %v1480, %v1656
      %v1658 = vpop.f32.mrb[0].mxu0
      %1659 = vmatprep.mubr.bf16.mxu0 %v579
      %1660 = vmatmul.mubr.bf16.gmra.mrb[0].mxu0 %v578
      %v1661 = vpop.f32.mrb[0].mxu0
      %v1662 = vadd.f32 %v1485, %v1661
      %v1663 = vpop.f32.mrb[0].mxu0
      %v1664 = vpop.f32.mrb[0].mxu0
      %v1665 = vadd.f32 %v1488, %v1664
      %v1666 = vpop.f32.mrb[0].mxu0
      %1667 = vmatprep.mubr.bf16.mxu0 %v580
      %1668 = vmatmul.mubr.bf16.gmra.mrb[0].mxu0 %v579
      %v1669 = vpop.f32.mrb[0].mxu0
      %v1670 = vadd.f32 %v1493, %v1669
      %v1671 = vpop.f32.mrb[0].mxu0
      %v1672 = vpop.f32.mrb[0].mxu0
      %v1673 = vadd.f32 %v1496, %v1672
      %v1674 = vpop.f32.mrb[0].mxu0
      %1675 = vmatprep.mubr.bf16.mxu0 %v581
      %1676 = vmatmul.mubr.bf16.gmra.mrb[0].mxu0 %v580
      %v1677 = vpop.f32.mrb[0].mxu0
      %v1678 = vadd.f32 %v1501, %v1677
      %v1679 = vpop.f32.mrb[0].mxu0
      %v1680 = vpop.f32.mrb[0].mxu0
      %v1681 = vadd.f32 %v1504, %v1680
      %v1682 = vpop.f32.mrb[0].mxu0
      %1683 = vmatprep.mubr.bf16.mxu0 %v582
      %1684 = vmatmul.mubr.bf16.gmra.mrb[0].mxu0 %v581
      %v1685 = vpop.f32.mrb[0].mxu0
      %v1686 = vadd.f32 %v1509, %v1685
      %v1687 = vpop.f32.mrb[0].mxu0
      %v1688 = vpop.f32.mrb[0].mxu0
      %v1689 = vadd.f32 %v1512, %v1688
      %v1690 = vpop.f32.mrb[0].mxu0
      %1691 = vmatprep.mubr.bf16.mxu0 %v583
      %1692 = vmatmul.mubr.bf16.gmra.mrb[0].mxu0 %v582
      %v1693 = vpop.f32.mrb[0].mxu0
      %v1694 = vadd.f32 %v1517, %v1693
      %v1695 = vpop.f32.mrb[0].mxu0
      %v1696 = vpop.f32.mrb[0].mxu0
      %v1697 = vadd.f32 %v1520, %v1696
      %v1698 = vpop.f32.mrb[0].mxu0
      %1699 = vmatprep.mubr.bf16.mxu0 %v584
      %1700 = vmatmul.mubr.bf16.gmra.mrb[0].mxu0 %v583
      %v1701 = vpop.f32.mrb[0].mxu0
      %v1702 = vadd.f32 %v1525, %v1701
      %v1703 = vpop.f32.mrb[0].mxu0
      %v1704 = vpop.f32.mrb[0].mxu0
      %v1705 = vadd.f32 %v1528, %v1704
      %v1706 = vpop.f32.mrb[0].mxu0
      %1707 = vmatprep.mubr.bf16.mxu0 %v585
      %1708 = vmatmul.mubr.bf16.gmra.mrb[0].mxu0 %v584
      %v1709 = vpop.f32.mrb[0].mxu0
      %v1710 = vadd.f32 %v1533, %v1709
      %v1711 = vpop.f32.mrb[0].mxu0
      %v1712 = vpop.f32.mrb[0].mxu0
      %v1713 = vadd.f32 %v1536, %v1712
      %v1714 = vpop.f32.mrb[0].mxu0
      %1715 = vmatprep.mubr.bf16.mxu0 %v586
      %1716 = vmatmul.mubr.bf16.gmra.mrb[0].mxu0 %v585
      %v1717 = vpop.f32.mrb[0].mxu0
      %v1718 = vadd.f32 %v1541, %v1717
      %v1719 = vpop.f32.mrb[0].mxu0
      %v1720 = vpop.f32.mrb[0].mxu0
      %v1721 = vadd.f32 %v1544, %v1720
      %v1722 = vpop.f32.mrb[0].mxu0
      %1723 = vmatprep.mubr.bf16.mxu0 %v587
      %1724 = vmatmul.mubr.bf16.gmra.mrb[0].mxu0 %v586
      %v1725 = vpop.f32.mrb[0].mxu0
      %v1726 = vadd.f32 %v1549, %v1725
      %v1727 = vpop.f32.mrb[0].mxu0
      %v1728 = vpop.f32.mrb[0].mxu0
      %v1729 = vadd.f32 %v1552, %v1728
      %v1730 = vpop.f32.mrb[0].mxu0
      %1731 = vmatprep.mubr.bf16.mxu0 %v588
      %1732 = vmatmul.mubr.bf16.gmra.mrb[0].mxu0 %v587
      %v1733 = vpop.f32.mrb[0].mxu0
      %v1734 = vadd.f32 %v1557, %v1733
      %v1735 = vpop.f32.mrb[0].mxu0
      %v1736 = vpop.f32.mrb[0].mxu0
      %v1737 = vadd.f32 %v1560, %v1736
      %v1738 = vpop.f32.mrb[0].mxu0
      %1739 = vmatprep.mubr.bf16.mxu0 %v591
      %1740 = vmatmul.mubr.bf16.gmra.mrb[0].mxu0 %v588
      %v1741 = vpop.f32.mrb[0].mxu0
      %v1742 = vadd.f32 %v1565, %v1741
      %v1743 = vpop.f32.mrb[0].mxu0
      %v1744 = vpop.f32.mrb[0].mxu0
      %v1745 = vadd.f32 %v1568, %v1744
      %v1746 = vpop.f32.mrb[0].mxu0
      %1747 = vdwg.mxu0
      %1748 = vmatprep.subr.bf16.mxu0 0
      %1749 = vmatpush1.bf16.msra.mxu0 %v1282
      %1750 = vmatprep.subr.bf16.mxu0 0
      %1751 = vmatpush1.bf16.msra.mxu0 %v1283
      %1752 = vmatprep.subr.bf16.mxu0 0
      %1753 = vmatpush1.bf16.msra.mxu0 %v1284
      %1754 = vmatprep.subr.bf16.mxu0 0
      %1755 = vmatpush1.bf16.msra.mxu0 %v1285
      %1756 = vmatprep.subr.bf16.mxu0 0
      %1757 = vmatpush1.bf16.msra.mxu0 %v1286
      %1758 = vmatprep.subr.bf16.mxu0 0
      %1759 = vmatpush1.bf16.msra.mxu0 %v1287
      %1760 = vmatprep.subr.bf16.mxu0 0
      %1761 = vmatpush1.bf16.msra.mxu0 %v1288
      %1762 = vmatprep.subr.bf16.mxu0 0
      %1763 = vmatpush1.bf16.msra.mxu0 %v1289
      %1764 = vmatprep.subr.bf16.mxu0 0
      %1765 = vmatpush1.bf16.msra.mxu0 %v1290
      %1766 = vmatprep.subr.bf16.mxu0 0
      %1767 = vmatpush1.bf16.msra.mxu0 %v1291
      %1768 = vmatprep.subr.bf16.mxu0 0
      %1769 = vmatpush1.bf16.msra.mxu0 %v1292
      %1770 = vmatprep.subr.bf16.mxu0 0
      %1771 = vmatpush1.bf16.msra.mxu0 %v1293
      %1772 = vmatprep.subr.bf16.mxu0 0
      %1773 = vmatpush1.bf16.msra.mxu0 %v1294
      %1774 = vmatprep.subr.bf16.mxu0 0
      %1775 = vmatpush1.bf16.msra.mxu0 %v1295
      %1776 = vmatprep.subr.bf16.mxu0 0
      %1777 = vmatpush1.bf16.msra.mxu0 %v1296
      %1778 = vmatprep.subr.bf16.mxu0 0
      %1779 = vmatpush1.bf16.msra.mxu0 %v1297
      %1780 = vmatprep.mubr.bf16.mxu0 %v682
      %1781 = vmatmul.mubr.bf16.gmra.mrb[0].mxu0 %v628
      %v1782 = vpop.f32.mrb[0].mxu0
      %v1783 = vadd.f32 %v1606, %v1782
      %v1784 = vpop.f32.mrb[0].mxu0
      %v1785 = vpop.f32.mrb[0].mxu0
      %v1786 = vadd.f32 %v1609, %v1785
      %v1787 = vpop.f32.mrb[0].mxu0
      %1788 = vmatprep.mubr.bf16.mxu0 %v683
      %1789 = vmatmul.mubr.bf16.gmra.mrb[0].mxu0 %v629
      %v1790 = vpop.f32.mrb[0].mxu0
      %v1791 = vadd.f32 %v1614, %v1790
      %v1792 = vpop.f32.mrb[0].mxu0
      %v1793 = vpop.f32.mrb[0].mxu0
      %v1794 = vadd.f32 %v1617, %v1793
      %v1795 = vpop.f32.mrb[0].mxu0
      %1796 = vmatprep.mubr.bf16.mxu0 %v684
      %1797 = vmatmul.mubr.bf16.gmra.mrb[0].mxu0 %v630
      %v1798 = vpop.f32.mrb[0].mxu0
      %v1799 = vadd.f32 %v1622, %v1798
      %v1800 = vpop.f32.mrb[0].mxu0
      %v1801 = vpop.f32.mrb[0].mxu0
      %v1802 = vadd.f32 %v1625, %v1801
      %v1803 = vpop.f32.mrb[0].mxu0
      %1804 = vmatprep.mubr.bf16.mxu0 %v685
      %1805 = vmatmul.mubr.bf16.gmra.mrb[0].mxu0 %v631
      %v1806 = vpop.f32.mrb[0].mxu0
      %v1807 = vadd.f32 %v1630, %v1806
      %v1808 = vpop.f32.mrb[0].mxu0
      %v1809 = vpop.f32.mrb[0].mxu0
      %v1810 = vadd.f32 %v1633, %v1809
      %v1811 = vpop.f32.mrb[0].mxu0
      %1812 = vmatprep.mubr.bf16.mxu0 %v686
      %1813 = vmatmul.mubr.bf16.gmra.mrb[0].mxu0 %v632
      %v1814 = vpop.f32.mrb[0].mxu0
      %v1815 = vadd.f32 %v1638, %v1814
      %v1816 = vpop.f32.mrb[0].mxu0
      %v1817 = vpop.f32.mrb[0].mxu0
      %v1818 = vadd.f32 %v1641, %v1817
      %v1819 = vpop.f32.mrb[0].mxu0
      %1820 = vmatprep.mubr.bf16.mxu0 %v687
      %1821 = vmatmul.mubr.bf16.gmra.mrb[0].mxu0 %v633
      %v1822 = vpop.f32.mrb[0].mxu0
      %v1823 = vadd.f32 %v1646, %v1822
      %v1824 = vpop.f32.mrb[0].mxu0
      %v1825 = vpop.f32.mrb[0].mxu0
      %v1826 = vadd.f32 %v1649, %v1825
      %v1827 = vpop.f32.mrb[0].mxu0
      %1828 = vmatprep.mubr.bf16.mxu0 %v688
      %1829 = vmatmul.mubr.bf16.gmra.mrb[0].mxu0 %v634
      %v1830 = vpop.f32.mrb[0].mxu0
      %v1831 = vadd.f32 %v1654, %v1830
      %v1832 = vpop.f32.mrb[0].mxu0
      %v1833 = vpop.f32.mrb[0].mxu0
      %v1834 = vadd.f32 %v1657, %v1833
      %v1835 = vpop.f32.mrb[0].mxu0
      %1836 = vmatprep.mubr.bf16.mxu0 %v689
      %1837 = vmatmul.mubr.bf16.gmra.mrb[0].mxu0 %v635
      %v1838 = vpop.f32.mrb[0].mxu0
      %v1839 = vadd.f32 %v1662, %v1838
      %v1840 = vpop.f32.mrb[0].mxu0
      %v1841 = vpop.f32.mrb[0].mxu0
      %v1842 = vadd.f32 %v1665, %v1841
      %v1843 = vpop.f32.mrb[0].mxu0
      %1844 = vmatprep.mubr.bf16.mxu0 %v690
      %1845 = vmatmul.mubr.bf16.gmra.mrb[0].mxu0 %v636
      %v1846 = vpop.f32.mrb[0].mxu0
      %v1847 = vadd.f32 %v1670, %v1846
      %v1848 = vpop.f32.mrb[0].mxu0
      %v1849 = vpop.f32.mrb[0].mxu0
      %v1850 = vadd.f32 %v1673, %v1849
      %v1851 = vpop.f32.mrb[0].mxu0
      %1852 = vmatprep.mubr.bf16.mxu0 %v691
      %1853 = vmatmul.mubr.bf16.gmra.mrb[0].mxu0 %v637
      %v1854 = vpop.f32.mrb[0].mxu0
      %v1855 = vadd.f32 %v1678, %v1854
      %v1856 = vpop.f32.mrb[0].mxu0
      %v1857 = vpop.f32.mrb[0].mxu0
      %v1858 = vadd.f32 %v1681, %v1857
      %v1859 = vpop.f32.mrb[0].mxu0
      %1860 = vmatprep.mubr.bf16.mxu0 %v692
      %1861 = vmatmul.mubr.bf16.gmra.mrb[0].mxu0 %v638
      %v1862 = vpop.f32.mrb[0].mxu0
      %v1863 = vadd.f32 %v1686, %v1862
      %v1864 = vpop.f32.mrb[0].mxu0
      %v1865 = vpop.f32.mrb[0].mxu0
      %v1866 = vadd.f32 %v1689, %v1865
      %v1867 = vpop.f32.mrb[0].mxu0
      %1868 = vmatprep.mubr.bf16.mxu0 %v693
      %1869 = vmatmul.mubr.bf16.gmra.mrb[0].mxu0 %v639
      %v1870 = vpop.f32.mrb[0].mxu0
      %v1871 = vadd.f32 %v1694, %v1870
      %v1872 = vpop.f32.mrb[0].mxu0
      %v1873 = vpop.f32.mrb[0].mxu0
      %v1874 = vadd.f32 %v1697, %v1873
      %v1875 = vpop.f32.mrb[0].mxu0
      %1876 = vmatprep.mubr.bf16.mxu0 %v694
      %1877 = vmatmul.mubr.bf16.gmra.mrb[0].mxu0 %v640
      %v1878 = vpop.f32.mrb[0].mxu0
      %v1879 = vadd.f32 %v1702, %v1878
      %v1880 = vpop.f32.mrb[0].mxu0
      %v1881 = vpop.f32.mrb[0].mxu0
      %v1882 = vadd.f32 %v1705, %v1881
      %v1883 = vpop.f32.mrb[0].mxu0
      %1884 = vmatprep.mubr.bf16.mxu0 %v695
      %1885 = vmatmul.mubr.bf16.gmra.mrb[0].mxu0 %v641
      %v1886 = vpop.f32.mrb[0].mxu0
      %v1887 = vadd.f32 %v1710, %v1886
      %v1888 = vpop.f32.mrb[0].mxu0
      %v1889 = vpop.f32.mrb[0].mxu0
      %v1890 = vadd.f32 %v1713, %v1889
      %v1891 = vpop.f32.mrb[0].mxu0
      %1892 = vmatprep.mubr.bf16.mxu0 %v696
      %1893 = vmatmul.mubr.bf16.gmra.mrb[0].mxu0 %v642
      %v1894 = vpop.f32.mrb[0].mxu0
      %v1895 = vadd.f32 %v1718, %v1894
      %v1896 = vpop.f32.mrb[0].mxu0
      %v1897 = vpop.f32.mrb[0].mxu0
      %v1898 = vadd.f32 %v1721, %v1897
      %v1899 = vpop.f32.mrb[0].mxu0
      %1900 = vmatprep.mubr.bf16.mxu0 %v697
      %1901 = vmatmul.mubr.bf16.gmra.mrb[0].mxu0 %v643
      %v1902 = vpop.f32.mrb[0].mxu0
      %v1903 = vadd.f32 %v1726, %v1902
      %v1904 = vpop.f32.mrb[0].mxu0
      %v1905 = vpop.f32.mrb[0].mxu0
      %v1906 = vadd.f32 %v1729, %v1905
      %v1907 = vpop.f32.mrb[0].mxu0
      %1908 = vmatprep.mubr.bf16.mxu0 %v698
      %1909 = vmatmul.mubr.bf16.gmra.mrb[0].mxu0 %v644
      %v1910 = vpop.f32.mrb[0].mxu0
      %v1911 = vadd.f32 %v1734, %v1910
      %v1912 = vpop.f32.mrb[0].mxu0
      %v1913 = vpop.f32.mrb[0].mxu0
      %v1914 = vadd.f32 %v1737, %v1913
      %v1915 = vpop.f32.mrb[0].mxu0
      %1916 = vmatprep.mubr.bf16.mxu0 %v699
      %1917 = vmatmul.mubr.bf16.gmra.mrb[0].mxu0 %v645
      %v1918 = vpop.f32.mrb[0].mxu0
      %v1919 = vadd.f32 %v1742, %v1918
      %v1920 = vpop.f32.mrb[0].mxu0
      %v1921 = vpop.f32.mrb[0].mxu0
      %v1922 = vadd.f32 %v1745, %v1921
      %v1923 = vpop.f32.mrb[0].mxu0
      %1924 = vdwg.mxu0
      %1925 = vmatprep.subr.bf16.mxu0 0
      %1926 = vmatpush1.bf16.msra.mxu0 %v1298
      %1927 = vmatprep.subr.bf16.mxu0 0
      %1928 = vmatpush1.bf16.msra.mxu0 %v1299
      %1929 = vmatprep.subr.bf16.mxu0 0
      %1930 = vmatpush1.bf16.msra.mxu0 %v1300
      %1931 = vmatprep.subr.bf16.mxu0 0
      %1932 = vmatpush1.bf16.msra.mxu0 %v1301
      %1933 = vmatprep.subr.bf16.mxu0 0
      %1934 = vmatpush1.bf16.msra.mxu0 %v1302
      %1935 = vmatprep.subr.bf16.mxu0 0
      %1936 = vmatpush1.bf16.msra.mxu0 %v1303
      %1937 = vmatprep.subr.bf16.mxu0 0
      %1938 = vmatpush1.bf16.msra.mxu0 %v1304
      %1939 = vmatprep.subr.bf16.mxu0 0
      %1940 = vmatpush1.bf16.msra.mxu0 %v1305
      %1941 = vmatprep.subr.bf16.mxu0 0
      %1942 = vmatpush1.bf16.msra.mxu0 %v1306
      %1943 = vmatprep.subr.bf16.mxu0 0
      %1944 = vmatpush1.bf16.msra.mxu0 %v1307
      %1945 = vmatprep.subr.bf16.mxu0 0
      %1946 = vmatpush1.bf16.msra.mxu0 %v1308
      %1947 = vmatprep.subr.bf16.mxu0 0
      %1948 = vmatpush1.bf16.msra.mxu0 %v1309
      %1949 = vmatprep.subr.bf16.mxu0 0
      %1950 = vmatpush1.bf16.msra.mxu0 %v1310
      %1951 = vmatprep.subr.bf16.mxu0 0
      %1952 = vmatpush1.bf16.msra.mxu0 %v1311
      %1953 = vmatprep.subr.bf16.mxu0 0
      %1954 = vmatpush1.bf16.msra.mxu0 %v1312
      %1955 = vmatprep.subr.bf16.mxu0 0
      %1956 = vmatpush1.bf16.msra.mxu0 %v1313
      %1957 = vmatprep.mubr.bf16.mxu0 %v739
      %1958 = vmatmul.mubr.bf16.gmra.mrb[0].mxu0 %v683
      %v1959 = vpop.f32.mrb[0].mxu0
      %v1960 = vadd.f32 %v1783, %v1959
      %v1961 = vpop.f32.mrb[0].mxu0
      %v1962 = vpop.f32.mrb[0].mxu0
      %v1963 = vadd.f32 %v1786, %v1962
      %v1964 = vpop.f32.mrb[0].mxu0
      %1965 = vmatprep.mubr.bf16.mxu0 %v740
      %1966 = vmatmul.mubr.bf16.gmra.mrb[0].mxu0 %v684
      %v1967 = vpop.f32.mrb[0].mxu0
      %v1968 = vadd.f32 %v1791, %v1967
      %v1969 = vpop.f32.mrb[0].mxu0
      %v1970 = vpop.f32.mrb[0].mxu0
      %v1971 = vadd.f32 %v1794, %v1970
      %v1972 = vpop.f32.mrb[0].mxu0
      %1973 = vmatprep.mubr.bf16.mxu0 %v741
      %1974 = vmatmul.mubr.bf16.gmra.mrb[0].mxu0 %v685
      %v1975 = vpop.f32.mrb[0].mxu0
      %v1976 = vadd.f32 %v1799, %v1975
      %v1977 = vpop.f32.mrb[0].mxu0
      %v1978 = vpop.f32.mrb[0].mxu0
      %v1979 = vadd.f32 %v1802, %v1978
      %v1980 = vpop.f32.mrb[0].mxu0
      %1981 = vmatprep.mubr.bf16.mxu0 %v742
      %1982 = vmatmul.mubr.bf16.gmra.mrb[0].mxu0 %v686
      %v1983 = vpop.f32.mrb[0].mxu0
      %v1984 = vadd.f32 %v1807, %v1983
      %v1985 = vpop.f32.mrb[0].mxu0
      %v1986 = vpop.f32.mrb[0].mxu0
      %v1987 = vadd.f32 %v1810, %v1986
      %v1988 = vpop.f32.mrb[0].mxu0
      %1989 = vmatprep.mubr.bf16.mxu0 %v743
      %1990 = vmatmul.mubr.bf16.gmra.mrb[0].mxu0 %v687
      %v1991 = vpop.f32.mrb[0].mxu0
      %v1992 = vadd.f32 %v1815, %v1991
      %v1993 = vpop.f32.mrb[0].mxu0
      %v1994 = vpop.f32.mrb[0].mxu0
      %v1995 = vadd.f32 %v1818, %v1994
      %v1996 = vpop.f32.mrb[0].mxu0
      %1997 = vmatprep.mubr.bf16.mxu0 %v744
      %1998 = vmatmul.mubr.bf16.gmra.mrb[0].mxu0 %v688
      %v1999 = vpop.f32.mrb[0].mxu0
      %v2000 = vadd.f32 %v1823, %v1999
      %v2001 = vpop.f32.mrb[0].mxu0
      %v2002 = vpop.f32.mrb[0].mxu0
      %v2003 = vadd.f32 %v1826, %v2002
      %v2004 = vpop.f32.mrb[0].mxu0
      %2005 = vmatprep.mubr.bf16.mxu0 %v745
      %2006 = vmatmul.mubr.bf16.gmra.mrb[0].mxu0 %v689
      %v2007 = vpop.f32.mrb[0].mxu0
      %v2008 = vadd.f32 %v1831, %v2007
      %v2009 = vpop.f32.mrb[0].mxu0
      %v2010 = vpop.f32.mrb[0].mxu0
      %v2011 = vadd.f32 %v1834, %v2010
      %v2012 = vpop.f32.mrb[0].mxu0
      %2013 = vmatprep.mubr.bf16.mxu0 %v746
      %2014 = vmatmul.mubr.bf16.gmra.mrb[0].mxu0 %v690
      %v2015 = vpop.f32.mrb[0].mxu0
      %v2016 = vadd.f32 %v1839, %v2015
      %v2017 = vpop.f32.mrb[0].mxu0
      %v2018 = vpop.f32.mrb[0].mxu0
      %v2019 = vadd.f32 %v1842, %v2018
      %v2020 = vpop.f32.mrb[0].mxu0
      %2021 = vmatprep.mubr.bf16.mxu0 %v747
      %2022 = vmatmul.mubr.bf16.gmra.mrb[0].mxu0 %v691
      %v2023 = vpop.f32.mrb[0].mxu0
      %v2024 = vadd.f32 %v1847, %v2023
      %v2025 = vpop.f32.mrb[0].mxu0
      %v2026 = vpop.f32.mrb[0].mxu0
      %v2027 = vadd.f32 %v1850, %v2026
      %v2028 = vpop.f32.mrb[0].mxu0
      %2029 = vmatprep.mubr.bf16.mxu0 %v748
      %2030 = vmatmul.mubr.bf16.gmra.mrb[0].mxu0 %v692
      %v2031 = vpop.f32.mrb[0].mxu0
      %v2032 = vadd.f32 %v1855, %v2031
      %v2033 = vpop.f32.mrb[0].mxu0
      %v2034 = vpop.f32.mrb[0].mxu0
      %v2035 = vadd.f32 %v1858, %v2034
      %v2036 = vpop.f32.mrb[0].mxu0
      %2037 = vmatprep.mubr.bf16.mxu0 %v749
      %2038 = vmatmul.mubr.bf16.gmra.mrb[0].mxu0 %v693
      %v2039 = vpop.f32.mrb[0].mxu0
      %v2040 = vadd.f32 %v1863, %v2039
      %v2041 = vpop.f32.mrb[0].mxu0
      %v2042 = vpop.f32.mrb[0].mxu0
      %v2043 = vadd.f32 %v1866, %v2042
      %v2044 = vpop.f32.mrb[0].mxu0
      %2045 = vmatprep.mubr.bf16.mxu0 %v750
      %2046 = vmatmul.mubr.bf16.gmra.mrb[0].mxu0 %v694
      %v2047 = vpop.f32.mrb[0].mxu0
      %v2048 = vadd.f32 %v1871, %v2047
      %v2049 = vpop.f32.mrb[0].mxu0
      %v2050 = vpop.f32.mrb[0].mxu0
      %v2051 = vadd.f32 %v1874, %v2050
      %v2052 = vpop.f32.mrb[0].mxu0
      %2053 = vmatprep.mubr.bf16.mxu0 %v751
      %2054 = vmatmul.mubr.bf16.gmra.mrb[0].mxu0 %v695
      %v2055 = vpop.f32.mrb[0].mxu0
      %v2056 = vadd.f32 %v1879, %v2055
      %v2057 = vpop.f32.mrb[0].mxu0
      %v2058 = vpop.f32.mrb[0].mxu0
      %v2059 = vadd.f32 %v1882, %v2058
      %v2060 = vpop.f32.mrb[0].mxu0
      %2061 = vmatprep.mubr.bf16.mxu0 %v752
      %2062 = vmatmul.mubr.bf16.gmra.mrb[0].mxu0 %v696
      %v2063 = vpop.f32.mrb[0].mxu0
      %v2064 = vadd.f32 %v1887, %v2063
      %v2065 = vpop.f32.mrb[0].mxu0
      %v2066 = vpop.f32.mrb[0].mxu0
      %v2067 = vadd.f32 %v1890, %v2066
      %v2068 = vpop.f32.mrb[0].mxu0
      %2069 = vmatprep.mubr.bf16.mxu0 %v753
      %2070 = vmatmul.mubr.bf16.gmra.mrb[0].mxu0 %v697
      %v2071 = vpop.f32.mrb[0].mxu0
      %v2072 = vadd.f32 %v1895, %v2071
      %v2073 = vpop.f32.mrb[0].mxu0
      %v2074 = vpop.f32.mrb[0].mxu0
      %v2075 = vadd.f32 %v1898, %v2074
      %v2076 = vpop.f32.mrb[0].mxu0
      %2077 = vmatprep.mubr.bf16.mxu0 %v754
      %2078 = vmatmul.mubr.bf16.gmra.mrb[0].mxu0 %v698
      %v2079 = vpop.f32.mrb[0].mxu0
      %v2080 = vadd.f32 %v1903, %v2079
      %v2081 = vpop.f32.mrb[0].mxu0
      %v2082 = vpop.f32.mrb[0].mxu0
      %v2083 = vadd.f32 %v1906, %v2082
      %v2084 = vpop.f32.mrb[0].mxu0
      %2085 = vmatprep.mubr.bf16.mxu0 %v755
      %2086 = vmatmul.mubr.bf16.gmra.mrb[0].mxu0 %v699
      %v2087 = vpop.f32.mrb[0].mxu0
      %v2088 = vadd.f32 %v1911, %v2087
      %v2089 = vpop.f32.mrb[0].mxu0
      %v2090 = vpop.f32.mrb[0].mxu0
      %v2091 = vadd.f32 %v1914, %v2090
      %v2092 = vpop.f32.mrb[0].mxu0
      %2093 = vmatprep.mubr.bf16.mxu0 %v756
      %2094 = vmatmul.mubr.bf16.gmra.mrb[0].mxu0 %v702
      %v2095 = vpop.f32.mrb[0].mxu0
      %v2096 = vadd.f32 %v1919, %v2095
      %v2097 = vpop.f32.mrb[0].mxu0
      %v2098 = vpop.f32.mrb[0].mxu0
      %v2099 = vadd.f32 %v1922, %v2098
      %v2100 = vpop.f32.mrb[0].mxu0
      %2101 = vdwg.mxu0
      %2102 = vmatprep.subr.bf16.mxu0 0
      %2103 = vmatpush1.bf16.msra.mxu0 %v1314
      %2104 = vmatprep.subr.bf16.mxu0 0
      %2105 = vmatpush1.bf16.msra.mxu0 %v1315
      %2106 = vmatprep.subr.bf16.mxu0 0
      %2107 = vmatpush1.bf16.msra.mxu0 %v1316
      %2108 = vmatprep.subr.bf16.mxu0 0
      %2109 = vmatpush1.bf16.msra.mxu0 %v1317
      %2110 = vmatprep.subr.bf16.mxu0 0
      %2111 = vmatpush1.bf16.msra.mxu0 %v1318
      %2112 = vmatprep.subr.bf16.mxu0 0
      %2113 = vmatpush1.bf16.msra.mxu0 %v1319
      %2114 = vmatprep.subr.bf16.mxu0 0
      %2115 = vmatpush1.bf16.msra.mxu0 %v1320
      %2116 = vmatprep.subr.bf16.mxu0 0
      %2117 = vmatpush1.bf16.msra.mxu0 %v1321
      %2118 = vmatprep.subr.bf16.mxu0 0
      %2119 = vmatpush1.bf16.msra.mxu0 0
      %2120 = vmatprep.subr.bf16.mxu0 0
      %2121 = vmatpush1.bf16.msra.mxu0 0
      %2122 = vmatprep.subr.bf16.mxu0 0
      %2123 = vmatpush1.bf16.msra.mxu0 0
      %2124 = vmatprep.subr.bf16.mxu0 0
      %2125 = vmatpush1.bf16.msra.mxu0 0
      %2126 = vmatprep.subr.bf16.mxu0 0
      %2127 = vmatpush1.bf16.msra.mxu0 0
      %2128 = vmatprep.subr.bf16.mxu0 0
      %2129 = vmatpush1.bf16.msra.mxu0 0
      %2130 = vmatprep.subr.bf16.mxu0 0
      %2131 = vmatpush1.bf16.msra.mxu0 0
      %2132 = vmatprep.subr.bf16.mxu0 0
      %2133 = vmatpush1.bf16.msra.mxu0 0
      %2134 = vmatprep.mubr.bf16.mxu0 0
      %2135 = vmatmul.mubr.bf16.gmra.mrb[0].mxu0 %v793
      %v2136 = vpop.f32.mrb[0].mxu0
      %v2137 = vadd.f32 %v1960, %v2136
      %v2138 = vpop.f32.mrb[0].mxu0
      %v2139 = vpop.f32.mrb[0].mxu0
      %v2140 = vadd.f32 %v1963, %v2139
      %v2141 = vpop.f32.mrb[0].mxu0
      %2142 = vmatprep.mubr.bf16.mxu0 0
      %2143 = vmatmul.mubr.bf16.gmra.mrb[0].mxu0 %v794
      %v2144 = vpop.f32.mrb[0].mxu0
      %v2145 = vadd.f32 %v1968, %v2144
      %v2146 = vpop.f32.mrb[0].mxu0
      %v2147 = vpop.f32.mrb[0].mxu0
      %v2148 = vadd.f32 %v1971, %v2147
      %v2149 = vpop.f32.mrb[0].mxu0
      %2150 = vmatprep.mubr.bf16.mxu0 0
      %2151 = vmatmul.mubr.bf16.gmra.mrb[0].mxu0 %v795
      %v2152 = vpop.f32.mrb[0].mxu0
      %v2153 = vadd.f32 %v1976, %v2152
      %v2154 = vpop.f32.mrb[0].mxu0
      %v2155 = vpop.f32.mrb[0].mxu0
      %v2156 = vadd.f32 %v1979, %v2155
      %v2157 = vpop.f32.mrb[0].mxu0
      %2158 = vmatprep.mubr.bf16.mxu0 0
      %2159 = vmatmul.mubr.bf16.gmra.mrb[0].mxu0 %v796
      %v2160 = vpop.f32.mrb[0].mxu0
      %v2161 = vadd.f32 %v1984, %v2160
      %v2162 = vpop.f32.mrb[0].mxu0
      %v2163 = vpop.f32.mrb[0].mxu0
      %v2164 = vadd.f32 %v1987, %v2163
      %v2165 = vpop.f32.mrb[0].mxu0
      %2166 = vmatprep.mubr.bf16.mxu0 0
      %2167 = vmatmul.mubr.bf16.gmra.mrb[0].mxu0 %v797
      %v2168 = vpop.f32.mrb[0].mxu0
      %v2169 = vadd.f32 %v1992, %v2168
      %v2170 = vpop.f32.mrb[0].mxu0
      %v2171 = vpop.f32.mrb[0].mxu0
      %v2172 = vadd.f32 %v1995, %v2171
      %v2173 = vpop.f32.mrb[0].mxu0
      %2174 = vmatprep.mubr.bf16.mxu0 0
      %2175 = vmatmul.mubr.bf16.gmra.mrb[0].mxu0 %v798
      %v2176 = vpop.f32.mrb[0].mxu0
      %v2177 = vadd.f32 %v2000, %v2176
      %v2178 = vpop.f32.mrb[0].mxu0
      %v2179 = vpop.f32.mrb[0].mxu0
      %v2180 = vadd.f32 %v2003, %v2179
      %v2181 = vpop.f32.mrb[0].mxu0
      %2182 = vmatprep.mubr.bf16.mxu0 0
      %2183 = vmatmul.mubr.bf16.gmra.mrb[0].mxu0 %v799
      %v2184 = vpop.f32.mrb[0].mxu0
      %v2185 = vadd.f32 %v2008, %v2184
      %v2186 = vpop.f32.mrb[0].mxu0
      %v2187 = vpop.f32.mrb[0].mxu0
      %v2188 = vadd.f32 %v2011, %v2187
      %v2189 = vpop.f32.mrb[0].mxu0
      %2190 = vmatprep.mubr.bf16.mxu0 0
      %2191 = vmatmul.mubr.bf16.gmra.mrb[0].mxu0 %v800
      %v2192 = vpop.f32.mrb[0].mxu0
      %v2193 = vadd.f32 %v2016, %v2192
      %v2194 = vpop.f32.mrb[0].mxu0
      %v2195 = vpop.f32.mrb[0].mxu0
      %v2196 = vadd.f32 %v2019, %v2195
      %v2197 = vpop.f32.mrb[0].mxu0
      %2198 = vmatprep.mubr.bf16.mxu0 0
      %2199 = vmatmul.mubr.bf16.gmra.mrb[0].mxu0 %v801
      %v2200 = vpop.f32.mrb[0].mxu0
      %v2201 = vadd.f32 %v2024, %v2200
      %v2202 = vpop.f32.mrb[0].mxu0
      %v2203 = vpop.f32.mrb[0].mxu0
      %v2204 = vadd.f32 %v2027, %v2203
      %v2205 = vpop.f32.mrb[0].mxu0
      %2206 = vmatprep.mubr.bf16.mxu0 0
      %2207 = vmatmul.mubr.bf16.gmra.mrb[0].mxu0 %v802
      %v2208 = vpop.f32.mrb[0].mxu0
      %v2209 = vadd.f32 %v2032, %v2208
      %v2210 = vpop.f32.mrb[0].mxu0
      %v2211 = vpop.f32.mrb[0].mxu0
      %v2212 = vadd.f32 %v2035, %v2211
      %v2213 = vpop.f32.mrb[0].mxu0
      %2214 = vmatprep.mubr.bf16.mxu0 0
      %2215 = vmatmul.mubr.bf16.gmra.mrb[0].mxu0 %v803
      %v2216 = vpop.f32.mrb[0].mxu0
      %v2217 = vadd.f32 %v2040, %v2216
      %v2218 = vpop.f32.mrb[0].mxu0
      %v2219 = vpop.f32.mrb[0].mxu0
      %v2220 = vadd.f32 %v2043, %v2219
      %v2221 = vpop.f32.mrb[0].mxu0
      %2222 = vmatprep.mubr.bf16.mxu0 0
      %2223 = vmatmul.mubr.bf16.gmra.mrb[0].mxu0 %v804
      %v2224 = vpop.f32.mrb[0].mxu0
      %v2225 = vadd.f32 %v2048, %v2224
      %v2226 = vpop.f32.mrb[0].mxu0
      %v2227 = vpop.f32.mrb[0].mxu0
      %v2228 = vadd.f32 %v2051, %v2227
      %v2229 = vpop.f32.mrb[0].mxu0
      %2230 = vmatprep.mubr.bf16.mxu0 0
      %2231 = vmatmul.mubr.bf16.gmra.mrb[0].mxu0 %v805
      %v2232 = vpop.f32.mrb[0].mxu0
      %v2233 = vadd.f32 %v2056, %v2232
      %v2234 = vpop.f32.mrb[0].mxu0
      %v2235 = vpop.f32.mrb[0].mxu0
      %v2236 = vadd.f32 %v2059, %v2235
      %v2237 = vpop.f32.mrb[0].mxu0
      %2238 = vmatprep.mubr.bf16.mxu0 0
      %2239 = vmatmul.mubr.bf16.gmra.mrb[0].mxu0 %v806
      %v2240 = vpop.f32.mrb[0].mxu0
      %v2241 = vadd.f32 %v2064, %v2240
      %v2242 = vpop.f32.mrb[0].mxu0
      %v2243 = vpop.f32.mrb[0].mxu0
      %v2244 = vadd.f32 %v2067, %v2243
      %v2245 = vpop.f32.mrb[0].mxu0
      %2246 = vmatprep.mubr.bf16.mxu0 0
      %2247 = vmatmul.mubr.bf16.gmra.mrb[0].mxu0 %v807
      %v2248 = vpop.f32.mrb[0].mxu0
      %v2249 = vadd.f32 %v2072, %v2248
      %v2250 = vpop.f32.mrb[0].mxu0
      %v2251 = vpop.f32.mrb[0].mxu0
      %v2252 = vadd.f32 %v2075, %v2251
      %v2253 = vpop.f32.mrb[0].mxu0
      %2254 = vmatprep.mubr.bf16.mxu0 0
      %2255 = vmatmul.mubr.bf16.gmra.mrb[0].mxu0 %v808
      %v2256 = vpop.f32.mrb[0].mxu0
      %v2257 = vadd.f32 %v2080, %v2256
      %v2258 = vpop.f32.mrb[0].mxu0
      %v2259 = vpop.f32.mrb[0].mxu0
      %v2260 = vadd.f32 %v2083, %v2259
      %v2261 = vpop.f32.mrb[0].mxu0
      %2262 = vmatprep.mubr.bf16.mxu0 0
      %2263 = vmatmul.mubr.bf16.gmra.mrb[0].mxu0 %v809
      %v2264 = vpop.f32.mrb[0].mxu0
      %v2265 = vadd.f32 %v2088, %v2264
      %v2266 = vpop.f32.mrb[0].mxu0
      %v2267 = vpop.f32.mrb[0].mxu0
      %v2268 = vadd.f32 %v2091, %v2267
      %v2269 = vpop.f32.mrb[0].mxu0
      %2270 = vmatprep.mubr.bf16.mxu0 0
      %2271 = vmatmul.mubr.bf16.gmra.mrb[0].mxu0 %v810
      %v2272 = vpop.f32.mrb[0].mxu0
      %v2273 = vadd.f32 %v2096, %v2272
      %v2274 = vpop.f32.mrb[0].mxu0
      %v2275 = vpop.f32.mrb[0].mxu0
      %v2276 = vadd.f32 %v2099, %v2275
      %v2277 = vpop.f32.mrb[0].mxu0
      %2278 = vdwg.mxu0
      %2280 = vset.pattern.permute.xlu0 0
      %2281 = vperm.xlu0 %2280, %v389
      %v2282 = vpop.permute.xlu0 %2281
      %2285 = vset.pattern.permute.xlu0 0
      %2286 = vperm.xlu0 %2285, %v390
      %v2287 = vpop.permute.xlu0 %2286
      %2290 = vset.pattern.permute.xlu0 0
      %2291 = vperm.xlu0 %2290, %v391
      %v2292 = vpop.permute.xlu0 %2291
      %2295 = vset.pattern.permute.xlu0 0
      %2296 = vperm.xlu0 %2295, %v392
      %v2297 = vpop.permute.xlu0 %2296
      %2300 = vset.pattern.permute.xlu0 0
      %2301 = vperm.xlu0 %2300, %v393
      %v2302 = vpop.permute.xlu0 %2301
      %2305 = vset.pattern.permute.xlu0 0
      %2306 = vperm.xlu0 %2305, %v394
      %v2307 = vpop.permute.xlu0 %2306
      %2310 = vset.pattern.permute.xlu0 0
      %2311 = vperm.xlu0 %2310, %v395
      %v2312 = vpop.permute.xlu0 %2311
      %2315 = vset.pattern.permute.xlu0 0
      %2316 = vperm.xlu0 %2315, %v396
      %v2317 = vpop.permute.xlu0 %2316
      %2320 = vset.pattern.permute.xlu0 0
      %2321 = vperm.xlu0 %2320, %v397
      %v2322 = vpop.permute.xlu0 %2321
      %2325 = vset.pattern.permute.xlu0 0
      %2326 = vperm.xlu0 %2325, %v398
      %v2327 = vpop.permute.xlu0 %2326
      %2330 = vset.pattern.permute.xlu0 0
      %2331 = vperm.xlu0 %2330, %v399
      %v2332 = vpop.permute.xlu0 %2331
      %2335 = vset.pattern.permute.xlu0 0
      %2336 = vperm.xlu0 %2335, %v400
      %v2337 = vpop.permute.xlu0 %2336
      %2340 = vset.pattern.permute.xlu0 0
      %2341 = vperm.xlu0 %2340, %v401
      %v2342 = vpop.permute.xlu0 %2341
      %2345 = vset.pattern.permute.xlu0 0
      %2346 = vperm.xlu0 %2345, %v402
      %v2347 = vpop.permute.xlu0 %2346
      %2350 = vset.pattern.permute.xlu0 0
      %2351 = vperm.xlu0 %2350, %v403
      %v2352 = vpop.permute.xlu0 %2351
      %2355 = vset.pattern.permute.xlu0 0
      %2356 = vperm.xlu0 %2355, %v404
      %v2357 = vpop.permute.xlu0 %2356
      %2360 = vset.pattern.permute.xlu0 0
      %2361 = vperm.xlu0 %2360, %v405
      %v2362 = vpop.permute.xlu0 %2361
      %2365 = vset.pattern.permute.xlu0 0
      %2366 = vperm.xlu0 %2365, %v406
      %v2367 = vpop.permute.xlu0 %2366
      %2370 = vset.pattern.permute.xlu0 0
      %2371 = vperm.xlu0 %2370, %v407
      %v2372 = vpop.permute.xlu0 %2371
      %2375 = vset.pattern.permute.xlu0 0
      %2376 = vperm.xlu0 %2375, %v408
      %v2377 = vpop.permute.xlu0 %2376
      %2380 = vset.pattern.permute.xlu0 0
      %2381 = vperm.xlu0 %2380, %v409
      %v2382 = vpop.permute.xlu0 %2381
      %2385 = vset.pattern.permute.xlu0 0
      %2386 = vperm.xlu0 %2385, %v410
      %v2387 = vpop.permute.xlu0 %2386
      %2390 = vset.pattern.permute.xlu0 0
      %2391 = vperm.xlu0 %2390, %v411
      %v2392 = vpop.permute.xlu0 %2391
      %2395 = vset.pattern.permute.xlu0 0
      %2396 = vperm.xlu0 %2395, %v412
      %v2397 = vpop.permute.xlu0 %2396
      %2400 = vset.pattern.permute.xlu0 0
      %2401 = vperm.xlu0 %2400, %v413
      %v2402 = vpop.permute.xlu0 %2401
      %2405 = vset.pattern.permute.xlu0 0
      %2406 = vperm.xlu0 %2405, %v414
      %v2407 = vpop.permute.xlu0 %2406
      %2410 = vset.pattern.permute.xlu0 0
      %2411 = vperm.xlu0 %2410, %v415
      %v2412 = vpop.permute.xlu0 %2411
      %2415 = vset.pattern.permute.xlu0 0
      %2416 = vperm.xlu0 %2415, %v416
      %v2417 = vpop.permute.xlu0 %2416
      %2420 = vset.pattern.permute.xlu0 0
      %2421 = vperm.xlu0 %2420, %v417
      %v2422 = vpop.permute.xlu0 %2421
      %2425 = vset.pattern.permute.xlu0 0
      %2426 = vperm.xlu0 %2425, %v418
      %v2427 = vpop.permute.xlu0 %2426
      %2430 = vset.pattern.permute.xlu0 0
      %2431 = vperm.xlu0 %2430, %v419
      %v2432 = vpop.permute.xlu0 %2431
      %2435 = vset.pattern.permute.xlu0 0
      %2436 = vperm.xlu0 %2435, %v420
      %v2437 = vpop.permute.xlu0 %2436
      %2440 = vset.pattern.permute.xlu0 0
      %2441 = vperm.xlu0 %2440, %v421
      %v2442 = vpop.permute.xlu0 %2441
      %2445 = vset.pattern.permute.xlu0 0
      %2446 = vperm.xlu0 %2445, %v422
      %v2447 = vpop.permute.xlu0 %2446
      %2450 = vset.pattern.permute.xlu0 0
      %2451 = vperm.xlu0 %2450, %v423
      %v2452 = vpop.permute.xlu0 %2451
      %2455 = vset.pattern.permute.xlu0 0
      %2456 = vperm.xlu0 %2455, %v424
      %v2457 = vpop.permute.xlu0 %2456
      %v2459 = vmul.f32 %v2137, %v2282
      %v2460 = vmul.f32 %v2140, %v2287
      %v2461 = vmul.f32 %v2145, %v2292
      %v2462 = vmul.f32 %v2148, %v2297
      %v2463 = vmul.f32 %v2153, %v2302
      %v2464 = vmul.f32 %v2156, %v2307
      %v2465 = vmul.f32 %v2161, %v2312
      %v2466 = vmul.f32 %v2164, %v2317
      %v2467 = vmul.f32 %v2169, %v2322
      %v2468 = vmul.f32 %v2172, %v2327
      %v2469 = vmul.f32 %v2177, %v2332
      %v2470 = vmul.f32 %v2180, %v2337
      %v2471 = vmul.f32 %v2185, %v2342
      %v2472 = vmul.f32 %v2188, %v2347
      %v2473 = vmul.f32 %v2193, %v2352
      %v2474 = vmul.f32 %v2196, %v2357
      %v2475 = vmul.f32 %v2201, %v2362
      %v2476 = vmul.f32 %v2204, %v2367
      %v2477 = vmul.f32 %v2209, %v2372
      %v2478 = vmul.f32 %v2212, %v2377
      %v2479 = vmul.f32 %v2217, %v2382
      %v2480 = vmul.f32 %v2220, %v2387
      %v2481 = vmul.f32 %v2225, %v2392
      %v2482 = vmul.f32 %v2228, %v2397
      %v2483 = vmul.f32 %v2233, %v2402
      %v2484 = vmul.f32 %v2236, %v2407
      %v2485 = vmul.f32 %v2241, %v2412
      %v2486 = vmul.f32 %v2244, %v2417
      %v2487 = vmul.f32 %v2249, %v2422
      %v2488 = vmul.f32 %v2252, %v2427
      %v2489 = vmul.f32 %v2257, %v2432
      %v2490 = vmul.f32 %v2260, %v2437
      %v2491 = vmul.f32 %v2265, %v2442
      %v2492 = vmul.f32 %v2268, %v2447
      %v2493 = vmul.f32 %v2273, %v2452
      %v2494 = vmul.f32 %v2276, %v2457
      %v2495 = vadd.f32 %v2459, %v2460
      %v2496 = vadd.f32 %v2495, %v2461
      %v2497 = vadd.f32 %v2496, %v2462
      %v2498 = vadd.f32 %v2497, %v2463
      %v2499 = vadd.f32 %v2498, %v2464
      %v2500 = vadd.f32 %v2499, %v2465
      %v2501 = vadd.f32 %v2500, %v2466
      %v2502 = vadd.f32 %v2501, %v2467
      %v2503 = vadd.f32 %v2502, %v2468
      %v2504 = vadd.f32 %v2503, %v2469
      %v2505 = vadd.f32 %v2504, %v2470
      %v2506 = vadd.f32 %v2505, %v2471
      %v2507 = vadd.f32 %v2506, %v2472
      %v2508 = vadd.f32 %v2507, %v2473
      %v2509 = vadd.f32 %v2508, %v2474
      %v2510 = vadd.f32 %v2509, %v2475
      %v2511 = vadd.f32 %v2510, %v2476
      %v2512 = vadd.f32 %v2511, %v2477
      %v2513 = vadd.f32 %v2512, %v2478
      %v2514 = vadd.f32 %v2513, %v2479
      %v2515 = vadd.f32 %v2514, %v2480
      %v2516 = vadd.f32 %v2515, %v2481
      %v2517 = vadd.f32 %v2516, %v2482
      %v2518 = vadd.f32 %v2517, %v2483
      %v2519 = vadd.f32 %v2518, %v2484
      %v2520 = vadd.f32 %v2519, %v2485
      %v2521 = vadd.f32 %v2520, %v2486
      %v2522 = vadd.f32 %v2521, %v2487
      %v2523 = vadd.f32 %v2522, %v2488
      %v2524 = vadd.f32 %v2523, %v2489
      %v2525 = vadd.f32 %v2524, %v2490
      %v2526 = vadd.f32 %v2525, %v2491
      %v2527 = vadd.f32 %v2526, %v2492
      %v2528 = vadd.f32 %v2527, %v2493
      %v2529 = vadd.f32 %v2528, %v2494
      %2530 = vadd.xlane.f32.xlu0 %v2529
      %v2531 = vpop.xlane.xlu0 %2530
      %v2532 = vrot.slane %v2531, 4
      %v2533 = vadd.f32 %v2531, %v2532
      %v2534 = vrot.slane %v2533, 2
      %v2535 = vadd.f32 %v2533, %v2534
      %v2536 = vrot.slane %v2535, 1
      %v2537 = vadd.f32 %v2535, %v2536
      %s2538 = vtos %v2537
      %s2539 = smul.f32 %s2538, 0.00012207031
      %v2540 = vmul.f32 %v2459, %v2459
      %v2541 = vmul.f32 %v2460, %v2460
      %v2542 = vmul.f32 %v2461, %v2461
      %v2543 = vmul.f32 %v2462, %v2462
      %v2544 = vmul.f32 %v2463, %v2463
      %v2545 = vmul.f32 %v2464, %v2464
      %v2546 = vmul.f32 %v2465, %v2465
      %v2547 = vmul.f32 %v2466, %v2466
      %v2548 = vmul.f32 %v2467, %v2467
      %v2549 = vmul.f32 %v2468, %v2468
      %v2550 = vmul.f32 %v2469, %v2469
      %v2551 = vmul.f32 %v2470, %v2470
      %v2552 = vmul.f32 %v2471, %v2471
      %v2553 = vmul.f32 %v2472, %v2472
      %v2554 = vmul.f32 %v2473, %v2473
      %v2555 = vmul.f32 %v2474, %v2474
      %v2556 = vmul.f32 %v2475, %v2475
      %v2557 = vmul.f32 %v2476, %v2476
      %v2558 = vmul.f32 %v2477, %v2477
      %v2559 = vmul.f32 %v2478, %v2478
      %v2560 = vmul.f32 %v2479, %v2479
      %v2561 = vmul.f32 %v2480, %v2480
      %v2562 = vmul.f32 %v2481, %v2481
      %v2563 = vmul.f32 %v2482, %v2482
      %v2564 = vmul.f32 %v2483, %v2483
      %v2565 = vmul.f32 %v2484, %v2484
      %v2566 = vmul.f32 %v2485, %v2485
      %v2567 = vmul.f32 %v2486, %v2486
      %v2568 = vmul.f32 %v2487, %v2487
      %v2569 = vmul.f32 %v2488, %v2488
      %v2570 = vmul.f32 %v2489, %v2489
      %v2571 = vmul.f32 %v2490, %v2490
      %v2572 = vmul.f32 %v2491, %v2491
      %v2573 = vmul.f32 %v2492, %v2492
      %v2574 = vmul.f32 %v2493, %v2493
      %v2575 = vmul.f32 %v2494, %v2494
      %v2576 = vadd.f32 %v2540, %v2541
      %v2577 = vadd.f32 %v2576, %v2542
      %v2578 = vadd.f32 %v2577, %v2543
      %v2579 = vadd.f32 %v2578, %v2544
      %v2580 = vadd.f32 %v2579, %v2545
      %v2581 = vadd.f32 %v2580, %v2546
      %v2582 = vadd.f32 %v2581, %v2547
      %v2583 = vadd.f32 %v2582, %v2548
      %v2584 = vadd.f32 %v2583, %v2549
      %v2585 = vadd.f32 %v2584, %v2550
      %v2586 = vadd.f32 %v2585, %v2551
      %v2587 = vadd.f32 %v2586, %v2552
      %v2588 = vadd.f32 %v2587, %v2553
      %v2589 = vadd.f32 %v2588, %v2554
      %v2590 = vadd.f32 %v2589, %v2555
      %v2591 = vadd.f32 %v2590, %v2556
      %v2592 = vadd.f32 %v2591, %v2557
      %v2593 = vadd.f32 %v2592, %v2558
      %v2594 = vadd.f32 %v2593, %v2559
      %v2595 = vadd.f32 %v2594, %v2560
      %v2596 = vadd.f32 %v2595, %v2561
      %v2597 = vadd.f32 %v2596, %v2562
      %v2598 = vadd.f32 %v2597, %v2563
      %v2599 = vadd.f32 %v2598, %v2564
      %v2600 = vadd.f32 %v2599, %v2565
      %v2601 = vadd.f32 %v2600, %v2566
      %v2602 = vadd.f32 %v2601, %v2567
      %v2603 = vadd.f32 %v2602, %v2568
      %v2604 = vadd.f32 %v2603, %v2569
      %v2605 = vadd.f32 %v2604, %v2570
      %v2606 = vadd.f32 %v2605, %v2571
      %v2607 = vadd.f32 %v2606, %v2572
      %v2608 = vadd.f32 %v2607, %v2573
      %v2609 = vadd.f32 %v2608, %v2574
      %v2610 = vadd.f32 %v2609, %v2575
      %2611 = vadd.xlane.f32.xlu0 %v2610
      %v2612 = vpop.xlane.xlu0 %2611
      %v2613 = vrot.slane %v2612, 4
      %v2614 = vadd.f32 %v2612, %v2613
      %v2615 = vrot.slane %v2614, 2
      %v2616 = vadd.f32 %v2614, %v2615
      %v2617 = vrot.slane %v2616, 1
      %v2618 = vadd.f32 %v2616, %v2617
      %s2619 = vtos %v2618
      %s2620 = smul.f32 %s2619, 0.00012207031
      %s2621 = smul.f32 %s2539, %s2539
      %s2622 = ssub.f32 %s2620, %s2621
      %v2623 = vstv %s2539
      %v2624 = vsub.f32 %v2137, %v2623
      %v2625 = vsub.f32 %v2140, %v2623
      %v2626 = vsub.f32 %v2145, %v2623
      %v2627 = vsub.f32 %v2148, %v2623
      %v2628 = vsub.f32 %v2153, %v2623
      %v2629 = vsub.f32 %v2156, %v2623
      %v2630 = vsub.f32 %v2161, %v2623
      %v2631 = vsub.f32 %v2164, %v2623
      %v2632 = vsub.f32 %v2169, %v2623
      %v2633 = vsub.f32 %v2172, %v2623
      %v2634 = vsub.f32 %v2177, %v2623
      %v2635 = vsub.f32 %v2180, %v2623
      %v2636 = vsub.f32 %v2185, %v2623
      %v2637 = vsub.f32 %v2188, %v2623
      %v2638 = vsub.f32 %v2193, %v2623
      %v2639 = vsub.f32 %v2196, %v2623
      %v2640 = vsub.f32 %v2201, %v2623
      %v2641 = vsub.f32 %v2204, %v2623
      %v2642 = vsub.f32 %v2209, %v2623
      %v2643 = vsub.f32 %v2212, %v2623
      %v2644 = vsub.f32 %v2217, %v2623
      %v2645 = vsub.f32 %v2220, %v2623
      %v2646 = vsub.f32 %v2225, %v2623
      %v2647 = vsub.f32 %v2228, %v2623
      %v2648 = vsub.f32 %v2233, %v2623
      %v2649 = vsub.f32 %v2236, %v2623
      %v2650 = vsub.f32 %v2241, %v2623
      %v2651 = vsub.f32 %v2244, %v2623
      %v2652 = vsub.f32 %v2249, %v2623
      %v2653 = vsub.f32 %v2252, %v2623
      %v2654 = vsub.f32 %v2257, %v2623
      %v2655 = vsub.f32 %v2260, %v2623
      %v2656 = vsub.f32 %v2265, %v2623
      %v2657 = vsub.f32 %v2268, %v2623
      %v2658 = vsub.f32 %v2273, %v2623
      %v2659 = vsub.f32 %v2276, %v2623
      %s2660 = sadd.f32 %s2622, 1e-05
      %v2661 = vstv %s2660
      %v2662 = vrsqrt.pop %v2661
      %s2663 = vtos %v2662
      %v2664 = vstv %s2663
      %v2665 = vmul.f32 %v2624, %v2664
      %v2666 = vmul.f32 %v2625, %v2664
      %v2667 = vmul.f32 %v2626, %v2664
      %v2668 = vmul.f32 %v2627, %v2664
      %v2669 = vmul.f32 %v2628, %v2664
      %v2670 = vmul.f32 %v2629, %v2664
      %v2671 = vmul.f32 %v2630, %v2664
      %v2672 = vmul.f32 %v2631, %v2664
      %v2673 = vmul.f32 %v2632, %v2664
      %v2674 = vmul.f32 %v2633, %v2664
      %v2675 = vmul.f32 %v2634, %v2664
      %v2676 = vmul.f32 %v2635, %v2664
      %v2677 = vmul.f32 %v2636, %v2664
      %v2678 = vmul.f32 %v2637, %v2664
      %v2679 = vmul.f32 %v2638, %v2664
      %v2680 = vmul.f32 %v2639, %v2664
      %v2681 = vmul.f32 %v2640, %v2664
      %v2682 = vmul.f32 %v2641, %v2664
      %v2683 = vmul.f32 %v2642, %v2664
      %v2684 = vmul.f32 %v2643, %v2664
      %v2685 = vmul.f32 %v2644, %v2664
      %v2686 = vmul.f32 %v2645, %v2664
      %v2687 = vmul.f32 %v2646, %v2664
      %v2688 = vmul.f32 %v2647, %v2664
      %v2689 = vmul.f32 %v2648, %v2664
      %v2690 = vmul.f32 %v2649, %v2664
      %v2691 = vmul.f32 %v2650, %v2664
      %v2692 = vmul.f32 %v2651, %v2664
      %v2693 = vmul.f32 %v2652, %v2664
      %v2694 = vmul.f32 %v2653, %v2664
      %v2695 = vmul.f32 %v2654, %v2664
      %v2696 = vmul.f32 %v2655, %v2664
      %v2697 = vmul.f32 %v2656, %v2664
      %v2698 = vmul.f32 %v2657, %v2664
      %v2699 = vmul.f32 %v2658, %v2664
      %v2700 = vmul.f32 %v2659, %v2664
      %v2702 = vlaneseq
      %v2703 = vshrl.u32 %v2702, 7
      %v2704 = vsub.s32 0, %v2703
      %v2705 = vrot.slane %v425, %v2704
      %v2707 = vmul.f32 %v2665, %v2705
      %v2708 = vmul.f32 %v2666, %v2705
      %v2709 = vmul.f32 %v2667, %v2705
      %v2710 = vmul.f32 %v2668, %v2705
      %v2711 = vmul.f32 %v2669, %v2705
      %v2712 = vmul.f32 %v2670, %v2705
      %v2713 = vmul.f32 %v2671, %v2705
      %v2714 = vmul.f32 %v2672, %v2705
      %v2715 = vmul.f32 %v2673, %v2705
      %v2716 = vmul.f32 %v2674, %v2705
      %v2717 = vmul.f32 %v2675, %v2705
      %v2718 = vmul.f32 %v2676, %v2705
      %v2719 = vmul.f32 %v2677, %v2705
      %v2720 = vmul.f32 %v2678, %v2705
      %v2721 = vmul.f32 %v2679, %v2705
      %v2722 = vmul.f32 %v2680, %v2705
      %v2723 = vmul.f32 %v2681, %v2705
      %v2724 = vmul.f32 %v2682, %v2705
      %v2725 = vmul.f32 %v2683, %v2705
      %v2726 = vmul.f32 %v2684, %v2705
      %v2727 = vmul.f32 %v2685, %v2705
      %v2728 = vmul.f32 %v2686, %v2705
      %v2729 = vmul.f32 %v2687, %v2705
      %v2730 = vmul.f32 %v2688, %v2705
      %v2731 = vmul.f32 %v2689, %v2705
      %v2732 = vmul.f32 %v2690, %v2705
      %v2733 = vmul.f32 %v2691, %v2705
      %v2734 = vmul.f32 %v2692, %v2705
      %v2735 = vmul.f32 %v2693, %v2705
      %v2736 = vmul.f32 %v2694, %v2705
      %v2737 = vmul.f32 %v2695, %v2705
      %v2738 = vmul.f32 %v2696, %v2705
      %v2739 = vmul.f32 %v2697, %v2705
      %v2740 = vmul.f32 %v2698, %v2705
      %v2741 = vmul.f32 %v2699, %v2705
      %v2742 = vmul.f32 %v2700, %v2705
      %v2744 = vlaneseq
      %v2745 = vshrl.u32 %v2744, 7
      %v2746 = vsub.s32 0, %v2745
      %v2747 = vrot.slane %v426, %v2746
      %v2749 = vadd.f32 %v2707, %v2747
      %v2750 = vadd.f32 %v2708, %v2747
      %v2751 = vadd.f32 %v2709, %v2747
      %v2752 = vadd.f32 %v2710, %v2747
      %v2753 = vadd.f32 %v2711, %v2747
      %v2754 = vadd.f32 %v2712, %v2747
      %v2755 = vadd.f32 %v2713, %v2747
      %v2756 = vadd.f32 %v2714, %v2747
      %v2757 = vadd.f32 %v2715, %v2747
      %v2758 = vadd.f32 %v2716, %v2747
      %v2759 = vadd.f32 %v2717, %v2747
      %v2760 = vadd.f32 %v2718, %v2747
      %v2761 = vadd.f32 %v2719, %v2747
      %v2762 = vadd.f32 %v2720, %v2747
      %v2763 = vadd.f32 %v2721, %v2747
      %v2764 = vadd.f32 %v2722, %v2747
      %v2765 = vadd.f32 %v2723, %v2747
      %v2766 = vadd.f32 %v2724, %v2747
      %v2767 = vadd.f32 %v2725, %v2747
      %v2768 = vadd.f32 %v2726, %v2747
      %v2769 = vadd.f32 %v2727, %v2747
      %v2770 = vadd.f32 %v2728, %v2747
      %v2771 = vadd.f32 %v2729, %v2747
      %v2772 = vadd.f32 %v2730, %v2747
      %v2773 = vadd.f32 %v2731, %v2747
      %v2774 = vadd.f32 %v2732, %v2747
      %v2775 = vadd.f32 %v2733, %v2747
      %v2776 = vadd.f32 %v2734, %v2747
      %v2777 = vadd.f32 %v2735, %v2747
      %v2778 = vadd.f32 %v2736, %v2747
      %v2779 = vadd.f32 %v2737, %v2747
      %v2780 = vadd.f32 %v2738, %v2747
      %v2781 = vadd.f32 %v2739, %v2747
      %v2782 = vadd.f32 %v2740, %v2747
      %v2783 = vadd.f32 %v2741, %v2747
      %v2784 = vadd.f32 %v2742, %v2747
      %v2785 = vmax.f32 %v2749, 0.0
      %v2786 = vmax.f32 %v2750, 0.0
      %v2787 = vmax.f32 %v2751, 0.0
      %v2788 = vmax.f32 %v2752, 0.0
      %v2789 = vmax.f32 %v2753, 0.0
      %v2790 = vmax.f32 %v2754, 0.0
      %v2791 = vmax.f32 %v2755, 0.0
      %v2792 = vmax.f32 %v2756, 0.0
      %v2793 = vmax.f32 %v2757, 0.0
      %v2794 = vmax.f32 %v2758, 0.0
      %v2795 = vmax.f32 %v2759, 0.0
      %v2796 = vmax.f32 %v2760, 0.0
      %v2797 = vmax.f32 %v2761, 0.0
      %v2798 = vmax.f32 %v2762, 0.0
      %v2799 = vmax.f32 %v2763, 0.0
      %v2800 = vmax.f32 %v2764, 0.0
      %v2801 = vmax.f32 %v2765, 0.0
      %v2802 = vmax.f32 %v2766, 0.0
      %v2803 = vmax.f32 %v2767, 0.0
      %v2804 = vmax.f32 %v2768, 0.0
      %v2805 = vmax.f32 %v2769, 0.0
      %v2806 = vmax.f32 %v2770, 0.0
      %v2807 = vmax.f32 %v2771, 0.0
      %v2808 = vmax.f32 %v2772, 0.0
      %v2809 = vmax.f32 %v2773, 0.0
      %v2810 = vmax.f32 %v2774, 0.0
      %v2811 = vmax.f32 %v2775, 0.0
      %v2812 = vmax.f32 %v2776, 0.0
      %v2813 = vmax.f32 %v2777, 0.0
      %v2814 = vmax.f32 %v2778, 0.0
      %v2815 = vmax.f32 %v2779, 0.0
      %v2816 = vmax.f32 %v2780, 0.0
      %v2817 = vmax.f32 %v2781, 0.0
      %v2818 = vmax.f32 %v2782, 0.0
      %v2819 = vmax.f32 %v2783, 0.0
      %v2820 = vmax.f32 %v2784, 0.0
      %v2821 = vld [vmem:[%s8] sm:$0xf]
      %v2822 = vld [vmem:[%s8 + $0x4] sm:$0xf]
      %v2823 = vld [vmem:[%s8 + $0x8] sm:$0xf]
      %v2824 = vld [vmem:[%s8 + $0xc] sm:$0xf]
      %v2825 = vld [vmem:[%s8 + $0x10] sm:$0xf]
      %v2826 = vld [vmem:[%s8 + $0x14] sm:$0xf]
      %v2827 = vld [vmem:[%s8 + $0x18] sm:$0xf]
      %v2828 = vld [vmem:[%s8 + $0x1c] sm:$0xf]
      %v2829 = vld [vmem:[%s8 + $0x20] sm:$0xf]
      %v2830 = vld [vmem:[%s8 + $0x24] sm:$0xf]
      %v2831 = vld [vmem:[%s8 + $0x28] sm:$0xf]
      %v2832 = vld [vmem:[%s8 + $0x2c] sm:$0xf]
      %v2833 = vld [vmem:[%s8 + $0x30] sm:$0xf]
      %v2834 = vld [vmem:[%s8 + $0x34] sm:$0xf]
      %v2835 = vld [vmem:[%s8 + $0x38] sm:$0xf]
      %v2836 = vld [vmem:[%s8 + $0x3c] sm:$0xf]
      %v2837 = vld [vmem:[%s9] sm:$0x1]
      %v2839 = vlaneseq
      %v2840 = vshrl.u32 %v2839, 7
      %v2841 = vsub.s32 0, %v2840
      %v2842 = vrot.slane %v2837, %v2841
      %v2860 = vunpack.c.l.b16 %v2821
      %v2861 = vunpack.c.l.b16 %v2822
      %v2862 = vunpack.c.l.b16 %v2823
      %v2863 = vunpack.c.l.b16 %v2824
      %v2864 = vunpack.c.l.b16 %v2825
      %v2865 = vunpack.c.l.b16 %v2826
      %v2866 = vunpack.c.l.b16 %v2827
      %v2867 = vunpack.c.l.b16 %v2828
      %v2868 = vunpack.c.l.b16 %v2829
      %v2869 = vunpack.c.l.b16 %v2830
      %v2870 = vunpack.c.l.b16 %v2831
      %v2871 = vunpack.c.l.b16 %v2832
      %v2872 = vunpack.c.l.b16 %v2833
      %v2873 = vunpack.c.l.b16 %v2834
      %v2874 = vunpack.c.l.b16 %v2835
      %v2875 = vunpack.c.l.b16 %v2836
      %v2876 = vpack.c.b16 %v2861, %v2860
      %v2877 = vpack.c.b16 %v2863, %v2862
      %v2878 = vpack.c.b16 %v2865, %v2864
      %v2879 = vpack.c.b16 %v2867, %v2866
      %v2880 = vpack.c.b16 %v2869, %v2868
      %v2881 = vpack.c.b16 %v2871, %v2870
      %v2882 = vpack.c.b16 %v2873, %v2872
      %v2883 = vpack.c.b16 %v2875, %v2874
      %2892 = vmatprep.subr.bf16.mxu0 0
      %2893 = vmatpush1.bf16.msra.mxu0 %v2876
      %2894 = vmatprep.subr.bf16.mxu0 0
      %2895 = vmatpush1.bf16.msra.mxu0 %v2877
      %2896 = vmatprep.subr.bf16.mxu0 0
      %2897 = vmatpush1.bf16.msra.mxu0 %v2878
      %2898 = vmatprep.subr.bf16.mxu0 0
      %2899 = vmatpush1.bf16.msra.mxu0 %v2879
      %2900 = vmatprep.subr.bf16.mxu0 0
      %2901 = vmatpush1.bf16.msra.mxu0 %v2880
      %2902 = vmatprep.subr.bf16.mxu0 0
      %2903 = vmatpush1.bf16.msra.mxu0 %v2881
      %2904 = vmatprep.subr.bf16.mxu0 0
      %2905 = vmatpush1.bf16.msra.mxu0 %v2882
      %2906 = vmatprep.subr.bf16.mxu0 0
      %2907 = vmatpush1.bf16.msra.mxu0 %v2883
      %2908 = vmatprep.subr.bf16.mxu0 0
      %2909 = vmatpush1.bf16.msra.mxu0 0
      %2910 = vmatprep.subr.bf16.mxu0 0
      %2911 = vmatpush1.bf16.msra.mxu0 0
      %2912 = vmatprep.subr.bf16.mxu0 0
      %2913 = vmatpush1.bf16.msra.mxu0 0
      %2914 = vmatprep.subr.bf16.mxu0 0
      %2915 = vmatpush1.bf16.msra.mxu0 0
      %2916 = vmatprep.subr.bf16.mxu0 0
      %2917 = vmatpush1.bf16.msra.mxu0 0
      %2918 = vmatprep.subr.bf16.mxu0 0
      %2919 = vmatpush1.bf16.msra.mxu0 0
      %2920 = vmatprep.subr.bf16.mxu0 0
      %2921 = vmatpush1.bf16.msra.mxu0 0
      %2922 = vmatprep.subr.bf16.mxu0 0
      %2923 = vmatpush1.bf16.msra.mxu0 0
      %2924 = vmatprep.mubr.bf16.mxu0 0
      %2925 = vmatmul.mubr.bf16.gmra.mrb[0].mxu0 %v628
      %v2926 = vpop.f32.mrb[0].mxu0
      %v2927 = vadd.f32 %v2842, %v2926
      %v2928 = vpop.f32.mrb[0].mxu0
      %v2929 = vpop.f32.mrb[0].mxu0
      %v2930 = vadd.f32 %v2842, %v2929
      %v2931 = vpop.f32.mrb[0].mxu0
      %2932 = vmatprep.mubr.bf16.mxu0 0
      %2933 = vmatmul.mubr.bf16.gmra.mrb[0].mxu0 %v629
      %v2934 = vpop.f32.mrb[0].mxu0
      %v2935 = vadd.f32 %v2842, %v2934
      %v2936 = vpop.f32.mrb[0].mxu0
      %v2937 = vpop.f32.mrb[0].mxu0
      %v2938 = vadd.f32 %v2842, %v2937
      %v2939 = vpop.f32.mrb[0].mxu0
      %2940 = vmatprep.mubr.bf16.mxu0 0
      %2941 = vmatmul.mubr.bf16.gmra.mrb[0].mxu0 %v630
      %v2942 = vpop.f32.mrb[0].mxu0
      %v2943 = vadd.f32 %v2842, %v2942
      %v2944 = vpop.f32.mrb[0].mxu0
      %v2945 = vpop.f32.mrb[0].mxu0
      %v2946 = vadd.f32 %v2842, %v2945
      %v2947 = vpop.f32.mrb[0].mxu0
      %2948 = vmatprep.mubr.bf16.mxu0 0
      %2949 = vmatmul.mubr.bf16.gmra.mrb[0].mxu0 %v631
      %v2950 = vpop.f32.mrb[0].mxu0
      %v2951 = vadd.f32 %v2842, %v2950
      %v2952 = vpop.f32.mrb[0].mxu0
      %v2953 = vpop.f32.mrb[0].mxu0
      %v2954 = vadd.f32 %v2842, %v2953
      %v2955 = vpop.f32.mrb[0].mxu0
      %2956 = vmatprep.mubr.bf16.mxu0 0
      %2957 = vmatmul.mubr.bf16.gmra.mrb[0].mxu0 %v632
      %v2958 = vpop.f32.mrb[0].mxu0
      %v2959 = vadd.f32 %v2842, %v2958
      %v2960 = vpop.f32.mrb[0].mxu0
      %v2961 = vpop.f32.mrb[0].mxu0
      %v2962 = vadd.f32 %v2842, %v2961
      %v2963 = vpop.f32.mrb[0].mxu0
      %2964 = vmatprep.mubr.bf16.mxu0 0
      %2965 = vmatmul.mubr.bf16.gmra.mrb[0].mxu0 %v633
      %v2966 = vpop.f32.mrb[0].mxu0
      %v2967 = vadd.f32 %v2842, %v2966
      %v2968 = vpop.f32.mrb[0].mxu0
      %v2969 = vpop.f32.mrb[0].mxu0
      %v2970 = vadd.f32 %v2842, %v2969
      %v2971 = vpop.f32.mrb[0].mxu0
      %2972 = vmatprep.mubr.bf16.mxu0 0
      %2973 = vmatmul.mubr.bf16.gmra.mrb[0].mxu0 %v634
      %v2974 = vpop.f32.mrb[0].mxu0
      %v2975 = vadd.f32 %v2842, %v2974
      %v2976 = vpop.f32.mrb[0].mxu0
      %v2977 = vpop.f32.mrb[0].mxu0
      %v2978 = vadd.f32 %v2842, %v2977
      %v2979 = vpop.f32.mrb[0].mxu0
      %2980 = vmatprep.mubr.bf16.mxu0 0
      %2981 = vmatmul.mubr.bf16.gmra.mrb[0].mxu0 %v635
      %v2982 = vpop.f32.mrb[0].mxu0
      %v2983 = vadd.f32 %v2842, %v2982
      %v2984 = vpop.f32.mrb[0].mxu0
      %v2985 = vpop.f32.mrb[0].mxu0
      %v2986 = vadd.f32 %v2842, %v2985
      %v2987 = vpop.f32.mrb[0].mxu0
      %2988 = vmatprep.mubr.bf16.mxu0 0
      %2989 = vmatmul.mubr.bf16.gmra.mrb[0].mxu0 %v636
      %v2990 = vpop.f32.mrb[0].mxu0
      %v2991 = vadd.f32 %v2842, %v2990
      %v2992 = vpop.f32.mrb[0].mxu0
      %v2993 = vpop.f32.mrb[0].mxu0
      %v2994 = vadd.f32 %v2842, %v2993
      %v2995 = vpop.f32.mrb[0].mxu0
      %2996 = vmatprep.mubr.bf16.mxu0 0
      %2997 = vmatmul.mubr.bf16.gmra.mrb[0].mxu0 %v637
      %v2998 = vpop.f32.mrb[0].mxu0
      %v2999 = vadd.f32 %v2842, %v2998
      %v3000 = vpop.f32.mrb[0].mxu0
      %v3001 = vpop.f32.mrb[0].mxu0
      %v3002 = vadd.f32 %v2842, %v3001
      %v3003 = vpop.f32.mrb[0].mxu0
      %3004 = vmatprep.mubr.bf16.mxu0 0
      %3005 = vmatmul.mubr.bf16.gmra.mrb[0].mxu0 %v638
      %v3006 = vpop.f32.mrb[0].mxu0
      %v3007 = vadd.f32 %v2842, %v3006
      %v3008 = vpop.f32.mrb[0].mxu0
      %v3009 = vpop.f32.mrb[0].mxu0
      %v3010 = vadd.f32 %v2842, %v3009
      %v3011 = vpop.f32.mrb[0].mxu0
      %3012 = vmatprep.mubr.bf16.mxu0 0
      %3013 = vmatmul.mubr.bf16.gmra.mrb[0].mxu0 %v639
      %v3014 = vpop.f32.mrb[0].mxu0
      %v3015 = vadd.f32 %v2842, %v3014
      %v3016 = vpop.f32.mrb[0].mxu0
      %v3017 = vpop.f32.mrb[0].mxu0
      %v3018 = vadd.f32 %v2842, %v3017
      %v3019 = vpop.f32.mrb[0].mxu0
      %3020 = vmatprep.mubr.bf16.mxu0 0
      %3021 = vmatmul.mubr.bf16.gmra.mrb[0].mxu0 %v640
      %v3022 = vpop.f32.mrb[0].mxu0
      %v3023 = vadd.f32 %v2842, %v3022
      %v3024 = vpop.f32.mrb[0].mxu0
      %v3025 = vpop.f32.mrb[0].mxu0
      %v3026 = vadd.f32 %v2842, %v3025
      %v3027 = vpop.f32.mrb[0].mxu0
      %3028 = vmatprep.mubr.bf16.mxu0 0
      %3029 = vmatmul.mubr.bf16.gmra.mrb[0].mxu0 %v641
      %v3030 = vpop.f32.mrb[0].mxu0
      %v3031 = vadd.f32 %v2842, %v3030
      %v3032 = vpop.f32.mrb[0].mxu0
      %v3033 = vpop.f32.mrb[0].mxu0
      %v3034 = vadd.f32 %v2842, %v3033
      %v3035 = vpop.f32.mrb[0].mxu0
      %3036 = vmatprep.mubr.bf16.mxu0 0
      %3037 = vmatmul.mubr.bf16.gmra.mrb[0].mxu0 %v642
      %v3038 = vpop.f32.mrb[0].mxu0
      %v3039 = vadd.f32 %v2842, %v3038
      %v3040 = vpop.f32.mrb[0].mxu0
      %v3041 = vpop.f32.mrb[0].mxu0
      %v3042 = vadd.f32 %v2842, %v3041
      %v3043 = vpop.f32.mrb[0].mxu0
      %3044 = vmatprep.mubr.bf16.mxu0 0
      %3045 = vmatmul.mubr.bf16.gmra.mrb[0].mxu0 %v643
      %v3046 = vpop.f32.mrb[0].mxu0
      %v3047 = vadd.f32 %v2842, %v3046
      %v3048 = vpop.f32.mrb[0].mxu0
      %v3049 = vpop.f32.mrb[0].mxu0
      %v3050 = vadd.f32 %v2842, %v3049
      %v3051 = vpop.f32.mrb[0].mxu0
      %3052 = vmatprep.mubr.bf16.mxu0 0
      %3053 = vmatmul.mubr.bf16.gmra.mrb[0].mxu0 %v644
      %v3054 = vpop.f32.mrb[0].mxu0
      %v3055 = vadd.f32 %v2842, %v3054
      %v3056 = vpop.f32.mrb[0].mxu0
      %v3057 = vpop.f32.mrb[0].mxu0
      %v3058 = vadd.f32 %v2842, %v3057
      %v3059 = vpop.f32.mrb[0].mxu0
      %3060 = vmatprep.mubr.bf16.mxu0 0
      %3061 = vmatmul.mubr.bf16.gmra.mrb[0].mxu0 %v645
      %v3062 = vpop.f32.mrb[0].mxu0
      %v3063 = vadd.f32 %v2842, %v3062
      %v3064 = vpop.f32.mrb[0].mxu0
      %v3065 = vpop.f32.mrb[0].mxu0
      %v3066 = vadd.f32 %v2842, %v3065
      %v3067 = vpop.f32.mrb[0].mxu0
      %3068 = vdwg.mxu0
      %3069 = vst [vmem:[#allocation2] sm:$0xff] 0.0
      %3070 = vst [vmem:[#allocation2 + $0x8] sm:$0xff] 0.0
      %3071 = vst [vmem:[#allocation2 + $0x10] sm:$0xff] 0.0
      %3072 = vst [vmem:[#allocation2 + $0x18] sm:$0xff] 0.0
      %3073 = vst [vmem:[#allocation2 + $0x20] sm:$0xff] 0.0
      %3074 = vst [vmem:[#allocation2 + $0x28] sm:$0xff] 0.0
      %3075 = vst [vmem:[#allocation2 + $0x30] sm:$0xff] 0.0
      %3076 = vst [vmem:[#allocation2 + $0x38] sm:$0xff] 0.0
      %3077 = vst [vmem:[#allocation2 + $0x40] sm:$0xff] 0.0
      %3078 = vst [vmem:[#allocation2 + $0x48] sm:$0xff] 0.0
      %3079 = vst [vmem:[#allocation2 + $0x50] sm:$0xff] 0.0
      %3080 = vst [vmem:[#allocation2 + $0x58] sm:$0xff] 0.0
      %3081 = vst [vmem:[#allocation2 + $0x60] sm:$0xff] 0.0
      %3082 = vst [vmem:[#allocation2 + $0x68] sm:$0xff] 0.0
      %3083 = vst [vmem:[#allocation2 + $0x70] sm:$0xff] 0.0
      %3084 = vst [vmem:[#allocation2 + $0x78] sm:$0xff] 0.0
      %3085 = vst [vmem:[#allocation2 + $0x80] sm:$0xff] 0.0
      %3086 = vst [vmem:[#allocation2 + $0x88] sm:$0xff] 0.0
      %3087 = vst [vmem:[#allocation2 + $0x90] sm:$0xff] 0.0
      %3088 = vst [vmem:[#allocation2 + $0x98] sm:$0xff] 0.0
      %3089 = vst [vmem:[#allocation2 + $0xa0] sm:$0xff] 0.0
      %3090 = vst [vmem:[#allocation2 + $0xa8] sm:$0xff] 0.0
      %3091 = vst [vmem:[#allocation2 + $0xb0] sm:$0xff] 0.0
      %3092 = vst [vmem:[#allocation2 + $0xb8] sm:$0xff] 0.0
      %3093 = vst [vmem:[#allocation2 + $0xc0] sm:$0xff] 0.0
      %3094 = vst [vmem:[#allocation2 + $0xc8] sm:$0xff] 0.0
      %3095 = vst [vmem:[#allocation2 + $0xd0] sm:$0xff] 0.0
      %3096 = vst [vmem:[#allocation2 + $0xd8] sm:$0xff] 0.0
      %3097 = vst [vmem:[#allocation2 + $0xe0] sm:$0xff] 0.0
      %3098 = vst [vmem:[#allocation2 + $0xe8] sm:$0xff] 0.0
      %3099 = vst [vmem:[#allocation2 + $0xf0] sm:$0xff] 0.0
      %3100 = vst [vmem:[#allocation2 + $0xf8] sm:$0xff] 0.0
      %3101 = vst [vmem:[#allocation2 + $0x100] sm:$0xff] 0.0
      %3102 = vst [vmem:[#allocation2 + $0x108] sm:$0xff] 0.0
      %3103 = vst [vmem:[#allocation2 + $0x110] sm:$0xff] 0.0
      %3104 = vst [vmem:[#allocation2 + $0x118] sm:$0xff] 0.0
      %3105 = vst [vmem:[#allocation2 + $0x120] sm:$0xff] 0.0
      %3106 = vst [vmem:[#allocation2 + $0x128] sm:$0xff] 0.0
      %3107 = vst [vmem:[#allocation2 + $0x130] sm:$0xff] 0.0
      %3108 = vst [vmem:[#allocation2 + $0x138] sm:$0xff] 0.0
      %3109 = vst [vmem:[#allocation2 + $0x140] sm:$0xff] 0.0
      %3110 = vst [vmem:[#allocation2 + $0x148] sm:$0xff] 0.0
      %3111 = vst [vmem:[#allocation2 + $0x150] sm:$0x3f] 0.0
      %v3112 = vmul.f32 %v2785, %v2282
      %v3113 = vmul.f32 %v2786, %v2287
      %v3114 = vmul.f32 %v2787, %v2292
      %v3115 = vmul.f32 %v2788, %v2297
      %v3116 = vmul.f32 %v2789, %v2302
      %v3117 = vmul.f32 %v2790, %v2307
      %v3118 = vmul.f32 %v2791, %v2312
      %v3119 = vmul.f32 %v2792, %v2317
      %v3120 = vmul.f32 %v2793, %v2322
      %v3121 = vmul.f32 %v2794, %v2327
      %v3122 = vmul.f32 %v2795, %v2332
      %v3123 = vmul.f32 %v2796, %v2337
      %v3124 = vmul.f32 %v2797, %v2342
      %v3125 = vmul.f32 %v2798, %v2347
      %v3126 = vmul.f32 %v2799, %v2352
      %v3127 = vmul.f32 %v2800, %v2357
      %v3128 = vmul.f32 %v2801, %v2362
      %v3129 = vmul.f32 %v2802, %v2367
      %v3130 = vmul.f32 %v2803, %v2372
      %v3131 = vmul.f32 %v2804, %v2377
      %v3132 = vmul.f32 %v2805, %v2382
      %v3133 = vmul.f32 %v2806, %v2387
      %v3134 = vmul.f32 %v2807, %v2392
      %v3135 = vmul.f32 %v2808, %v2397
      %v3136 = vmul.f32 %v2809, %v2402
      %v3137 = vmul.f32 %v2810, %v2407
      %v3138 = vmul.f32 %v2811, %v2412
      %v3139 = vmul.f32 %v2812, %v2417
      %v3140 = vmul.f32 %v2813, %v2422
      %v3141 = vmul.f32 %v2814, %v2427
      %v3142 = vmul.f32 %v2815, %v2432
      %v3143 = vmul.f32 %v2816, %v2437
      %v3144 = vmul.f32 %v2817, %v2442
      %v3145 = vmul.f32 %v2818, %v2447
      %v3146 = vmul.f32 %v2819, %v2452
      %v3147 = vmul.f32 %v2820, %v2457
      %3148 = vst [vmem:[#allocation2 + $0x13] sm:$0xff] %v3112
      %3149 = vst [vmem:[#allocation2 + $0x1b] sm:$0xff] %v3113
      %3150 = vst [vmem:[#allocation2 + $0x23] sm:$0xff] %v3114
      %3151 = vst [vmem:[#allocation2 + $0x2b] sm:$0xff] %v3115
      %3152 = vst [vmem:[#allocation2 + $0x33] sm:$0xff] %v3116
      %3153 = vst [vmem:[#allocation2 + $0x3b] sm:$0xff] %v3117
      %3154 = vst [vmem:[#allocation2 + $0x43] sm:$0xff] %v3118
      %3155 = vst [vmem:[#allocation2 + $0x4b] sm:$0xff] %v3119
      %3156 = vst [vmem:[#allocation2 + $0x53] sm:$0xff] %v3120
      %3157 = vst [vmem:[#allocation2 + $0x5b] sm:$0xff] %v3121
      %3158 = vst [vmem:[#allocation2 + $0x63] sm:$0xff] %v3122
      %3159 = vst [vmem:[#allocation2 + $0x6b] sm:$0xff] %v3123
      %3160 = vst [vmem:[#allocation2 + $0x73] sm:$0xff] %v3124
      %3161 = vst [vmem:[#allocation2 + $0x7b] sm:$0xff] %v3125
      %3162 = vst [vmem:[#allocation2 + $0x83] sm:$0xff] %v3126
      %3163 = vst [vmem:[#allocation2 + $0x8b] sm:$0xff] %v3127
      %3164 = vst [vmem:[#allocation2 + $0x93] sm:$0xff] %v3128
      %3165 = vst [vmem:[#allocation2 + $0x9b] sm:$0xff] %v3129
      %3166 = vst [vmem:[#allocation2 + $0xa3] sm:$0xff] %v3130
      %3167 = vst [vmem:[#allocation2 + $0xab] sm:$0xff] %v3131
      %3168 = vst [vmem:[#allocation2 + $0xb3] sm:$0xff] %v3132
      %3169 = vst [vmem:[#allocation2 + $0xbb] sm:$0xff] %v3133
      %3170 = vst [vmem:[#allocation2 + $0xc3] sm:$0xff] %v3134
      %3171 = vst [vmem:[#allocation2 + $0xcb] sm:$0xff] %v3135
      %3172 = vst [vmem:[#allocation2 + $0xd3] sm:$0xff] %v3136
      %3173 = vst [vmem:[#allocation2 + $0xdb] sm:$0xff] %v3137
      %3174 = vst [vmem:[#allocation2 + $0xe3] sm:$0xff] %v3138
      %3175 = vst [vmem:[#allocation2 + $0xeb] sm:$0xff] %v3139
      %3176 = vst [vmem:[#allocation2 + $0xf3] sm:$0xff] %v3140
      %3177 = vst [vmem:[#allocation2 + $0xfb] sm:$0xff] %v3141
      %3178 = vst [vmem:[#allocation2 + $0x103] sm:$0xff] %v3142
      %3179 = vst [vmem:[#allocation2 + $0x10b] sm:$0xff] %v3143
      %3180 = vst [vmem:[#allocation2 + $0x113] sm:$0xff] %v3144
      %3181 = vst [vmem:[#allocation2 + $0x11b] sm:$0xff] %v3145
      %3182 = vst [vmem:[#allocation2 + $0x123] sm:$0xff] %v3146
      %3183 = vst [vmem:[#allocation2 + $0x12b] sm:$0xff] %v3147
      %v3184 = vld [vmem:[#allocation2] sm:$0xff]
      %v3185 = vld [vmem:[#allocation2 + $0x8] sm:$0xff]
      %v3186 = vld [vmem:[#allocation2 + $0x10] sm:$0xff]
      %v3187 = vld [vmem:[#allocation2 + $0x18] sm:$0xff]
      %v3188 = vld [vmem:[#allocation2 + $0x20] sm:$0xff]
      %v3189 = vld [vmem:[#allocation2 + $0x28] sm:$0xff]
      %v3190 = vld [vmem:[#allocation2 + $0x30] sm:$0xff]
      %v3191 = vld [vmem:[#allocation2 + $0x38] sm:$0xff]
      %v3192 = vld [vmem:[#allocation2 + $0x40] sm:$0xff]
      %v3193 = vld [vmem:[#allocation2 + $0x48] sm:$0xff]
      %v3194 = vld [vmem:[#allocation2 + $0x50] sm:$0xff]
      %v3195 = vld [vmem:[#allocation2 + $0x58] sm:$0xff]
      %v3196 = vld [vmem:[#allocation2 + $0x60] sm:$0xff]
      %v3197 = vld [vmem:[#allocation2 + $0x68] sm:$0xff]
      %v3198 = vld [vmem:[#allocation2 + $0x70] sm:$0xff]
      %v3199 = vld [vmem:[#allocation2 + $0x78] sm:$0xff]
      %v3200 = vld [vmem:[#allocation2 + $0x80] sm:$0xff]
      %v3201 = vld [vmem:[#allocation2 + $0x88] sm:$0xff]
      %v3202 = vld [vmem:[#allocation2 + $0x90] sm:$0xff]
      %v3203 = vld [vmem:[#allocation2 + $0x98] sm:$0xff]
      %v3204 = vld [vmem:[#allocation2 + $0xa0] sm:$0xff]
      %v3205 = vld [vmem:[#allocation2 + $0xa8] sm:$0xff]
      %v3206 = vld [vmem:[#allocation2 + $0xb0] sm:$0xff]
      %v3207 = vld [vmem:[#allocation2 + $0xb8] sm:$0xff]
      %v3208 = vld [vmem:[#allocation2 + $0xc0] sm:$0xff]
      %v3209 = vld [vmem:[#allocation2 + $0xc8] sm:$0xff]
      %v3210 = vld [vmem:[#allocation2 + $0xd0] sm:$0xff]
      %v3211 = vld [vmem:[#allocation2 + $0xd8] sm:$0xff]
      %v3212 = vld [vmem:[#allocation2 + $0xe0] sm:$0xff]
      %v3213 = vld [vmem:[#allocation2 + $0xe8] sm:$0xff]
      %v3214 = vld [vmem:[#allocation2 + $0xf0] sm:$0xff]
      %v3215 = vld [vmem:[#allocation2 + $0xf8] sm:$0xff]
      %v3216 = vld [vmem:[#allocation2 + $0x100] sm:$0xff]
      %v3217 = vld [vmem:[#allocation2 + $0x108] sm:$0xff]
      %v3218 = vld [vmem:[#allocation2 + $0x110] sm:$0xff]
      %v3219 = vld [vmem:[#allocation2 + $0x118] sm:$0xff]
      %v3220 = vpack.c.bf16 %v3185, %v3184
      %v3221 = vpack.c.bf16 %v3187, %v3186
      %v3222 = vpack.c.bf16 %v3189, %v3188
      %v3223 = vpack.c.bf16 %v3191, %v3190
      %v3224 = vpack.c.bf16 %v3193, %v3192
      %v3225 = vpack.c.bf16 %v3195, %v3194
      %v3226 = vpack.c.bf16 %v3197, %v3196
      %v3227 = vpack.c.bf16 %v3199, %v3198
      %v3228 = vpack.c.bf16 %v3201, %v3200
      %v3229 = vpack.c.bf16 %v3203, %v3202
      %v3230 = vpack.c.bf16 %v3205, %v3204
      %v3231 = vpack.c.bf16 %v3207, %v3206
      %v3232 = vpack.c.bf16 %v3209, %v3208
      %v3233 = vpack.c.bf16 %v3211, %v3210
      %v3234 = vpack.c.bf16 %v3213, %v3212
      %v3235 = vpack.c.bf16 %v3215, %v3214
      %v3236 = vpack.c.bf16 %v3217, %v3216
      %v3237 = vpack.c.bf16 %v3219, %v3218
      %v3238 = vld [vmem:[#allocation2 + $0x1] sm:$0xff]
      %v3239 = vld [vmem:[#allocation2 + $0x9] sm:$0xff]
      %v3240 = vld [vmem:[#allocation2 + $0x11] sm:$0xff]
      %v3241 = vld [vmem:[#allocation2 + $0x19] sm:$0xff]
      %v3242 = vld [vmem:[#allocation2 + $0x21] sm:$0xff]
      %v3243 = vld [vmem:[#allocation2 + $0x29] sm:$0xff]
      %v3244 = vld [vmem:[#allocation2 + $0x31] sm:$0xff]
      %v3245 = vld [vmem:[#allocation2 + $0x39] sm:$0xff]
      %v3246 = vld [vmem:[#allocation2 + $0x41] sm:$0xff]
      %v3247 = vld [vmem:[#allocation2 + $0x49] sm:$0xff]
      %v3248 = vld [vmem:[#allocation2 + $0x51] sm:$0xff]
      %v3249 = vld [vmem:[#allocation2 + $0x59] sm:$0xff]
      %v3250 = vld [vmem:[#allocation2 + $0x61] sm:$0xff]
      %v3251 = vld [vmem:[#allocation2 + $0x69] sm:$0xff]
      %v3252 = vld [vmem:[#allocation2 + $0x71] sm:$0xff]
      %v3253 = vld [vmem:[#allocation2 + $0x79] sm:$0xff]
      %v3254 = vld [vmem:[#allocation2 + $0x81] sm:$0xff]
      %v3255 = vld [vmem:[#allocation2 + $0x89] sm:$0xff]
      %v3256 = vld [vmem:[#allocation2 + $0x91] sm:$0xff]
      %v3257 = vld [vmem:[#allocation2 + $0x99] sm:$0xff]
      %v3258 = vld [vmem:[#allocation2 + $0xa1] sm:$0xff]
      %v3259 = vld [vmem:[#allocation2 + $0xa9] sm:$0xff]
      %v3260 = vld [vmem:[#allocation2 + $0xb1] sm:$0xff]
      %v3261 = vld [vmem:[#allocation2 + $0xb9] sm:$0xff]
      %v3262 = vld [vmem:[#allocation2 + $0xc1] sm:$0xff]
      %v3263 = vld [vmem:[#allocation2 + $0xc9] sm:$0xff]
      %v3264 = vld [vmem:[#allocation2 + $0xd1] sm:$0xff]
      %v3265 = vld [vmem:[#allocation2 + $0xd9] sm:$0xff]
      %v3266 = vld [vmem:[#allocation2 + $0xe1] sm:$0xff]
      %v3267 = vld [vmem:[#allocation2 + $0xe9] sm:$0xff]
      %v3268 = vld [vmem:[#allocation2 + $0xf1] sm:$0xff]
      %v3269 = vld [vmem:[#allocation2 + $0xf9] sm:$0xff]
      %v3270 = vld [vmem:[#allocation2 + $0x101] sm:$0xff]
      %v3271 = vld [vmem:[#allocation2 + $0x109] sm:$0xff]
      %v3272 = vld [vmem:[#allocation2 + $0x111] sm:$0xff]
      %v3273 = vld [vmem:[#allocation2 + $0x119] sm:$0xff]
      %v3274 = vpack.c.bf16 %v3239, %v3238
      %v3275 = vpack.c.bf16 %v3241, %v3240
      %v3276 = vpack.c.bf16 %v3243, %v3242
      %v3277 = vpack.c.bf16 %v3245, %v3244
      %v3278 = vpack.c.bf16 %v3247, %v3246
      %v3279 = vpack.c.bf16 %v3249, %v3248
      %v3280 = vpack.c.bf16 %v3251, %v3250
      %v3281 = vpack.c.bf16 %v3253, %v3252
      %v3282 = vpack.c.bf16 %v3255, %v3254
      %v3283 = vpack.c.bf16 %v3257, %v3256
      %v3284 = vpack.c.bf16 %v3259, %v3258
      %v3285 = vpack.c.bf16 %v3261, %v3260
      %v3286 = vpack.c.bf16 %v3263, %v3262
      %v3287 = vpack.c.bf16 %v3265, %v3264
      %v3288 = vpack.c.bf16 %v3267, %v3266
      %v3289 = vpack.c.bf16 %v3269, %v3268
      %v3290 = vpack.c.bf16 %v3271, %v3270
      %v3291 = vpack.c.bf16 %v3273, %v3272
      %v3292 = vld [vmem:[#allocation2 + $0x2] sm:$0xff]
      %v3293 = vld [vmem:[#allocation2 + $0xa] sm:$0xff]
      %v3294 = vld [vmem:[#allocation2 + $0x12] sm:$0xff]
      %v3295 = vld [vmem:[#allocation2 + $0x1a] sm:$0xff]
      %v3296 = vld [vmem:[#allocation2 + $0x22] sm:$0xff]
      %v3297 = vld [vmem:[#allocation2 + $0x2a] sm:$0xff]
      %v3298 = vld [vmem:[#allocation2 + $0x32] sm:$0xff]
      %v3299 = vld [vmem:[#allocation2 + $0x3a] sm:$0xff]
      %v3300 = vld [vmem:[#allocation2 + $0x42] sm:$0xff]
      %v3301 = vld [vmem:[#allocation2 + $0x4a] sm:$0xff]
      %v3302 = vld [vmem:[#allocation2 + $0x52] sm:$0xff]
      %v3303 = vld [vmem:[#allocation2 + $0x5a] sm:$0xff]
      %v3304 = vld [vmem:[#allocation2 + $0x62] sm:$0xff]
      %v3305 = vld [vmem:[#allocation2 + $0x6a] sm:$0xff]
      %v3306 = vld [vmem:[#allocation2 + $0x72] sm:$0xff]
      %v3307 = vld [vmem:[#allocation2 + $0x7a] sm:$0xff]
      %v3308 = vld [vmem:[#allocation2 + $0x82] sm:$0xff]
      %v3309 = vld [vmem:[#allocation2 + $0x8a] sm:$0xff]
      %v3310 = vld [vmem:[#allocation2 + $0x92] sm:$0xff]
      %v3311 = vld [vmem:[#allocation2 + $0x9a] sm:$0xff]
      %v3312 = vld [vmem:[#allocation2 + $0xa2] sm:$0xff]
      %v3313 = vld [vmem:[#allocation2 + $0xaa] sm:$0xff]
      %v3314 = vld [vmem:[#allocation2 + $0xb2] sm:$0xff]
      %v3315 = vld [vmem:[#allocation2 + $0xba] sm:$0xff]
      %v3316 = vld [vmem:[#allocation2 + $0xc2] sm:$0xff]
      %v3317 = vld [vmem:[#allocation2 + $0xca] sm:$0xff]
      %v3318 = vld [vmem:[#allocation2 + $0xd2] sm:$0xff]
      %v3319 = vld [vmem:[#allocation2 + $0xda] sm:$0xff]
      %v3320 = vld [vmem:[#allocation2 + $0xe2] sm:$0xff]
      %v3321 = vld [vmem:[#allocation2 + $0xea] sm:$0xff]
      %v3322 = vld [vmem:[#allocation2 + $0xf2] sm:$0xff]
      %v3323 = vld [vmem:[#allocation2 + $0xfa] sm:$0xff]
      %v3324 = vld [vmem:[#allocation2 + $0x102] sm:$0xff]
      %v3325 = vld [vmem:[#allocation2 + $0x10a] sm:$0xff]
      %v3326 = vld [vmem:[#allocation2 + $0x112] sm:$0xff]
      %v3327 = vld [vmem:[#allocation2 + $0x11a] sm:$0xff]
      %v3328 = vpack.c.bf16 %v3293, %v3292
      %v3329 = vpack.c.bf16 %v3295, %v3294
      %v3330 = vpack.c.bf16 %v3297, %v3296
      %v3331 = vpack.c.bf16 %v3299, %v3298
      %v3332 = vpack.c.bf16 %v3301, %v3300
      %v3333 = vpack.c.bf16 %v3303, %v3302
      %v3334 = vpack.c.bf16 %v3305, %v3304
      %v3335 = vpack.c.bf16 %v3307, %v3306
      %v3336 = vpack.c.bf16 %v3309, %v3308
      %v3337 = vpack.c.bf16 %v3311, %v3310
      %v3338 = vpack.c.bf16 %v3313, %v3312
      %v3339 = vpack.c.bf16 %v3315, %v3314
      %v3340 = vpack.c.bf16 %v3317, %v3316
      %v3341 = vpack.c.bf16 %v3319, %v3318
      %v3342 = vpack.c.bf16 %v3321, %v3320
      %v3343 = vpack.c.bf16 %v3323, %v3322
      %v3344 = vpack.c.bf16 %v3325, %v3324
      %v3345 = vpack.c.bf16 %v3327, %v3326
      %v3346 = vld [vmem:[#allocation2 + $0x122] sm:$0xff]
      %v3347 = vld [vmem:[#allocation2 + $0x12a] sm:$0xff]
      %v3348 = vpack.c.bf16 %v3347, %v3346
      %v3349 = vld [vmem:[#allocation2 + $0x13] sm:$0xff]
      %v3350 = vld [vmem:[#allocation2 + $0x1b] sm:$0xff]
      %v3351 = vld [vmem:[#allocation2 + $0x23] sm:$0xff]
      %v3352 = vld [vmem:[#allocation2 + $0x2b] sm:$0xff]
      %v3353 = vld [vmem:[#allocation2 + $0x33] sm:$0xff]
      %v3354 = vld [vmem:[#allocation2 + $0x3b] sm:$0xff]
      %v3355 = vld [vmem:[#allocation2 + $0x43] sm:$0xff]
      %v3356 = vld [vmem:[#allocation2 + $0x4b] sm:$0xff]
      %v3357 = vld [vmem:[#allocation2 + $0x53] sm:$0xff]
      %v3358 = vld [vmem:[#allocation2 + $0x5b] sm:$0xff]
      %v3359 = vld [vmem:[#allocation2 + $0x63] sm:$0xff]
      %v3360 = vld [vmem:[#allocation2 + $0x6b] sm:$0xff]
      %v3361 = vld [vmem:[#allocation2 + $0x73] sm:$0xff]
      %v3362 = vld [vmem:[#allocation2 + $0x7b] sm:$0xff]
      %v3363 = vld [vmem:[#allocation2 + $0x83] sm:$0xff]
      %v3364 = vld [vmem:[#allocation2 + $0x8b] sm:$0xff]
      %v3365 = vld [vmem:[#allocation2 + $0x93] sm:$0xff]
      %v3366 = vld [vmem:[#allocation2 + $0x9b] sm:$0xff]
      %v3367 = vld [vmem:[#allocation2 + $0xa3] sm:$0xff]
      %v3368 = vld [vmem:[#allocation2 + $0xab] sm:$0xff]
      %v3369 = vld [vmem:[#allocation2 + $0xb3] sm:$0xff]
      %v3370 = vld [vmem:[#allocation2 + $0xbb] sm:$0xff]
      %v3371 = vld [vmem:[#allocation2 + $0xc3] sm:$0xff]
      %v3372 = vld [vmem:[#allocation2 + $0xcb] sm:$0xff]
      %v3373 = vld [vmem:[#allocation2 + $0xd3] sm:$0xff]
      %v3374 = vld [vmem:[#allocation2 + $0xdb] sm:$0xff]
      %v3375 = vld [vmem:[#allocation2 + $0xe3] sm:$0xff]
      %v3376 = vld [vmem:[#allocation2 + $0xeb] sm:$0xff]
      %v3377 = vld [vmem:[#allocation2 + $0xf3] sm:$0xff]
      %v3378 = vld [vmem:[#allocation2 + $0xfb] sm:$0xff]
      %v3379 = vld [vmem:[#allocation2 + $0x103] sm:$0xff]
      %v3380 = vld [vmem:[#allocation2 + $0x10b] sm:$0xff]
      %v3381 = vld [vmem:[#allocation2 + $0x113] sm:$0xff]
      %v3382 = vld [vmem:[#allocation2 + $0x11b] sm:$0xff]
      %v3383 = vld [vmem:[#allocation2 + $0x123] sm:$0xff]
      %v3384 = vld [vmem:[#allocation2 + $0x12b] sm:$0xff]
      %v3385 = vpack.c.bf16 %v3350, %v3349
      %v3386 = vpack.c.bf16 %v3352, %v3351
      %v3387 = vpack.c.bf16 %v3354, %v3353
      %v3388 = vpack.c.bf16 %v3356, %v3355
      %v3389 = vpack.c.bf16 %v3358, %v3357
      %v3390 = vpack.c.bf16 %v3360, %v3359
      %v3391 = vpack.c.bf16 %v3362, %v3361
      %v3392 = vpack.c.bf16 %v3364, %v3363
      %v3393 = vpack.c.bf16 %v3366, %v3365
      %v3394 = vpack.c.bf16 %v3368, %v3367
      %v3395 = vpack.c.bf16 %v3370, %v3369
      %v3396 = vpack.c.bf16 %v3372, %v3371
      %v3397 = vpack.c.bf16 %v3374, %v3373
      %v3398 = vpack.c.bf16 %v3376, %v3375
      %v3399 = vpack.c.bf16 %v3378, %v3377
      %v3400 = vpack.c.bf16 %v3380, %v3379
      %v3401 = vpack.c.bf16 %v3382, %v3381
      %v3402 = vpack.c.bf16 %v3384, %v3383
      %v3403 = vld [vmem:[#allocation2 + $0x14] sm:$0xff]
      %v3404 = vld [vmem:[#allocation2 + $0x1c] sm:$0xff]
      %v3405 = vld [vmem:[#allocation2 + $0x24] sm:$0xff]
      %v3406 = vld [vmem:[#allocation2 + $0x2c] sm:$0xff]
      %v3407 = vld [vmem:[#allocation2 + $0x34] sm:$0xff]
      %v3408 = vld [vmem:[#allocation2 + $0x3c] sm:$0xff]
      %v3409 = vld [vmem:[#allocation2 + $0x44] sm:$0xff]
      %v3410 = vld [vmem:[#allocation2 + $0x4c] sm:$0xff]
      %v3411 = vld [vmem:[#allocation2 + $0x54] sm:$0xff]
      %v3412 = vld [vmem:[#allocation2 + $0x5c] sm:$0xff]
      %v3413 = vld [vmem:[#allocation2 + $0x64] sm:$0xff]
      %v3414 = vld [vmem:[#allocation2 + $0x6c] sm:$0xff]
      %v3415 = vld [vmem:[#allocation2 + $0x74] sm:$0xff]
      %v3416 = vld [vmem:[#allocation2 + $0x7c] sm:$0xff]
      %v3417 = vld [vmem:[#allocation2 + $0x84] sm:$0xff]
      %v3418 = vld [vmem:[#allocation2 + $0x8c] sm:$0xff]
      %v3419 = vld [vmem:[#allocation2 + $0x94] sm:$0xff]
      %v3420 = vld [vmem:[#allocation2 + $0x9c] sm:$0xff]
      %v3421 = vld [vmem:[#allocation2 + $0xa4] sm:$0xff]
      %v3422 = vld [vmem:[#allocation2 + $0xac] sm:$0xff]
      %v3423 = vld [vmem:[#allocation2 + $0xb4] sm:$0xff]
      %v3424 = vld [vmem:[#allocation2 + $0xbc] sm:$0xff]
      %v3425 = vld [vmem:[#allocation2 + $0xc4] sm:$0xff]
      %v3426 = vld [vmem:[#allocation2 + $0xcc] sm:$0xff]
      %v3427 = vld [vmem:[#allocation2 + $0xd4] sm:$0xff]
      %v3428 = vld [vmem:[#allocation2 + $0xdc] sm:$0xff]
      %v3429 = vld [vmem:[#allocation2 + $0xe4] sm:$0xff]
      %v3430 = vld [vmem:[#allocation2 + $0xec] sm:$0xff]
      %v3431 = vld [vmem:[#allocation2 + $0xf4] sm:$0xff]
      %v3432 = vld [vmem:[#allocation2 + $0xfc] sm:$0xff]
      %v3433 = vld [vmem:[#allocation2 + $0x104] sm:$0xff]
      %v3434 = vld [vmem:[#allocation2 + $0x10c] sm:$0xff]
      %v3435 = vld [vmem:[#allocation2 + $0x114] sm:$0xff]
      %v3436 = vld [vmem:[#allocation2 + $0x11c] sm:$0xff]
      %v3437 = vld [vmem:[#allocation2 + $0x124] sm:$0xff]
      %v3438 = vld [vmem:[#allocation2 + $0x12c] sm:$0xff]
      %v3439 = vpack.c.bf16 %v3404, %v3403
      %v3440 = vpack.c.bf16 %v3406, %v3405
      %v3441 = vpack.c.bf16 %v3408, %v3407
      %v3442 = vpack.c.bf16 %v3410, %v3409
      %v3443 = vpack.c.bf16 %v3412, %v3411
      %v3444 = vpack.c.bf16 %v3414, %v3413
      %v3445 = vpack.c.bf16 %v3416, %v3415
      %v3446 = vpack.c.bf16 %v3418, %v3417
      %v3447 = vpack.c.bf16 %v3420, %v3419
      %v3448 = vpack.c.bf16 %v3422, %v3421
      %v3449 = vpack.c.bf16 %v3424, %v3423
      %v3450 = vpack.c.bf16 %v3426, %v3425
      %v3451 = vpack.c.bf16 %v3428, %v3427
      %v3452 = vpack.c.bf16 %v3430, %v3429
      %v3453 = vpack.c.bf16 %v3432, %v3431
      %v3454 = vpack.c.bf16 %v3434, %v3433
      %v3455 = vpack.c.bf16 %v3436, %v3435
      %v3456 = vpack.c.bf16 %v3438, %v3437
      %v3457 = vld [vmem:[#allocation2 + $0x134] sm:$0xff]
      %v3458 = vld [vmem:[#allocation2 + $0x13c] sm:$0xff]
      %v3459 = vpack.c.bf16 %v3458, %v3457
      %v3460 = vld [vmem:[#allocation2 + $0x25] sm:$0xff]
      %v3461 = vld [vmem:[#allocation2 + $0x2d] sm:$0xff]
      %v3462 = vld [vmem:[#allocation2 + $0x35] sm:$0xff]
      %v3463 = vld [vmem:[#allocation2 + $0x3d] sm:$0xff]
      %v3464 = vld [vmem:[#allocation2 + $0x45] sm:$0xff]
      %v3465 = vld [vmem:[#allocation2 + $0x4d] sm:$0xff]
      %v3466 = vld [vmem:[#allocation2 + $0x55] sm:$0xff]
      %v3467 = vld [vmem:[#allocation2 + $0x5d] sm:$0xff]
      %v3468 = vld [vmem:[#allocation2 + $0x65] sm:$0xff]
      %v3469 = vld [vmem:[#allocation2 + $0x6d] sm:$0xff]
      %v3470 = vld [vmem:[#allocation2 + $0x75] sm:$0xff]
      %v3471 = vld [vmem:[#allocation2 + $0x7d] sm:$0xff]
      %v3472 = vld [vmem:[#allocation2 + $0x85] sm:$0xff]
      %v3473 = vld [vmem:[#allocation2 + $0x8d] sm:$0xff]
      %v3474 = vld [vmem:[#allocation2 + $0x95] sm:$0xff]
      %v3475 = vld [vmem:[#allocation2 + $0x9d] sm:$0xff]
      %v3476 = vld [vmem:[#allocation2 + $0xa5] sm:$0xff]
      %v3477 = vld [vmem:[#allocation2 + $0xad] sm:$0xff]
      %v3478 = vld [vmem:[#allocation2 + $0xb5] sm:$0xff]
      %v3479 = vld [vmem:[#allocation2 + $0xbd] sm:$0xff]
      %v3480 = vld [vmem:[#allocation2 + $0xc5] sm:$0xff]
      %v3481 = vld [vmem:[#allocation2 + $0xcd] sm:$0xff]
      %v3482 = vld [vmem:[#allocation2 + $0xd5] sm:$0xff]
      %v3483 = vld [vmem:[#allocation2 + $0xdd] sm:$0xff]
      %v3484 = vld [vmem:[#allocation2 + $0xe5] sm:$0xff]
      %v3485 = vld [vmem:[#allocation2 + $0xed] sm:$0xff]
      %v3486 = vld [vmem:[#allocation2 + $0xf5] sm:$0xff]
      %v3487 = vld [vmem:[#allocation2 + $0xfd] sm:$0xff]
      %v3488 = vld [vmem:[#allocation2 + $0x105] sm:$0xff]
      %v3489 = vld [vmem:[#allocation2 + $0x10d] sm:$0xff]
      %v3490 = vld [vmem:[#allocation2 + $0x115] sm:$0xff]
      %v3491 = vld [vmem:[#allocation2 + $0x11d] sm:$0xff]
      %v3492 = vld [vmem:[#allocation2 + $0x125] sm:$0xff]
      %v3493 = vld [vmem:[#allocation2 + $0x12d] sm:$0xff]
      %v3494 = vld [vmem:[#allocation2 + $0x135] sm:$0xff]
      %v3495 = vld [vmem:[#allocation2 + $0x13d] sm:$0xff]
      %v3496 = vpack.c.bf16 %v3461, %v3460
      %v3497 = vpack.c.bf16 %v3463, %v3462
      %v3498 = vpack.c.bf16 %v3465, %v3464
      %v3499 = vpack.c.bf16 %v3467, %v3466
      %v3500 = vpack.c.bf16 %v3469, %v3468
      %v3501 = vpack.c.bf16 %v3471, %v3470
      %v3502 = vpack.c.bf16 %v3473, %v3472
      %v3503 = vpack.c.bf16 %v3475, %v3474
      %v3504 = vpack.c.bf16 %v3477, %v3476
      %v3505 = vpack.c.bf16 %v3479, %v3478
      %v3506 = vpack.c.bf16 %v3481, %v3480
      %v3507 = vpack.c.bf16 %v3483, %v3482
      %v3508 = vpack.c.bf16 %v3485, %v3484
      %v3509 = vpack.c.bf16 %v3487, %v3486
      %v3510 = vpack.c.bf16 %v3489, %v3488
      %v3511 = vpack.c.bf16 %v3491, %v3490
      %v3512 = vpack.c.bf16 %v3493, %v3492
      %v3513 = vpack.c.bf16 %v3495, %v3494
      %v3514 = vld [vmem:[#allocation2 + $0x26] sm:$0xff]
      %v3515 = vld [vmem:[#allocation2 + $0x2e] sm:$0xff]
      %v3516 = vld [vmem:[#allocation2 + $0x36] sm:$0xff]
      %v3517 = vld [vmem:[#allocation2 + $0x3e] sm:$0xff]
      %v3518 = vld [vmem:[#allocation2 + $0x46] sm:$0xff]
      %v3519 = vld [vmem:[#allocation2 + $0x4e] sm:$0xff]
      %v3520 = vld [vmem:[#allocation2 + $0x56] sm:$0xff]
      %v3521 = vld [vmem:[#allocation2 + $0x5e] sm:$0xff]
      %v3522 = vld [vmem:[#allocation2 + $0x66] sm:$0xff]
      %v3523 = vld [vmem:[#allocation2 + $0x6e] sm:$0xff]
      %v3524 = vld [vmem:[#allocation2 + $0x76] sm:$0xff]
      %v3525 = vld [vmem:[#allocation2 + $0x7e] sm:$0xff]
      %v3526 = vld [vmem:[#allocation2 + $0x86] sm:$0xff]
      %v3527 = vld [vmem:[#allocation2 + $0x8e] sm:$0xff]
      %v3528 = vld [vmem:[#allocation2 + $0x96] sm:$0xff]
      %v3529 = vld [vmem:[#allocation2 + $0x9e] sm:$0xff]
      %v3530 = vld [vmem:[#allocation2 + $0xa6] sm:$0xff]
      %v3531 = vld [vmem:[#allocation2 + $0xae] sm:$0xff]
      %v3532 = vld [vmem:[#allocation2 + $0xb6] sm:$0xff]
      %v3533 = vld [vmem:[#allocation2 + $0xbe] sm:$0xff]
      %v3534 = vld [vmem:[#allocation2 + $0xc6] sm:$0xff]
      %v3535 = vld [vmem:[#allocation2 + $0xce] sm:$0xff]
      %v3536 = vld [vmem:[#allocation2 + $0xd6] sm:$0xff]
      %v3537 = vld [vmem:[#allocation2 + $0xde] sm:$0xff]
      %v3538 = vld [vmem:[#allocation2 + $0xe6] sm:$0xff]
      %v3539 = vld [vmem:[#allocation2 + $0xee] sm:$0xff]
      %v3540 = vld [vmem:[#allocation2 + $0xf6] sm:$0xff]
      %v3541 = vld [vmem:[#allocation2 + $0xfe] sm:$0xff]
      %v3542 = vld [vmem:[#allocation2 + $0x106] sm:$0xff]
      %v3543 = vld [vmem:[#allocation2 + $0x10e] sm:$0xff]
      %v3544 = vld [vmem:[#allocation2 + $0x116] sm:$0xff]
      %v3545 = vld [vmem:[#allocation2 + $0x11e] sm:$0xff]
      %v3546 = vld [vmem:[#allocation2 + $0x126] sm:$0xff]
      %v3547 = vld [vmem:[#allocation2 + $0x12e] sm:$0xff]
      %v3548 = vld [vmem:[#allocation2 + $0x136] sm:$0xff]
      %v3549 = vld [vmem:[#allocation2 + $0x13e] sm:$0xff]
      %v3550 = vpack.c.bf16 %v3515, %v3514
      %v3551 = vpack.c.bf16 %v3517, %v3516
      %v3552 = vpack.c.bf16 %v3519, %v3518
      %v3553 = vpack.c.bf16 %v3521, %v3520
      %v3554 = vpack.c.bf16 %v3523, %v3522
      %v3555 = vpack.c.bf16 %v3525, %v3524
      %v3556 = vpack.c.bf16 %v3527, %v3526
      %v3557 = vpack.c.bf16 %v3529, %v3528
      %v3558 = vpack.c.bf16 %v3531, %v3530
      %v3559 = vpack.c.bf16 %v3533, %v3532
      %v3560 = vpack.c.bf16 %v3535, %v3534
      %v3561 = vpack.c.bf16 %v3537, %v3536
      %v3562 = vpack.c.bf16 %v3539, %v3538
      %v3563 = vpack.c.bf16 %v3541, %v3540
      %v3564 = vpack.c.bf16 %v3543, %v3542
      %v3565 = vpack.c.bf16 %v3545, %v3544
      %v3566 = vpack.c.bf16 %v3547, %v3546
      %v3567 = vpack.c.bf16 %v3549, %v3548
      %v3568 = vld [vmem:[%s4] sm:$0xf]
      %v3569 = vld [vmem:[%s4 + $0x4] sm:$0xf]
      %v3570 = vld [vmem:[%s4 + $0x8] sm:$0xf]
      %v3571 = vld [vmem:[%s4 + $0xc] sm:$0xf]
      %v3572 = vld [vmem:[%s4 + $0x10] sm:$0xf]
      %v3573 = vld [vmem:[%s4 + $0x14] sm:$0xf]
      %v3574 = vld [vmem:[%s4 + $0x18] sm:$0xf]
      %v3575 = vld [vmem:[%s4 + $0x1c] sm:$0xf]
      %v3576 = vld [vmem:[%s4 + $0x20] sm:$0xf]
      %v3577 = vld [vmem:[%s4 + $0x24] sm:$0xf]
      %v3578 = vld [vmem:[%s4 + $0x28] sm:$0xf]
      %v3579 = vld [vmem:[%s4 + $0x2c] sm:$0xf]
      %v3580 = vld [vmem:[%s4 + $0x30] sm:$0xf]
      %v3581 = vld [vmem:[%s4 + $0x34] sm:$0xf]
      %v3582 = vld [vmem:[%s4 + $0x38] sm:$0xf]
      %v3583 = vld [vmem:[%s4 + $0x3c] sm:$0xf]
      %v3584 = vld [vmem:[%s4 + $0x40] sm:$0xf]
      %v3585 = vld [vmem:[%s4 + $0x44] sm:$0xf]
      %v3586 = vld [vmem:[%s4 + $0x48] sm:$0xf]
      %v3587 = vld [vmem:[%s4 + $0x4c] sm:$0xf]
      %v3588 = vld [vmem:[%s4 + $0x50] sm:$0xf]
      %v3589 = vld [vmem:[%s4 + $0x54] sm:$0xf]
      %v3590 = vld [vmem:[%s4 + $0x58] sm:$0xf]
      %v3591 = vld [vmem:[%s4 + $0x5c] sm:$0xf]
      %v3592 = vld [vmem:[%s4 + $0x60] sm:$0xf]
      %v3593 = vld [vmem:[%s4 + $0x64] sm:$0xf]
      %v3594 = vld [vmem:[%s4 + $0x68] sm:$0xf]
      %v3595 = vld [vmem:[%s4 + $0x6c] sm:$0xf]
      %v3596 = vld [vmem:[%s4 + $0x70] sm:$0xf]
      %v3597 = vld [vmem:[%s4 + $0x74] sm:$0xf]
      %v3598 = vld [vmem:[%s4 + $0x78] sm:$0xf]
      %v3599 = vld [vmem:[%s4 + $0x7c] sm:$0xf]
      %v3600 = vld [vmem:[%s4 + $0x80] sm:$0xf]
      %v3601 = vld [vmem:[%s4 + $0x84] sm:$0xf]
      %v3602 = vld [vmem:[%s4 + $0x88] sm:$0xf]
      %v3603 = vld [vmem:[%s4 + $0x8c] sm:$0xf]
      %v3604 = vld [vmem:[%s4 + $0x90] sm:$0xf]
      %v3605 = vld [vmem:[%s4 + $0x94] sm:$0xf]
      %v3606 = vld [vmem:[%s4 + $0x98] sm:$0xf]
      %v3607 = vld [vmem:[%s4 + $0x9c] sm:$0xf]
      %v3608 = vld [vmem:[%s4 + $0xa0] sm:$0xf]
      %v3609 = vld [vmem:[%s4 + $0xa4] sm:$0xf]
      %v3610 = vld [vmem:[%s4 + $0xa8] sm:$0xf]
      %v3611 = vld [vmem:[%s4 + $0xac] sm:$0xf]
      %v3612 = vld [vmem:[%s4 + $0xb0] sm:$0xf]
      %v3613 = vld [vmem:[%s4 + $0xb4] sm:$0xf]
      %v3614 = vld [vmem:[%s4 + $0xb8] sm:$0xf]
      %v3615 = vld [vmem:[%s4 + $0xbc] sm:$0xf]
      %v3616 = vld [vmem:[%s4 + $0xc0] sm:$0xf]
      %v3617 = vld [vmem:[%s4 + $0xc4] sm:$0xf]
      %v3618 = vld [vmem:[%s4 + $0xc8] sm:$0xf]
      %v3619 = vld [vmem:[%s4 + $0xcc] sm:$0xf]
      %v3620 = vld [vmem:[%s4 + $0xd0] sm:$0xf]
      %v3621 = vld [vmem:[%s4 + $0xd4] sm:$0xf]
      %v3622 = vld [vmem:[%s4 + $0xd8] sm:$0xf]
      %v3623 = vld [vmem:[%s4 + $0xdc] sm:$0xf]
      %v3624 = vld [vmem:[%s4 + $0xe0] sm:$0xf]
      %v3625 = vld [vmem:[%s4 + $0xe4] sm:$0xf]
      %v3626 = vld [vmem:[%s4 + $0xe8] sm:$0xf]
      %v3627 = vld [vmem:[%s4 + $0xec] sm:$0xf]
      %v3628 = vld [vmem:[%s4 + $0xf0] sm:$0xf]
      %v3629 = vld [vmem:[%s4 + $0xf4] sm:$0xf]
      %v3630 = vld [vmem:[%s4 + $0xf8] sm:$0xf]
      %v3631 = vld [vmem:[%s4 + $0xfc] sm:$0xf]
      %v3632 = vld [vmem:[%s4 + $0x100] sm:$0xf]
      %v3633 = vld [vmem:[%s4 + $0x104] sm:$0xf]
      %v3634 = vld [vmem:[%s4 + $0x108] sm:$0xf]
      %v3635 = vld [vmem:[%s4 + $0x10c] sm:$0xf]
      %v3636 = vld [vmem:[%s4 + $0x110] sm:$0xf]
      %v3637 = vld [vmem:[%s4 + $0x114] sm:$0xf]
      %v3638 = vld [vmem:[%s4 + $0x118] sm:$0xf]
      %v3639 = vld [vmem:[%s4 + $0x11c] sm:$0xf]
      %v3640 = vld [vmem:[%s4 + $0x120] sm:$0xf]
      %v3641 = vld [vmem:[%s4 + $0x124] sm:$0xf]
      %v3642 = vld [vmem:[%s4 + $0x128] sm:$0xf]
      %v3643 = vld [vmem:[%s4 + $0x12c] sm:$0xf]
      %v3644 = vld [vmem:[%s4 + $0x130] sm:$0xf]
      %v3645 = vld [vmem:[%s4 + $0x134] sm:$0xf]
      %v3646 = vld [vmem:[%s4 + $0x138] sm:$0xf]
      %v3647 = vld [vmem:[%s4 + $0x13c] sm:$0xf]
      %v3648 = vld [vmem:[%s4 + $0x140] sm:$0xf]
      %v3649 = vld [vmem:[%s4 + $0x144] sm:$0xf]
      %v3650 = vld [vmem:[%s4 + $0x148] sm:$0xf]
      %v3651 = vld [vmem:[%s4 + $0x14c] sm:$0xf]
      %v3652 = vld [vmem:[%s4 + $0x150] sm:$0xf]
      %v3653 = vld [vmem:[%s4 + $0x154] sm:$0xf]
      %v3654 = vld [vmem:[%s4 + $0x158] sm:$0xf]
      %v3655 = vld [vmem:[%s4 + $0x15c] sm:$0xf]
      %v3656 = vld [vmem:[%s4 + $0x160] sm:$0xf]
      %v3657 = vld [vmem:[%s4 + $0x164] sm:$0xf]
      %v3658 = vld [vmem:[%s4 + $0x168] sm:$0xf]
      %v3659 = vld [vmem:[%s4 + $0x16c] sm:$0xf]
      %v3660 = vld [vmem:[%s4 + $0x170] sm:$0xf]
      %v3661 = vld [vmem:[%s4 + $0x174] sm:$0xf]
      %v3662 = vld [vmem:[%s4 + $0x178] sm:$0xf]
      %v3663 = vld [vmem:[%s4 + $0x17c] sm:$0xf]
      %v3664 = vld [vmem:[%s4 + $0x180] sm:$0xf]
      %v3665 = vld [vmem:[%s4 + $0x184] sm:$0xf]
      %v3666 = vld [vmem:[%s4 + $0x188] sm:$0xf]
      %v3667 = vld [vmem:[%s4 + $0x18c] sm:$0xf]
      %v3668 = vld [vmem:[%s4 + $0x190] sm:$0xf]
      %v3669 = vld [vmem:[%s4 + $0x194] sm:$0xf]
      %v3670 = vld [vmem:[%s4 + $0x198] sm:$0xf]
      %v3671 = vld [vmem:[%s4 + $0x19c] sm:$0xf]
      %v3672 = vld [vmem:[%s4 + $0x1a0] sm:$0xf]
      %v3673 = vld [vmem:[%s4 + $0x1a4] sm:$0xf]
      %v3674 = vld [vmem:[%s4 + $0x1a8] sm:$0xf]
      %v3675 = vld [vmem:[%s4 + $0x1ac] sm:$0xf]
      %v3676 = vld [vmem:[%s4 + $0x1b0] sm:$0xf]
      %v3677 = vld [vmem:[%s4 + $0x1b4] sm:$0xf]
      %v3678 = vld [vmem:[%s4 + $0x1b8] sm:$0xf]
      %v3679 = vld [vmem:[%s4 + $0x1bc] sm:$0xf]
      %v3680 = vld [vmem:[%s4 + $0x1c0] sm:$0xf]
      %v3681 = vld [vmem:[%s4 + $0x1c4] sm:$0xf]
      %v3682 = vld [vmem:[%s4 + $0x1c8] sm:$0xf]
      %v3683 = vld [vmem:[%s4 + $0x1cc] sm:$0xf]
      %v3684 = vld [vmem:[%s4 + $0x1d0] sm:$0xf]
      %v3685 = vld [vmem:[%s4 + $0x1d4] sm:$0xf]
      %v3686 = vld [vmem:[%s4 + $0x1d8] sm:$0xf]
      %v3687 = vld [vmem:[%s4 + $0x1dc] sm:$0xf]
      %v3688 = vld [vmem:[%s4 + $0x1e0] sm:$0xf]
      %v3689 = vld [vmem:[%s4 + $0x1e4] sm:$0xf]
      %v3690 = vld [vmem:[%s4 + $0x1e8] sm:$0xf]
      %v3691 = vld [vmem:[%s4 + $0x1ec] sm:$0xf]
      %v3692 = vld [vmem:[%s4 + $0x1f0] sm:$0xf]
      %v3693 = vld [vmem:[%s4 + $0x1f4] sm:$0xf]
      %v3694 = vld [vmem:[%s4 + $0x1f8] sm:$0xf]
      %v3695 = vld [vmem:[%s4 + $0x1fc] sm:$0xf]
      %v3696 = vld [vmem:[%s4 + $0x200] sm:$0xf]
      %v3697 = vld [vmem:[%s4 + $0x204] sm:$0xf]
      %v3698 = vld [vmem:[%s4 + $0x208] sm:$0xf]
      %v3699 = vld [vmem:[%s4 + $0x20c] sm:$0xf]
      %v3700 = vld [vmem:[%s4 + $0x210] sm:$0xf]
      %v3701 = vld [vmem:[%s4 + $0x214] sm:$0xf]
      %v3702 = vld [vmem:[%s4 + $0x218] sm:$0xf]
      %v3703 = vld [vmem:[%s4 + $0x21c] sm:$0xf]
      %v3704 = vld [vmem:[%s4 + $0x220] sm:$0xf]
      %v3705 = vld [vmem:[%s4 + $0x224] sm:$0xf]
      %v3706 = vld [vmem:[%s4 + $0x228] sm:$0xf]
      %v3707 = vld [vmem:[%s4 + $0x22c] sm:$0xf]
      %v3708 = vld [vmem:[%s4 + $0x230] sm:$0xf]
      %v3709 = vld [vmem:[%s4 + $0x234] sm:$0xf]
      %v3710 = vld [vmem:[%s4 + $0x238] sm:$0xf]
      %v3711 = vld [vmem:[%s4 + $0x23c] sm:$0xf]
      %v3712 = vld [vmem:[%s5] sm:$0x1]
      %v3714 = vlaneseq
      %v3715 = vshrl.u32 %v3714, 7
      %v3716 = vsub.s32 0, %v3715
      %v3717 = vrot.slane %v3712, %v3716
      %v3863 = vunpack.c.l.b16 %v3568
      %v3864 = vunpack.c.l.b16 %v3569
      %v3865 = vunpack.c.l.b16 %v3570
      %v3866 = vunpack.c.l.b16 %v3571
      %v3867 = vunpack.c.l.b16 %v3572
      %v3868 = vunpack.c.l.b16 %v3573
      %v3869 = vunpack.c.l.b16 %v3574
      %v3870 = vunpack.c.l.b16 %v3575
      %v3871 = vunpack.c.l.b16 %v3576
      %v3872 = vunpack.c.l.b16 %v3577
      %v3873 = vunpack.c.l.b16 %v3578
      %v3874 = vunpack.c.l.b16 %v3579
      %v3875 = vunpack.c.l.b16 %v3580
      %v3876 = vunpack.c.l.b16 %v3581
      %v3877 = vunpack.c.l.b16 %v3582
      %v3878 = vunpack.c.l.b16 %v3583
      %v3879 = vunpack.c.l.b16 %v3584
      %v3880 = vunpack.c.l.b16 %v3585
      %v3881 = vunpack.c.l.b16 %v3586
      %v3882 = vunpack.c.l.b16 %v3587
      %v3883 = vunpack.c.l.b16 %v3588
      %v3884 = vunpack.c.l.b16 %v3589
      %v3885 = vunpack.c.l.b16 %v3590
      %v3886 = vunpack.c.l.b16 %v3591
      %v3887 = vunpack.c.l.b16 %v3592
      %v3888 = vunpack.c.l.b16 %v3593
      %v3889 = vunpack.c.l.b16 %v3594
      %v3890 = vunpack.c.l.b16 %v3595
      %v3891 = vunpack.c.l.b16 %v3596
      %v3892 = vunpack.c.l.b16 %v3597
      %v3893 = vunpack.c.l.b16 %v3598
      %v3894 = vunpack.c.l.b16 %v3599
      %v3895 = vunpack.c.l.b16 %v3600
      %v3896 = vunpack.c.l.b16 %v3601
      %v3897 = vunpack.c.l.b16 %v3602
      %v3898 = vunpack.c.l.b16 %v3603
      %v3899 = vunpack.c.l.b16 %v3604
      %v3900 = vunpack.c.l.b16 %v3605
      %v3901 = vunpack.c.l.b16 %v3606
      %v3902 = vunpack.c.l.b16 %v3607
      %v3903 = vunpack.c.l.b16 %v3608
      %v3904 = vunpack.c.l.b16 %v3609
      %v3905 = vunpack.c.l.b16 %v3610
      %v3906 = vunpack.c.l.b16 %v3611
      %v3907 = vunpack.c.l.b16 %v3612
      %v3908 = vunpack.c.l.b16 %v3613
      %v3909 = vunpack.c.l.b16 %v3614
      %v3910 = vunpack.c.l.b16 %v3615
      %v3911 = vunpack.c.l.b16 %v3616
      %v3912 = vunpack.c.l.b16 %v3617
      %v3913 = vunpack.c.l.b16 %v3618
      %v3914 = vunpack.c.l.b16 %v3619
      %v3915 = vunpack.c.l.b16 %v3620
      %v3916 = vunpack.c.l.b16 %v3621
      %v3917 = vunpack.c.l.b16 %v3622
      %v3918 = vunpack.c.l.b16 %v3623
      %v3919 = vunpack.c.l.b16 %v3624
      %v3920 = vunpack.c.l.b16 %v3625
      %v3921 = vunpack.c.l.b16 %v3626
      %v3922 = vunpack.c.l.b16 %v3627
      %v3923 = vunpack.c.l.b16 %v3628
      %v3924 = vunpack.c.l.b16 %v3629
      %v3925 = vunpack.c.l.b16 %v3630
      %v3926 = vunpack.c.l.b16 %v3631
      %v3927 = vunpack.c.l.b16 %v3632
      %v3928 = vunpack.c.l.b16 %v3633
      %v3929 = vunpack.c.l.b16 %v3634
      %v3930 = vunpack.c.l.b16 %v3635
      %v3931 = vunpack.c.l.b16 %v3636
      %v3932 = vunpack.c.l.b16 %v3637
      %v3933 = vunpack.c.l.b16 %v3638
      %v3934 = vunpack.c.l.b16 %v3639
      %v3935 = vunpack.c.l.b16 %v3640
      %v3936 = vunpack.c.l.b16 %v3641
      %v3937 = vunpack.c.l.b16 %v3642
      %v3938 = vunpack.c.l.b16 %v3643
      %v3939 = vunpack.c.l.b16 %v3644
      %v3940 = vunpack.c.l.b16 %v3645
      %v3941 = vunpack.c.l.b16 %v3646
      %v3942 = vunpack.c.l.b16 %v3647
      %v3943 = vunpack.c.l.b16 %v3648
      %v3944 = vunpack.c.l.b16 %v3649
      %v3945 = vunpack.c.l.b16 %v3650
      %v3946 = vunpack.c.l.b16 %v3651
      %v3947 = vunpack.c.l.b16 %v3652
      %v3948 = vunpack.c.l.b16 %v3653
      %v3949 = vunpack.c.l.b16 %v3654
      %v3950 = vunpack.c.l.b16 %v3655
      %v3951 = vunpack.c.l.b16 %v3656
      %v3952 = vunpack.c.l.b16 %v3657
      %v3953 = vunpack.c.l.b16 %v3658
      %v3954 = vunpack.c.l.b16 %v3659
      %v3955 = vunpack.c.l.b16 %v3660
      %v3956 = vunpack.c.l.b16 %v3661
      %v3957 = vunpack.c.l.b16 %v3662
      %v3958 = vunpack.c.l.b16 %v3663
      %v3959 = vunpack.c.l.b16 %v3664
      %v3960 = vunpack.c.l.b16 %v3665
      %v3961 = vunpack.c.l.b16 %v3666
      %v3962 = vunpack.c.l.b16 %v3667
      %v3963 = vunpack.c.l.b16 %v3668
      %v3964 = vunpack.c.l.b16 %v3669
      %v3965 = vunpack.c.l.b16 %v3670
      %v3966 = vunpack.c.l.b16 %v3671
      %v3967 = vunpack.c.l.b16 %v3672
      %v3968 = vunpack.c.l.b16 %v3673
      %v3969 = vunpack.c.l.b16 %v3674
      %v3970 = vunpack.c.l.b16 %v3675
      %v3971 = vunpack.c.l.b16 %v3676
      %v3972 = vunpack.c.l.b16 %v3677
      %v3973 = vunpack.c.l.b16 %v3678
      %v3974 = vunpack.c.l.b16 %v3679
      %v3975 = vunpack.c.l.b16 %v3680
      %v3976 = vunpack.c.l.b16 %v3681
      %v3977 = vunpack.c.l.b16 %v3682
      %v3978 = vunpack.c.l.b16 %v3683
      %v3979 = vunpack.c.l.b16 %v3684
      %v3980 = vunpack.c.l.b16 %v3685
      %v3981 = vunpack.c.l.b16 %v3686
      %v3982 = vunpack.c.l.b16 %v3687
      %v3983 = vunpack.c.l.b16 %v3688
      %v3984 = vunpack.c.l.b16 %v3689
      %v3985 = vunpack.c.l.b16 %v3690
      %v3986 = vunpack.c.l.b16 %v3691
      %v3987 = vunpack.c.l.b16 %v3692
      %v3988 = vunpack.c.l.b16 %v3693
      %v3989 = vunpack.c.l.b16 %v3694
      %v3990 = vunpack.c.l.b16 %v3695
      %v3991 = vunpack.c.l.b16 %v3696
      %v3992 = vunpack.c.l.b16 %v3697
      %v3993 = vunpack.c.l.b16 %v3698
      %v3994 = vunpack.c.l.b16 %v3699
      %v3995 = vunpack.c.l.b16 %v3700
      %v3996 = vunpack.c.l.b16 %v3701
      %v3997 = vunpack.c.l.b16 %v3702
      %v3998 = vunpack.c.l.b16 %v3703
      %v3999 = vunpack.c.l.b16 %v3704
      %v4000 = vunpack.c.l.b16 %v3705
      %v4001 = vunpack.c.l.b16 %v3706
      %v4002 = vunpack.c.l.b16 %v3707
      %v4003 = vunpack.c.l.b16 %v3708
      %v4004 = vunpack.c.l.b16 %v3709
      %v4005 = vunpack.c.l.b16 %v3710
      %v4006 = vunpack.c.l.b16 %v3711
      %v4007 = vpack.c.b16 %v3864, %v3863
      %v4008 = vpack.c.b16 %v3866, %v3865
      %v4009 = vpack.c.b16 %v3868, %v3867
      %v4010 = vpack.c.b16 %v3870, %v3869
      %v4011 = vpack.c.b16 %v3872, %v3871
      %v4012 = vpack.c.b16 %v3874, %v3873
      %v4013 = vpack.c.b16 %v3876, %v3875
      %v4014 = vpack.c.b16 %v3878, %v3877
      %v4015 = vpack.c.b16 %v3880, %v3879
      %v4016 = vpack.c.b16 %v3882, %v3881
      %v4017 = vpack.c.b16 %v3884, %v3883
      %v4018 = vpack.c.b16 %v3886, %v3885
      %v4019 = vpack.c.b16 %v3888, %v3887
      %v4020 = vpack.c.b16 %v3890, %v3889
      %v4021 = vpack.c.b16 %v3892, %v3891
      %v4022 = vpack.c.b16 %v3894, %v3893
      %v4023 = vpack.c.b16 %v3896, %v3895
      %v4024 = vpack.c.b16 %v3898, %v3897
      %v4025 = vpack.c.b16 %v3900, %v3899
      %v4026 = vpack.c.b16 %v3902, %v3901
      %v4027 = vpack.c.b16 %v3904, %v3903
      %v4028 = vpack.c.b16 %v3906, %v3905
      %v4029 = vpack.c.b16 %v3908, %v3907
      %v4030 = vpack.c.b16 %v3910, %v3909
      %v4031 = vpack.c.b16 %v3912, %v3911
      %v4032 = vpack.c.b16 %v3914, %v3913
      %v4033 = vpack.c.b16 %v3916, %v3915
      %v4034 = vpack.c.b16 %v3918, %v3917
      %v4035 = vpack.c.b16 %v3920, %v3919
      %v4036 = vpack.c.b16 %v3922, %v3921
      %v4037 = vpack.c.b16 %v3924, %v3923
      %v4038 = vpack.c.b16 %v3926, %v3925
      %v4039 = vpack.c.b16 %v3928, %v3927
      %v4040 = vpack.c.b16 %v3930, %v3929
      %v4041 = vpack.c.b16 %v3932, %v3931
      %v4042 = vpack.c.b16 %v3934, %v3933
      %v4043 = vpack.c.b16 %v3936, %v3935
      %v4044 = vpack.c.b16 %v3938, %v3937
      %v4045 = vpack.c.b16 %v3940, %v3939
      %v4046 = vpack.c.b16 %v3942, %v3941
      %v4047 = vpack.c.b16 %v3944, %v3943
      %v4048 = vpack.c.b16 %v3946, %v3945
      %v4049 = vpack.c.b16 %v3948, %v3947
      %v4050 = vpack.c.b16 %v3950, %v3949
      %v4051 = vpack.c.b16 %v3952, %v3951
      %v4052 = vpack.c.b16 %v3954, %v3953
      %v4053 = vpack.c.b16 %v3956, %v3955
      %v4054 = vpack.c.b16 %v3958, %v3957
      %v4055 = vpack.c.b16 %v3960, %v3959
      %v4056 = vpack.c.b16 %v3962, %v3961
      %v4057 = vpack.c.b16 %v3964, %v3963
      %v4058 = vpack.c.b16 %v3966, %v3965
      %v4059 = vpack.c.b16 %v3968, %v3967
      %v4060 = vpack.c.b16 %v3970, %v3969
      %v4061 = vpack.c.b16 %v3972, %v3971
      %v4062 = vpack.c.b16 %v3974, %v3973
      %v4063 = vpack.c.b16 %v3976, %v3975
      %v4064 = vpack.c.b16 %v3978, %v3977
      %v4065 = vpack.c.b16 %v3980, %v3979
      %v4066 = vpack.c.b16 %v3982, %v3981
      %v4067 = vpack.c.b16 %v3984, %v3983
      %v4068 = vpack.c.b16 %v3986, %v3985
      %v4069 = vpack.c.b16 %v3988, %v3987
      %v4070 = vpack.c.b16 %v3990, %v3989
      %v4071 = vpack.c.b16 %v3992, %v3991
      %v4072 = vpack.c.b16 %v3994, %v3993
      %v4073 = vpack.c.b16 %v3996, %v3995
      %v4074 = vpack.c.b16 %v3998, %v3997
      %v4075 = vpack.c.b16 %v4000, %v3999
      %v4076 = vpack.c.b16 %v4002, %v4001
      %v4077 = vpack.c.b16 %v4004, %v4003
      %v4078 = vpack.c.b16 %v4006, %v4005
      %4151 = vmatprep.subr.bf16.mxu0 0
      %4152 = vmatpush1.bf16.msra.mxu0 %v4007
      %4153 = vmatprep.subr.bf16.mxu0 0
      %4154 = vmatpush1.bf16.msra.mxu0 %v4008
      %4155 = vmatprep.subr.bf16.mxu0 0
      %4156 = vmatpush1.bf16.msra.mxu0 %v4009
      %4157 = vmatprep.subr.bf16.mxu0 0
      %4158 = vmatpush1.bf16.msra.mxu0 %v4010
      %4159 = vmatprep.subr.bf16.mxu0 0
      %4160 = vmatpush1.bf16.msra.mxu0 %v4011
      %4161 = vmatprep.subr.bf16.mxu0 0
      %4162 = vmatpush1.bf16.msra.mxu0 %v4012
      %4163 = vmatprep.subr.bf16.mxu0 0
      %4164 = vmatpush1.bf16.msra.mxu0 %v4013
      %4165 = vmatprep.subr.bf16.mxu0 0
      %4166 = vmatpush1.bf16.msra.mxu0 %v4014
      %4167 = vmatprep.subr.bf16.mxu0 0
      %4168 = vmatpush1.bf16.msra.mxu0 %v4015
      %4169 = vmatprep.subr.bf16.mxu0 0
      %4170 = vmatpush1.bf16.msra.mxu0 %v4016
      %4171 = vmatprep.subr.bf16.mxu0 0
      %4172 = vmatpush1.bf16.msra.mxu0 %v4017
      %4173 = vmatprep.subr.bf16.mxu0 0
      %4174 = vmatpush1.bf16.msra.mxu0 %v4018
      %4175 = vmatprep.subr.bf16.mxu0 0
      %4176 = vmatpush1.bf16.msra.mxu0 %v4019
      %4177 = vmatprep.subr.bf16.mxu0 0
      %4178 = vmatpush1.bf16.msra.mxu0 %v4020
      %4179 = vmatprep.subr.bf16.mxu0 0
      %4180 = vmatpush1.bf16.msra.mxu0 %v4021
      %4181 = vmatprep.subr.bf16.mxu0 0
      %4182 = vmatpush1.bf16.msra.mxu0 %v4022
      %4183 = vmatprep.mubr.bf16.mxu0 %v3274
      %4184 = vmatmul.mubr.bf16.gmra.mrb[0].mxu0 %v3220
      %v4185 = vpop.f32.mrb[0].mxu0
      %v4186 = vadd.f32 %v3717, %v4185
      %v4187 = vpop.f32.mrb[0].mxu0
      %v4188 = vpop.f32.mrb[0].mxu0
      %v4189 = vadd.f32 %v3717, %v4188
      %v4190 = vpop.f32.mrb[0].mxu0
      %4191 = vmatprep.mubr.bf16.mxu0 %v3275
      %4192 = vmatmul.mubr.bf16.gmra.mrb[0].mxu0 %v3221
      %v4193 = vpop.f32.mrb[0].mxu0
      %v4194 = vadd.f32 %v3717, %v4193
      %v4195 = vpop.f32.mrb[0].mxu0
      %v4196 = vpop.f32.mrb[0].mxu0
      %v4197 = vadd.f32 %v3717, %v4196
      %v4198 = vpop.f32.mrb[0].mxu0
      %4199 = vmatprep.mubr.bf16.mxu0 %v3276
      %4200 = vmatmul.mubr.bf16.gmra.mrb[0].mxu0 %v3222
      %v4201 = vpop.f32.mrb[0].mxu0
      %v4202 = vadd.f32 %v3717, %v4201
      %v4203 = vpop.f32.mrb[0].mxu0
      %v4204 = vpop.f32.mrb[0].mxu0
      %v4205 = vadd.f32 %v3717, %v4204
      %v4206 = vpop.f32.mrb[0].mxu0
      %4207 = vmatprep.mubr.bf16.mxu0 %v3277
      %4208 = vmatmul.mubr.bf16.gmra.mrb[0].mxu0 %v3223
      %v4209 = vpop.f32.mrb[0].mxu0
      %v4210 = vadd.f32 %v3717, %v4209
      %v4211 = vpop.f32.mrb[0].mxu0
      %v4212 = vpop.f32.mrb[0].mxu0
      %v4213 = vadd.f32 %v3717, %v4212
      %v4214 = vpop.f32.mrb[0].mxu0
      %4215 = vmatprep.mubr.bf16.mxu0 %v3278
      %4216 = vmatmul.mubr.bf16.gmra.mrb[0].mxu0 %v3224
      %v4217 = vpop.f32.mrb[0].mxu0
      %v4218 = vadd.f32 %v3717, %v4217
      %v4219 = vpop.f32.mrb[0].mxu0
      %v4220 = vpop.f32.mrb[0].mxu0
      %v4221 = vadd.f32 %v3717, %v4220
      %v4222 = vpop.f32.mrb[0].mxu0
      %4223 = vmatprep.mubr.bf16.mxu0 %v3279
      %4224 = vmatmul.mubr.bf16.gmra.mrb[0].mxu0 %v3225
      %v4225 = vpop.f32.mrb[0].mxu0
      %v4226 = vadd.f32 %v3717, %v4225
      %v4227 = vpop.f32.mrb[0].mxu0
      %v4228 = vpop.f32.mrb[0].mxu0
      %v4229 = vadd.f32 %v3717, %v4228
      %v4230 = vpop.f32.mrb[0].mxu0
      %4231 = vmatprep.mubr.bf16.mxu0 %v3280
      %4232 = vmatmul.mubr.bf16.gmra.mrb[0].mxu0 %v3226
      %v4233 = vpop.f32.mrb[0].mxu0
      %v4234 = vadd.f32 %v3717, %v4233
      %v4235 = vpop.f32.mrb[0].mxu0
      %v4236 = vpop.f32.mrb[0].mxu0
      %v4237 = vadd.f32 %v3717, %v4236
      %v4238 = vpop.f32.mrb[0].mxu0
      %4239 = vmatprep.mubr.bf16.mxu0 %v3281
      %4240 = vmatmul.mubr.bf16.gmra.mrb[0].mxu0 %v3227
      %v4241 = vpop.f32.mrb[0].mxu0
      %v4242 = vadd.f32 %v3717, %v4241
      %v4243 = vpop.f32.mrb[0].mxu0
      %v4244 = vpop.f32.mrb[0].mxu0
      %v4245 = vadd.f32 %v3717, %v4244
      %v4246 = vpop.f32.mrb[0].mxu0
      %4247 = vmatprep.mubr.bf16.mxu0 %v3282
      %4248 = vmatmul.mubr.bf16.gmra.mrb[0].mxu0 %v3228
      %v4249 = vpop.f32.mrb[0].mxu0
      %v4250 = vadd.f32 %v3717, %v4249
      %v4251 = vpop.f32.mrb[0].mxu0
      %v4252 = vpop.f32.mrb[0].mxu0
      %v4253 = vadd.f32 %v3717, %v4252
      %v4254 = vpop.f32.mrb[0].mxu0
      %4255 = vmatprep.mubr.bf16.mxu0 %v3283
      %4256 = vmatmul.mubr.bf16.gmra.mrb[0].mxu0 %v3229
      %v4257 = vpop.f32.mrb[0].mxu0
      %v4258 = vadd.f32 %v3717, %v4257
      %v4259 = vpop.f32.mrb[0].mxu0
      %v4260 = vpop.f32.mrb[0].mxu0
      %v4261 = vadd.f32 %v3717, %v4260
      %v4262 = vpop.f32.mrb[0].mxu0
      %4263 = vmatprep.mubr.bf16.mxu0 %v3284
      %4264 = vmatmul.mubr.bf16.gmra.mrb[0].mxu0 %v3230
      %v4265 = vpop.f32.mrb[0].mxu0
      %v4266 = vadd.f32 %v3717, %v4265
      %v4267 = vpop.f32.mrb[0].mxu0
      %v4268 = vpop.f32.mrb[0].mxu0
      %v4269 = vadd.f32 %v3717, %v4268
      %v4270 = vpop.f32.mrb[0].mxu0
      %4271 = vmatprep.mubr.bf16.mxu0 %v3285
      %4272 = vmatmul.mubr.bf16.gmra.mrb[0].mxu0 %v3231
      %v4273 = vpop.f32.mrb[0].mxu0
      %v4274 = vadd.f32 %v3717, %v4273
      %v4275 = vpop.f32.mrb[0].mxu0
      %v4276 = vpop.f32.mrb[0].mxu0
      %v4277 = vadd.f32 %v3717, %v4276
      %v4278 = vpop.f32.mrb[0].mxu0
      %4279 = vmatprep.mubr.bf16.mxu0 %v3286
      %4280 = vmatmul.mubr.bf16.gmra.mrb[0].mxu0 %v3232
      %v4281 = vpop.f32.mrb[0].mxu0
      %v4282 = vadd.f32 %v3717, %v4281
      %v4283 = vpop.f32.mrb[0].mxu0
      %v4284 = vpop.f32.mrb[0].mxu0
      %v4285 = vadd.f32 %v3717, %v4284
      %v4286 = vpop.f32.mrb[0].mxu0
      %4287 = vmatprep.mubr.bf16.mxu0 %v3287
      %4288 = vmatmul.mubr.bf16.gmra.mrb[0].mxu0 %v3233
      %v4289 = vpop.f32.mrb[0].mxu0
      %v4290 = vadd.f32 %v3717, %v4289
      %v4291 = vpop.f32.mrb[0].mxu0
      %v4292 = vpop.f32.mrb[0].mxu0
      %v4293 = vadd.f32 %v3717, %v4292
      %v4294 = vpop.f32.mrb[0].mxu0
      %4295 = vmatprep.mubr.bf16.mxu0 %v3288
      %4296 = vmatmul.mubr.bf16.gmra.mrb[0].mxu0 %v3234
      %v4297 = vpop.f32.mrb[0].mxu0
      %v4298 = vadd.f32 %v3717, %v4297
      %v4299 = vpop.f32.mrb[0].mxu0
      %v4300 = vpop.f32.mrb[0].mxu0
      %v4301 = vadd.f32 %v3717, %v4300
      %v4302 = vpop.f32.mrb[0].mxu0
      %4303 = vmatprep.mubr.bf16.mxu0 %v3289
      %4304 = vmatmul.mubr.bf16.gmra.mrb[0].mxu0 %v3235
      %v4305 = vpop.f32.mrb[0].mxu0
      %v4306 = vadd.f32 %v3717, %v4305
      %v4307 = vpop.f32.mrb[0].mxu0
      %v4308 = vpop.f32.mrb[0].mxu0
      %v4309 = vadd.f32 %v3717, %v4308
      %v4310 = vpop.f32.mrb[0].mxu0
      %4311 = vmatprep.mubr.bf16.mxu0 %v3290
      %4312 = vmatmul.mubr.bf16.gmra.mrb[0].mxu0 %v3236
      %v4313 = vpop.f32.mrb[0].mxu0
      %v4314 = vadd.f32 %v3717, %v4313
      %v4315 = vpop.f32.mrb[0].mxu0
      %v4316 = vpop.f32.mrb[0].mxu0
      %v4317 = vadd.f32 %v3717, %v4316
      %v4318 = vpop.f32.mrb[0].mxu0
      %4319 = vmatprep.mubr.bf16.mxu0 %v3291
      %4320 = vmatmul.mubr.bf16.gmra.mrb[0].mxu0 %v3237
      %v4321 = vpop.f32.mrb[0].mxu0
      %v4322 = vadd.f32 %v3717, %v4321
      %v4323 = vpop.f32.mrb[0].mxu0
      %v4324 = vpop.f32.mrb[0].mxu0
      %v4325 = vadd.f32 %v3717, %v4324
      %v4326 = vpop.f32.mrb[0].mxu0
      %4327 = vdwg.mxu0
      %4328 = vmatprep.subr.bf16.mxu0 0
      %4329 = vmatpush1.bf16.msra.mxu0 %v4023
      %4330 = vmatprep.subr.bf16.mxu0 0
      %4331 = vmatpush1.bf16.msra.mxu0 %v4024
      %4332 = vmatprep.subr.bf16.mxu0 0
      %4333 = vmatpush1.bf16.msra.mxu0 %v4025
      %4334 = vmatprep.subr.bf16.mxu0 0
      %4335 = vmatpush1.bf16.msra.mxu0 %v4026
      %4336 = vmatprep.subr.bf16.mxu0 0
      %4337 = vmatpush1.bf16.msra.mxu0 %v4027
      %4338 = vmatprep.subr.bf16.mxu0 0
      %4339 = vmatpush1.bf16.msra.mxu0 %v4028
      %4340 = vmatprep.subr.bf16.mxu0 0
      %4341 = vmatpush1.bf16.msra.mxu0 %v4029
      %4342 = vmatprep.subr.bf16.mxu0 0
      %4343 = vmatpush1.bf16.msra.mxu0 %v4030
      %4344 = vmatprep.subr.bf16.mxu0 0
      %4345 = vmatpush1.bf16.msra.mxu0 %v4031
      %4346 = vmatprep.subr.bf16.mxu0 0
      %4347 = vmatpush1.bf16.msra.mxu0 %v4032
      %4348 = vmatprep.subr.bf16.mxu0 0
      %4349 = vmatpush1.bf16.msra.mxu0 %v4033
      %4350 = vmatprep.subr.bf16.mxu0 0
      %4351 = vmatpush1.bf16.msra.mxu0 %v4034
      %4352 = vmatprep.subr.bf16.mxu0 0
      %4353 = vmatpush1.bf16.msra.mxu0 %v4035
      %4354 = vmatprep.subr.bf16.mxu0 0
      %4355 = vmatpush1.bf16.msra.mxu0 %v4036
      %4356 = vmatprep.subr.bf16.mxu0 0
      %4357 = vmatpush1.bf16.msra.mxu0 %v4037
      %4358 = vmatprep.subr.bf16.mxu0 0
      %4359 = vmatpush1.bf16.msra.mxu0 %v4038
      %4360 = vmatprep.mubr.bf16.mxu0 %v3329
      %4361 = vmatmul.mubr.bf16.gmra.mrb[0].mxu0 %v3328
      %v4362 = vpop.f32.mrb[0].mxu0
      %v4363 = vadd.f32 %v4186, %v4362
      %v4364 = vpop.f32.mrb[0].mxu0
      %v4365 = vpop.f32.mrb[0].mxu0
      %v4366 = vadd.f32 %v4189, %v4365
      %v4367 = vpop.f32.mrb[0].mxu0
      %4368 = vmatprep.mubr.bf16.mxu0 %v3330
      %4369 = vmatmul.mubr.bf16.gmra.mrb[0].mxu0 %v3329
      %v4370 = vpop.f32.mrb[0].mxu0
      %v4371 = vadd.f32 %v4194, %v4370
      %v4372 = vpop.f32.mrb[0].mxu0
      %v4373 = vpop.f32.mrb[0].mxu0
      %v4374 = vadd.f32 %v4197, %v4373
      %v4375 = vpop.f32.mrb[0].mxu0
      %4376 = vmatprep.mubr.bf16.mxu0 %v3331
      %4377 = vmatmul.mubr.bf16.gmra.mrb[0].mxu0 %v3330
      %v4378 = vpop.f32.mrb[0].mxu0
      %v4379 = vadd.f32 %v4202, %v4378
      %v4380 = vpop.f32.mrb[0].mxu0
      %v4381 = vpop.f32.mrb[0].mxu0
      %v4382 = vadd.f32 %v4205, %v4381
      %v4383 = vpop.f32.mrb[0].mxu0
      %4384 = vmatprep.mubr.bf16.mxu0 %v3332
      %4385 = vmatmul.mubr.bf16.gmra.mrb[0].mxu0 %v3331
      %v4386 = vpop.f32.mrb[0].mxu0
      %v4387 = vadd.f32 %v4210, %v4386
      %v4388 = vpop.f32.mrb[0].mxu0
      %v4389 = vpop.f32.mrb[0].mxu0
      %v4390 = vadd.f32 %v4213, %v4389
      %v4391 = vpop.f32.mrb[0].mxu0
      %4392 = vmatprep.mubr.bf16.mxu0 %v3333
      %4393 = vmatmul.mubr.bf16.gmra.mrb[0].mxu0 %v3332
      %v4394 = vpop.f32.mrb[0].mxu0
      %v4395 = vadd.f32 %v4218, %v4394
      %v4396 = vpop.f32.mrb[0].mxu0
      %v4397 = vpop.f32.mrb[0].mxu0
      %v4398 = vadd.f32 %v4221, %v4397
      %v4399 = vpop.f32.mrb[0].mxu0
      %4400 = vmatprep.mubr.bf16.mxu0 %v3334
      %4401 = vmatmul.mubr.bf16.gmra.mrb[0].mxu0 %v3333
      %v4402 = vpop.f32.mrb[0].mxu0
      %v4403 = vadd.f32 %v4226, %v4402
      %v4404 = vpop.f32.mrb[0].mxu0
      %v4405 = vpop.f32.mrb[0].mxu0
      %v4406 = vadd.f32 %v4229, %v4405
      %v4407 = vpop.f32.mrb[0].mxu0
      %4408 = vmatprep.mubr.bf16.mxu0 %v3335
      %4409 = vmatmul.mubr.bf16.gmra.mrb[0].mxu0 %v3334
      %v4410 = vpop.f32.mrb[0].mxu0
      %v4411 = vadd.f32 %v4234, %v4410
      %v4412 = vpop.f32.mrb[0].mxu0
      %v4413 = vpop.f32.mrb[0].mxu0
      %v4414 = vadd.f32 %v4237, %v4413
      %v4415 = vpop.f32.mrb[0].mxu0
      %4416 = vmatprep.mubr.bf16.mxu0 %v3336
      %4417 = vmatmul.mubr.bf16.gmra.mrb[0].mxu0 %v3335
      %v4418 = vpop.f32.mrb[0].mxu0
      %v4419 = vadd.f32 %v4242, %v4418
      %v4420 = vpop.f32.mrb[0].mxu0
      %v4421 = vpop.f32.mrb[0].mxu0
      %v4422 = vadd.f32 %v4245, %v4421
      %v4423 = vpop.f32.mrb[0].mxu0
      %4424 = vmatprep.mubr.bf16.mxu0 %v3337
      %4425 = vmatmul.mubr.bf16.gmra.mrb[0].mxu0 %v3336
      %v4426 = vpop.f32.mrb[0].mxu0
      %v4427 = vadd.f32 %v4250, %v4426
      %v4428 = vpop.f32.mrb[0].mxu0
      %v4429 = vpop.f32.mrb[0].mxu0
      %v4430 = vadd.f32 %v4253, %v4429
      %v4431 = vpop.f32.mrb[0].mxu0
      %4432 = vmatprep.mubr.bf16.mxu0 %v3338
      %4433 = vmatmul.mubr.bf16.gmra.mrb[0].mxu0 %v3337
      %v4434 = vpop.f32.mrb[0].mxu0
      %v4435 = vadd.f32 %v4258, %v4434
      %v4436 = vpop.f32.mrb[0].mxu0
      %v4437 = vpop.f32.mrb[0].mxu0
      %v4438 = vadd.f32 %v4261, %v4437
      %v4439 = vpop.f32.mrb[0].mxu0
      %4440 = vmatprep.mubr.bf16.mxu0 %v3339
      %4441 = vmatmul.mubr.bf16.gmra.mrb[0].mxu0 %v3338
      %v4442 = vpop.f32.mrb[0].mxu0
      %v4443 = vadd.f32 %v4266, %v4442
      %v4444 = vpop.f32.mrb[0].mxu0
      %v4445 = vpop.f32.mrb[0].mxu0
      %v4446 = vadd.f32 %v4269, %v4445
      %v4447 = vpop.f32.mrb[0].mxu0
      %4448 = vmatprep.mubr.bf16.mxu0 %v3340
      %4449 = vmatmul.mubr.bf16.gmra.mrb[0].mxu0 %v3339
      %v4450 = vpop.f32.mrb[0].mxu0
      %v4451 = vadd.f32 %v4274, %v4450
      %v4452 = vpop.f32.mrb[0].mxu0
      %v4453 = vpop.f32.mrb[0].mxu0
      %v4454 = vadd.f32 %v4277, %v4453
      %v4455 = vpop.f32.mrb[0].mxu0
      %4456 = vmatprep.mubr.bf16.mxu0 %v3341
      %4457 = vmatmul.mubr.bf16.gmra.mrb[0].mxu0 %v3340
      %v4458 = vpop.f32.mrb[0].mxu0
      %v4459 = vadd.f32 %v4282, %v4458
      %v4460 = vpop.f32.mrb[0].mxu0
      %v4461 = vpop.f32.mrb[0].mxu0
      %v4462 = vadd.f32 %v4285, %v4461
      %v4463 = vpop.f32.mrb[0].mxu0
      %4464 = vmatprep.mubr.bf16.mxu0 %v3342
      %4465 = vmatmul.mubr.bf16.gmra.mrb[0].mxu0 %v3341
      %v4466 = vpop.f32.mrb[0].mxu0
      %v4467 = vadd.f32 %v4290, %v4466
      %v4468 = vpop.f32.mrb[0].mxu0
      %v4469 = vpop.f32.mrb[0].mxu0
      %v4470 = vadd.f32 %v4293, %v4469
      %v4471 = vpop.f32.mrb[0].mxu0
      %4472 = vmatprep.mubr.bf16.mxu0 %v3343
      %4473 = vmatmul.mubr.bf16.gmra.mrb[0].mxu0 %v3342
      %v4474 = vpop.f32.mrb[0].mxu0
      %v4475 = vadd.f32 %v4298, %v4474
      %v4476 = vpop.f32.mrb[0].mxu0
      %v4477 = vpop.f32.mrb[0].mxu0
      %v4478 = vadd.f32 %v4301, %v4477
      %v4479 = vpop.f32.mrb[0].mxu0
      %4480 = vmatprep.mubr.bf16.mxu0 %v3344
      %4481 = vmatmul.mubr.bf16.gmra.mrb[0].mxu0 %v3343
      %v4482 = vpop.f32.mrb[0].mxu0
      %v4483 = vadd.f32 %v4306, %v4482
      %v4484 = vpop.f32.mrb[0].mxu0
      %v4485 = vpop.f32.mrb[0].mxu0
      %v4486 = vadd.f32 %v4309, %v4485
      %v4487 = vpop.f32.mrb[0].mxu0
      %4488 = vmatprep.mubr.bf16.mxu0 %v3345
      %4489 = vmatmul.mubr.bf16.gmra.mrb[0].mxu0 %v3344
      %v4490 = vpop.f32.mrb[0].mxu0
      %v4491 = vadd.f32 %v4314, %v4490
      %v4492 = vpop.f32.mrb[0].mxu0
      %v4493 = vpop.f32.mrb[0].mxu0
      %v4494 = vadd.f32 %v4317, %v4493
      %v4495 = vpop.f32.mrb[0].mxu0
      %4496 = vmatprep.mubr.bf16.mxu0 %v3348
      %4497 = vmatmul.mubr.bf16.gmra.mrb[0].mxu0 %v3345
      %v4498 = vpop.f32.mrb[0].mxu0
      %v4499 = vadd.f32 %v4322, %v4498
      %v4500 = vpop.f32.mrb[0].mxu0
      %v4501 = vpop.f32.mrb[0].mxu0
      %v4502 = vadd.f32 %v4325, %v4501
      %v4503 = vpop.f32.mrb[0].mxu0
      %4504 = vdwg.mxu0
      %4505 = vmatprep.subr.bf16.mxu0 0
      %4506 = vmatpush1.bf16.msra.mxu0 %v4039
      %4507 = vmatprep.subr.bf16.mxu0 0
      %4508 = vmatpush1.bf16.msra.mxu0 %v4040
      %4509 = vmatprep.subr.bf16.mxu0 0
      %4510 = vmatpush1.bf16.msra.mxu0 %v4041
      %4511 = vmatprep.subr.bf16.mxu0 0
      %4512 = vmatpush1.bf16.msra.mxu0 %v4042
      %4513 = vmatprep.subr.bf16.mxu0 0
      %4514 = vmatpush1.bf16.msra.mxu0 %v4043
      %4515 = vmatprep.subr.bf16.mxu0 0
      %4516 = vmatpush1.bf16.msra.mxu0 %v4044
      %4517 = vmatprep.subr.bf16.mxu0 0
      %4518 = vmatpush1.bf16.msra.mxu0 %v4045
      %4519 = vmatprep.subr.bf16.mxu0 0
      %4520 = vmatpush1.bf16.msra.mxu0 %v4046
      %4521 = vmatprep.subr.bf16.mxu0 0
      %4522 = vmatpush1.bf16.msra.mxu0 %v4047
      %4523 = vmatprep.subr.bf16.mxu0 0
      %4524 = vmatpush1.bf16.msra.mxu0 %v4048
      %4525 = vmatprep.subr.bf16.mxu0 0
      %4526 = vmatpush1.bf16.msra.mxu0 %v4049
      %4527 = vmatprep.subr.bf16.mxu0 0
      %4528 = vmatpush1.bf16.msra.mxu0 %v4050
      %4529 = vmatprep.subr.bf16.mxu0 0
      %4530 = vmatpush1.bf16.msra.mxu0 %v4051
      %4531 = vmatprep.subr.bf16.mxu0 0
      %4532 = vmatpush1.bf16.msra.mxu0 %v4052
      %4533 = vmatprep.subr.bf16.mxu0 0
      %4534 = vmatpush1.bf16.msra.mxu0 %v4053
      %4535 = vmatprep.subr.bf16.mxu0 0
      %4536 = vmatpush1.bf16.msra.mxu0 %v4054
      %4537 = vmatprep.mubr.bf16.mxu0 %v3439
      %4538 = vmatmul.mubr.bf16.gmra.mrb[0].mxu0 %v3385
      %v4539 = vpop.f32.mrb[0].mxu0
      %v4540 = vadd.f32 %v4363, %v4539
      %v4541 = vpop.f32.mrb[0].mxu0
      %v4542 = vpop.f32.mrb[0].mxu0
      %v4543 = vadd.f32 %v4366, %v4542
      %v4544 = vpop.f32.mrb[0].mxu0
      %4545 = vmatprep.mubr.bf16.mxu0 %v3440
      %4546 = vmatmul.mubr.bf16.gmra.mrb[0].mxu0 %v3386
      %v4547 = vpop.f32.mrb[0].mxu0
      %v4548 = vadd.f32 %v4371, %v4547
      %v4549 = vpop.f32.mrb[0].mxu0
      %v4550 = vpop.f32.mrb[0].mxu0
      %v4551 = vadd.f32 %v4374, %v4550
      %v4552 = vpop.f32.mrb[0].mxu0
      %4553 = vmatprep.mubr.bf16.mxu0 %v3441
      %4554 = vmatmul.mubr.bf16.gmra.mrb[0].mxu0 %v3387
      %v4555 = vpop.f32.mrb[0].mxu0
      %v4556 = vadd.f32 %v4379, %v4555
      %v4557 = vpop.f32.mrb[0].mxu0
      %v4558 = vpop.f32.mrb[0].mxu0
      %v4559 = vadd.f32 %v4382, %v4558
      %v4560 = vpop.f32.mrb[0].mxu0
      %4561 = vmatprep.mubr.bf16.mxu0 %v3442
      %4562 = vmatmul.mubr.bf16.gmra.mrb[0].mxu0 %v3388
      %v4563 = vpop.f32.mrb[0].mxu0
      %v4564 = vadd.f32 %v4387, %v4563
      %v4565 = vpop.f32.mrb[0].mxu0
      %v4566 = vpop.f32.mrb[0].mxu0
      %v4567 = vadd.f32 %v4390, %v4566
      %v4568 = vpop.f32.mrb[0].mxu0
      %4569 = vmatprep.mubr.bf16.mxu0 %v3443
      %4570 = vmatmul.mubr.bf16.gmra.mrb[0].mxu0 %v3389
      %v4571 = vpop.f32.mrb[0].mxu0
      %v4572 = vadd.f32 %v4395, %v4571
      %v4573 = vpop.f32.mrb[0].mxu0
      %v4574 = vpop.f32.mrb[0].mxu0
      %v4575 = vadd.f32 %v4398, %v4574
      %v4576 = vpop.f32.mrb[0].mxu0
      %4577 = vmatprep.mubr.bf16.mxu0 %v3444
      %4578 = vmatmul.mubr.bf16.gmra.mrb[0].mxu0 %v3390
      %v4579 = vpop.f32.mrb[0].mxu0
      %v4580 = vadd.f32 %v4403, %v4579
      %v4581 = vpop.f32.mrb[0].mxu0
      %v4582 = vpop.f32.mrb[0].mxu0
      %v4583 = vadd.f32 %v4406, %v4582
      %v4584 = vpop.f32.mrb[0].mxu0
      %4585 = vmatprep.mubr.bf16.mxu0 %v3445
      %4586 = vmatmul.mubr.bf16.gmra.mrb[0].mxu0 %v3391
      %v4587 = vpop.f32.mrb[0].mxu0
      %v4588 = vadd.f32 %v4411, %v4587
      %v4589 = vpop.f32.mrb[0].mxu0
      %v4590 = vpop.f32.mrb[0].mxu0
      %v4591 = vadd.f32 %v4414, %v4590
      %v4592 = vpop.f32.mrb[0].mxu0
      %4593 = vmatprep.mubr.bf16.mxu0 %v3446
      %4594 = vmatmul.mubr.bf16.gmra.mrb[0].mxu0 %v3392
      %v4595 = vpop.f32.mrb[0].mxu0
      %v4596 = vadd.f32 %v4419, %v4595
      %v4597 = vpop.f32.mrb[0].mxu0
      %v4598 = vpop.f32.mrb[0].mxu0
      %v4599 = vadd.f32 %v4422, %v4598
      %v4600 = vpop.f32.mrb[0].mxu0
      %4601 = vmatprep.mubr.bf16.mxu0 %v3447
      %4602 = vmatmul.mubr.bf16.gmra.mrb[0].mxu0 %v3393
      %v4603 = vpop.f32.mrb[0].mxu0
      %v4604 = vadd.f32 %v4427, %v4603
      %v4605 = vpop.f32.mrb[0].mxu0
      %v4606 = vpop.f32.mrb[0].mxu0
      %v4607 = vadd.f32 %v4430, %v4606
      %v4608 = vpop.f32.mrb[0].mxu0
      %4609 = vmatprep.mubr.bf16.mxu0 %v3448
      %4610 = vmatmul.mubr.bf16.gmra.mrb[0].mxu0 %v3394
      %v4611 = vpop.f32.mrb[0].mxu0
      %v4612 = vadd.f32 %v4435, %v4611
      %v4613 = vpop.f32.mrb[0].mxu0
      %v4614 = vpop.f32.mrb[0].mxu0
      %v4615 = vadd.f32 %v4438, %v4614
      %v4616 = vpop.f32.mrb[0].mxu0
      %4617 = vmatprep.mubr.bf16.mxu0 %v3449
      %4618 = vmatmul.mubr.bf16.gmra.mrb[0].mxu0 %v3395
      %v4619 = vpop.f32.mrb[0].mxu0
      %v4620 = vadd.f32 %v4443, %v4619
      %v4621 = vpop.f32.mrb[0].mxu0
      %v4622 = vpop.f32.mrb[0].mxu0
      %v4623 = vadd.f32 %v4446, %v4622
      %v4624 = vpop.f32.mrb[0].mxu0
      %4625 = vmatprep.mubr.bf16.mxu0 %v3450
      %4626 = vmatmul.mubr.bf16.gmra.mrb[0].mxu0 %v3396
      %v4627 = vpop.f32.mrb[0].mxu0
      %v4628 = vadd.f32 %v4451, %v4627
      %v4629 = vpop.f32.mrb[0].mxu0
      %v4630 = vpop.f32.mrb[0].mxu0
      %v4631 = vadd.f32 %v4454, %v4630
      %v4632 = vpop.f32.mrb[0].mxu0
      %4633 = vmatprep.mubr.bf16.mxu0 %v3451
      %4634 = vmatmul.mubr.bf16.gmra.mrb[0].mxu0 %v3397
      %v4635 = vpop.f32.mrb[0].mxu0
      %v4636 = vadd.f32 %v4459, %v4635
      %v4637 = vpop.f32.mrb[0].mxu0
      %v4638 = vpop.f32.mrb[0].mxu0
      %v4639 = vadd.f32 %v4462, %v4638
      %v4640 = vpop.f32.mrb[0].mxu0
      %4641 = vmatprep.mubr.bf16.mxu0 %v3452
      %4642 = vmatmul.mubr.bf16.gmra.mrb[0].mxu0 %v3398
      %v4643 = vpop.f32.mrb[0].mxu0
      %v4644 = vadd.f32 %v4467, %v4643
      %v4645 = vpop.f32.mrb[0].mxu0
      %v4646 = vpop.f32.mrb[0].mxu0
      %v4647 = vadd.f32 %v4470, %v4646
      %v4648 = vpop.f32.mrb[0].mxu0
      %4649 = vmatprep.mubr.bf16.mxu0 %v3453
      %4650 = vmatmul.mubr.bf16.gmra.mrb[0].mxu0 %v3399
      %v4651 = vpop.f32.mrb[0].mxu0
      %v4652 = vadd.f32 %v4475, %v4651
      %v4653 = vpop.f32.mrb[0].mxu0
      %v4654 = vpop.f32.mrb[0].mxu0
      %v4655 = vadd.f32 %v4478, %v4654
      %v4656 = vpop.f32.mrb[0].mxu0
      %4657 = vmatprep.mubr.bf16.mxu0 %v3454
      %4658 = vmatmul.mubr.bf16.gmra.mrb[0].mxu0 %v3400
      %v4659 = vpop.f32.mrb[0].mxu0
      %v4660 = vadd.f32 %v4483, %v4659
      %v4661 = vpop.f32.mrb[0].mxu0
      %v4662 = vpop.f32.mrb[0].mxu0
      %v4663 = vadd.f32 %v4486, %v4662
      %v4664 = vpop.f32.mrb[0].mxu0
      %4665 = vmatprep.mubr.bf16.mxu0 %v3455
      %4666 = vmatmul.mubr.bf16.gmra.mrb[0].mxu0 %v3401
      %v4667 = vpop.f32.mrb[0].mxu0
      %v4668 = vadd.f32 %v4491, %v4667
      %v4669 = vpop.f32.mrb[0].mxu0
      %v4670 = vpop.f32.mrb[0].mxu0
      %v4671 = vadd.f32 %v4494, %v4670
      %v4672 = vpop.f32.mrb[0].mxu0
      %4673 = vmatprep.mubr.bf16.mxu0 %v3456
      %4674 = vmatmul.mubr.bf16.gmra.mrb[0].mxu0 %v3402
      %v4675 = vpop.f32.mrb[0].mxu0
      %v4676 = vadd.f32 %v4499, %v4675
      %v4677 = vpop.f32.mrb[0].mxu0
      %v4678 = vpop.f32.mrb[0].mxu0
      %v4679 = vadd.f32 %v4502, %v4678
      %v4680 = vpop.f32.mrb[0].mxu0
      %4681 = vdwg.mxu0
      %4682 = vmatprep.subr.bf16.mxu0 0
      %4683 = vmatpush1.bf16.msra.mxu0 %v4055
      %4684 = vmatprep.subr.bf16.mxu0 0
      %4685 = vmatpush1.bf16.msra.mxu0 %v4056
      %4686 = vmatprep.subr.bf16.mxu0 0
      %4687 = vmatpush1.bf16.msra.mxu0 %v4057
      %4688 = vmatprep.subr.bf16.mxu0 0
      %4689 = vmatpush1.bf16.msra.mxu0 %v4058
      %4690 = vmatprep.subr.bf16.mxu0 0
      %4691 = vmatpush1.bf16.msra.mxu0 %v4059
      %4692 = vmatprep.subr.bf16.mxu0 0
      %4693 = vmatpush1.bf16.msra.mxu0 %v4060
      %4694 = vmatprep.subr.bf16.mxu0 0
      %4695 = vmatpush1.bf16.msra.mxu0 %v4061
      %4696 = vmatprep.subr.bf16.mxu0 0
      %4697 = vmatpush1.bf16.msra.mxu0 %v4062
      %4698 = vmatprep.subr.bf16.mxu0 0
      %4699 = vmatpush1.bf16.msra.mxu0 %v4063
      %4700 = vmatprep.subr.bf16.mxu0 0
      %4701 = vmatpush1.bf16.msra.mxu0 %v4064
      %4702 = vmatprep.subr.bf16.mxu0 0
      %4703 = vmatpush1.bf16.msra.mxu0 %v4065
      %4704 = vmatprep.subr.bf16.mxu0 0
      %4705 = vmatpush1.bf16.msra.mxu0 %v4066
      %4706 = vmatprep.subr.bf16.mxu0 0
      %4707 = vmatpush1.bf16.msra.mxu0 %v4067
      %4708 = vmatprep.subr.bf16.mxu0 0
      %4709 = vmatpush1.bf16.msra.mxu0 %v4068
      %4710 = vmatprep.subr.bf16.mxu0 0
      %4711 = vmatpush1.bf16.msra.mxu0 %v4069
      %4712 = vmatprep.subr.bf16.mxu0 0
      %4713 = vmatpush1.bf16.msra.mxu0 %v4070
      %4714 = vmatprep.mubr.bf16.mxu0 %v3496
      %4715 = vmatmul.mubr.bf16.gmra.mrb[0].mxu0 %v3440
      %v4716 = vpop.f32.mrb[0].mxu0
      %v4717 = vadd.f32 %v4540, %v4716
      %v4718 = vpop.f32.mrb[0].mxu0
      %v4719 = vpop.f32.mrb[0].mxu0
      %v4720 = vadd.f32 %v4543, %v4719
      %v4721 = vpop.f32.mrb[0].mxu0
      %4722 = vmatprep.mubr.bf16.mxu0 %v3497
      %4723 = vmatmul.mubr.bf16.gmra.mrb[0].mxu0 %v3441
      %v4724 = vpop.f32.mrb[0].mxu0
      %v4725 = vadd.f32 %v4548, %v4724
      %v4726 = vpop.f32.mrb[0].mxu0
      %v4727 = vpop.f32.mrb[0].mxu0
      %v4728 = vadd.f32 %v4551, %v4727
      %v4729 = vpop.f32.mrb[0].mxu0
      %4730 = vmatprep.mubr.bf16.mxu0 %v3498
      %4731 = vmatmul.mubr.bf16.gmra.mrb[0].mxu0 %v3442
      %v4732 = vpop.f32.mrb[0].mxu0
      %v4733 = vadd.f32 %v4556, %v4732
      %v4734 = vpop.f32.mrb[0].mxu0
      %v4735 = vpop.f32.mrb[0].mxu0
      %v4736 = vadd.f32 %v4559, %v4735
      %v4737 = vpop.f32.mrb[0].mxu0
      %4738 = vmatprep.mubr.bf16.mxu0 %v3499
      %4739 = vmatmul.mubr.bf16.gmra.mrb[0].mxu0 %v3443
      %v4740 = vpop.f32.mrb[0].mxu0
      %v4741 = vadd.f32 %v4564, %v4740
      %v4742 = vpop.f32.mrb[0].mxu0
      %v4743 = vpop.f32.mrb[0].mxu0
      %v4744 = vadd.f32 %v4567, %v4743
      %v4745 = vpop.f32.mrb[0].mxu0
      %4746 = vmatprep.mubr.bf16.mxu0 %v3500
      %4747 = vmatmul.mubr.bf16.gmra.mrb[0].mxu0 %v3444
      %v4748 = vpop.f32.mrb[0].mxu0
      %v4749 = vadd.f32 %v4572, %v4748
      %v4750 = vpop.f32.mrb[0].mxu0
      %v4751 = vpop.f32.mrb[0].mxu0
      %v4752 = vadd.f32 %v4575, %v4751
      %v4753 = vpop.f32.mrb[0].mxu0
      %4754 = vmatprep.mubr.bf16.mxu0 %v3501
      %4755 = vmatmul.mubr.bf16.gmra.mrb[0].mxu0 %v3445
      %v4756 = vpop.f32.mrb[0].mxu0
      %v4757 = vadd.f32 %v4580, %v4756
      %v4758 = vpop.f32.mrb[0].mxu0
      %v4759 = vpop.f32.mrb[0].mxu0
      %v4760 = vadd.f32 %v4583, %v4759
      %v4761 = vpop.f32.mrb[0].mxu0
      %4762 = vmatprep.mubr.bf16.mxu0 %v3502
      %4763 = vmatmul.mubr.bf16.gmra.mrb[0].mxu0 %v3446
      %v4764 = vpop.f32.mrb[0].mxu0
      %v4765 = vadd.f32 %v4588, %v4764
      %v4766 = vpop.f32.mrb[0].mxu0
      %v4767 = vpop.f32.mrb[0].mxu0
      %v4768 = vadd.f32 %v4591, %v4767
      %v4769 = vpop.f32.mrb[0].mxu0
      %4770 = vmatprep.mubr.bf16.mxu0 %v3503
      %4771 = vmatmul.mubr.bf16.gmra.mrb[0].mxu0 %v3447
      %v4772 = vpop.f32.mrb[0].mxu0
      %v4773 = vadd.f32 %v4596, %v4772
      %v4774 = vpop.f32.mrb[0].mxu0
      %v4775 = vpop.f32.mrb[0].mxu0
      %v4776 = vadd.f32 %v4599, %v4775
      %v4777 = vpop.f32.mrb[0].mxu0
      %4778 = vmatprep.mubr.bf16.mxu0 %v3504
      %4779 = vmatmul.mubr.bf16.gmra.mrb[0].mxu0 %v3448
      %v4780 = vpop.f32.mrb[0].mxu0
      %v4781 = vadd.f32 %v4604, %v4780
      %v4782 = vpop.f32.mrb[0].mxu0
      %v4783 = vpop.f32.mrb[0].mxu0
      %v4784 = vadd.f32 %v4607, %v4783
      %v4785 = vpop.f32.mrb[0].mxu0
      %4786 = vmatprep.mubr.bf16.mxu0 %v3505
      %4787 = vmatmul.mubr.bf16.gmra.mrb[0].mxu0 %v3449
      %v4788 = vpop.f32.mrb[0].mxu0
      %v4789 = vadd.f32 %v4612, %v4788
      %v4790 = vpop.f32.mrb[0].mxu0
      %v4791 = vpop.f32.mrb[0].mxu0
      %v4792 = vadd.f32 %v4615, %v4791
      %v4793 = vpop.f32.mrb[0].mxu0
      %4794 = vmatprep.mubr.bf16.mxu0 %v3506
      %4795 = vmatmul.mubr.bf16.gmra.mrb[0].mxu0 %v3450
      %v4796 = vpop.f32.mrb[0].mxu0
      %v4797 = vadd.f32 %v4620, %v4796
      %v4798 = vpop.f32.mrb[0].mxu0
      %v4799 = vpop.f32.mrb[0].mxu0
      %v4800 = vadd.f32 %v4623, %v4799
      %v4801 = vpop.f32.mrb[0].mxu0
      %4802 = vmatprep.mubr.bf16.mxu0 %v3507
      %4803 = vmatmul.mubr.bf16.gmra.mrb[0].mxu0 %v3451
      %v4804 = vpop.f32.mrb[0].mxu0
      %v4805 = vadd.f32 %v4628, %v4804
      %v4806 = vpop.f32.mrb[0].mxu0
      %v4807 = vpop.f32.mrb[0].mxu0
      %v4808 = vadd.f32 %v4631, %v4807
      %v4809 = vpop.f32.mrb[0].mxu0
      %4810 = vmatprep.mubr.bf16.mxu0 %v3508
      %4811 = vmatmul.mubr.bf16.gmra.mrb[0].mxu0 %v3452
      %v4812 = vpop.f32.mrb[0].mxu0
      %v4813 = vadd.f32 %v4636, %v4812
      %v4814 = vpop.f32.mrb[0].mxu0
      %v4815 = vpop.f32.mrb[0].mxu0
      %v4816 = vadd.f32 %v4639, %v4815
      %v4817 = vpop.f32.mrb[0].mxu0
      %4818 = vmatprep.mubr.bf16.mxu0 %v3509
      %4819 = vmatmul.mubr.bf16.gmra.mrb[0].mxu0 %v3453
      %v4820 = vpop.f32.mrb[0].mxu0
      %v4821 = vadd.f32 %v4644, %v4820
      %v4822 = vpop.f32.mrb[0].mxu0
      %v4823 = vpop.f32.mrb[0].mxu0
      %v4824 = vadd.f32 %v4647, %v4823
      %v4825 = vpop.f32.mrb[0].mxu0
      %4826 = vmatprep.mubr.bf16.mxu0 %v3510
      %4827 = vmatmul.mubr.bf16.gmra.mrb[0].mxu0 %v3454
      %v4828 = vpop.f32.mrb[0].mxu0
      %v4829 = vadd.f32 %v4652, %v4828
      %v4830 = vpop.f32.mrb[0].mxu0
      %v4831 = vpop.f32.mrb[0].mxu0
      %v4832 = vadd.f32 %v4655, %v4831
      %v4833 = vpop.f32.mrb[0].mxu0
      %4834 = vmatprep.mubr.bf16.mxu0 %v3511
      %4835 = vmatmul.mubr.bf16.gmra.mrb[0].mxu0 %v3455
      %v4836 = vpop.f32.mrb[0].mxu0
      %v4837 = vadd.f32 %v4660, %v4836
      %v4838 = vpop.f32.mrb[0].mxu0
      %v4839 = vpop.f32.mrb[0].mxu0
      %v4840 = vadd.f32 %v4663, %v4839
      %v4841 = vpop.f32.mrb[0].mxu0
      %4842 = vmatprep.mubr.bf16.mxu0 %v3512
      %4843 = vmatmul.mubr.bf16.gmra.mrb[0].mxu0 %v3456
      %v4844 = vpop.f32.mrb[0].mxu0
      %v4845 = vadd.f32 %v4668, %v4844
      %v4846 = vpop.f32.mrb[0].mxu0
      %v4847 = vpop.f32.mrb[0].mxu0
      %v4848 = vadd.f32 %v4671, %v4847
      %v4849 = vpop.f32.mrb[0].mxu0
      %4850 = vmatprep.mubr.bf16.mxu0 %v3513
      %4851 = vmatmul.mubr.bf16.gmra.mrb[0].mxu0 %v3459
      %v4852 = vpop.f32.mrb[0].mxu0
      %v4853 = vadd.f32 %v4676, %v4852
      %v4854 = vpop.f32.mrb[0].mxu0
      %v4855 = vpop.f32.mrb[0].mxu0
      %v4856 = vadd.f32 %v4679, %v4855
      %v4857 = vpop.f32.mrb[0].mxu0
      %4858 = vdwg.mxu0
      %4859 = vmatprep.subr.bf16.mxu0 0
      %4860 = vmatpush1.bf16.msra.mxu0 %v4071
      %4861 = vmatprep.subr.bf16.mxu0 0
      %4862 = vmatpush1.bf16.msra.mxu0 %v4072
      %4863 = vmatprep.subr.bf16.mxu0 0
      %4864 = vmatpush1.bf16.msra.mxu0 %v4073
      %4865 = vmatprep.subr.bf16.mxu0 0
      %4866 = vmatpush1.bf16.msra.mxu0 %v4074
      %4867 = vmatprep.subr.bf16.mxu0 0
      %4868 = vmatpush1.bf16.msra.mxu0 %v4075
      %4869 = vmatprep.subr.bf16.mxu0 0
      %4870 = vmatpush1.bf16.msra.mxu0 %v4076
      %4871 = vmatprep.subr.bf16.mxu0 0
      %4872 = vmatpush1.bf16.msra.mxu0 %v4077
      %4873 = vmatprep.subr.bf16.mxu0 0
      %4874 = vmatpush1.bf16.msra.mxu0 %v4078
      %4875 = vmatprep.subr.bf16.mxu0 0
      %4876 = vmatpush1.bf16.msra.mxu0 0
      %4877 = vmatprep.subr.bf16.mxu0 0
      %4878 = vmatpush1.bf16.msra.mxu0 0
      %4879 = vmatprep.subr.bf16.mxu0 0
      %4880 = vmatpush1.bf16.msra.mxu0 0
      %4881 = vmatprep.subr.bf16.mxu0 0
      %4882 = vmatpush1.bf16.msra.mxu0 0
      %4883 = vmatprep.subr.bf16.mxu0 0
      %4884 = vmatpush1.bf16.msra.mxu0 0
      %4885 = vmatprep.subr.bf16.mxu0 0
      %4886 = vmatpush1.bf16.msra.mxu0 0
      %4887 = vmatprep.subr.bf16.mxu0 0
      %4888 = vmatpush1.bf16.msra.mxu0 0
      %4889 = vmatprep.subr.bf16.mxu0 0
      %4890 = vmatpush1.bf16.msra.mxu0 0
      %4891 = vmatprep.mubr.bf16.mxu0 0
      %4892 = vmatmul.mubr.bf16.gmra.mrb[0].mxu0 %v3550
      %v4893 = vpop.f32.mrb[0].mxu0
      %v4894 = vadd.f32 %v4717, %v4893
      %v4895 = vpop.f32.mrb[0].mxu0
      %v4896 = vpop.f32.mrb[0].mxu0
      %v4897 = vadd.f32 %v4720, %v4896
      %v4898 = vpop.f32.mrb[0].mxu0
      %4899 = vmatprep.mubr.bf16.mxu0 0
      %4900 = vmatmul.mubr.bf16.gmra.mrb[0].mxu0 %v3551
      %v4901 = vpop.f32.mrb[0].mxu0
      %v4902 = vadd.f32 %v4725, %v4901
      %v4903 = vpop.f32.mrb[0].mxu0
      %v4904 = vpop.f32.mrb[0].mxu0
      %v4905 = vadd.f32 %v4728, %v4904
      %v4906 = vpop.f32.mrb[0].mxu0
      %4907 = vmatprep.mubr.bf16.mxu0 0
      %4908 = vmatmul.mubr.bf16.gmra.mrb[0].mxu0 %v3552
      %v4909 = vpop.f32.mrb[0].mxu0
      %v4910 = vadd.f32 %v4733, %v4909
      %v4911 = vpop.f32.mrb[0].mxu0
      %v4912 = vpop.f32.mrb[0].mxu0
      %v4913 = vadd.f32 %v4736, %v4912
      %v4914 = vpop.f32.mrb[0].mxu0
      %4915 = vmatprep.mubr.bf16.mxu0 0
      %4916 = vmatmul.mubr.bf16.gmra.mrb[0].mxu0 %v3553
      %v4917 = vpop.f32.mrb[0].mxu0
      %v4918 = vadd.f32 %v4741, %v4917
      %v4919 = vpop.f32.mrb[0].mxu0
      %v4920 = vpop.f32.mrb[0].mxu0
      %v4921 = vadd.f32 %v4744, %v4920
      %v4922 = vpop.f32.mrb[0].mxu0
      %4923 = vmatprep.mubr.bf16.mxu0 0
      %4924 = vmatmul.mubr.bf16.gmra.mrb[0].mxu0 %v3554
      %v4925 = vpop.f32.mrb[0].mxu0
      %v4926 = vadd.f32 %v4749, %v4925
      %v4927 = vpop.f32.mrb[0].mxu0
      %v4928 = vpop.f32.mrb[0].mxu0
      %v4929 = vadd.f32 %v4752, %v4928
      %v4930 = vpop.f32.mrb[0].mxu0
      %4931 = vmatprep.mubr.bf16.mxu0 0
      %4932 = vmatmul.mubr.bf16.gmra.mrb[0].mxu0 %v3555
      %v4933 = vpop.f32.mrb[0].mxu0
      %v4934 = vadd.f32 %v4757, %v4933
      %v4935 = vpop.f32.mrb[0].mxu0
      %v4936 = vpop.f32.mrb[0].mxu0
      %v4937 = vadd.f32 %v4760, %v4936
      %v4938 = vpop.f32.mrb[0].mxu0
      %4939 = vmatprep.mubr.bf16.mxu0 0
      %4940 = vmatmul.mubr.bf16.gmra.mrb[0].mxu0 %v3556
      %v4941 = vpop.f32.mrb[0].mxu0
      %v4942 = vadd.f32 %v4765, %v4941
      %v4943 = vpop.f32.mrb[0].mxu0
      %v4944 = vpop.f32.mrb[0].mxu0
      %v4945 = vadd.f32 %v4768, %v4944
      %v4946 = vpop.f32.mrb[0].mxu0
      %4947 = vmatprep.mubr.bf16.mxu0 0
      %4948 = vmatmul.mubr.bf16.gmra.mrb[0].mxu0 %v3557
      %v4949 = vpop.f32.mrb[0].mxu0
      %v4950 = vadd.f32 %v4773, %v4949
      %v4951 = vpop.f32.mrb[0].mxu0
      %v4952 = vpop.f32.mrb[0].mxu0
      %v4953 = vadd.f32 %v4776, %v4952
      %v4954 = vpop.f32.mrb[0].mxu0
      %4955 = vmatprep.mubr.bf16.mxu0 0
      %4956 = vmatmul.mubr.bf16.gmra.mrb[0].mxu0 %v3558
      %v4957 = vpop.f32.mrb[0].mxu0
      %v4958 = vadd.f32 %v4781, %v4957
      %v4959 = vpop.f32.mrb[0].mxu0
      %v4960 = vpop.f32.mrb[0].mxu0
      %v4961 = vadd.f32 %v4784, %v4960
      %v4962 = vpop.f32.mrb[0].mxu0
      %4963 = vmatprep.mubr.bf16.mxu0 0
      %4964 = vmatmul.mubr.bf16.gmra.mrb[0].mxu0 %v3559
      %v4965 = vpop.f32.mrb[0].mxu0
      %v4966 = vadd.f32 %v4789, %v4965
      %v4967 = vpop.f32.mrb[0].mxu0
      %v4968 = vpop.f32.mrb[0].mxu0
      %v4969 = vadd.f32 %v4792, %v4968
      %v4970 = vpop.f32.mrb[0].mxu0
      %4971 = vmatprep.mubr.bf16.mxu0 0
      %4972 = vmatmul.mubr.bf16.gmra.mrb[0].mxu0 %v3560
      %v4973 = vpop.f32.mrb[0].mxu0
      %v4974 = vadd.f32 %v4797, %v4973
      %v4975 = vpop.f32.mrb[0].mxu0
      %v4976 = vpop.f32.mrb[0].mxu0
      %v4977 = vadd.f32 %v4800, %v4976
      %v4978 = vpop.f32.mrb[0].mxu0
      %4979 = vmatprep.mubr.bf16.mxu0 0
      %4980 = vmatmul.mubr.bf16.gmra.mrb[0].mxu0 %v3561
      %v4981 = vpop.f32.mrb[0].mxu0
      %v4982 = vadd.f32 %v4805, %v4981
      %v4983 = vpop.f32.mrb[0].mxu0
      %v4984 = vpop.f32.mrb[0].mxu0
      %v4985 = vadd.f32 %v4808, %v4984
      %v4986 = vpop.f32.mrb[0].mxu0
      %4987 = vmatprep.mubr.bf16.mxu0 0
      %4988 = vmatmul.mubr.bf16.gmra.mrb[0].mxu0 %v3562
      %v4989 = vpop.f32.mrb[0].mxu0
      %v4990 = vadd.f32 %v4813, %v4989
      %v4991 = vpop.f32.mrb[0].mxu0
      %v4992 = vpop.f32.mrb[0].mxu0
      %v4993 = vadd.f32 %v4816, %v4992
      %v4994 = vpop.f32.mrb[0].mxu0
      %4995 = vmatprep.mubr.bf16.mxu0 0
      %4996 = vmatmul.mubr.bf16.gmra.mrb[0].mxu0 %v3563
      %v4997 = vpop.f32.mrb[0].mxu0
      %v4998 = vadd.f32 %v4821, %v4997
      %v4999 = vpop.f32.mrb[0].mxu0
      %v5000 = vpop.f32.mrb[0].mxu0
      %v5001 = vadd.f32 %v4824, %v5000
      %v5002 = vpop.f32.mrb[0].mxu0
      %5003 = vmatprep.mubr.bf16.mxu0 0
      %5004 = vmatmul.mubr.bf16.gmra.mrb[0].mxu0 %v3564
      %v5005 = vpop.f32.mrb[0].mxu0
      %v5006 = vadd.f32 %v4829, %v5005
      %v5007 = vpop.f32.mrb[0].mxu0
      %v5008 = vpop.f32.mrb[0].mxu0
      %v5009 = vadd.f32 %v4832, %v5008
      %v5010 = vpop.f32.mrb[0].mxu0
      %5011 = vmatprep.mubr.bf16.mxu0 0
      %5012 = vmatmul.mubr.bf16.gmra.mrb[0].mxu0 %v3565
      %v5013 = vpop.f32.mrb[0].mxu0
      %v5014 = vadd.f32 %v4837, %v5013
      %v5015 = vpop.f32.mrb[0].mxu0
      %v5016 = vpop.f32.mrb[0].mxu0
      %v5017 = vadd.f32 %v4840, %v5016
      %v5018 = vpop.f32.mrb[0].mxu0
      %5019 = vmatprep.mubr.bf16.mxu0 0
      %5020 = vmatmul.mubr.bf16.gmra.mrb[0].mxu0 %v3566
      %v5021 = vpop.f32.mrb[0].mxu0
      %v5022 = vadd.f32 %v4845, %v5021
      %v5023 = vpop.f32.mrb[0].mxu0
      %v5024 = vpop.f32.mrb[0].mxu0
      %v5025 = vadd.f32 %v4848, %v5024
      %v5026 = vpop.f32.mrb[0].mxu0
      %5027 = vmatprep.mubr.bf16.mxu0 0
      %5028 = vmatmul.mubr.bf16.gmra.mrb[0].mxu0 %v3567
      %v5029 = vpop.f32.mrb[0].mxu0
      %v5030 = vadd.f32 %v4853, %v5029
      %v5031 = vpop.f32.mrb[0].mxu0
      %v5032 = vpop.f32.mrb[0].mxu0
      %v5033 = vadd.f32 %v4856, %v5032
      %v5034 = vpop.f32.mrb[0].mxu0
      %5035 = vdwg.mxu0
      %v5036 = vmul.f32 %v4894, %v2282
      %v5037 = vmul.f32 %v4897, %v2287
      %v5038 = vmul.f32 %v4902, %v2292
      %v5039 = vmul.f32 %v4905, %v2297
      %v5040 = vmul.f32 %v4910, %v2302
      %v5041 = vmul.f32 %v4913, %v2307
      %v5042 = vmul.f32 %v4918, %v2312
      %v5043 = vmul.f32 %v4921, %v2317
      %v5044 = vmul.f32 %v4926, %v2322
      %v5045 = vmul.f32 %v4929, %v2327
      %v5046 = vmul.f32 %v4934, %v2332
      %v5047 = vmul.f32 %v4937, %v2337
      %v5048 = vmul.f32 %v4942, %v2342
      %v5049 = vmul.f32 %v4945, %v2347
      %v5050 = vmul.f32 %v4950, %v2352
      %v5051 = vmul.f32 %v4953, %v2357
      %v5052 = vmul.f32 %v4958, %v2362
      %v5053 = vmul.f32 %v4961, %v2367
      %v5054 = vmul.f32 %v4966, %v2372
      %v5055 = vmul.f32 %v4969, %v2377
      %v5056 = vmul.f32 %v4974, %v2382
      %v5057 = vmul.f32 %v4977, %v2387
      %v5058 = vmul.f32 %v4982, %v2392
      %v5059 = vmul.f32 %v4985, %v2397
      %v5060 = vmul.f32 %v4990, %v2402
      %v5061 = vmul.f32 %v4993, %v2407
      %v5062 = vmul.f32 %v4998, %v2412
      %v5063 = vmul.f32 %v5001, %v2417
      %v5064 = vmul.f32 %v5006, %v2422
      %v5065 = vmul.f32 %v5009, %v2427
      %v5066 = vmul.f32 %v5014, %v2432
      %v5067 = vmul.f32 %v5017, %v2437
      %v5068 = vmul.f32 %v5022, %v2442
      %v5069 = vmul.f32 %v5025, %v2447
      %v5070 = vmul.f32 %v5030, %v2452
      %v5071 = vmul.f32 %v5033, %v2457
      %v5072 = vadd.f32 %v5036, %v5037
      %v5073 = vadd.f32 %v5072, %v5038
      %v5074 = vadd.f32 %v5073, %v5039
      %v5075 = vadd.f32 %v5074, %v5040
      %v5076 = vadd.f32 %v5075, %v5041
      %v5077 = vadd.f32 %v5076, %v5042
      %v5078 = vadd.f32 %v5077, %v5043
      %v5079 = vadd.f32 %v5078, %v5044
      %v5080 = vadd.f32 %v5079, %v5045
      %v5081 = vadd.f32 %v5080, %v5046
      %v5082 = vadd.f32 %v5081, %v5047
      %v5083 = vadd.f32 %v5082, %v5048
      %v5084 = vadd.f32 %v5083, %v5049
      %v5085 = vadd.f32 %v5084, %v5050
      %v5086 = vadd.f32 %v5085, %v5051
      %v5087 = vadd.f32 %v5086, %v5052
      %v5088 = vadd.f32 %v5087, %v5053
      %v5089 = vadd.f32 %v5088, %v5054
      %v5090 = vadd.f32 %v5089, %v5055
      %v5091 = vadd.f32 %v5090, %v5056
      %v5092 = vadd.f32 %v5091, %v5057
      %v5093 = vadd.f32 %v5092, %v5058
      %v5094 = vadd.f32 %v5093, %v5059
      %v5095 = vadd.f32 %v5094, %v5060
      %v5096 = vadd.f32 %v5095, %v5061
      %v5097 = vadd.f32 %v5096, %v5062
      %v5098 = vadd.f32 %v5097, %v5063
      %v5099 = vadd.f32 %v5098, %v5064
      %v5100 = vadd.f32 %v5099, %v5065
      %v5101 = vadd.f32 %v5100, %v5066
      %v5102 = vadd.f32 %v5101, %v5067
      %v5103 = vadd.f32 %v5102, %v5068
      %v5104 = vadd.f32 %v5103, %v5069
      %v5105 = vadd.f32 %v5104, %v5070
      %v5106 = vadd.f32 %v5105, %v5071
      %5107 = vadd.xlane.f32.xlu0 %v5106
      %v5108 = vpop.xlane.xlu0 %5107
      %v5109 = vrot.slane %v5108, 4
      %v5110 = vadd.f32 %v5108, %v5109
      %v5111 = vrot.slane %v5110, 2
      %v5112 = vadd.f32 %v5110, %v5111
      %v5113 = vrot.slane %v5112, 1
      %v5114 = vadd.f32 %v5112, %v5113
      %s5115 = vtos %v5114
      %s5116 = smul.f32 %s5115, 0.00012207031
      %v5117 = vmul.f32 %v5036, %v5036
      %v5118 = vmul.f32 %v5037, %v5037
      %v5119 = vmul.f32 %v5038, %v5038
      %v5120 = vmul.f32 %v5039, %v5039
      %v5121 = vmul.f32 %v5040, %v5040
      %v5122 = vmul.f32 %v5041, %v5041
      %v5123 = vmul.f32 %v5042, %v5042
      %v5124 = vmul.f32 %v5043, %v5043
      %v5125 = vmul.f32 %v5044, %v5044
      %v5126 = vmul.f32 %v5045, %v5045
      %v5127 = vmul.f32 %v5046, %v5046
      %v5128 = vmul.f32 %v5047, %v5047
      %v5129 = vmul.f32 %v5048, %v5048
      %v5130 = vmul.f32 %v5049, %v5049
      %v5131 = vmul.f32 %v5050, %v5050
      %v5132 = vmul.f32 %v5051, %v5051
      %v5133 = vmul.f32 %v5052, %v5052
      %v5134 = vmul.f32 %v5053, %v5053
      %v5135 = vmul.f32 %v5054, %v5054
      %v5136 = vmul.f32 %v5055, %v5055
      %v5137 = vmul.f32 %v5056, %v5056
      %v5138 = vmul.f32 %v5057, %v5057
      %v5139 = vmul.f32 %v5058, %v5058
      %v5140 = vmul.f32 %v5059, %v5059
      %v5141 = vmul.f32 %v5060, %v5060
      %v5142 = vmul.f32 %v5061, %v5061
      %v5143 = vmul.f32 %v5062, %v5062
      %v5144 = vmul.f32 %v5063, %v5063
      %v5145 = vmul.f32 %v5064, %v5064
      %v5146 = vmul.f32 %v5065, %v5065
      %v5147 = vmul.f32 %v5066, %v5066
      %v5148 = vmul.f32 %v5067, %v5067
      %v5149 = vmul.f32 %v5068, %v5068
      %v5150 = vmul.f32 %v5069, %v5069
      %v5151 = vmul.f32 %v5070, %v5070
      %v5152 = vmul.f32 %v5071, %v5071
      %v5153 = vadd.f32 %v5117, %v5118
      %v5154 = vadd.f32 %v5153, %v5119
      %v5155 = vadd.f32 %v5154, %v5120
      %v5156 = vadd.f32 %v5155, %v5121
      %v5157 = vadd.f32 %v5156, %v5122
      %v5158 = vadd.f32 %v5157, %v5123
      %v5159 = vadd.f32 %v5158, %v5124
      %v5160 = vadd.f32 %v5159, %v5125
      %v5161 = vadd.f32 %v5160, %v5126
      %v5162 = vadd.f32 %v5161, %v5127
      %v5163 = vadd.f32 %v5162, %v5128
      %v5164 = vadd.f32 %v5163, %v5129
      %v5165 = vadd.f32 %v5164, %v5130
      %v5166 = vadd.f32 %v5165, %v5131
      %v5167 = vadd.f32 %v5166, %v5132
      %v5168 = vadd.f32 %v5167, %v5133
      %v5169 = vadd.f32 %v5168, %v5134
      %v5170 = vadd.f32 %v5169, %v5135
      %v5171 = vadd.f32 %v5170, %v5136
      %v5172 = vadd.f32 %v5171, %v5137
      %v5173 = vadd.f32 %v5172, %v5138
      %v5174 = vadd.f32 %v5173, %v5139
      %v5175 = vadd.f32 %v5174, %v5140
      %v5176 = vadd.f32 %v5175, %v5141
      %v5177 = vadd.f32 %v5176, %v5142
      %v5178 = vadd.f32 %v5177, %v5143
      %v5179 = vadd.f32 %v5178, %v5144
      %v5180 = vadd.f32 %v5179, %v5145
      %v5181 = vadd.f32 %v5180, %v5146
      %v5182 = vadd.f32 %v5181, %v5147
      %v5183 = vadd.f32 %v5182, %v5148
      %v5184 = vadd.f32 %v5183, %v5149
      %v5185 = vadd.f32 %v5184, %v5150
      %v5186 = vadd.f32 %v5185, %v5151
      %v5187 = vadd.f32 %v5186, %v5152
      %5188 = vadd.xlane.f32.xlu0 %v5187
      %v5189 = vpop.xlane.xlu0 %5188
      %v5190 = vrot.slane %v5189, 4
      %v5191 = vadd.f32 %v5189, %v5190
      %v5192 = vrot.slane %v5191, 2
      %v5193 = vadd.f32 %v5191, %v5192
      %v5194 = vrot.slane %v5193, 1
      %v5195 = vadd.f32 %v5193, %v5194
      %s5196 = vtos %v5195
      %s5197 = smul.f32 %s5196, 0.00012207031
      %s5198 = smul.f32 %s5116, %s5116
      %s5199 = ssub.f32 %s5197, %s5198
      %v5200 = vstv %s5116
      %v5201 = vsub.f32 %v4894, %v5200
      %v5202 = vsub.f32 %v4897, %v5200
      %v5203 = vsub.f32 %v4902, %v5200
      %v5204 = vsub.f32 %v4905, %v5200
      %v5205 = vsub.f32 %v4910, %v5200
      %v5206 = vsub.f32 %v4913, %v5200
      %v5207 = vsub.f32 %v4918, %v5200
      %v5208 = vsub.f32 %v4921, %v5200
      %v5209 = vsub.f32 %v4926, %v5200
      %v5210 = vsub.f32 %v4929, %v5200
      %v5211 = vsub.f32 %v4934, %v5200
      %v5212 = vsub.f32 %v4937, %v5200
      %v5213 = vsub.f32 %v4942, %v5200
      %v5214 = vsub.f32 %v4945, %v5200
      %v5215 = vsub.f32 %v4950, %v5200
      %v5216 = vsub.f32 %v4953, %v5200
      %v5217 = vsub.f32 %v4958, %v5200
      %v5218 = vsub.f32 %v4961, %v5200
      %v5219 = vsub.f32 %v4966, %v5200
      %v5220 = vsub.f32 %v4969, %v5200
      %v5221 = vsub.f32 %v4974, %v5200
      %v5222 = vsub.f32 %v4977, %v5200
      %v5223 = vsub.f32 %v4982, %v5200
      %v5224 = vsub.f32 %v4985, %v5200
      %v5225 = vsub.f32 %v4990, %v5200
      %v5226 = vsub.f32 %v4993, %v5200
      %v5227 = vsub.f32 %v4998, %v5200
      %v5228 = vsub.f32 %v5001, %v5200
      %v5229 = vsub.f32 %v5006, %v5200
      %v5230 = vsub.f32 %v5009, %v5200
      %v5231 = vsub.f32 %v5014, %v5200
      %v5232 = vsub.f32 %v5017, %v5200
      %v5233 = vsub.f32 %v5022, %v5200
      %v5234 = vsub.f32 %v5025, %v5200
      %v5235 = vsub.f32 %v5030, %v5200
      %v5236 = vsub.f32 %v5033, %v5200
      %s5237 = sadd.f32 %s5199, 1e-05
      %v5238 = vstv %s5237
      %v5239 = vrsqrt.pop %v5238
      %s5240 = vtos %v5239
      %v5241 = vstv %s5240
      %v5242 = vmul.f32 %v5201, %v5241
      %v5243 = vmul.f32 %v5202, %v5241
      %v5244 = vmul.f32 %v5203, %v5241
      %v5245 = vmul.f32 %v5204, %v5241
      %v5246 = vmul.f32 %v5205, %v5241
      %v5247 = vmul.f32 %v5206, %v5241
      %v5248 = vmul.f32 %v5207, %v5241
      %v5249 = vmul.f32 %v5208, %v5241
      %v5250 = vmul.f32 %v5209, %v5241
      %v5251 = vmul.f32 %v5210, %v5241
      %v5252 = vmul.f32 %v5211, %v5241
      %v5253 = vmul.f32 %v5212, %v5241
      %v5254 = vmul.f32 %v5213, %v5241
      %v5255 = vmul.f32 %v5214, %v5241
      %v5256 = vmul.f32 %v5215, %v5241
      %v5257 = vmul.f32 %v5216, %v5241
      %v5258 = vmul.f32 %v5217, %v5241
      %v5259 = vmul.f32 %v5218, %v5241
      %v5260 = vmul.f32 %v5219, %v5241
      %v5261 = vmul.f32 %v5220, %v5241
      %v5262 = vmul.f32 %v5221, %v5241
      %v5263 = vmul.f32 %v5222, %v5241
      %v5264 = vmul.f32 %v5223, %v5241
      %v5265 = vmul.f32 %v5224, %v5241
      %v5266 = vmul.f32 %v5225, %v5241
      %v5267 = vmul.f32 %v5226, %v5241
      %v5268 = vmul.f32 %v5227, %v5241
      %v5269 = vmul.f32 %v5228, %v5241
      %v5270 = vmul.f32 %v5229, %v5241
      %v5271 = vmul.f32 %v5230, %v5241
      %v5272 = vmul.f32 %v5231, %v5241
      %v5273 = vmul.f32 %v5232, %v5241
      %v5274 = vmul.f32 %v5233, %v5241
      %v5275 = vmul.f32 %v5234, %v5241
      %v5276 = vmul.f32 %v5235, %v5241
      %v5277 = vmul.f32 %v5236, %v5241
      %v5278 = vmul.f32 %v5242, %v2705
      %v5279 = vmul.f32 %v5243, %v2705
      %v5280 = vmul.f32 %v5244, %v2705
      %v5281 = vmul.f32 %v5245, %v2705
      %v5282 = vmul.f32 %v5246, %v2705
      %v5283 = vmul.f32 %v5247, %v2705
      %v5284 = vmul.f32 %v5248, %v2705
      %v5285 = vmul.f32 %v5249, %v2705
      %v5286 = vmul.f32 %v5250, %v2705
      %v5287 = vmul.f32 %v5251, %v2705
      %v5288 = vmul.f32 %v5252, %v2705
      %v5289 = vmul.f32 %v5253, %v2705
      %v5290 = vmul.f32 %v5254, %v2705
      %v5291 = vmul.f32 %v5255, %v2705
      %v5292 = vmul.f32 %v5256, %v2705
      %v5293 = vmul.f32 %v5257, %v2705
      %v5294 = vmul.f32 %v5258, %v2705
      %v5295 = vmul.f32 %v5259, %v2705
      %v5296 = vmul.f32 %v5260, %v2705
      %v5297 = vmul.f32 %v5261, %v2705
      %v5298 = vmul.f32 %v5262, %v2705
      %v5299 = vmul.f32 %v5263, %v2705
      %v5300 = vmul.f32 %v5264, %v2705
      %v5301 = vmul.f32 %v5265, %v2705
      %v5302 = vmul.f32 %v5266, %v2705
      %v5303 = vmul.f32 %v5267, %v2705
      %v5304 = vmul.f32 %v5268, %v2705
      %v5305 = vmul.f32 %v5269, %v2705
      %v5306 = vmul.f32 %v5270, %v2705
      %v5307 = vmul.f32 %v5271, %v2705
      %v5308 = vmul.f32 %v5272, %v2705
      %v5309 = vmul.f32 %v5273, %v2705
      %v5310 = vmul.f32 %v5274, %v2705
      %v5311 = vmul.f32 %v5275, %v2705
      %v5312 = vmul.f32 %v5276, %v2705
      %v5313 = vmul.f32 %v5277, %v2705
      %v5314 = vadd.f32 %v5278, %v2747
      %v5315 = vadd.f32 %v5279, %v2747
      %v5316 = vadd.f32 %v5280, %v2747
      %v5317 = vadd.f32 %v5281, %v2747
      %v5318 = vadd.f32 %v5282, %v2747
      %v5319 = vadd.f32 %v5283, %v2747
      %v5320 = vadd.f32 %v5284, %v2747
      %v5321 = vadd.f32 %v5285, %v2747
      %v5322 = vadd.f32 %v5286, %v2747
      %v5323 = vadd.f32 %v5287, %v2747
      %v5324 = vadd.f32 %v5288, %v2747
      %v5325 = vadd.f32 %v5289, %v2747
      %v5326 = vadd.f32 %v5290, %v2747
      %v5327 = vadd.f32 %v5291, %v2747
      %v5328 = vadd.f32 %v5292, %v2747
      %v5329 = vadd.f32 %v5293, %v2747
      %v5330 = vadd.f32 %v5294, %v2747
      %v5331 = vadd.f32 %v5295, %v2747
      %v5332 = vadd.f32 %v5296, %v2747
      %v5333 = vadd.f32 %v5297, %v2747
      %v5334 = vadd.f32 %v5298, %v2747
      %v5335 = vadd.f32 %v5299, %v2747
      %v5336 = vadd.f32 %v5300, %v2747
      %v5337 = vadd.f32 %v5301, %v2747
      %v5338 = vadd.f32 %v5302, %v2747
      %v5339 = vadd.f32 %v5303, %v2747
      %v5340 = vadd.f32 %v5304, %v2747
      %v5341 = vadd.f32 %v5305, %v2747
      %v5342 = vadd.f32 %v5306, %v2747
      %v5343 = vadd.f32 %v5307, %v2747
      %v5344 = vadd.f32 %v5308, %v2747
      %v5345 = vadd.f32 %v5309, %v2747
      %v5346 = vadd.f32 %v5310, %v2747
      %v5347 = vadd.f32 %v5311, %v2747
      %v5348 = vadd.f32 %v5312, %v2747
      %v5349 = vadd.f32 %v5313, %v2747
      %v5350 = vmax.f32 %v5314, 0.0
      %v5351 = vmax.f32 %v5315, 0.0
      %v5352 = vmax.f32 %v5316, 0.0
      %v5353 = vmax.f32 %v5317, 0.0
      %v5354 = vmax.f32 %v5318, 0.0
      %v5355 = vmax.f32 %v5319, 0.0
      %v5356 = vmax.f32 %v5320, 0.0
      %v5357 = vmax.f32 %v5321, 0.0
      %v5358 = vmax.f32 %v5322, 0.0
      %v5359 = vmax.f32 %v5323, 0.0
      %v5360 = vmax.f32 %v5324, 0.0
      %v5361 = vmax.f32 %v5325, 0.0
      %v5362 = vmax.f32 %v5326, 0.0
      %v5363 = vmax.f32 %v5327, 0.0
      %v5364 = vmax.f32 %v5328, 0.0
      %v5365 = vmax.f32 %v5329, 0.0
      %v5366 = vmax.f32 %v5330, 0.0
      %v5367 = vmax.f32 %v5331, 0.0
      %v5368 = vmax.f32 %v5332, 0.0
      %v5369 = vmax.f32 %v5333, 0.0
      %v5370 = vmax.f32 %v5334, 0.0
      %v5371 = vmax.f32 %v5335, 0.0
      %v5372 = vmax.f32 %v5336, 0.0
      %v5373 = vmax.f32 %v5337, 0.0
      %v5374 = vmax.f32 %v5338, 0.0
      %v5375 = vmax.f32 %v5339, 0.0
      %v5376 = vmax.f32 %v5340, 0.0
      %v5377 = vmax.f32 %v5341, 0.0
      %v5378 = vmax.f32 %v5342, 0.0
      %v5379 = vmax.f32 %v5343, 0.0
      %v5380 = vmax.f32 %v5344, 0.0
      %v5381 = vmax.f32 %v5345, 0.0
      %v5382 = vmax.f32 %v5346, 0.0
      %v5383 = vmax.f32 %v5347, 0.0
      %v5384 = vmax.f32 %v5348, 0.0
      %v5385 = vmax.f32 %v5349, 0.0
      %v5386 = vadd.f32 %v5350, %v2927
      %v5387 = vadd.f32 %v5351, %v2930
      %v5388 = vadd.f32 %v5352, %v2935
      %v5389 = vadd.f32 %v5353, %v2938
      %v5390 = vadd.f32 %v5354, %v2943
      %v5391 = vadd.f32 %v5355, %v2946
      %v5392 = vadd.f32 %v5356, %v2951
      %v5393 = vadd.f32 %v5357, %v2954
      %v5394 = vadd.f32 %v5358, %v2959
      %v5395 = vadd.f32 %v5359, %v2962
      %v5396 = vadd.f32 %v5360, %v2967
      %v5397 = vadd.f32 %v5361, %v2970
      %v5398 = vadd.f32 %v5362, %v2975
      %v5399 = vadd.f32 %v5363, %v2978
      %v5400 = vadd.f32 %v5364, %v2983
      %v5401 = vadd.f32 %v5365, %v2986
      %v5402 = vadd.f32 %v5366, %v2991
      %v5403 = vadd.f32 %v5367, %v2994
      %v5404 = vadd.f32 %v5368, %v2999
      %v5405 = vadd.f32 %v5369, %v3002
      %v5406 = vadd.f32 %v5370, %v3007
      %v5407 = vadd.f32 %v5371, %v3010
      %v5408 = vadd.f32 %v5372, %v3015
      %v5409 = vadd.f32 %v5373, %v3018
      %v5410 = vadd.f32 %v5374, %v3023
      %v5411 = vadd.f32 %v5375, %v3026
      %v5412 = vadd.f32 %v5376, %v3031
      %v5413 = vadd.f32 %v5377, %v3034
      %v5414 = vadd.f32 %v5378, %v3039
      %v5415 = vadd.f32 %v5379, %v3042
      %v5416 = vadd.f32 %v5380, %v3047
      %v5417 = vadd.f32 %v5381, %v3050
      %v5418 = vadd.f32 %v5382, %v3055
      %v5419 = vadd.f32 %v5383, %v3058
      %v5420 = vadd.f32 %v5384, %v3063
      %v5421 = vadd.f32 %v5385, %v3066
      %5422 = vst [vmem:[%s387] sm:$0xff] %v5386
      %5423 = vst [vmem:[%s387 + $0x8] sm:$0xff] %v5387
      %5424 = vst [vmem:[%s387 + $0x10] sm:$0xff] %v5388
      %5425 = vst [vmem:[%s387 + $0x18] sm:$0xff] %v5389
      %5426 = vst [vmem:[%s387 + $0x20] sm:$0xff] %v5390
      %5427 = vst [vmem:[%s387 + $0x28] sm:$0xff] %v5391
      %5428 = vst [vmem:[%s387 + $0x30] sm:$0xff] %v5392
      %5429 = vst [vmem:[%s387 + $0x38] sm:$0xff] %v5393
      %5430 = vst [vmem:[%s387 + $0x40] sm:$0xff] %v5394
      %5431 = vst [vmem:[%s387 + $0x48] sm:$0xff] %v5395
      %5432 = vst [vmem:[%s387 + $0x50] sm:$0xff] %v5396
      %5433 = vst [vmem:[%s387 + $0x58] sm:$0xff] %v5397
      %5434 = vst [vmem:[%s387 + $0x60] sm:$0xff] %v5398
      %5435 = vst [vmem:[%s387 + $0x68] sm:$0xff] %v5399
      %5436 = vst [vmem:[%s387 + $0x70] sm:$0xff] %v5400
      %5437 = vst [vmem:[%s387 + $0x78] sm:$0xff] %v5401
      %5438 = vst [vmem:[%s387 + $0x80] sm:$0xff] %v5402
      %5439 = vst [vmem:[%s387 + $0x88] sm:$0xff] %v5403
      %5440 = vst [vmem:[%s387 + $0x90] sm:$0xff] %v5404
      %5441 = vst [vmem:[%s387 + $0x98] sm:$0xff] %v5405
      %5442 = vst [vmem:[%s387 + $0xa0] sm:$0xff] %v5406
      %5443 = vst [vmem:[%s387 + $0xa8] sm:$0xff] %v5407
      %5444 = vst [vmem:[%s387 + $0xb0] sm:$0xff] %v5408
      %5445 = vst [vmem:[%s387 + $0xb8] sm:$0xff] %v5409
      %5446 = vst [vmem:[%s387 + $0xc0] sm:$0xff] %v5410
      %5447 = vst [vmem:[%s387 + $0xc8] sm:$0xff] %v5411
      %5448 = vst [vmem:[%s387 + $0xd0] sm:$0xff] %v5412
      %5449 = vst [vmem:[%s387 + $0xd8] sm:$0xff] %v5413
      %5450 = vst [vmem:[%s387 + $0xe0] sm:$0xff] %v5414
      %5451 = vst [vmem:[%s387 + $0xe8] sm:$0xff] %v5415
      %5452 = vst [vmem:[%s387 + $0xf0] sm:$0xff] %v5416
      %5453 = vst [vmem:[%s387 + $0xf8] sm:$0xff] %v5417
      %5454 = vst [vmem:[%s387 + $0x100] sm:$0xff] %v5418
      %5455 = vst [vmem:[%s387 + $0x108] sm:$0xff] %v5419
      %5456 = vst [vmem:[%s387 + $0x110] sm:$0xff] %v5420
      %5457 = vst [vmem:[%s387 + $0x118] sm:$0xff] %v5421
      %p5458 = scmp.lt.s32.totalorder %s21, 1
      %s5459 = scalar_select %p5458, %s21, 1
      %s5460 = smul.addr %s5459, 36
      %s5461 = smul.addr %s5460, 8
      %s5462 = scalar_lea.vmem %s10, %s5461
      // Predicated region
      $region61: #{dilated_net_forward.2} parent=59 // pred_check
        %p5463 = pneg %p264
      $region62: #{dilated_net_forward.2} parent=59 // pred_check_branch
        %5465 = sbr.rel (%p5463) target = $region64
      $region63: #{dilated_net_forward.2} parent=59 // pred_region
        _
      $region64: #{dilated_net_forward.2} parent=59 // pred_fallthru
        _
    $region60: #{dilated_net_forward.2} parent=5 // pred_fallthru
      _
    %p5466 = scmp.le.s32.totalorder 2, %s16
    // Predicated region
    $region65: #{dilated_net_forward.2} parent=5 // pred_check
      %p5467 = pneg %p5466
    $region66: #{dilated_net_forward.2} parent=5 // pred_check_branch
      %5469 = sbr.rel (%p5467) target = $region68
    $region67: #{dilated_net_forward.2} parent=5 // pred_region
      %s5470 = ssub.s32 %s16, 2
      // Predicated region
      $region69: #{dilated_net_forward.2} parent=67 // pred_check
        %p5471 = pneg %p270
      $region70: #{dilated_net_forward.2} parent=67 // pred_check_branch
        %5473 = sbr.rel (%p5471) target = $region72
      $region71: #{dilated_net_forward.2} parent=67 // pred_region
        %p5474 = scmp.lt.s32.totalorder %s22, 1
        %s5475 = scalar_select %p5474, %s22, 1
        %s5476 = smul.addr %s5475, 36
        %s5477 = smul.addr %s5476, 8
        %s5478 = scalar_lea.vmem %s10, %s5477
      $region72: #{dilated_net_forward.2} parent=67 // pred_fallthru
        _
    $region68: #{dilated_net_forward.2} parent=5 // pred_fallthru
      _
  $region6: #{dilated_net_forward.2} parent=0 // loop_footer
    %s20 = sadd.s32 1, %s16
  $region7: #{dilated_net_forward.2} parent=0 // loop_footer_branch
    %15 = sbr.rel target = $region3
  $region8: #{dilated_net_forward.2} parent=0 // loop_exit
    _

</llo_original>
